<compile_context>
chip_gen: v7x
topology: tpu7x:2x2x1
jax: 0.10.0
libtpu: 0.0.40
codegen_flags: <defaults>
</compile_context>

<pallas_src>
import numpy as np
import jax
import jax.numpy as jnp
from jax.experimental import pallas as pl
from jax.experimental.pallas import tpu as pltpu


# NOTE: the -1e30 padded-logit bias trick is only valid while the fc2 /
# log_softmax path stays in float32 (exp underflows to exactly 0 there).
NEG = -1e30


# ----------------------------------------------------------------------------
# Fused Pallas kernel: whole Net0 forward for one batch tile.
# ----------------------------------------------------------------------------
def net0_fused_kernel(x_ref, a1_ref, b1_ref, a2_ref, b2_ref,
                      wf1_ref, bf1_ref, wf2_ref, bf2_ref, o_ref):
    TB = x_ref.shape[0]
    f32, bf16 = jnp.float32, jnp.bfloat16

    x = x_ref[...]                                   # (TB, 4, 7, 32) bf16
    a1 = [a1_ref[k] for k in range(5)]               # 5 x (32, 256) bf16
    a2 = [a2_ref[k] for k in range(5)]               # 5 x (128, 256) bf16

    # ---- conv1 + 2x2 max-pool + bias + relu ---------------------------------
    # Row windows: xs[u] holds image rows 4*r + u (r = 0..5).
    xs = [x[:, u % 4, u // 4:u // 4 + 6, :].reshape(TB * 6, 32) for u in range(8)]

    h1 = []                                          # pooled rows, split by parity p
    for p in range(2):
        accs = []
        for t in range(2):                           # pre-pool row parity
            v = 2 * p + t
            acc = jnp.dot(xs[v], a1[0], preferred_element_type=f32)
            for k in range(1, 5):                    # kernel-row taps
                acc = acc + jnp.dot(xs[v + k], a1[k], preferred_element_type=f32)
            accs.append(acc)                         # (TB*6, 256)
        m = jnp.maximum(accs[0], accs[1])            # max over row parity
        m = jnp.maximum(m[:, :128], m[:, 128:])      # max over column parity
        hp = jnp.maximum(m + b1_ref[...], 0.0)       # bias + relu
        h1.append(hp.astype(bf16).reshape(TB, 6, 128))   # lanes = j_pool*10 + c

    # ---- conv2 + 2x2 max-pool + bias + relu ---------------------------------
    # Row windows of the (parity-split) conv1 output.
    hs = [h1[u % 2][:, u // 2:u // 2 + 4, :].reshape(TB * 4, 128) for u in range(6)]

    acc2 = []
    for t in range(2):                               # pre-pool row parity
        acc = jnp.dot(hs[t], a2[0], preferred_element_type=f32)
        for k in range(1, 5):
            acc = acc + jnp.dot(hs[t + k], a2[k], preferred_element_type=f32)
        acc2.append(acc)                             # (TB*4, 256)
    m2 = jnp.maximum(acc2[0], acc2[1])
    m2 = jnp.maximum(m2[:, :128], m2[:, 128:])
    h2 = jnp.maximum(m2 + b2_ref[...], 0.0)          # (TB*4, 128), lanes = j*20 + d

    # ---- flatten + fc1 + relu  (dropout = identity, eval mode) --------------
    flat = h2.astype(bf16).reshape(TB, 512)          # lane = i_pool*128 + j*20 + d
    z1 = jnp.dot(flat, wf1_ref[...], preferred_element_type=f32)
    z1 = jnp.maximum(z1 + bf1_ref[...], 0.0)         # (TB, 64)

    # ---- fc2 + log_softmax (padded lanes carry bias -1e30, f32 only) --------
    z2 = jnp.dot(z1.astype(bf16), wf2_ref[...], preferred_element_type=f32)
    z2 = z2 + bf2_ref[...]                           # (TB, 128)
    mx = jnp.max(z2, axis=-1, keepdims=True)
    lse = jnp.log(jnp.sum(jnp.exp(z2 - mx), axis=-1, keepdims=True)) + mx
    o_ref[...] = z2 - lse                            # lane-dense (TB, 128) store


# ----------------------------------------------------------------------------
# One-time weight packing: banded matmul weights with pooling folded in.
# ----------------------------------------------------------------------------
def _prep_params(params):
    f32, bf16 = jnp.float32, jnp.bfloat16
    w1 = params["conv1_w"].astype(f32)               # (10, 1, 5, 5)
    b1 = params["conv1_b"].astype(f32)
    w2 = params["conv2_w"].astype(f32)               # (20, 10, 5, 5)
    b2 = params["conv2_b"].astype(f32)
    wf1 = params["fc1_w"].astype(f32)                # (50, 320)
    bf1 = params["fc1_b"].astype(f32)
    wf2 = params["fc2_w"].astype(f32)                # (10, 50)
    bf2 = params["fc2_b"].astype(f32)

    # conv1 banded weights A1[a]: (32, 256), cols = s*128 + j_pool*10 + c,
    # A1[a][w_in, ...] = w1[c, 0, a, w_in - (2*j_pool + s)] inside the band.
    ind1 = (np.arange(32)[:, None, None, None] ==
            (2 * np.arange(12)[None, None, :, None] +
             np.arange(2)[None, :, None, None] +
             np.arange(5)[None, None, None, :])).astype(np.float32)   # (32,2,12,5)
    a1 = jnp.einsum('wsjk,cak->awsjc', jnp.asarray(ind1), w1[:, 0, :, :])
    a1 = a1.reshape(5, 32, 2, 120)
    a1 = jnp.pad(a1, ((0, 0), (0, 0), (0, 0), (0, 8)))
    a1 = a1.reshape(5, 32, 256).astype(bf16)
    b1l = jnp.pad(jnp.tile(b1, 12), (0, 8)).reshape(1, 128).astype(f32)

    # conv2 banded weights A2[a]: (128, 256),
    # rows = j1*10 + c (pad 120->128), cols = s*128 + j_pool*20 + d (pad 80->128).
    ind2 = (np.arange(12)[:, None, None, None] ==
            (2 * np.arange(4)[None, None, :, None] +
             np.arange(2)[None, :, None, None] +
             np.arange(5)[None, None, None, :])).astype(np.float32)   # (12,2,4,5)
    a2 = jnp.einsum('jsqk,dcak->ajcsqd', jnp.asarray(ind2), w2)       # (5,12,10,2,4,20)
    a2 = a2.reshape(5, 120, 2, 80)
    a2 = jnp.pad(a2, ((0, 0), (0, 8), (0, 0), (0, 48)))
    a2 = a2.reshape(5, 128, 256).astype(bf16)
    b2l = jnp.pad(jnp.tile(b2, 4), (0, 48)).reshape(1, 128).astype(f32)

    # fc1: rows ordered as i_pool*128 + (j_pool*20 + d) to match the kernel's
    # flattened activation layout; PyTorch flatten order is (d, i, j).
    wf1r = wf1.reshape(50, 20, 4, 4).transpose(2, 3, 1, 0)            # (i, j, d, o)
    wf1r = wf1r.reshape(4, 80, 50)
    wf1r = jnp.pad(wf1r, ((0, 0), (0, 48), (0, 14)))                  # (4, 128, 64)
    wf1p = wf1r.reshape(512, 64).astype(bf16)
    bf1p = jnp.pad(bf1, (0, 14)).reshape(1, 64).astype(f32)

    # fc2: (64, 128); padded logit lanes masked via -1e30 bias (f32 path only).
    wf2p = jnp.pad(wf2.T, ((0, 14), (0, 118))).astype(bf16)
    bf2p = jnp.full((1, 128), NEG, f32).at[0, :10].set(bf2)

    return a1, b1l, a2, b2l, wf1p, bf1p, wf2p, bf2p


def _prep_input(x_nchw, Bp):
    """NCHW (B,1,28,28) -> (Bp, 4, 7, 32) bf16; [b,q,r,w] = X[b, 4r+q, w]."""
    B = x_nchw.shape[0]
    x = x_nchw.reshape(B, 28, 28).astype(jnp.float32)
    x = jnp.pad(x, ((0, Bp - B), (0, 0), (0, 4)))          # pad batch, width->32
    x = x.reshape(Bp, 7, 4, 32).transpose(0, 2, 1, 3)      # rows mod 4 classes
    return x.astype(jnp.bfloat16)


def _pick_tb(B):
    """Large tile for MXU M-dim / grid-step amortization; grid >= 2 when possible."""
    for tb in (128, 64, 32, 16):
        if B >= 2 * tb:
            return tb
    return 8


# ----------------------------------------------------------------------------
# Net0 forward: single fused pallas_call, gridded over batch tiles.
# ----------------------------------------------------------------------------
def net0_forward(x_nchw, params):
    B = x_nchw.shape[0]
    TB = _pick_tb(B)
    Bp = ((B + TB - 1) // TB) * TB                   # pad batch to a multiple of TB

    xk = _prep_input(x_nchw, Bp)
    a1, b1l, a2, b2l, wf1p, bf1p, wf2p, bf2p = _prep_params(params)

    def cspec(arr):                                  # constant (weight) operand
        nd = arr.ndim
        return pl.BlockSpec(arr.shape, lambda i, _nd=nd: (0,) * _nd)

    out = pl.pallas_call(
        net0_fused_kernel,
        out_shape=jax.ShapeDtypeStruct((Bp, 128), jnp.float32),
        grid=(Bp // TB,),
        in_specs=[
            pl.BlockSpec((TB, 4, 7, 32), lambda i: (i, 0, 0, 0)),
            cspec(a1), cspec(b1l), cspec(a2), cspec(b2l),
            cspec(wf1p), cspec(bf1p), cspec(wf2p), cspec(bf2p),
        ],
        out_specs=pl.BlockSpec((TB, 128), lambda i: (i, 0)),
        compiler_params=pltpu.CompilerParams(
            dimension_semantics=("parallel",),
            vmem_limit_bytes=48 * 1024 * 1024),
    )(xk, a1, b1l, a2, b2l, wf1p, bf1p, wf2p, bf2p)

    return out[:B, :10]                              # drop padded rows / logit lanes


# ----------------------------------------------------------------------------
# Independent reference (lax.conv path, same bf16-operand / f32-accumulate).
# ----------------------------------------------------------------------------
def net0_reference(x_nchw, params):
    f32, bf16 = jnp.float32, jnp.bfloat16

    def conv(x, w):
        return jax.lax.conv(x.astype(bf16), w.astype(bf16), (1, 1), "VALID",
                            preferred_element_type=f32)

    def pool(y):
        return jax.lax.reduce_window(y, -jnp.inf, jax.lax.max,
                                     (1, 1, 2, 2), (1, 1, 2, 2), "VALID")

    y = conv(x_nchw.astype(f32), params["conv1_w"])
    y = y + params["conv1_b"].reshape(1, -1, 1, 1)
    y = jnp.maximum(pool(y), 0.0)
    y = conv(y, params["conv2_w"]) + params["conv2_b"].reshape(1, -1, 1, 1)
    y = jnp.maximum(pool(y), 0.0)
    y = y.reshape(x_nchw.shape[0], 320)
    y = jnp.maximum(jnp.dot(y.astype(bf16), params["fc1_w"].T.astype(bf16),
                            preferred_element_type=f32) + params["fc1_b"], 0.0)
    y = jnp.dot(y.astype(bf16), params["fc2_w"].T.astype(bf16),
                preferred_element_type=f32) + params["fc2_b"]
    return jax.nn.log_softmax(y, axis=-1)


def init_params(key):
    ks = jax.random.split(key, 8)
    s = lambda k, shape, scale: (scale * jax.random.normal(k, shape)).astype(jnp.float32)
    return {
        "conv1_w": s(ks[0], (10, 1, 5, 5), 0.2),
        "conv1_b": s(ks[1], (10,), 0.1),
        "conv2_w": s(ks[2], (20, 10, 5, 5), 0.1),
        "conv2_b": s(ks[3], (20,), 0.1),
        "fc1_w":   s(ks[4], (50, 320), 0.05),
        "fc1_b":   s(ks[5], (50,), 0.05),
        "fc2_w":   s(ks[6], (10, 50), 0.1),
        "fc2_b":   s(ks[7], (10,), 0.1),
    }


if __name__ == "__main__":
    key = jax.random.PRNGKey(0)
    k_params, k_x = jax.random.split(key)
    params = init_params(k_params)

    fwd = jax.jit(net0_forward)

    # MNIST-shaped inputs (fc1=320 implies 28x28 single-channel).
    # B=2 exercises batch padding (2 -> 8); B=40 exercises grid > 1 + padding.
    for B in (2, 40):
        x = jax.random.normal(jax.random.fold_in(k_x, B), (B, 1, 28, 28),
                              dtype=jnp.float32)
        out = jax.block_until_ready(fwd(x, params))
        assert out.shape == (B, 10)

        # log_softmax rows must exponentiate-sum to 1.
        row_sums = jnp.exp(out).sum(axis=-1)
        assert bool(jnp.all(jnp.abs(row_sums - 1.0) < 1e-3))

        # Sanity check against an independent lax.conv reference (tolerance
        # covers bf16 double-rounding differences between the two lowerings).
        ref = net0_reference(x, params)
        err = float(jnp.max(jnp.abs(out - ref)))
        assert err < 0.1, f"mismatch vs reference: {err}"

    print("KERNEL_OK")
</pallas_src>

<mosaic_0001>
module attributes {stable_mosaic.version = 11 : i64} {
  func.func @net0_fused_kernel(%arg0: i32, %arg1: memref<8x4x7x32xbf16, #tpu.memory_space<vmem>>, %arg2: memref<5x32x256xbf16, #tpu.memory_space<vmem>>, %arg3: memref<1x128xf32, #tpu.memory_space<vmem>>, %arg4: memref<5x128x256xbf16, #tpu.memory_space<vmem>>, %arg5: memref<1x128xf32, #tpu.memory_space<vmem>>, %arg6: memref<512x64xbf16, #tpu.memory_space<vmem>>, %arg7: memref<1x64xf32, #tpu.memory_space<vmem>>, %arg8: memref<64x128xbf16, #tpu.memory_space<vmem>>, %arg9: memref<1x128xf32, #tpu.memory_space<vmem>>, %arg10: memref<8x128xf32, #tpu.memory_space<vmem>>) attributes {dimension_semantics = [#tpu.dimension_semantics<parallel>], iteration_bounds = array<i64: 1>, scalar_prefetch = 0 : i64, scratch_operands = 0 : i64, tpu.core_type = #tpu.core_type<tc>, window_params = [{transform_indices = @transform_0, window_bounds = array<i64: 8, 4, 7, 32>}, {pipeline_mode = #tpu.pipeline_mode<synchronous>, transform_indices = @transform_1, window_bounds = array<i64: 5, 32, 256>}, {pipeline_mode = #tpu.pipeline_mode<synchronous>, transform_indices = @transform_2, window_bounds = array<i64: 1, 128>}, {pipeline_mode = #tpu.pipeline_mode<synchronous>, transform_indices = @transform_3, window_bounds = array<i64: 5, 128, 256>}, {pipeline_mode = #tpu.pipeline_mode<synchronous>, transform_indices = @transform_4, window_bounds = array<i64: 1, 128>}, {pipeline_mode = #tpu.pipeline_mode<synchronous>, transform_indices = @transform_5, window_bounds = array<i64: 512, 64>}, {pipeline_mode = #tpu.pipeline_mode<synchronous>, transform_indices = @transform_6, window_bounds = array<i64: 1, 64>}, {pipeline_mode = #tpu.pipeline_mode<synchronous>, transform_indices = @transform_7, window_bounds = array<i64: 64, 128>}, {pipeline_mode = #tpu.pipeline_mode<synchronous>, transform_indices = @transform_8, window_bounds = array<i64: 1, 128>}, {transform_indices = @transform_9, window_bounds = array<i64: 8, 128>}]} {
    %c0 = arith.constant 0 : index
    %c0_0 = arith.constant 0 : index
    %c0_1 = arith.constant 0 : index
    %c0_2 = arith.constant 0 : index
    %0 = vector.load %arg1[%c0, %c0_0, %c0_1, %c0_2] : memref<8x4x7x32xbf16, #tpu.memory_space<vmem>>, vector<8x4x7x32xbf16>
    %c0_3 = arith.constant 0 : index
    %c0_4 = arith.constant 0 : index
    %c0_5 = arith.constant 0 : index
    %1 = vector.load %arg2[%c0_3, %c0_4, %c0_5] : memref<5x32x256xbf16, #tpu.memory_space<vmem>>, vector<1x32x256xbf16>
    %2 = vector.shape_cast %1 : vector<1x32x256xbf16> to vector<32x256xbf16>
    %c1 = arith.constant 1 : index
    %c0_6 = arith.constant 0 : index
    %c0_7 = arith.constant 0 : index
    %3 = vector.load %arg2[%c1, %c0_6, %c0_7] : memref<5x32x256xbf16, #tpu.memory_space<vmem>>, vector<1x32x256xbf16>
    %4 = vector.shape_cast %3 : vector<1x32x256xbf16> to vector<32x256xbf16>
    %c2 = arith.constant 2 : index
    %c0_8 = arith.constant 0 : index
    %c0_9 = arith.constant 0 : index
    %5 = vector.load %arg2[%c2, %c0_8, %c0_9] : memref<5x32x256xbf16, #tpu.memory_space<vmem>>, vector<1x32x256xbf16>
    %6 = vector.shape_cast %5 : vector<1x32x256xbf16> to vector<32x256xbf16>
    %c3 = arith.constant 3 : index
    %c0_10 = arith.constant 0 : index
    %c0_11 = arith.constant 0 : index
    %7 = vector.load %arg2[%c3, %c0_10, %c0_11] : memref<5x32x256xbf16, #tpu.memory_space<vmem>>, vector<1x32x256xbf16>
    %8 = vector.shape_cast %7 : vector<1x32x256xbf16> to vector<32x256xbf16>
    %c4 = arith.constant 4 : index
    %c0_12 = arith.constant 0 : index
    %c0_13 = arith.constant 0 : index
    %9 = vector.load %arg2[%c4, %c0_12, %c0_13] : memref<5x32x256xbf16, #tpu.memory_space<vmem>>, vector<1x32x256xbf16>
    %10 = vector.shape_cast %9 : vector<1x32x256xbf16> to vector<32x256xbf16>
    %c0_14 = arith.constant 0 : index
    %c0_15 = arith.constant 0 : index
    %c0_16 = arith.constant 0 : index
    %11 = vector.load %arg4[%c0_14, %c0_15, %c0_16] : memref<5x128x256xbf16, #tpu.memory_space<vmem>>, vector<1x128x256xbf16>
    %12 = vector.shape_cast %11 : vector<1x128x256xbf16> to vector<128x256xbf16>
    %c1_17 = arith.constant 1 : index
    %c0_18 = arith.constant 0 : index
    %c0_19 = arith.constant 0 : index
    %13 = vector.load %arg4[%c1_17, %c0_18, %c0_19] : memref<5x128x256xbf16, #tpu.memory_space<vmem>>, vector<1x128x256xbf16>
    %14 = vector.shape_cast %13 : vector<1x128x256xbf16> to vector<128x256xbf16>
    %c2_20 = arith.constant 2 : index
    %c0_21 = arith.constant 0 : index
    %c0_22 = arith.constant 0 : index
    %15 = vector.load %arg4[%c2_20, %c0_21, %c0_22] : memref<5x128x256xbf16, #tpu.memory_space<vmem>>, vector<1x128x256xbf16>
    %16 = vector.shape_cast %15 : vector<1x128x256xbf16> to vector<128x256xbf16>
    %c3_23 = arith.constant 3 : index
    %c0_24 = arith.constant 0 : index
    %c0_25 = arith.constant 0 : index
    %17 = vector.load %arg4[%c3_23, %c0_24, %c0_25] : memref<5x128x256xbf16, #tpu.memory_space<vmem>>, vector<1x128x256xbf16>
    %18 = vector.shape_cast %17 : vector<1x128x256xbf16> to vector<128x256xbf16>
    %c4_26 = arith.constant 4 : index
    %c0_27 = arith.constant 0 : index
    %c0_28 = arith.constant 0 : index
    %19 = vector.load %arg4[%c4_26, %c0_27, %c0_28] : memref<5x128x256xbf16, #tpu.memory_space<vmem>>, vector<1x128x256xbf16>
    %20 = vector.shape_cast %19 : vector<1x128x256xbf16> to vector<128x256xbf16>
    %21 = vector.extract_strided_slice %0 {offsets = [0, 0, 0, 0], sizes = [8, 1, 6, 32], strides = [1, 1, 1, 1]} : vector<8x4x7x32xbf16> to vector<8x1x6x32xbf16>
    %22 = vector.shape_cast %21 : vector<8x1x6x32xbf16> to vector<8x6x32xbf16>
    %23 = vector.shape_cast %22 : vector<8x6x32xbf16> to vector<48x32xbf16>
    %24 = vector.extract_strided_slice %0 {offsets = [0, 1, 0, 0], sizes = [8, 1, 6, 32], strides = [1, 1, 1, 1]} : vector<8x4x7x32xbf16> to vector<8x1x6x32xbf16>
    %25 = vector.shape_cast %24 : vector<8x1x6x32xbf16> to vector<8x6x32xbf16>
    %26 = vector.shape_cast %25 : vector<8x6x32xbf16> to vector<48x32xbf16>
    %27 = vector.extract_strided_slice %0 {offsets = [0, 2, 0, 0], sizes = [8, 1, 6, 32], strides = [1, 1, 1, 1]} : vector<8x4x7x32xbf16> to vector<8x1x6x32xbf16>
    %28 = vector.shape_cast %27 : vector<8x1x6x32xbf16> to vector<8x6x32xbf16>
    %29 = vector.shape_cast %28 : vector<8x6x32xbf16> to vector<48x32xbf16>
    %30 = vector.extract_strided_slice %0 {offsets = [0, 3, 0, 0], sizes = [8, 1, 6, 32], strides = [1, 1, 1, 1]} : vector<8x4x7x32xbf16> to vector<8x1x6x32xbf16>
    %31 = vector.shape_cast %30 : vector<8x1x6x32xbf16> to vector<8x6x32xbf16>
    %32 = vector.shape_cast %31 : vector<8x6x32xbf16> to vector<48x32xbf16>
    %33 = vector.extract_strided_slice %0 {offsets = [0, 0, 1, 0], sizes = [8, 1, 6, 32], strides = [1, 1, 1, 1]} : vector<8x4x7x32xbf16> to vector<8x1x6x32xbf16>
    %34 = vector.shape_cast %33 : vector<8x1x6x32xbf16> to vector<8x6x32xbf16>
    %35 = vector.shape_cast %34 : vector<8x6x32xbf16> to vector<48x32xbf16>
    %36 = vector.extract_strided_slice %0 {offsets = [0, 1, 1, 0], sizes = [8, 1, 6, 32], strides = [1, 1, 1, 1]} : vector<8x4x7x32xbf16> to vector<8x1x6x32xbf16>
    %37 = vector.shape_cast %36 : vector<8x1x6x32xbf16> to vector<8x6x32xbf16>
    %38 = vector.shape_cast %37 : vector<8x6x32xbf16> to vector<48x32xbf16>
    %39 = vector.extract_strided_slice %0 {offsets = [0, 2, 1, 0], sizes = [8, 1, 6, 32], strides = [1, 1, 1, 1]} : vector<8x4x7x32xbf16> to vector<8x1x6x32xbf16>
    %40 = vector.shape_cast %39 : vector<8x1x6x32xbf16> to vector<8x6x32xbf16>
    %41 = vector.shape_cast %40 : vector<8x6x32xbf16> to vector<48x32xbf16>
    %42 = vector.extract_strided_slice %0 {offsets = [0, 3, 1, 0], sizes = [8, 1, 6, 32], strides = [1, 1, 1, 1]} : vector<8x4x7x32xbf16> to vector<8x1x6x32xbf16>
    %43 = vector.shape_cast %42 : vector<8x1x6x32xbf16> to vector<8x6x32xbf16>
    %44 = vector.shape_cast %43 : vector<8x6x32xbf16> to vector<48x32xbf16>
    %cst = arith.constant dense<0.000000e+00> : vector<48x256xf32>
    %45 = tpu.matmul %23, %2, %cst {dimension_numbers = #tpu.dot_dimension_numbers<[1], [0], [0], [1], [0, 0, 1, 1], [], []>} : vector<48x32xbf16>, vector<32x256xbf16>, vector<48x256xf32> -> vector<48x256xf32>
    %cst_29 = arith.constant dense<0.000000e+00> : vector<48x256xf32>
    %46 = tpu.matmul %26, %4, %cst_29 {dimension_numbers = #tpu.dot_dimension_numbers<[1], [0], [0], [1], [0, 0, 1, 1], [], []>} : vector<48x32xbf16>, vector<32x256xbf16>, vector<48x256xf32> -> vector<48x256xf32>
    %47 = arith.addf %45, %46 : vector<48x256xf32>
    %cst_30 = arith.constant dense<0.000000e+00> : vector<48x256xf32>
    %48 = tpu.matmul %29, %6, %cst_30 {dimension_numbers = #tpu.dot_dimension_numbers<[1], [0], [0], [1], [0, 0, 1, 1], [], []>} : vector<48x32xbf16>, vector<32x256xbf16>, vector<48x256xf32> -> vector<48x256xf32>
    %49 = arith.addf %47, %48 : vector<48x256xf32>
    %cst_31 = arith.constant dense<0.000000e+00> : vector<48x256xf32>
    %50 = tpu.matmul %32, %8, %cst_31 {dimension_numbers = #tpu.dot_dimension_numbers<[1], [0], [0], [1], [0, 0, 1, 1], [], []>} : vector<48x32xbf16>, vector<32x256xbf16>, vector<48x256xf32> -> vector<48x256xf32>
    %51 = arith.addf %49, %50 : vector<48x256xf32>
    %cst_32 = arith.constant dense<0.000000e+00> : vector<48x256xf32>
    %52 = tpu.matmul %35, %10, %cst_32 {dimension_numbers = #tpu.dot_dimension_numbers<[1], [0], [0], [1], [0, 0, 1, 1], [], []>} : vector<48x32xbf16>, vector<32x256xbf16>, vector<48x256xf32> -> vector<48x256xf32>
    %53 = arith.addf %51, %52 : vector<48x256xf32>
    %cst_33 = arith.constant dense<0.000000e+00> : vector<48x256xf32>
    %54 = tpu.matmul %26, %2, %cst_33 {dimension_numbers = #tpu.dot_dimension_numbers<[1], [0], [0], [1], [0, 0, 1, 1], [], []>} : vector<48x32xbf16>, vector<32x256xbf16>, vector<48x256xf32> -> vector<48x256xf32>
    %cst_34 = arith.constant dense<0.000000e+00> : vector<48x256xf32>
    %55 = tpu.matmul %29, %4, %cst_34 {dimension_numbers = #tpu.dot_dimension_numbers<[1], [0], [0], [1], [0, 0, 1, 1], [], []>} : vector<48x32xbf16>, vector<32x256xbf16>, vector<48x256xf32> -> vector<48x256xf32>
    %56 = arith.addf %54, %55 : vector<48x256xf32>
    %cst_35 = arith.constant dense<0.000000e+00> : vector<48x256xf32>
    %57 = tpu.matmul %32, %6, %cst_35 {dimension_numbers = #tpu.dot_dimension_numbers<[1], [0], [0], [1], [0, 0, 1, 1], [], []>} : vector<48x32xbf16>, vector<32x256xbf16>, vector<48x256xf32> -> vector<48x256xf32>
    %58 = arith.addf %56, %57 : vector<48x256xf32>
    %cst_36 = arith.constant dense<0.000000e+00> : vector<48x256xf32>
    %59 = tpu.matmul %35, %8, %cst_36 {dimension_numbers = #tpu.dot_dimension_numbers<[1], [0], [0], [1], [0, 0, 1, 1], [], []>} : vector<48x32xbf16>, vector<32x256xbf16>, vector<48x256xf32> -> vector<48x256xf32>
    %60 = arith.addf %58, %59 : vector<48x256xf32>
    %cst_37 = arith.constant dense<0.000000e+00> : vector<48x256xf32>
    %61 = tpu.matmul %38, %10, %cst_37 {dimension_numbers = #tpu.dot_dimension_numbers<[1], [0], [0], [1], [0, 0, 1, 1], [], []>} : vector<48x32xbf16>, vector<32x256xbf16>, vector<48x256xf32> -> vector<48x256xf32>
    %62 = arith.addf %60, %61 : vector<48x256xf32>
    %63 = arith.maximumf %53, %62 : vector<48x256xf32>
    %64 = vector.extract_strided_slice %63 {offsets = [0, 0], sizes = [48, 128], strides = [1, 1]} : vector<48x256xf32> to vector<48x128xf32>
    %65 = vector.extract_strided_slice %63 {offsets = [0, 128], sizes = [48, 128], strides = [1, 1]} : vector<48x256xf32> to vector<48x128xf32>
    %66 = arith.maximumf %64, %65 : vector<48x128xf32>
    %c0_38 = arith.constant 0 : index
    %c0_39 = arith.constant 0 : index
    %67 = vector.load %arg3[%c0_38, %c0_39] : memref<1x128xf32, #tpu.memory_space<vmem>>, vector<1x128xf32>
    %68 = vector.broadcast %67 : vector<1x128xf32> to vector<48x128xf32>
    %69 = arith.addf %66, %68 : vector<48x128xf32>
    %cst_40 = arith.constant 0.000000e+00 : f32
    %70 = vector.broadcast %cst_40 : f32 to vector<48x128xf32>
    %71 = arith.maximumf %69, %70 : vector<48x128xf32>
    %72 = arith.truncf %71 : vector<48x128xf32> to vector<48x128xbf16>
    %73 = vector.shape_cast %72 : vector<48x128xbf16> to vector<8x6x128xbf16>
    %cst_41 = arith.constant dense<0.000000e+00> : vector<48x256xf32>
    %74 = tpu.matmul %29, %2, %cst_41 {dimension_numbers = #tpu.dot_dimension_numbers<[1], [0], [0], [1], [0, 0, 1, 1], [], []>} : vector<48x32xbf16>, vector<32x256xbf16>, vector<48x256xf32> -> vector<48x256xf32>
    %cst_42 = arith.constant dense<0.000000e+00> : vector<48x256xf32>
    %75 = tpu.matmul %32, %4, %cst_42 {dimension_numbers = #tpu.dot_dimension_numbers<[1], [0], [0], [1], [0, 0, 1, 1], [], []>} : vector<48x32xbf16>, vector<32x256xbf16>, vector<48x256xf32> -> vector<48x256xf32>
    %76 = arith.addf %74, %75 : vector<48x256xf32>
    %cst_43 = arith.constant dense<0.000000e+00> : vector<48x256xf32>
    %77 = tpu.matmul %35, %6, %cst_43 {dimension_numbers = #tpu.dot_dimension_numbers<[1], [0], [0], [1], [0, 0, 1, 1], [], []>} : vector<48x32xbf16>, vector<32x256xbf16>, vector<48x256xf32> -> vector<48x256xf32>
    %78 = arith.addf %76, %77 : vector<48x256xf32>
    %cst_44 = arith.constant dense<0.000000e+00> : vector<48x256xf32>
    %79 = tpu.matmul %38, %8, %cst_44 {dimension_numbers = #tpu.dot_dimension_numbers<[1], [0], [0], [1], [0, 0, 1, 1], [], []>} : vector<48x32xbf16>, vector<32x256xbf16>, vector<48x256xf32> -> vector<48x256xf32>
    %80 = arith.addf %78, %79 : vector<48x256xf32>
    %cst_45 = arith.constant dense<0.000000e+00> : vector<48x256xf32>
    %81 = tpu.matmul %41, %10, %cst_45 {dimension_numbers = #tpu.dot_dimension_numbers<[1], [0], [0], [1], [0, 0, 1, 1], [], []>} : vector<48x32xbf16>, vector<32x256xbf16>, vector<48x256xf32> -> vector<48x256xf32>
    %82 = arith.addf %80, %81 : vector<48x256xf32>
    %cst_46 = arith.constant dense<0.000000e+00> : vector<48x256xf32>
    %83 = tpu.matmul %32, %2, %cst_46 {dimension_numbers = #tpu.dot_dimension_numbers<[1], [0], [0], [1], [0, 0, 1, 1], [], []>} : vector<48x32xbf16>, vector<32x256xbf16>, vector<48x256xf32> -> vector<48x256xf32>
    %cst_47 = arith.constant dense<0.000000e+00> : vector<48x256xf32>
    %84 = tpu.matmul %35, %4, %cst_47 {dimension_numbers = #tpu.dot_dimension_numbers<[1], [0], [0], [1], [0, 0, 1, 1], [], []>} : vector<48x32xbf16>, vector<32x256xbf16>, vector<48x256xf32> -> vector<48x256xf32>
    %85 = arith.addf %83, %84 : vector<48x256xf32>
    %cst_48 = arith.constant dense<0.000000e+00> : vector<48x256xf32>
    %86 = tpu.matmul %38, %6, %cst_48 {dimension_numbers = #tpu.dot_dimension_numbers<[1], [0], [0], [1], [0, 0, 1, 1], [], []>} : vector<48x32xbf16>, vector<32x256xbf16>, vector<48x256xf32> -> vector<48x256xf32>
    %87 = arith.addf %85, %86 : vector<48x256xf32>
    %cst_49 = arith.constant dense<0.000000e+00> : vector<48x256xf32>
    %88 = tpu.matmul %41, %8, %cst_49 {dimension_numbers = #tpu.dot_dimension_numbers<[1], [0], [0], [1], [0, 0, 1, 1], [], []>} : vector<48x32xbf16>, vector<32x256xbf16>, vector<48x256xf32> -> vector<48x256xf32>
    %89 = arith.addf %87, %88 : vector<48x256xf32>
    %cst_50 = arith.constant dense<0.000000e+00> : vector<48x256xf32>
    %90 = tpu.matmul %44, %10, %cst_50 {dimension_numbers = #tpu.dot_dimension_numbers<[1], [0], [0], [1], [0, 0, 1, 1], [], []>} : vector<48x32xbf16>, vector<32x256xbf16>, vector<48x256xf32> -> vector<48x256xf32>
    %91 = arith.addf %89, %90 : vector<48x256xf32>
    %92 = arith.maximumf %82, %91 : vector<48x256xf32>
    %93 = vector.extract_strided_slice %92 {offsets = [0, 0], sizes = [48, 128], strides = [1, 1]} : vector<48x256xf32> to vector<48x128xf32>
    %94 = vector.extract_strided_slice %92 {offsets = [0, 128], sizes = [48, 128], strides = [1, 1]} : vector<48x256xf32> to vector<48x128xf32>
    %95 = arith.maximumf %93, %94 : vector<48x128xf32>
    %c0_51 = arith.constant 0 : index
    %c0_52 = arith.constant 0 : index
    %96 = vector.load %arg3[%c0_51, %c0_52] : memref<1x128xf32, #tpu.memory_space<vmem>>, vector<1x128xf32>
    %97 = vector.broadcast %96 : vector<1x128xf32> to vector<48x128xf32>
    %98 = arith.addf %95, %97 : vector<48x128xf32>
    %cst_53 = arith.constant 0.000000e+00 : f32
    %99 = vector.broadcast %cst_53 : f32 to vector<48x128xf32>
    %100 = arith.maximumf %98, %99 : vector<48x128xf32>
    %101 = arith.truncf %100 : vector<48x128xf32> to vector<48x128xbf16>
    %102 = vector.shape_cast %101 : vector<48x128xbf16> to vector<8x6x128xbf16>
    %103 = vector.extract_strided_slice %73 {offsets = [0, 0, 0], sizes = [8, 4, 128], strides = [1, 1, 1]} : vector<8x6x128xbf16> to vector<8x4x128xbf16>
    %104 = vector.shape_cast %103 : vector<8x4x128xbf16> to vector<32x128xbf16>
    %105 = vector.extract_strided_slice %102 {offsets = [0, 0, 0], sizes = [8, 4, 128], strides = [1, 1, 1]} : vector<8x6x128xbf16> to vector<8x4x128xbf16>
    %106 = vector.shape_cast %105 : vector<8x4x128xbf16> to vector<32x128xbf16>
    %107 = vector.extract_strided_slice %73 {offsets = [0, 1, 0], sizes = [8, 4, 128], strides = [1, 1, 1]} : vector<8x6x128xbf16> to vector<8x4x128xbf16>
    %108 = vector.shape_cast %107 : vector<8x4x128xbf16> to vector<32x128xbf16>
    %109 = vector.extract_strided_slice %102 {offsets = [0, 1, 0], sizes = [8, 4, 128], strides = [1, 1, 1]} : vector<8x6x128xbf16> to vector<8x4x128xbf16>
    %110 = vector.shape_cast %109 : vector<8x4x128xbf16> to vector<32x128xbf16>
    %111 = vector.extract_strided_slice %73 {offsets = [0, 2, 0], sizes = [8, 4, 128], strides = [1, 1, 1]} : vector<8x6x128xbf16> to vector<8x4x128xbf16>
    %112 = vector.shape_cast %111 : vector<8x4x128xbf16> to vector<32x128xbf16>
    %113 = vector.extract_strided_slice %102 {offsets = [0, 2, 0], sizes = [8, 4, 128], strides = [1, 1, 1]} : vector<8x6x128xbf16> to vector<8x4x128xbf16>
    %114 = vector.shape_cast %113 : vector<8x4x128xbf16> to vector<32x128xbf16>
    %cst_54 = arith.constant dense<0.000000e+00> : vector<32x256xf32>
    %115 = tpu.matmul %104, %12, %cst_54 {dimension_numbers = #tpu.dot_dimension_numbers<[1], [0], [0], [1], [0, 0, 1, 1], [], []>} : vector<32x128xbf16>, vector<128x256xbf16>, vector<32x256xf32> -> vector<32x256xf32>
    %cst_55 = arith.constant dense<0.000000e+00> : vector<32x256xf32>
    %116 = tpu.matmul %106, %14, %cst_55 {dimension_numbers = #tpu.dot_dimension_numbers<[1], [0], [0], [1], [0, 0, 1, 1], [], []>} : vector<32x128xbf16>, vector<128x256xbf16>, vector<32x256xf32> -> vector<32x256xf32>
    %117 = arith.addf %115, %116 : vector<32x256xf32>
    %cst_56 = arith.constant dense<0.000000e+00> : vector<32x256xf32>
    %118 = tpu.matmul %108, %16, %cst_56 {dimension_numbers = #tpu.dot_dimension_numbers<[1], [0], [0], [1], [0, 0, 1, 1], [], []>} : vector<32x128xbf16>, vector<128x256xbf16>, vector<32x256xf32> -> vector<32x256xf32>
    %119 = arith.addf %117, %118 : vector<32x256xf32>
    %cst_57 = arith.constant dense<0.000000e+00> : vector<32x256xf32>
    %120 = tpu.matmul %110, %18, %cst_57 {dimension_numbers = #tpu.dot_dimension_numbers<[1], [0], [0], [1], [0, 0, 1, 1], [], []>} : vector<32x128xbf16>, vector<128x256xbf16>, vector<32x256xf32> -> vector<32x256xf32>
    %121 = arith.addf %119, %120 : vector<32x256xf32>
    %cst_58 = arith.constant dense<0.000000e+00> : vector<32x256xf32>
    %122 = tpu.matmul %112, %20, %cst_58 {dimension_numbers = #tpu.dot_dimension_numbers<[1], [0], [0], [1], [0, 0, 1, 1], [], []>} : vector<32x128xbf16>, vector<128x256xbf16>, vector<32x256xf32> -> vector<32x256xf32>
    %123 = arith.addf %121, %122 : vector<32x256xf32>
    %cst_59 = arith.constant dense<0.000000e+00> : vector<32x256xf32>
    %124 = tpu.matmul %106, %12, %cst_59 {dimension_numbers = #tpu.dot_dimension_numbers<[1], [0], [0], [1], [0, 0, 1, 1], [], []>} : vector<32x128xbf16>, vector<128x256xbf16>, vector<32x256xf32> -> vector<32x256xf32>
    %cst_60 = arith.constant dense<0.000000e+00> : vector<32x256xf32>
    %125 = tpu.matmul %108, %14, %cst_60 {dimension_numbers = #tpu.dot_dimension_numbers<[1], [0], [0], [1], [0, 0, 1, 1], [], []>} : vector<32x128xbf16>, vector<128x256xbf16>, vector<32x256xf32> -> vector<32x256xf32>
    %126 = arith.addf %124, %125 : vector<32x256xf32>
    %cst_61 = arith.constant dense<0.000000e+00> : vector<32x256xf32>
    %127 = tpu.matmul %110, %16, %cst_61 {dimension_numbers = #tpu.dot_dimension_numbers<[1], [0], [0], [1], [0, 0, 1, 1], [], []>} : vector<32x128xbf16>, vector<128x256xbf16>, vector<32x256xf32> -> vector<32x256xf32>
    %128 = arith.addf %126, %127 : vector<32x256xf32>
    %cst_62 = arith.constant dense<0.000000e+00> : vector<32x256xf32>
    %129 = tpu.matmul %112, %18, %cst_62 {dimension_numbers = #tpu.dot_dimension_numbers<[1], [0], [0], [1], [0, 0, 1, 1], [], []>} : vector<32x128xbf16>, vector<128x256xbf16>, vector<32x256xf32> -> vector<32x256xf32>
    %130 = arith.addf %128, %129 : vector<32x256xf32>
    %cst_63 = arith.constant dense<0.000000e+00> : vector<32x256xf32>
    %131 = tpu.matmul %114, %20, %cst_63 {dimension_numbers = #tpu.dot_dimension_numbers<[1], [0], [0], [1], [0, 0, 1, 1], [], []>} : vector<32x128xbf16>, vector<128x256xbf16>, vector<32x256xf32> -> vector<32x256xf32>
    %132 = arith.addf %130, %131 : vector<32x256xf32>
    %133 = arith.maximumf %123, %132 : vector<32x256xf32>
    %134 = vector.extract_strided_slice %133 {offsets = [0, 0], sizes = [32, 128], strides = [1, 1]} : vector<32x256xf32> to vector<32x128xf32>
    %135 = vector.extract_strided_slice %133 {offsets = [0, 128], sizes = [32, 128], strides = [1, 1]} : vector<32x256xf32> to vector<32x128xf32>
    %136 = arith.maximumf %134, %135 : vector<32x128xf32>
    %c0_64 = arith.constant 0 : index
    %c0_65 = arith.constant 0 : index
    %137 = vector.load %arg5[%c0_64, %c0_65] : memref<1x128xf32, #tpu.memory_space<vmem>>, vector<1x128xf32>
    %138 = vector.broadcast %137 : vector<1x128xf32> to vector<32x128xf32>
    %139 = arith.addf %136, %138 : vector<32x128xf32>
    %cst_66 = arith.constant 0.000000e+00 : f32
    %140 = vector.broadcast %cst_66 : f32 to vector<32x128xf32>
    %141 = arith.maximumf %139, %140 : vector<32x128xf32>
    %142 = arith.truncf %141 : vector<32x128xf32> to vector<32x128xbf16>
    %143 = vector.shape_cast %142 : vector<32x128xbf16> to vector<8x512xbf16>
    %c0_67 = arith.constant 0 : index
    %c0_68 = arith.constant 0 : index
    %144 = vector.load %arg6[%c0_67, %c0_68] : memref<512x64xbf16, #tpu.memory_space<vmem>>, vector<512x64xbf16>
    %cst_69 = arith.constant dense<0.000000e+00> : vector<8x64xf32>
    %145 = tpu.matmul %143, %144, %cst_69 {dimension_numbers = #tpu.dot_dimension_numbers<[1], [0], [0], [1], [0, 0, 1, 1], [], []>} : vector<8x512xbf16>, vector<512x64xbf16>, vector<8x64xf32> -> vector<8x64xf32>
    %c0_70 = arith.constant 0 : index
    %c0_71 = arith.constant 0 : index
    %146 = vector.load %arg7[%c0_70, %c0_71] : memref<1x64xf32, #tpu.memory_space<vmem>>, vector<1x64xf32>
    %147 = vector.broadcast %146 : vector<1x64xf32> to vector<8x64xf32>
    %148 = arith.addf %145, %147 : vector<8x64xf32>
    %cst_72 = arith.constant 0.000000e+00 : f32
    %149 = vector.broadcast %cst_72 : f32 to vector<8x64xf32>
    %150 = arith.maximumf %148, %149 : vector<8x64xf32>
    %151 = arith.truncf %150 : vector<8x64xf32> to vector<8x64xbf16>
    %c0_73 = arith.constant 0 : index
    %c0_74 = arith.constant 0 : index
    %152 = vector.load %arg8[%c0_73, %c0_74] : memref<64x128xbf16, #tpu.memory_space<vmem>>, vector<64x128xbf16>
    %cst_75 = arith.constant dense<0.000000e+00> : vector<8x128xf32>
    %153 = tpu.matmul %151, %152, %cst_75 {dimension_numbers = #tpu.dot_dimension_numbers<[1], [0], [0], [1], [0, 0, 1, 1], [], []>} : vector<8x64xbf16>, vector<64x128xbf16>, vector<8x128xf32> -> vector<8x128xf32>
    %c0_76 = arith.constant 0 : index
    %c0_77 = arith.constant 0 : index
    %154 = vector.load %arg9[%c0_76, %c0_77] : memref<1x128xf32, #tpu.memory_space<vmem>>, vector<1x128xf32>
    %155 = vector.broadcast %154 : vector<1x128xf32> to vector<8x128xf32>
    %156 = arith.addf %153, %155 : vector<8x128xf32>
    %cst_78 = arith.constant dense<0xFF800000> : vector<8xf32>
    %157 = vector.multi_reduction <maximumf>, %156, %cst_78 [1] : vector<8x128xf32> to vector<8xf32>
    %158 = vector.shape_cast %157 : vector<8xf32> to vector<8x1xf32>
    %159 = vector.broadcast %158 : vector<8x1xf32> to vector<8x128xf32>
    %160 = arith.subf %156, %159 : vector<8x128xf32>
    %161 = math.exp %160 : vector<8x128xf32>
    %cst_79 = arith.constant dense<0.000000e+00> : vector<8xf32>
    %162 = vector.multi_reduction <add>, %161, %cst_79 [1] : vector<8x128xf32> to vector<8xf32>
    %163 = vector.shape_cast %162 : vector<8xf32> to vector<8x1xf32>
    %164 = math.log %163 : vector<8x1xf32>
    %165 = arith.addf %164, %158 : vector<8x1xf32>
    %166 = vector.broadcast %165 : vector<8x1xf32> to vector<8x128xf32>
    %167 = arith.subf %156, %166 : vector<8x128xf32>
    %c0_80 = arith.constant 0 : index
    %c0_81 = arith.constant 0 : index
    %168 = vector.load %arg10[%c0_80, %c0_81] : memref<8x128xf32, #tpu.memory_space<vmem>>, vector<8x128xf32>
    tpu.vector_store %arg10[%c0_80, %c0_81], %167 {strides = array<i32>} : memref<8x128xf32, #tpu.memory_space<vmem>>, vector<8x128xf32>,
    return
  }
  func.func @transform_0(%arg0: i32) -> (i32, i32, i32, i32) {
    %c0_i32 = arith.constant 0 : i32
    %c0_i32_0 = arith.constant 0 : i32
    %c0_i32_1 = arith.constant 0 : i32
    %c0_i32_2 = arith.constant 0 : i32
    return %arg0, %c0_i32, %c0_i32_0, %c0_i32_1 : i32, i32, i32, i32
  }
  func.func @transform_1(%arg0: i32) -> (i32, i32, i32) {
    %c0_i32 = arith.constant 0 : i32
    %c0_i32_0 = arith.constant 0 : i32
    %c0_i32_1 = arith.constant 0 : i32
    %c0_i32_2 = arith.constant 0 : i32
    return %c0_i32, %c0_i32_0, %c0_i32_1 : i32, i32, i32
  }
  func.func @transform_2(%arg0: i32) -> (i32, i32) {
    %c0_i32 = arith.constant 0 : i32
    %c0_i32_0 = arith.constant 0 : i32
    %c0_i32_1 = arith.constant 0 : i32
    return %c0_i32, %c0_i32_0 : i32, i32
  }
  func.func @transform_3(%arg0: i32) -> (i32, i32, i32) {
    %c0_i32 = arith.constant 0 : i32
    %c0_i32_0 = arith.constant 0 : i32
    %c0_i32_1 = arith.constant 0 : i32
    %c0_i32_2 = arith.constant 0 : i32
    return %c0_i32, %c0_i32_0, %c0_i32_1 : i32, i32, i32
  }
  func.func @transform_4(%arg0: i32) -> (i32, i32) {
    %c0_i32 = arith.constant 0 : i32
    %c0_i32_0 = arith.constant 0 : i32
    %c0_i32_1 = arith.constant 0 : i32
    return %c0_i32, %c0_i32_0 : i32, i32
  }
  func.func @transform_5(%arg0: i32) -> (i32, i32) {
    %c0_i32 = arith.constant 0 : i32
    %c0_i32_0 = arith.constant 0 : i32
    %c0_i32_1 = arith.constant 0 : i32
    return %c0_i32, %c0_i32_0 : i32, i32
  }
  func.func @transform_6(%arg0: i32) -> (i32, i32) {
    %c0_i32 = arith.constant 0 : i32
    %c0_i32_0 = arith.constant 0 : i32
    %c0_i32_1 = arith.constant 0 : i32
    return %c0_i32, %c0_i32_0 : i32, i32
  }
  func.func @transform_7(%arg0: i32) -> (i32, i32) {
    %c0_i32 = arith.constant 0 : i32
    %c0_i32_0 = arith.constant 0 : i32
    %c0_i32_1 = arith.constant 0 : i32
    return %c0_i32, %c0_i32_0 : i32, i32
  }
  func.func @transform_8(%arg0: i32) -> (i32, i32) {
    %c0_i32 = arith.constant 0 : i32
    %c0_i32_0 = arith.constant 0 : i32
    %c0_i32_1 = arith.constant 0 : i32
    return %c0_i32, %c0_i32_0 : i32, i32
  }
  func.func @transform_9(%arg0: i32) -> (i32, i32) {
    %c0_i32 = arith.constant 0 : i32
    %c0_i32_0 = arith.constant 0 : i32
    return %arg0, %c0_i32 : i32, i32
  }
}

</mosaic_0001>

<llo_original>
// kernel: tile.19
$region0: #{tile.19}
  %s0 = inlined_call_operand.vmem [shape: f32[4,20], index: 0, kind: input, shape index: {}]
  %s1 = inlined_call_operand.vmem [shape: f32[80], index: 1, kind: output, shape index: {}]
  $region1: #{tile.19} parent=0
    #allocation0 [shape = 'u8[4096]{0}', space=vmem, size = 0x1000, scoped, tag = 'scoped mem for output reshape']
    #allocation1 [shape = 'u8[4096]{0}', space=vmem, size = 0x1000, scoped, tag = 'scoped mem for input reshape']
    %s3 = sshllo.u32 0, 4
    %v4 = vld [vmem:[%s0] sm:%s3]
    %5 = vst [vmem:[#allocation1] sm:%s3] %v4
    %v6 = vld [vmem:[#allocation1] sm:$0x1]
    %vm7 = vcmask 162816
    %8 = vst.msk [vmem:[#allocation0] sm:$0x1] %vm7, %v6
    %s9 = scalar_lea.vmem [#allocation1], 3
    %v10 = vld [vmem:[%s9] sm:$0x1]
    %11 = vrot.lane.b32.xlu0 %v10, 60
    %v12 = vpop.permute.xlu0 %11
    %vm13 = vcmask 654816
    %14 = vst.msk [vmem:[#allocation0] sm:$0x1] %vm13, %v12
    %s15 = scalar_lea.vmem [#allocation1], 2
    %v16 = vld [vmem:[%s15] sm:$0x1]
    %17 = vrot.lane.b32.xlu0 %v16, 40
    %v18 = vpop.permute.xlu0 %17
    %vm19 = vcmask 490816
    %20 = vst.msk [vmem:[#allocation0] sm:$0x1] %vm19, %v18
    %s21 = scalar_lea.vmem [#allocation1], 1
    %v22 = vld [vmem:[%s21] sm:$0x1]
    %23 = vrot.lane.b32.xlu0 %v22, 20
    %v24 = vpop.permute.xlu0 %23
    %vm25 = vcmask 326816
    %26 = vst.msk [vmem:[#allocation0] sm:$0x1] %vm25, %v24
    %s28 = sshllo.u32 0, 1
    %v30 = vld [vmem:[#allocation0] sm:%s28]
    %s31 = sshllo.u32 0, 1
    %32 = vst [vmem:[%s1] sm:%s31] %v30

// kernel: tile.14
$region0: #{tile.14}
  %s0 = inlined_call_operand.vmem [shape: f32[12,10], index: 0, kind: input, shape index: {}]
  %s1 = inlined_call_operand.vmem [shape: f32[120], index: 1, kind: output, shape index: {}]
  $region1: #{tile.14} parent=0
    #allocation0 [shape = 'u8[4096]{0}', space=vmem, size = 0x1000, scoped, tag = 'scoped mem for output reshape']
    %v2 = vld [vmem:[%s0] sm:$0x1]
    %vm3 = vcmask 80896
    %4 = vst.msk [vmem:[#allocation0] sm:$0x1] %vm3, %v2
    %s5 = scalar_lea.vmem %s0, 11
    %v6 = vld [vmem:[%s5] sm:$0x1]
    %7 = vrot.lane.b32.xlu0 %v6, 110
    %v8 = vpop.permute.xlu0 %7
    %vm9 = vcmask 982896
    %10 = vst.msk [vmem:[#allocation0] sm:$0x1] %vm9, %v8
    %s11 = scalar_lea.vmem %s0, 10
    %v12 = vld [vmem:[%s11] sm:$0x1]
    %13 = vrot.lane.b32.xlu0 %v12, 100
    %v14 = vpop.permute.xlu0 %13
    %vm15 = vcmask 900896
    %16 = vst.msk [vmem:[#allocation0] sm:$0x1] %vm15, %v14
    %s17 = scalar_lea.vmem %s0, 9
    %v18 = vld [vmem:[%s17] sm:$0x1]
    %19 = vrot.lane.b32.xlu0 %v18, 90
    %v20 = vpop.permute.xlu0 %19
    %vm21 = vcmask 818896
    %22 = vst.msk [vmem:[#allocation0] sm:$0x1] %vm21, %v20
    %s23 = scalar_lea.vmem %s0, 8
    %v24 = vld [vmem:[%s23] sm:$0x1]
    %25 = vrot.lane.b32.xlu0 %v24, 80
    %v26 = vpop.permute.xlu0 %25
    %vm27 = vcmask 736896
    %28 = vst.msk [vmem:[#allocation0] sm:$0x1] %vm27, %v26
    %s29 = scalar_lea.vmem %s0, 7
    %v30 = vld [vmem:[%s29] sm:$0x1]
    %31 = vrot.lane.b32.xlu0 %v30, 70
    %v32 = vpop.permute.xlu0 %31
    %vm33 = vcmask 654896
    %34 = vst.msk [vmem:[#allocation0] sm:$0x1] %vm33, %v32
    %s35 = scalar_lea.vmem %s0, 6
    %v36 = vld [vmem:[%s35] sm:$0x1]
    %37 = vrot.lane.b32.xlu0 %v36, 60
    %v38 = vpop.permute.xlu0 %37
    %vm39 = vcmask 572896
    %40 = vst.msk [vmem:[#allocation0] sm:$0x1] %vm39, %v38
    %s41 = scalar_lea.vmem %s0, 5
    %v42 = vld [vmem:[%s41] sm:$0x1]
    %43 = vrot.lane.b32.xlu0 %v42, 50
    %v44 = vpop.permute.xlu0 %43
    %vm45 = vcmask 490896
    %46 = vst.msk [vmem:[#allocation0] sm:$0x1] %vm45, %v44
    %s47 = scalar_lea.vmem %s0, 4
    %v48 = vld [vmem:[%s47] sm:$0x1]
    %49 = vrot.lane.b32.xlu0 %v48, 40
    %v50 = vpop.permute.xlu0 %49
    %vm51 = vcmask 408896
    %52 = vst.msk [vmem:[#allocation0] sm:$0x1] %vm51, %v50
    %s53 = scalar_lea.vmem %s0, 3
    %v54 = vld [vmem:[%s53] sm:$0x1]
    %55 = vrot.lane.b32.xlu0 %v54, 30
    %v56 = vpop.permute.xlu0 %55
    %vm57 = vcmask 326896
    %58 = vst.msk [vmem:[#allocation0] sm:$0x1] %vm57, %v56
    %s59 = scalar_lea.vmem %s0, 2
    %v60 = vld [vmem:[%s59] sm:$0x1]
    %61 = vrot.lane.b32.xlu0 %v60, 20
    %v62 = vpop.permute.xlu0 %61
    %vm63 = vcmask 244896
    %64 = vst.msk [vmem:[#allocation0] sm:$0x1] %vm63, %v62
    %s65 = scalar_lea.vmem %s0, 1
    %v66 = vld [vmem:[%s65] sm:$0x1]
    %67 = vrot.lane.b32.xlu0 %v66, 10
    %v68 = vpop.permute.xlu0 %67
    %vm69 = vcmask 162896
    %70 = vst.msk [vmem:[#allocation0] sm:$0x1] %vm69, %v68
    %s72 = sshllo.u32 0, 1
    %v74 = vld [vmem:[#allocation0] sm:%s72]
    %s75 = sshllo.u32 0, 1
    %76 = vst [vmem:[%s1] sm:%s75] %v74

// kernel: tile.18
$region0: #{tile.18}
  #allocation2 [shape = 's32[1]{0}', space=sflag, size = 0x4, scoped, tag = 'scoped memory for tile.18']
  %s0 = inlined_call_operand.hbm [shape: f32[20], index: 0, kind: input, shape index: {}]
  %s1 = inlined_call_operand.vmem [shape: f32[4,20], index: 1, kind: output, shape index: {}]
  $region1: #{tile.18} parent=0
    #allocation0 [shape = 'u8[512]{0}', space=vmem, size = 0x400, scoped, tag = 'operand span for operand 0']
    #allocation1 [shape = 's32[1]{0}', space=sflag, size = 0x4, scoped, tag = 'scoped memory for tile.18']
    %2 = vsyncpa [#allocation1], 0
    // Predicated region
    $region2: #{tile.18} parent=1 // pred_check
      _
    $region3: #{tile.18} parent=1 // pred_check_branch
      %4 = sbr.rel (0) target = $region5
    $region4: #{tile.18} parent=1 // pred_region
      %s6 = ssub.s32 16, 16
      %7 = vsyncadd [#allocation1], %s6
      %s9 = sshll.u32 [#allocation0], 4
      %s10 = int_to_ptr.vmem [resolvable:$true] %s9
      %12 = dma.hbm_to_vmem [thread:$0]  %s0, 16, %s10, [#allocation1]
    $region5: #{tile.18} parent=1 // pred_fallthru
      _
    // Predicated region
    $region6: #{tile.18} parent=1 // pred_check
      _
    $region7: #{tile.18} parent=1 // pred_check_branch
      %14 = sbr.rel (0) target = $region9
    $region8: #{tile.18} parent=1 // pred_region
      %15 = dma.done [#allocation1], 16
    $region9: #{tile.18} parent=1 // pred_fallthru
      _
    %v16 = vld [vmem:[#allocation0] ss:$0 sm:$0xff]
    %17 = vst [vmem:[%s1] sm:$0xf] %v16
    %18 = vsyncpa [#allocation1], 1

// kernel: tile.13
$region0: #{tile.13}
  #allocation2 [shape = 's32[1]{0}', space=sflag, size = 0x4, scoped, tag = 'scoped memory for tile.13']
  %s0 = inlined_call_operand.hbm [shape: f32[10], index: 0, kind: input, shape index: {}]
  %s1 = inlined_call_operand.vmem [shape: f32[12,10], index: 1, kind: output, shape index: {}]
  $region1: #{tile.13} parent=0
    #allocation0 [shape = 'u8[512]{0}', space=vmem, size = 0x400, scoped, tag = 'operand span for operand 0']
    #allocation1 [shape = 's32[1]{0}', space=sflag, size = 0x4, scoped, tag = 'scoped memory for tile.13']
    %2 = vsyncpa [#allocation1], 0
    // Predicated region
    $region2: #{tile.13} parent=1 // pred_check
      _
    $region3: #{tile.13} parent=1 // pred_check_branch
      %4 = sbr.rel (0) target = $region5
    $region4: #{tile.13} parent=1 // pred_region
      %s6 = ssub.s32 16, 16
      %7 = vsyncadd [#allocation1], %s6
      %s9 = sshll.u32 [#allocation0], 4
      %s10 = int_to_ptr.vmem [resolvable:$true] %s9
      %12 = dma.hbm_to_vmem [thread:$0]  %s0, 16, %s10, [#allocation1]
    $region5: #{tile.13} parent=1 // pred_fallthru
      _
    // Predicated region
    $region6: #{tile.13} parent=1 // pred_check
      _
    $region7: #{tile.13} parent=1 // pred_check_branch
      %14 = sbr.rel (0) target = $region9
    $region8: #{tile.13} parent=1 // pred_region
      %15 = dma.done [#allocation1], 16
    $region9: #{tile.13} parent=1 // pred_fallthru
      _
    %v16 = vld [vmem:[#allocation0] ss:$0 sm:$0xff]
    %17 = vst [vmem:[%s1] sm:$0xff] %v16
    %s18 = scalar_lea.vmem %s1, 8
    %19 = vst [vmem:[%s18] sm:$0xff] %v16
    %20 = vsyncpa [#allocation1], 1

// kernel: net0_forward.1
$region0: #{net0_forward.1}
  #allocation0 [shape = 'u32[]', space=smem, size = 0x4, offset = 0x4, fixed_abs, tag = 'smem constant byte address 0x4 - core index']
  #allocation1 [shape = 'u32[144,128]{1,0:T(1,128)}', space=vmem, size = 0x12000, scoped, tag = 'internal scratch']
  %s0 = inlined_call_operand.vmem [shape: bf16[8,4,7,32], index: 0, kind: input, shape index: {}]
  %s1 = inlined_call_operand.vmem [shape: bf16[5,32,256], index: 1, kind: input, shape index: {}]
  %s2 = inlined_call_operand.vmem [shape: f32[1,128], index: 2, kind: input, shape index: {}]
  %s3 = inlined_call_operand.vmem [shape: bf16[5,128,256], index: 3, kind: input, shape index: {}]
  %s4 = inlined_call_operand.vmem [shape: f32[1,128], index: 4, kind: input, shape index: {}]
  %s5 = inlined_call_operand.vmem [shape: bf16[512,64], index: 5, kind: input, shape index: {}]
  %s6 = inlined_call_operand.vmem [shape: f32[1,64], index: 6, kind: input, shape index: {}]
  %s7 = inlined_call_operand.vmem [shape: bf16[64,128], index: 7, kind: input, shape index: {}]
  %s8 = inlined_call_operand.vmem [shape: f32[1,128], index: 8, kind: input, shape index: {}]
  %s9 = inlined_call_operand.vmem [shape: f32[8,128], index: 9, kind: output, shape index: {}]
  %s10 = sld [smem:[#allocation0]]
  $region46: #{net0_forward.1} parent=0
    _
  %s12 = ssub.s32 1, %s10
  %s13 = scalar_select 0, %s12, %s10
  // Predicated region
  $region2: #{net0_forward.1} parent=0 // pred_check
    _
  $region3: #{net0_forward.1} parent=0 // pred_check_branch
    %15 = sbr.rel (0) target = $region5
  $region4: #{net0_forward.1} parent=0 // pred_region
    _
  $region5: #{net0_forward.1} parent=0 // pred_fallthru
    _
  // Predicated region
  $region6: #{net0_forward.1} parent=0 // pred_check
    _
  $region7: #{net0_forward.1} parent=0 // pred_check_branch
    %17 = sbr.rel (0) target = $region9
  $region8: #{net0_forward.1} parent=0 // pred_region
    _
  $region9: #{net0_forward.1} parent=0 // pred_fallthru
    _
  // Predicated region
  $region10: #{net0_forward.1} parent=0 // pred_check
    _
  $region11: #{net0_forward.1} parent=0 // pred_check_branch
    %19 = sbr.rel (0) target = $region13
  $region12: #{net0_forward.1} parent=0 // pred_region
    _
  $region13: #{net0_forward.1} parent=0 // pred_fallthru
    _
  // Predicated region
  $region14: #{net0_forward.1} parent=0 // pred_check
    _
  $region15: #{net0_forward.1} parent=0 // pred_check_branch
    %21 = sbr.rel (0) target = $region17
  $region16: #{net0_forward.1} parent=0 // pred_region
    _
  $region17: #{net0_forward.1} parent=0 // pred_fallthru
    _
  // Predicated region
  $region18: #{net0_forward.1} parent=0 // pred_check
    _
  $region19: #{net0_forward.1} parent=0 // pred_check_branch
    %23 = sbr.rel (0) target = $region21
  $region20: #{net0_forward.1} parent=0 // pred_region
    _
  $region21: #{net0_forward.1} parent=0 // pred_fallthru
    _
  // Predicated region
  $region22: #{net0_forward.1} parent=0 // pred_check
    _
  $region23: #{net0_forward.1} parent=0 // pred_check_branch
    %25 = sbr.rel (0) target = $region25
  $region24: #{net0_forward.1} parent=0 // pred_region
    _
  $region25: #{net0_forward.1} parent=0 // pred_fallthru
    _
  // Predicated region
  $region26: #{net0_forward.1} parent=0 // pred_check
    _
  $region27: #{net0_forward.1} parent=0 // pred_check_branch
    %27 = sbr.rel (0) target = $region29
  $region28: #{net0_forward.1} parent=0 // pred_region
    _
  $region29: #{net0_forward.1} parent=0 // pred_fallthru
    _
  // Predicated region
  $region30: #{net0_forward.1} parent=0 // pred_check
    _
  $region31: #{net0_forward.1} parent=0 // pred_check_branch
    %29 = sbr.rel (0) target = $region33
  $region32: #{net0_forward.1} parent=0 // pred_region
    _
  $region33: #{net0_forward.1} parent=0 // pred_fallthru
    _
  // Predicated region
  $region34: #{net0_forward.1} parent=0 // pred_check
    _
  $region35: #{net0_forward.1} parent=0 // pred_check_branch
    %31 = sbr.rel (0) target = $region37
  $region36: #{net0_forward.1} parent=0 // pred_region
    _
  $region37: #{net0_forward.1} parent=0 // pred_fallthru
    _
  %v33 = vld [vmem:[%s0] sm:$0xf]
  %v34 = vld [vmem:[%s0 + $0x4] sm:$0xf]
  %v35 = vld [vmem:[%s0 + $0x8] sm:$0xf]
  %v36 = vld [vmem:[%s0 + $0xc] sm:$0xf]
  %v37 = vld [vmem:[%s0 + $0x10] sm:$0xf]
  %v38 = vld [vmem:[%s0 + $0x14] sm:$0xf]
  %v39 = vld [vmem:[%s0 + $0x18] sm:$0xf]
  %v40 = vld [vmem:[%s0 + $0x1c] sm:$0xf]
  %v41 = vld [vmem:[%s0 + $0x20] sm:$0xf]
  %v42 = vld [vmem:[%s0 + $0x24] sm:$0xf]
  %v43 = vld [vmem:[%s0 + $0x28] sm:$0xf]
  %v44 = vld [vmem:[%s0 + $0x2c] sm:$0xf]
  %v45 = vld [vmem:[%s0 + $0x30] sm:$0xf]
  %v46 = vld [vmem:[%s0 + $0x34] sm:$0xf]
  %v47 = vld [vmem:[%s0 + $0x38] sm:$0xf]
  %v48 = vld [vmem:[%s0 + $0x3c] sm:$0xf]
  %v49 = vld [vmem:[%s0 + $0x40] sm:$0xf]
  %v50 = vld [vmem:[%s0 + $0x44] sm:$0xf]
  %v51 = vld [vmem:[%s0 + $0x48] sm:$0xf]
  %v52 = vld [vmem:[%s0 + $0x4c] sm:$0xf]
  %v53 = vld [vmem:[%s0 + $0x50] sm:$0xf]
  %v54 = vld [vmem:[%s0 + $0x54] sm:$0xf]
  %v55 = vld [vmem:[%s0 + $0x58] sm:$0xf]
  %v56 = vld [vmem:[%s0 + $0x5c] sm:$0xf]
  %v57 = vld [vmem:[%s0 + $0x60] sm:$0xf]
  %v58 = vld [vmem:[%s0 + $0x64] sm:$0xf]
  %v59 = vld [vmem:[%s0 + $0x68] sm:$0xf]
  %v60 = vld [vmem:[%s0 + $0x6c] sm:$0xf]
  %v61 = vld [vmem:[%s0 + $0x70] sm:$0xf]
  %v62 = vld [vmem:[%s0 + $0x74] sm:$0xf]
  %v63 = vld [vmem:[%s0 + $0x78] sm:$0xf]
  %v64 = vld [vmem:[%s0 + $0x7c] sm:$0xf]
  %v65 = vld [vmem:[%s1] sm:$0xff]
  %v66 = vld [vmem:[%s1 + $0x8] sm:$0xff]
  %v67 = vld [vmem:[%s1 + $0x10] sm:$0xff]
  %v68 = vld [vmem:[%s1 + $0x18] sm:$0xff]
  %s69 = scalar_lea.vmem %s1, 32
  %v70 = vld [vmem:[%s69] sm:$0xff]
  %v71 = vld [vmem:[%s69 + $0x8] sm:$0xff]
  %v72 = vld [vmem:[%s69 + $0x10] sm:$0xff]
  %v73 = vld [vmem:[%s69 + $0x18] sm:$0xff]
  %s74 = scalar_lea.vmem %s1, 64
  %v75 = vld [vmem:[%s74] sm:$0xff]
  %v76 = vld [vmem:[%s74 + $0x8] sm:$0xff]
  %v77 = vld [vmem:[%s74 + $0x10] sm:$0xff]
  %v78 = vld [vmem:[%s74 + $0x18] sm:$0xff]
  %s79 = scalar_lea.vmem %s1, 96
  %v80 = vld [vmem:[%s79] sm:$0xff]
  %v81 = vld [vmem:[%s79 + $0x8] sm:$0xff]
  %v82 = vld [vmem:[%s79 + $0x10] sm:$0xff]
  %v83 = vld [vmem:[%s79 + $0x18] sm:$0xff]
  %s84 = scalar_lea.vmem %s1, 128
  %v85 = vld [vmem:[%s84] sm:$0xff]
  %v86 = vld [vmem:[%s84 + $0x8] sm:$0xff]
  %v87 = vld [vmem:[%s84 + $0x10] sm:$0xff]
  %v88 = vld [vmem:[%s84 + $0x18] sm:$0xff]
  %v89 = vld [vmem:[%s3] sm:$0xff]
  %v90 = vld [vmem:[%s3 + $0x8] sm:$0xff]
  %v91 = vld [vmem:[%s3 + $0x10] sm:$0xff]
  %v92 = vld [vmem:[%s3 + $0x18] sm:$0xff]
  %v93 = vld [vmem:[%s3 + $0x20] sm:$0xff]
  %v94 = vld [vmem:[%s3 + $0x28] sm:$0xff]
  %v95 = vld [vmem:[%s3 + $0x30] sm:$0xff]
  %v96 = vld [vmem:[%s3 + $0x38] sm:$0xff]
  %v97 = vld [vmem:[%s3 + $0x40] sm:$0xff]
  %v98 = vld [vmem:[%s3 + $0x48] sm:$0xff]
  %v99 = vld [vmem:[%s3 + $0x50] sm:$0xff]
  %v100 = vld [vmem:[%s3 + $0x58] sm:$0xff]
  %v101 = vld [vmem:[%s3 + $0x60] sm:$0xff]
  %v102 = vld [vmem:[%s3 + $0x68] sm:$0xff]
  %v103 = vld [vmem:[%s3 + $0x70] sm:$0xff]
  %v104 = vld [vmem:[%s3 + $0x78] sm:$0xff]
  %s105 = scalar_lea.vmem %s3, 128
  %v106 = vld [vmem:[%s105] sm:$0xff]
  %v107 = vld [vmem:[%s105 + $0x8] sm:$0xff]
  %v108 = vld [vmem:[%s105 + $0x10] sm:$0xff]
  %v109 = vld [vmem:[%s105 + $0x18] sm:$0xff]
  %v110 = vld [vmem:[%s105 + $0x20] sm:$0xff]
  %v111 = vld [vmem:[%s105 + $0x28] sm:$0xff]
  %v112 = vld [vmem:[%s105 + $0x30] sm:$0xff]
  %v113 = vld [vmem:[%s105 + $0x38] sm:$0xff]
  %v114 = vld [vmem:[%s105 + $0x40] sm:$0xff]
  %v115 = vld [vmem:[%s105 + $0x48] sm:$0xff]
  %v116 = vld [vmem:[%s105 + $0x50] sm:$0xff]
  %v117 = vld [vmem:[%s105 + $0x58] sm:$0xff]
  %v118 = vld [vmem:[%s105 + $0x60] sm:$0xff]
  %v119 = vld [vmem:[%s105 + $0x68] sm:$0xff]
  %v120 = vld [vmem:[%s105 + $0x70] sm:$0xff]
  %v121 = vld [vmem:[%s105 + $0x78] sm:$0xff]
  %s122 = scalar_lea.vmem %s3, 256
  %v123 = vld [vmem:[%s122] sm:$0xff]
  %v124 = vld [vmem:[%s122 + $0x8] sm:$0xff]
  %v125 = vld [vmem:[%s122 + $0x10] sm:$0xff]
  %v126 = vld [vmem:[%s122 + $0x18] sm:$0xff]
  %v127 = vld [vmem:[%s122 + $0x20] sm:$0xff]
  %v128 = vld [vmem:[%s122 + $0x28] sm:$0xff]
  %v129 = vld [vmem:[%s122 + $0x30] sm:$0xff]
  %v130 = vld [vmem:[%s122 + $0x38] sm:$0xff]
  %v131 = vld [vmem:[%s122 + $0x40] sm:$0xff]
  %v132 = vld [vmem:[%s122 + $0x48] sm:$0xff]
  %v133 = vld [vmem:[%s122 + $0x50] sm:$0xff]
  %v134 = vld [vmem:[%s122 + $0x58] sm:$0xff]
  %v135 = vld [vmem:[%s122 + $0x60] sm:$0xff]
  %v136 = vld [vmem:[%s122 + $0x68] sm:$0xff]
  %v137 = vld [vmem:[%s122 + $0x70] sm:$0xff]
  %v138 = vld [vmem:[%s122 + $0x78] sm:$0xff]
  %s139 = scalar_lea.vmem %s3, 384
  %v140 = vld [vmem:[%s139] sm:$0xff]
  %v141 = vld [vmem:[%s139 + $0x8] sm:$0xff]
  %v142 = vld [vmem:[%s139 + $0x10] sm:$0xff]
  %v143 = vld [vmem:[%s139 + $0x18] sm:$0xff]
  %v144 = vld [vmem:[%s139 + $0x20] sm:$0xff]
  %v145 = vld [vmem:[%s139 + $0x28] sm:$0xff]
  %v146 = vld [vmem:[%s139 + $0x30] sm:$0xff]
  %v147 = vld [vmem:[%s139 + $0x38] sm:$0xff]
  %v148 = vld [vmem:[%s139 + $0x40] sm:$0xff]
  %v149 = vld [vmem:[%s139 + $0x48] sm:$0xff]
  %v150 = vld [vmem:[%s139 + $0x50] sm:$0xff]
  %v151 = vld [vmem:[%s139 + $0x58] sm:$0xff]
  %v152 = vld [vmem:[%s139 + $0x60] sm:$0xff]
  %v153 = vld [vmem:[%s139 + $0x68] sm:$0xff]
  %v154 = vld [vmem:[%s139 + $0x70] sm:$0xff]
  %v155 = vld [vmem:[%s139 + $0x78] sm:$0xff]
  %s156 = scalar_lea.vmem %s3, 512
  %v157 = vld [vmem:[%s156] sm:$0xff]
  %v158 = vld [vmem:[%s156 + $0x8] sm:$0xff]
  %v159 = vld [vmem:[%s156 + $0x10] sm:$0xff]
  %v160 = vld [vmem:[%s156 + $0x18] sm:$0xff]
  %v161 = vld [vmem:[%s156 + $0x20] sm:$0xff]
  %v162 = vld [vmem:[%s156 + $0x28] sm:$0xff]
  %v163 = vld [vmem:[%s156 + $0x30] sm:$0xff]
  %v164 = vld [vmem:[%s156 + $0x38] sm:$0xff]
  %v165 = vld [vmem:[%s156 + $0x40] sm:$0xff]
  %v166 = vld [vmem:[%s156 + $0x48] sm:$0xff]
  %v167 = vld [vmem:[%s156 + $0x50] sm:$0xff]
  %v168 = vld [vmem:[%s156 + $0x58] sm:$0xff]
  %v169 = vld [vmem:[%s156 + $0x60] sm:$0xff]
  %v170 = vld [vmem:[%s156 + $0x68] sm:$0xff]
  %v171 = vld [vmem:[%s156 + $0x70] sm:$0xff]
  %v172 = vld [vmem:[%s156 + $0x78] sm:$0xff]
  %v182 = vunpack.c.l.s4 1966171168
  %v183 = vunpack.c.0.s8 %v182
  %v184 = vlaneseq
  %v185 = vshrl.u32 %v184, 7
  %v186 = vsub.s32 %v183, %v185
  %v187 = vrot.slane %v33, %v186
  %v188 = vcombine.high %v187, %v187
  %v190 = vunpack.c.l.s4 1966171168
  %v191 = vunpack.c.0.s8 %v190
  %v192 = vlaneseq
  %v193 = vshrl.u32 %v192, 7
  %v194 = vsub.s32 %v191, %v193
  %v195 = vrot.slane %v187, %v194
  %v197 = vunpack.c.l.s4 1966171168
  %v198 = vunpack.c.0.s8 %v197
  %v199 = vlaneseq
  %v200 = vshrl.u32 %v199, 7
  %v201 = vsub.s32 %v198, %v200
  %v202 = vrot.slane %v188, %v201
  %v203 = vcombine.high %v195, %v195
  %v205 = vunpack.c.l.s4 1966171168
  %v206 = vunpack.c.0.s8 %v205
  %v207 = vlaneseq
  %v208 = vshrl.u32 %v207, 7
  %v209 = vsub.s32 %v206, %v208
  %v210 = vrot.slane %v37, %v209
  %v211 = vcombine.high %v210, %v210
  %v213 = vunpack.c.l.s4 1966171168
  %v214 = vunpack.c.0.s8 %v213
  %v215 = vlaneseq
  %v216 = vshrl.u32 %v215, 7
  %v217 = vsub.s32 %v214, %v216
  %v218 = vrot.slane %v210, %v217
  %v220 = vunpack.c.l.s4 1966171168
  %v221 = vunpack.c.0.s8 %v220
  %v222 = vlaneseq
  %v223 = vshrl.u32 %v222, 7
  %v224 = vsub.s32 %v221, %v223
  %v225 = vrot.slane %v211, %v224
  %v226 = vcombine.high %v218, %v218
  %v228 = vunpack.c.l.s4 1966171168
  %v229 = vunpack.c.0.s8 %v228
  %v230 = vlaneseq
  %v231 = vshrl.u32 %v230, 7
  %v232 = vsub.s32 %v229, %v231
  %v233 = vrot.slane %v41, %v232
  %v234 = vcombine.high %v233, %v233
  %v236 = vunpack.c.l.s4 1966171168
  %v237 = vunpack.c.0.s8 %v236
  %v238 = vlaneseq
  %v239 = vshrl.u32 %v238, 7
  %v240 = vsub.s32 %v237, %v239
  %v241 = vrot.slane %v233, %v240
  %v243 = vunpack.c.l.s4 1966171168
  %v244 = vunpack.c.0.s8 %v243
  %v245 = vlaneseq
  %v246 = vshrl.u32 %v245, 7
  %v247 = vsub.s32 %v244, %v246
  %v248 = vrot.slane %v234, %v247
  %v249 = vcombine.high %v241, %v241
  %v251 = vunpack.c.l.s4 1966171168
  %v252 = vunpack.c.0.s8 %v251
  %v253 = vlaneseq
  %v254 = vshrl.u32 %v253, 7
  %v255 = vsub.s32 %v252, %v254
  %v256 = vrot.slane %v45, %v255
  %v257 = vcombine.high %v256, %v256
  %v259 = vunpack.c.l.s4 1966171168
  %v260 = vunpack.c.0.s8 %v259
  %v261 = vlaneseq
  %v262 = vshrl.u32 %v261, 7
  %v263 = vsub.s32 %v260, %v262
  %v264 = vrot.slane %v256, %v263
  %v266 = vunpack.c.l.s4 1966171168
  %v267 = vunpack.c.0.s8 %v266
  %v268 = vlaneseq
  %v269 = vshrl.u32 %v268, 7
  %v270 = vsub.s32 %v267, %v269
  %v271 = vrot.slane %v257, %v270
  %v272 = vcombine.high %v264, %v264
  %v274 = vunpack.c.l.s4 1966171168
  %v275 = vunpack.c.0.s8 %v274
  %v276 = vlaneseq
  %v277 = vshrl.u32 %v276, 7
  %v278 = vsub.s32 %v275, %v277
  %v279 = vrot.slane %v49, %v278
  %v280 = vcombine.high %v279, %v279
  %v282 = vunpack.c.l.s4 1966171168
  %v283 = vunpack.c.0.s8 %v282
  %v284 = vlaneseq
  %v285 = vshrl.u32 %v284, 7
  %v286 = vsub.s32 %v283, %v285
  %v287 = vrot.slane %v279, %v286
  %v289 = vunpack.c.l.s4 1966171168
  %v290 = vunpack.c.0.s8 %v289
  %v291 = vlaneseq
  %v292 = vshrl.u32 %v291, 7
  %v293 = vsub.s32 %v290, %v292
  %v294 = vrot.slane %v280, %v293
  %v295 = vcombine.high %v287, %v287
  %v297 = vunpack.c.l.s4 1966171168
  %v298 = vunpack.c.0.s8 %v297
  %v299 = vlaneseq
  %v300 = vshrl.u32 %v299, 7
  %v301 = vsub.s32 %v298, %v300
  %v302 = vrot.slane %v53, %v301
  %v303 = vcombine.high %v302, %v302
  %v305 = vunpack.c.l.s4 1966171168
  %v306 = vunpack.c.0.s8 %v305
  %v307 = vlaneseq
  %v308 = vshrl.u32 %v307, 7
  %v309 = vsub.s32 %v306, %v308
  %v310 = vrot.slane %v302, %v309
  %v312 = vunpack.c.l.s4 1966171168
  %v313 = vunpack.c.0.s8 %v312
  %v314 = vlaneseq
  %v315 = vshrl.u32 %v314, 7
  %v316 = vsub.s32 %v313, %v315
  %v317 = vrot.slane %v303, %v316
  %v318 = vcombine.high %v310, %v310
  %v320 = vunpack.c.l.s4 1966171168
  %v321 = vunpack.c.0.s8 %v320
  %v322 = vlaneseq
  %v323 = vshrl.u32 %v322, 7
  %v324 = vsub.s32 %v321, %v323
  %v325 = vrot.slane %v57, %v324
  %v326 = vcombine.high %v325, %v325
  %v328 = vunpack.c.l.s4 1966171168
  %v329 = vunpack.c.0.s8 %v328
  %v330 = vlaneseq
  %v331 = vshrl.u32 %v330, 7
  %v332 = vsub.s32 %v329, %v331
  %v333 = vrot.slane %v325, %v332
  %v335 = vunpack.c.l.s4 1966171168
  %v336 = vunpack.c.0.s8 %v335
  %v337 = vlaneseq
  %v338 = vshrl.u32 %v337, 7
  %v339 = vsub.s32 %v336, %v338
  %v340 = vrot.slane %v326, %v339
  %v341 = vcombine.high %v333, %v333
  %v343 = vunpack.c.l.s4 1966171168
  %v344 = vunpack.c.0.s8 %v343
  %v345 = vlaneseq
  %v346 = vshrl.u32 %v345, 7
  %v347 = vsub.s32 %v344, %v346
  %v348 = vrot.slane %v61, %v347
  %v349 = vcombine.high %v348, %v348
  %v351 = vunpack.c.l.s4 1966171168
  %v352 = vunpack.c.0.s8 %v351
  %v353 = vlaneseq
  %v354 = vshrl.u32 %v353, 7
  %v355 = vsub.s32 %v352, %v354
  %v356 = vrot.slane %v348, %v355
  %v358 = vunpack.c.l.s4 1966171168
  %v359 = vunpack.c.0.s8 %v358
  %v360 = vlaneseq
  %v361 = vshrl.u32 %v360, 7
  %v362 = vsub.s32 %v359, %v361
  %v363 = vrot.slane %v349, %v362
  %v364 = vcombine.high %v356, %v356
  %v374 = vunpack.c.l.s4 1966171168
  %v375 = vunpack.c.0.s8 %v374
  %v376 = vlaneseq
  %v377 = vshrl.u32 %v376, 7
  %v378 = vsub.s32 %v375, %v377
  %v379 = vrot.slane %v34, %v378
  %v380 = vcombine.high %v379, %v379
  %v382 = vunpack.c.l.s4 1966171168
  %v383 = vunpack.c.0.s8 %v382
  %v384 = vlaneseq
  %v385 = vshrl.u32 %v384, 7
  %v386 = vsub.s32 %v383, %v385
  %v387 = vrot.slane %v379, %v386
  %v389 = vunpack.c.l.s4 1966171168
  %v390 = vunpack.c.0.s8 %v389
  %v391 = vlaneseq
  %v392 = vshrl.u32 %v391, 7
  %v393 = vsub.s32 %v390, %v392
  %v394 = vrot.slane %v380, %v393
  %v395 = vcombine.high %v387, %v387
  %v397 = vunpack.c.l.s4 1966171168
  %v398 = vunpack.c.0.s8 %v397
  %v399 = vlaneseq
  %v400 = vshrl.u32 %v399, 7
  %v401 = vsub.s32 %v398, %v400
  %v402 = vrot.slane %v38, %v401
  %v403 = vcombine.high %v402, %v402
  %v405 = vunpack.c.l.s4 1966171168
  %v406 = vunpack.c.0.s8 %v405
  %v407 = vlaneseq
  %v408 = vshrl.u32 %v407, 7
  %v409 = vsub.s32 %v406, %v408
  %v410 = vrot.slane %v402, %v409
  %v412 = vunpack.c.l.s4 1966171168
  %v413 = vunpack.c.0.s8 %v412
  %v414 = vlaneseq
  %v415 = vshrl.u32 %v414, 7
  %v416 = vsub.s32 %v413, %v415
  %v417 = vrot.slane %v403, %v416
  %v418 = vcombine.high %v410, %v410
  %v420 = vunpack.c.l.s4 1966171168
  %v421 = vunpack.c.0.s8 %v420
  %v422 = vlaneseq
  %v423 = vshrl.u32 %v422, 7
  %v424 = vsub.s32 %v421, %v423
  %v425 = vrot.slane %v42, %v424
  %v426 = vcombine.high %v425, %v425
  %v428 = vunpack.c.l.s4 1966171168
  %v429 = vunpack.c.0.s8 %v428
  %v430 = vlaneseq
  %v431 = vshrl.u32 %v430, 7
  %v432 = vsub.s32 %v429, %v431
  %v433 = vrot.slane %v425, %v432
  %v435 = vunpack.c.l.s4 1966171168
  %v436 = vunpack.c.0.s8 %v435
  %v437 = vlaneseq
  %v438 = vshrl.u32 %v437, 7
  %v439 = vsub.s32 %v436, %v438
  %v440 = vrot.slane %v426, %v439
  %v441 = vcombine.high %v433, %v433
  %v443 = vunpack.c.l.s4 1966171168
  %v444 = vunpack.c.0.s8 %v443
  %v445 = vlaneseq
  %v446 = vshrl.u32 %v445, 7
  %v447 = vsub.s32 %v444, %v446
  %v448 = vrot.slane %v46, %v447
  %v449 = vcombine.high %v448, %v448
  %v451 = vunpack.c.l.s4 1966171168
  %v452 = vunpack.c.0.s8 %v451
  %v453 = vlaneseq
  %v454 = vshrl.u32 %v453, 7
  %v455 = vsub.s32 %v452, %v454
  %v456 = vrot.slane %v448, %v455
  %v458 = vunpack.c.l.s4 1966171168
  %v459 = vunpack.c.0.s8 %v458
  %v460 = vlaneseq
  %v461 = vshrl.u32 %v460, 7
  %v462 = vsub.s32 %v459, %v461
  %v463 = vrot.slane %v449, %v462
  %v464 = vcombine.high %v456, %v456
  %v466 = vunpack.c.l.s4 1966171168
  %v467 = vunpack.c.0.s8 %v466
  %v468 = vlaneseq
  %v469 = vshrl.u32 %v468, 7
  %v470 = vsub.s32 %v467, %v469
  %v471 = vrot.slane %v50, %v470
  %v472 = vcombine.high %v471, %v471
  %v474 = vunpack.c.l.s4 1966171168
  %v475 = vunpack.c.0.s8 %v474
  %v476 = vlaneseq
  %v477 = vshrl.u32 %v476, 7
  %v478 = vsub.s32 %v475, %v477
  %v479 = vrot.slane %v471, %v478
  %v481 = vunpack.c.l.s4 1966171168
  %v482 = vunpack.c.0.s8 %v481
  %v483 = vlaneseq
  %v484 = vshrl.u32 %v483, 7
  %v485 = vsub.s32 %v482, %v484
  %v486 = vrot.slane %v472, %v485
  %v487 = vcombine.high %v479, %v479
  %v489 = vunpack.c.l.s4 1966171168
  %v490 = vunpack.c.0.s8 %v489
  %v491 = vlaneseq
  %v492 = vshrl.u32 %v491, 7
  %v493 = vsub.s32 %v490, %v492
  %v494 = vrot.slane %v54, %v493
  %v495 = vcombine.high %v494, %v494
  %v497 = vunpack.c.l.s4 1966171168
  %v498 = vunpack.c.0.s8 %v497
  %v499 = vlaneseq
  %v500 = vshrl.u32 %v499, 7
  %v501 = vsub.s32 %v498, %v500
  %v502 = vrot.slane %v494, %v501
  %v504 = vunpack.c.l.s4 1966171168
  %v505 = vunpack.c.0.s8 %v504
  %v506 = vlaneseq
  %v507 = vshrl.u32 %v506, 7
  %v508 = vsub.s32 %v505, %v507
  %v509 = vrot.slane %v495, %v508
  %v510 = vcombine.high %v502, %v502
  %v512 = vunpack.c.l.s4 1966171168
  %v513 = vunpack.c.0.s8 %v512
  %v514 = vlaneseq
  %v515 = vshrl.u32 %v514, 7
  %v516 = vsub.s32 %v513, %v515
  %v517 = vrot.slane %v58, %v516
  %v518 = vcombine.high %v517, %v517
  %v520 = vunpack.c.l.s4 1966171168
  %v521 = vunpack.c.0.s8 %v520
  %v522 = vlaneseq
  %v523 = vshrl.u32 %v522, 7
  %v524 = vsub.s32 %v521, %v523
  %v525 = vrot.slane %v517, %v524
  %v527 = vunpack.c.l.s4 1966171168
  %v528 = vunpack.c.0.s8 %v527
  %v529 = vlaneseq
  %v530 = vshrl.u32 %v529, 7
  %v531 = vsub.s32 %v528, %v530
  %v532 = vrot.slane %v518, %v531
  %v533 = vcombine.high %v525, %v525
  %v535 = vunpack.c.l.s4 1966171168
  %v536 = vunpack.c.0.s8 %v535
  %v537 = vlaneseq
  %v538 = vshrl.u32 %v537, 7
  %v539 = vsub.s32 %v536, %v538
  %v540 = vrot.slane %v62, %v539
  %v541 = vcombine.high %v540, %v540
  %v543 = vunpack.c.l.s4 1966171168
  %v544 = vunpack.c.0.s8 %v543
  %v545 = vlaneseq
  %v546 = vshrl.u32 %v545, 7
  %v547 = vsub.s32 %v544, %v546
  %v548 = vrot.slane %v540, %v547
  %v550 = vunpack.c.l.s4 1966171168
  %v551 = vunpack.c.0.s8 %v550
  %v552 = vlaneseq
  %v553 = vshrl.u32 %v552, 7
  %v554 = vsub.s32 %v551, %v553
  %v555 = vrot.slane %v541, %v554
  %v556 = vcombine.high %v548, %v548
  %v566 = vunpack.c.l.s4 1966171168
  %v567 = vunpack.c.0.s8 %v566
  %v568 = vlaneseq
  %v569 = vshrl.u32 %v568, 7
  %v570 = vsub.s32 %v567, %v569
  %v571 = vrot.slane %v35, %v570
  %v572 = vcombine.high %v571, %v571
  %v574 = vunpack.c.l.s4 1966171168
  %v575 = vunpack.c.0.s8 %v574
  %v576 = vlaneseq
  %v577 = vshrl.u32 %v576, 7
  %v578 = vsub.s32 %v575, %v577
  %v579 = vrot.slane %v571, %v578
  %v581 = vunpack.c.l.s4 1966171168
  %v582 = vunpack.c.0.s8 %v581
  %v583 = vlaneseq
  %v584 = vshrl.u32 %v583, 7
  %v585 = vsub.s32 %v582, %v584
  %v586 = vrot.slane %v572, %v585
  %v587 = vcombine.high %v579, %v579
  %v589 = vunpack.c.l.s4 1966171168
  %v590 = vunpack.c.0.s8 %v589
  %v591 = vlaneseq
  %v592 = vshrl.u32 %v591, 7
  %v593 = vsub.s32 %v590, %v592
  %v594 = vrot.slane %v39, %v593
  %v595 = vcombine.high %v594, %v594
  %v597 = vunpack.c.l.s4 1966171168
  %v598 = vunpack.c.0.s8 %v597
  %v599 = vlaneseq
  %v600 = vshrl.u32 %v599, 7
  %v601 = vsub.s32 %v598, %v600
  %v602 = vrot.slane %v594, %v601
  %v604 = vunpack.c.l.s4 1966171168
  %v605 = vunpack.c.0.s8 %v604
  %v606 = vlaneseq
  %v607 = vshrl.u32 %v606, 7
  %v608 = vsub.s32 %v605, %v607
  %v609 = vrot.slane %v595, %v608
  %v610 = vcombine.high %v602, %v602
  %v612 = vunpack.c.l.s4 1966171168
  %v613 = vunpack.c.0.s8 %v612
  %v614 = vlaneseq
  %v615 = vshrl.u32 %v614, 7
  %v616 = vsub.s32 %v613, %v615
  %v617 = vrot.slane %v43, %v616
  %v618 = vcombine.high %v617, %v617
  %v620 = vunpack.c.l.s4 1966171168
  %v621 = vunpack.c.0.s8 %v620
  %v622 = vlaneseq
  %v623 = vshrl.u32 %v622, 7
  %v624 = vsub.s32 %v621, %v623
  %v625 = vrot.slane %v617, %v624
  %v627 = vunpack.c.l.s4 1966171168
  %v628 = vunpack.c.0.s8 %v627
  %v629 = vlaneseq
  %v630 = vshrl.u32 %v629, 7
  %v631 = vsub.s32 %v628, %v630
  %v632 = vrot.slane %v618, %v631
  %v633 = vcombine.high %v625, %v625
  %v635 = vunpack.c.l.s4 1966171168
  %v636 = vunpack.c.0.s8 %v635
  %v637 = vlaneseq
  %v638 = vshrl.u32 %v637, 7
  %v639 = vsub.s32 %v636, %v638
  %v640 = vrot.slane %v47, %v639
  %v641 = vcombine.high %v640, %v640
  %v643 = vunpack.c.l.s4 1966171168
  %v644 = vunpack.c.0.s8 %v643
  %v645 = vlaneseq
  %v646 = vshrl.u32 %v645, 7
  %v647 = vsub.s32 %v644, %v646
  %v648 = vrot.slane %v640, %v647
  %v650 = vunpack.c.l.s4 1966171168
  %v651 = vunpack.c.0.s8 %v650
  %v652 = vlaneseq
  %v653 = vshrl.u32 %v652, 7
  %v654 = vsub.s32 %v651, %v653
  %v655 = vrot.slane %v641, %v654
  %v656 = vcombine.high %v648, %v648
  %v658 = vunpack.c.l.s4 1966171168
  %v659 = vunpack.c.0.s8 %v658
  %v660 = vlaneseq
  %v661 = vshrl.u32 %v660, 7
  %v662 = vsub.s32 %v659, %v661
  %v663 = vrot.slane %v51, %v662
  %v664 = vcombine.high %v663, %v663
  %v666 = vunpack.c.l.s4 1966171168
  %v667 = vunpack.c.0.s8 %v666
  %v668 = vlaneseq
  %v669 = vshrl.u32 %v668, 7
  %v670 = vsub.s32 %v667, %v669
  %v671 = vrot.slane %v663, %v670
  %v673 = vunpack.c.l.s4 1966171168
  %v674 = vunpack.c.0.s8 %v673
  %v675 = vlaneseq
  %v676 = vshrl.u32 %v675, 7
  %v677 = vsub.s32 %v674, %v676
  %v678 = vrot.slane %v664, %v677
  %v679 = vcombine.high %v671, %v671
  %v681 = vunpack.c.l.s4 1966171168
  %v682 = vunpack.c.0.s8 %v681
  %v683 = vlaneseq
  %v684 = vshrl.u32 %v683, 7
  %v685 = vsub.s32 %v682, %v684
  %v686 = vrot.slane %v55, %v685
  %v687 = vcombine.high %v686, %v686
  %v689 = vunpack.c.l.s4 1966171168
  %v690 = vunpack.c.0.s8 %v689
  %v691 = vlaneseq
  %v692 = vshrl.u32 %v691, 7
  %v693 = vsub.s32 %v690, %v692
  %v694 = vrot.slane %v686, %v693
  %v696 = vunpack.c.l.s4 1966171168
  %v697 = vunpack.c.0.s8 %v696
  %v698 = vlaneseq
  %v699 = vshrl.u32 %v698, 7
  %v700 = vsub.s32 %v697, %v699
  %v701 = vrot.slane %v687, %v700
  %v702 = vcombine.high %v694, %v694
  %v704 = vunpack.c.l.s4 1966171168
  %v705 = vunpack.c.0.s8 %v704
  %v706 = vlaneseq
  %v707 = vshrl.u32 %v706, 7
  %v708 = vsub.s32 %v705, %v707
  %v709 = vrot.slane %v59, %v708
  %v710 = vcombine.high %v709, %v709
  %v712 = vunpack.c.l.s4 1966171168
  %v713 = vunpack.c.0.s8 %v712
  %v714 = vlaneseq
  %v715 = vshrl.u32 %v714, 7
  %v716 = vsub.s32 %v713, %v715
  %v717 = vrot.slane %v709, %v716
  %v719 = vunpack.c.l.s4 1966171168
  %v720 = vunpack.c.0.s8 %v719
  %v721 = vlaneseq
  %v722 = vshrl.u32 %v721, 7
  %v723 = vsub.s32 %v720, %v722
  %v724 = vrot.slane %v710, %v723
  %v725 = vcombine.high %v717, %v717
  %v727 = vunpack.c.l.s4 1966171168
  %v728 = vunpack.c.0.s8 %v727
  %v729 = vlaneseq
  %v730 = vshrl.u32 %v729, 7
  %v731 = vsub.s32 %v728, %v730
  %v732 = vrot.slane %v63, %v731
  %v733 = vcombine.high %v732, %v732
  %v735 = vunpack.c.l.s4 1966171168
  %v736 = vunpack.c.0.s8 %v735
  %v737 = vlaneseq
  %v738 = vshrl.u32 %v737, 7
  %v739 = vsub.s32 %v736, %v738
  %v740 = vrot.slane %v732, %v739
  %v742 = vunpack.c.l.s4 1966171168
  %v743 = vunpack.c.0.s8 %v742
  %v744 = vlaneseq
  %v745 = vshrl.u32 %v744, 7
  %v746 = vsub.s32 %v743, %v745
  %v747 = vrot.slane %v733, %v746
  %v748 = vcombine.high %v740, %v740
  %v758 = vunpack.c.l.s4 1966171168
  %v759 = vunpack.c.0.s8 %v758
  %v760 = vlaneseq
  %v761 = vshrl.u32 %v760, 7
  %v762 = vsub.s32 %v759, %v761
  %v763 = vrot.slane %v36, %v762
  %v764 = vcombine.high %v763, %v763
  %v766 = vunpack.c.l.s4 1966171168
  %v767 = vunpack.c.0.s8 %v766
  %v768 = vlaneseq
  %v769 = vshrl.u32 %v768, 7
  %v770 = vsub.s32 %v767, %v769
  %v771 = vrot.slane %v763, %v770
  %v773 = vunpack.c.l.s4 1966171168
  %v774 = vunpack.c.0.s8 %v773
  %v775 = vlaneseq
  %v776 = vshrl.u32 %v775, 7
  %v777 = vsub.s32 %v774, %v776
  %v778 = vrot.slane %v764, %v777
  %v779 = vcombine.high %v771, %v771
  %v781 = vunpack.c.l.s4 1966171168
  %v782 = vunpack.c.0.s8 %v781
  %v783 = vlaneseq
  %v784 = vshrl.u32 %v783, 7
  %v785 = vsub.s32 %v782, %v784
  %v786 = vrot.slane %v40, %v785
  %v787 = vcombine.high %v786, %v786
  %v789 = vunpack.c.l.s4 1966171168
  %v790 = vunpack.c.0.s8 %v789
  %v791 = vlaneseq
  %v792 = vshrl.u32 %v791, 7
  %v793 = vsub.s32 %v790, %v792
  %v794 = vrot.slane %v786, %v793
  %v796 = vunpack.c.l.s4 1966171168
  %v797 = vunpack.c.0.s8 %v796
  %v798 = vlaneseq
  %v799 = vshrl.u32 %v798, 7
  %v800 = vsub.s32 %v797, %v799
  %v801 = vrot.slane %v787, %v800
  %v802 = vcombine.high %v794, %v794
  %v804 = vunpack.c.l.s4 1966171168
  %v805 = vunpack.c.0.s8 %v804
  %v806 = vlaneseq
  %v807 = vshrl.u32 %v806, 7
  %v808 = vsub.s32 %v805, %v807
  %v809 = vrot.slane %v44, %v808
  %v810 = vcombine.high %v809, %v809
  %v812 = vunpack.c.l.s4 1966171168
  %v813 = vunpack.c.0.s8 %v812
  %v814 = vlaneseq
  %v815 = vshrl.u32 %v814, 7
  %v816 = vsub.s32 %v813, %v815
  %v817 = vrot.slane %v809, %v816
  %v819 = vunpack.c.l.s4 1966171168
  %v820 = vunpack.c.0.s8 %v819
  %v821 = vlaneseq
  %v822 = vshrl.u32 %v821, 7
  %v823 = vsub.s32 %v820, %v822
  %v824 = vrot.slane %v810, %v823
  %v825 = vcombine.high %v817, %v817
  %v827 = vunpack.c.l.s4 1966171168
  %v828 = vunpack.c.0.s8 %v827
  %v829 = vlaneseq
  %v830 = vshrl.u32 %v829, 7
  %v831 = vsub.s32 %v828, %v830
  %v832 = vrot.slane %v48, %v831
  %v833 = vcombine.high %v832, %v832
  %v835 = vunpack.c.l.s4 1966171168
  %v836 = vunpack.c.0.s8 %v835
  %v837 = vlaneseq
  %v838 = vshrl.u32 %v837, 7
  %v839 = vsub.s32 %v836, %v838
  %v840 = vrot.slane %v832, %v839
  %v842 = vunpack.c.l.s4 1966171168
  %v843 = vunpack.c.0.s8 %v842
  %v844 = vlaneseq
  %v845 = vshrl.u32 %v844, 7
  %v846 = vsub.s32 %v843, %v845
  %v847 = vrot.slane %v833, %v846
  %v848 = vcombine.high %v840, %v840
  %v850 = vunpack.c.l.s4 1966171168
  %v851 = vunpack.c.0.s8 %v850
  %v852 = vlaneseq
  %v853 = vshrl.u32 %v852, 7
  %v854 = vsub.s32 %v851, %v853
  %v855 = vrot.slane %v52, %v854
  %v856 = vcombine.high %v855, %v855
  %v858 = vunpack.c.l.s4 1966171168
  %v859 = vunpack.c.0.s8 %v858
  %v860 = vlaneseq
  %v861 = vshrl.u32 %v860, 7
  %v862 = vsub.s32 %v859, %v861
  %v863 = vrot.slane %v855, %v862
  %v865 = vunpack.c.l.s4 1966171168
  %v866 = vunpack.c.0.s8 %v865
  %v867 = vlaneseq
  %v868 = vshrl.u32 %v867, 7
  %v869 = vsub.s32 %v866, %v868
  %v870 = vrot.slane %v856, %v869
  %v871 = vcombine.high %v863, %v863
  %v873 = vunpack.c.l.s4 1966171168
  %v874 = vunpack.c.0.s8 %v873
  %v875 = vlaneseq
  %v876 = vshrl.u32 %v875, 7
  %v877 = vsub.s32 %v874, %v876
  %v878 = vrot.slane %v56, %v877
  %v879 = vcombine.high %v878, %v878
  %v881 = vunpack.c.l.s4 1966171168
  %v882 = vunpack.c.0.s8 %v881
  %v883 = vlaneseq
  %v884 = vshrl.u32 %v883, 7
  %v885 = vsub.s32 %v882, %v884
  %v886 = vrot.slane %v878, %v885
  %v888 = vunpack.c.l.s4 1966171168
  %v889 = vunpack.c.0.s8 %v888
  %v890 = vlaneseq
  %v891 = vshrl.u32 %v890, 7
  %v892 = vsub.s32 %v889, %v891
  %v893 = vrot.slane %v879, %v892
  %v894 = vcombine.high %v886, %v886
  %v896 = vunpack.c.l.s4 1966171168
  %v897 = vunpack.c.0.s8 %v896
  %v898 = vlaneseq
  %v899 = vshrl.u32 %v898, 7
  %v900 = vsub.s32 %v897, %v899
  %v901 = vrot.slane %v60, %v900
  %v902 = vcombine.high %v901, %v901
  %v904 = vunpack.c.l.s4 1966171168
  %v905 = vunpack.c.0.s8 %v904
  %v906 = vlaneseq
  %v907 = vshrl.u32 %v906, 7
  %v908 = vsub.s32 %v905, %v907
  %v909 = vrot.slane %v901, %v908
  %v911 = vunpack.c.l.s4 1966171168
  %v912 = vunpack.c.0.s8 %v911
  %v913 = vlaneseq
  %v914 = vshrl.u32 %v913, 7
  %v915 = vsub.s32 %v912, %v914
  %v916 = vrot.slane %v902, %v915
  %v917 = vcombine.high %v909, %v909
  %v919 = vunpack.c.l.s4 1966171168
  %v920 = vunpack.c.0.s8 %v919
  %v921 = vlaneseq
  %v922 = vshrl.u32 %v921, 7
  %v923 = vsub.s32 %v920, %v922
  %v924 = vrot.slane %v64, %v923
  %v925 = vcombine.high %v924, %v924
  %v927 = vunpack.c.l.s4 1966171168
  %v928 = vunpack.c.0.s8 %v927
  %v929 = vlaneseq
  %v930 = vshrl.u32 %v929, 7
  %v931 = vsub.s32 %v928, %v930
  %v932 = vrot.slane %v924, %v931
  %v934 = vunpack.c.l.s4 1966171168
  %v935 = vunpack.c.0.s8 %v934
  %v936 = vlaneseq
  %v937 = vshrl.u32 %v936, 7
  %v938 = vsub.s32 %v935, %v937
  %v939 = vrot.slane %v925, %v938
  %v940 = vcombine.high %v932, %v932
  %v941 = vcombine.high %v202, %v202
  %v942 = vcombine.high %v225, %v225
  %v943 = vcombine.high %v248, %v248
  %v944 = vcombine.high %v271, %v271
  %v945 = vcombine.high %v294, %v294
  %v946 = vcombine.high %v317, %v317
  %v947 = vcombine.high %v340, %v340
  %v948 = vcombine.high %v363, %v363
  %vm949 = vsmask.f32 256
  %vm950 = vsmask.f32 1284
  %vm951 = vmor %vm949, %vm950
  %vm952 = vsmask.f32 2312
  %vm953 = vmor %vm951, %vm952
  %vm954 = vsmask.f32 3340
  %vm955 = vmor %vm953, %vm954
  %vm956 = vsmask.f32 4368
  %vm957 = vmor %vm955, %vm956
  %vm958 = vsmask.f32 5396
  %vm959 = vmor %vm957, %vm958
  %vm960 = vsmask.f32 6424
  %vm961 = vmor %vm959, %vm960
  %vm962 = vsmask.f32 7452
  %vm963 = vmor %vm961, %vm962
  %v965 = vshrl.u32 %v195, 16
  %v967 = vrot.slane %v965, 7
  %v968 = vrot.slane %v967, 1
  %v970 = vshll.u32 %v202, 16
  %v972 = vsel %vm963, %v968, %v970
  %v973 = vshrl.u32 %v202, 16
  %v975 = vrot.slane %v973, 7
  %v976 = vrot.slane %v975, 1
  %v978 = vshll.u32 %v203, 16
  %v980 = vsel %vm963, %v976, %v978
  %v981 = vshrl.u32 %v203, 16
  %v983 = vrot.slane %v981, 7
  %v984 = vrot.slane %v983, 1
  %v986 = vshll.u32 %v941, 16
  %v988 = vsel %vm963, %v984, %v986
  %v990 = vshrl.u32 %v218, 16
  %v992 = vrot.slane %v990, 7
  %v993 = vrot.slane %v992, 1
  %v995 = vshll.u32 %v225, 16
  %v997 = vsel %vm963, %v993, %v995
  %v998 = vshrl.u32 %v225, 16
  %v1000 = vrot.slane %v998, 7
  %v1001 = vrot.slane %v1000, 1
  %v1003 = vshll.u32 %v226, 16
  %v1005 = vsel %vm963, %v1001, %v1003
  %v1006 = vshrl.u32 %v226, 16
  %v1008 = vrot.slane %v1006, 7
  %v1009 = vrot.slane %v1008, 1
  %v1011 = vshll.u32 %v942, 16
  %v1013 = vsel %vm963, %v1009, %v1011
  %v1015 = vshrl.u32 %v241, 16
  %v1017 = vrot.slane %v1015, 7
  %v1018 = vrot.slane %v1017, 1
  %v1020 = vshll.u32 %v248, 16
  %v1022 = vsel %vm963, %v1018, %v1020
  %v1023 = vshrl.u32 %v248, 16
  %v1025 = vrot.slane %v1023, 7
  %v1026 = vrot.slane %v1025, 1
  %v1028 = vshll.u32 %v249, 16
  %v1030 = vsel %vm963, %v1026, %v1028
  %v1031 = vshrl.u32 %v249, 16
  %v1033 = vrot.slane %v1031, 7
  %v1034 = vrot.slane %v1033, 1
  %v1036 = vshll.u32 %v943, 16
  %v1038 = vsel %vm963, %v1034, %v1036
  %v1040 = vshrl.u32 %v264, 16
  %v1042 = vrot.slane %v1040, 7
  %v1043 = vrot.slane %v1042, 1
  %v1045 = vshll.u32 %v271, 16
  %v1047 = vsel %vm963, %v1043, %v1045
  %v1048 = vshrl.u32 %v271, 16
  %v1050 = vrot.slane %v1048, 7
  %v1051 = vrot.slane %v1050, 1
  %v1053 = vshll.u32 %v272, 16
  %v1055 = vsel %vm963, %v1051, %v1053
  %v1056 = vshrl.u32 %v272, 16
  %v1058 = vrot.slane %v1056, 7
  %v1059 = vrot.slane %v1058, 1
  %v1061 = vshll.u32 %v944, 16
  %v1063 = vsel %vm963, %v1059, %v1061
  %v1065 = vshrl.u32 %v287, 16
  %v1067 = vrot.slane %v1065, 7
  %v1068 = vrot.slane %v1067, 1
  %v1070 = vshll.u32 %v294, 16
  %v1072 = vsel %vm963, %v1068, %v1070
  %v1073 = vshrl.u32 %v294, 16
  %v1075 = vrot.slane %v1073, 7
  %v1076 = vrot.slane %v1075, 1
  %v1078 = vshll.u32 %v295, 16
  %v1080 = vsel %vm963, %v1076, %v1078
  %v1081 = vshrl.u32 %v295, 16
  %v1083 = vrot.slane %v1081, 7
  %v1084 = vrot.slane %v1083, 1
  %v1086 = vshll.u32 %v945, 16
  %v1088 = vsel %vm963, %v1084, %v1086
  %v1090 = vshrl.u32 %v310, 16
  %v1092 = vrot.slane %v1090, 7
  %v1093 = vrot.slane %v1092, 1
  %v1095 = vshll.u32 %v317, 16
  %v1097 = vsel %vm963, %v1093, %v1095
  %v1098 = vshrl.u32 %v317, 16
  %v1100 = vrot.slane %v1098, 7
  %v1101 = vrot.slane %v1100, 1
  %v1103 = vshll.u32 %v318, 16
  %v1105 = vsel %vm963, %v1101, %v1103
  %v1106 = vshrl.u32 %v318, 16
  %v1108 = vrot.slane %v1106, 7
  %v1109 = vrot.slane %v1108, 1
  %v1111 = vshll.u32 %v946, 16
  %v1113 = vsel %vm963, %v1109, %v1111
  %v1115 = vshrl.u32 %v333, 16
  %v1117 = vrot.slane %v1115, 7
  %v1118 = vrot.slane %v1117, 1
  %v1120 = vshll.u32 %v340, 16
  %v1122 = vsel %vm963, %v1118, %v1120
  %v1123 = vshrl.u32 %v340, 16
  %v1125 = vrot.slane %v1123, 7
  %v1126 = vrot.slane %v1125, 1
  %v1128 = vshll.u32 %v341, 16
  %v1130 = vsel %vm963, %v1126, %v1128
  %v1131 = vshrl.u32 %v341, 16
  %v1133 = vrot.slane %v1131, 7
  %v1134 = vrot.slane %v1133, 1
  %v1136 = vshll.u32 %v947, 16
  %v1138 = vsel %vm963, %v1134, %v1136
  %v1140 = vshrl.u32 %v356, 16
  %v1142 = vrot.slane %v1140, 7
  %v1143 = vrot.slane %v1142, 1
  %v1145 = vshll.u32 %v363, 16
  %v1147 = vsel %vm963, %v1143, %v1145
  %v1148 = vshrl.u32 %v363, 16
  %v1150 = vrot.slane %v1148, 7
  %v1151 = vrot.slane %v1150, 1
  %v1153 = vshll.u32 %v364, 16
  %v1155 = vsel %vm963, %v1151, %v1153
  %v1156 = vshrl.u32 %v364, 16
  %v1158 = vrot.slane %v1156, 7
  %v1159 = vrot.slane %v1158, 1
  %v1161 = vshll.u32 %v948, 16
  %v1163 = vsel %vm963, %v1159, %v1161
  %v1164 = vcombine.high %v394, %v394
  %v1165 = vcombine.high %v417, %v417
  %v1166 = vcombine.high %v440, %v440
  %v1167 = vcombine.high %v463, %v463
  %v1168 = vcombine.high %v486, %v486
  %v1169 = vcombine.high %v509, %v509
  %v1170 = vcombine.high %v532, %v532
  %v1171 = vcombine.high %v555, %v555
  %v1173 = vshrl.u32 %v387, 16
  %v1175 = vrot.slane %v1173, 7
  %v1176 = vrot.slane %v1175, 1
  %v1178 = vshll.u32 %v394, 16
  %v1180 = vsel %vm963, %v1176, %v1178
  %v1181 = vshrl.u32 %v394, 16
  %v1183 = vrot.slane %v1181, 7
  %v1184 = vrot.slane %v1183, 1
  %v1186 = vshll.u32 %v395, 16
  %v1188 = vsel %vm963, %v1184, %v1186
  %v1189 = vshrl.u32 %v395, 16
  %v1191 = vrot.slane %v1189, 7
  %v1192 = vrot.slane %v1191, 1
  %v1194 = vshll.u32 %v1164, 16
  %v1196 = vsel %vm963, %v1192, %v1194
  %v1198 = vshrl.u32 %v410, 16
  %v1200 = vrot.slane %v1198, 7
  %v1201 = vrot.slane %v1200, 1
  %v1203 = vshll.u32 %v417, 16
  %v1205 = vsel %vm963, %v1201, %v1203
  %v1206 = vshrl.u32 %v417, 16
  %v1208 = vrot.slane %v1206, 7
  %v1209 = vrot.slane %v1208, 1
  %v1211 = vshll.u32 %v418, 16
  %v1213 = vsel %vm963, %v1209, %v1211
  %v1214 = vshrl.u32 %v418, 16
  %v1216 = vrot.slane %v1214, 7
  %v1217 = vrot.slane %v1216, 1
  %v1219 = vshll.u32 %v1165, 16
  %v1221 = vsel %vm963, %v1217, %v1219
  %v1223 = vshrl.u32 %v433, 16
  %v1225 = vrot.slane %v1223, 7
  %v1226 = vrot.slane %v1225, 1
  %v1228 = vshll.u32 %v440, 16
  %v1230 = vsel %vm963, %v1226, %v1228
  %v1231 = vshrl.u32 %v440, 16
  %v1233 = vrot.slane %v1231, 7
  %v1234 = vrot.slane %v1233, 1
  %v1236 = vshll.u32 %v441, 16
  %v1238 = vsel %vm963, %v1234, %v1236
  %v1239 = vshrl.u32 %v441, 16
  %v1241 = vrot.slane %v1239, 7
  %v1242 = vrot.slane %v1241, 1
  %v1244 = vshll.u32 %v1166, 16
  %v1246 = vsel %vm963, %v1242, %v1244
  %v1248 = vshrl.u32 %v456, 16
  %v1250 = vrot.slane %v1248, 7
  %v1251 = vrot.slane %v1250, 1
  %v1253 = vshll.u32 %v463, 16
  %v1255 = vsel %vm963, %v1251, %v1253
  %v1256 = vshrl.u32 %v463, 16
  %v1258 = vrot.slane %v1256, 7
  %v1259 = vrot.slane %v1258, 1
  %v1261 = vshll.u32 %v464, 16
  %v1263 = vsel %vm963, %v1259, %v1261
  %v1264 = vshrl.u32 %v464, 16
  %v1266 = vrot.slane %v1264, 7
  %v1267 = vrot.slane %v1266, 1
  %v1269 = vshll.u32 %v1167, 16
  %v1271 = vsel %vm963, %v1267, %v1269
  %v1273 = vshrl.u32 %v479, 16
  %v1275 = vrot.slane %v1273, 7
  %v1276 = vrot.slane %v1275, 1
  %v1278 = vshll.u32 %v486, 16
  %v1280 = vsel %vm963, %v1276, %v1278
  %v1281 = vshrl.u32 %v486, 16
  %v1283 = vrot.slane %v1281, 7
  %v1284 = vrot.slane %v1283, 1
  %v1286 = vshll.u32 %v487, 16
  %v1288 = vsel %vm963, %v1284, %v1286
  %v1289 = vshrl.u32 %v487, 16
  %v1291 = vrot.slane %v1289, 7
  %v1292 = vrot.slane %v1291, 1
  %v1294 = vshll.u32 %v1168, 16
  %v1296 = vsel %vm963, %v1292, %v1294
  %v1298 = vshrl.u32 %v502, 16
  %v1300 = vrot.slane %v1298, 7
  %v1301 = vrot.slane %v1300, 1
  %v1303 = vshll.u32 %v509, 16
  %v1305 = vsel %vm963, %v1301, %v1303
  %v1306 = vshrl.u32 %v509, 16
  %v1308 = vrot.slane %v1306, 7
  %v1309 = vrot.slane %v1308, 1
  %v1311 = vshll.u32 %v510, 16
  %v1313 = vsel %vm963, %v1309, %v1311
  %v1314 = vshrl.u32 %v510, 16
  %v1316 = vrot.slane %v1314, 7
  %v1317 = vrot.slane %v1316, 1
  %v1319 = vshll.u32 %v1169, 16
  %v1321 = vsel %vm963, %v1317, %v1319
  %v1323 = vshrl.u32 %v525, 16
  %v1325 = vrot.slane %v1323, 7
  %v1326 = vrot.slane %v1325, 1
  %v1328 = vshll.u32 %v532, 16
  %v1330 = vsel %vm963, %v1326, %v1328
  %v1331 = vshrl.u32 %v532, 16
  %v1333 = vrot.slane %v1331, 7
  %v1334 = vrot.slane %v1333, 1
  %v1336 = vshll.u32 %v533, 16
  %v1338 = vsel %vm963, %v1334, %v1336
  %v1339 = vshrl.u32 %v533, 16
  %v1341 = vrot.slane %v1339, 7
  %v1342 = vrot.slane %v1341, 1
  %v1344 = vshll.u32 %v1170, 16
  %v1346 = vsel %vm963, %v1342, %v1344
  %v1348 = vshrl.u32 %v548, 16
  %v1350 = vrot.slane %v1348, 7
  %v1351 = vrot.slane %v1350, 1
  %v1353 = vshll.u32 %v555, 16
  %v1355 = vsel %vm963, %v1351, %v1353
  %v1356 = vshrl.u32 %v555, 16
  %v1358 = vrot.slane %v1356, 7
  %v1359 = vrot.slane %v1358, 1
  %v1361 = vshll.u32 %v556, 16
  %v1363 = vsel %vm963, %v1359, %v1361
  %v1364 = vshrl.u32 %v556, 16
  %v1366 = vrot.slane %v1364, 7
  %v1367 = vrot.slane %v1366, 1
  %v1369 = vshll.u32 %v1171, 16
  %v1371 = vsel %vm963, %v1367, %v1369
  %v1372 = vcombine.high %v586, %v586
  %v1373 = vcombine.high %v609, %v609
  %v1374 = vcombine.high %v632, %v632
  %v1375 = vcombine.high %v655, %v655
  %v1376 = vcombine.high %v678, %v678
  %v1377 = vcombine.high %v701, %v701
  %v1378 = vcombine.high %v724, %v724
  %v1379 = vcombine.high %v747, %v747
  %v1381 = vshrl.u32 %v579, 16
  %v1383 = vrot.slane %v1381, 7
  %v1384 = vrot.slane %v1383, 1
  %v1386 = vshll.u32 %v586, 16
  %v1388 = vsel %vm963, %v1384, %v1386
  %v1389 = vshrl.u32 %v586, 16
  %v1391 = vrot.slane %v1389, 7
  %v1392 = vrot.slane %v1391, 1
  %v1394 = vshll.u32 %v587, 16
  %v1396 = vsel %vm963, %v1392, %v1394
  %v1397 = vshrl.u32 %v587, 16
  %v1399 = vrot.slane %v1397, 7
  %v1400 = vrot.slane %v1399, 1
  %v1402 = vshll.u32 %v1372, 16
  %v1404 = vsel %vm963, %v1400, %v1402
  %v1406 = vshrl.u32 %v602, 16
  %v1408 = vrot.slane %v1406, 7
  %v1409 = vrot.slane %v1408, 1
  %v1411 = vshll.u32 %v609, 16
  %v1413 = vsel %vm963, %v1409, %v1411
  %v1414 = vshrl.u32 %v609, 16
  %v1416 = vrot.slane %v1414, 7
  %v1417 = vrot.slane %v1416, 1
  %v1419 = vshll.u32 %v610, 16
  %v1421 = vsel %vm963, %v1417, %v1419
  %v1422 = vshrl.u32 %v610, 16
  %v1424 = vrot.slane %v1422, 7
  %v1425 = vrot.slane %v1424, 1
  %v1427 = vshll.u32 %v1373, 16
  %v1429 = vsel %vm963, %v1425, %v1427
  %v1431 = vshrl.u32 %v625, 16
  %v1433 = vrot.slane %v1431, 7
  %v1434 = vrot.slane %v1433, 1
  %v1436 = vshll.u32 %v632, 16
  %v1438 = vsel %vm963, %v1434, %v1436
  %v1439 = vshrl.u32 %v632, 16
  %v1441 = vrot.slane %v1439, 7
  %v1442 = vrot.slane %v1441, 1
  %v1444 = vshll.u32 %v633, 16
  %v1446 = vsel %vm963, %v1442, %v1444
  %v1447 = vshrl.u32 %v633, 16
  %v1449 = vrot.slane %v1447, 7
  %v1450 = vrot.slane %v1449, 1
  %v1452 = vshll.u32 %v1374, 16
  %v1454 = vsel %vm963, %v1450, %v1452
  %v1456 = vshrl.u32 %v648, 16
  %v1458 = vrot.slane %v1456, 7
  %v1459 = vrot.slane %v1458, 1
  %v1461 = vshll.u32 %v655, 16
  %v1463 = vsel %vm963, %v1459, %v1461
  %v1464 = vshrl.u32 %v655, 16
  %v1466 = vrot.slane %v1464, 7
  %v1467 = vrot.slane %v1466, 1
  %v1469 = vshll.u32 %v656, 16
  %v1471 = vsel %vm963, %v1467, %v1469
  %v1472 = vshrl.u32 %v656, 16
  %v1474 = vrot.slane %v1472, 7
  %v1475 = vrot.slane %v1474, 1
  %v1477 = vshll.u32 %v1375, 16
  %v1479 = vsel %vm963, %v1475, %v1477
  %v1481 = vshrl.u32 %v671, 16
  %v1483 = vrot.slane %v1481, 7
  %v1484 = vrot.slane %v1483, 1
  %v1486 = vshll.u32 %v678, 16
  %v1488 = vsel %vm963, %v1484, %v1486
  %v1489 = vshrl.u32 %v678, 16
  %v1491 = vrot.slane %v1489, 7
  %v1492 = vrot.slane %v1491, 1
  %v1494 = vshll.u32 %v679, 16
  %v1496 = vsel %vm963, %v1492, %v1494
  %v1497 = vshrl.u32 %v679, 16
  %v1499 = vrot.slane %v1497, 7
  %v1500 = vrot.slane %v1499, 1
  %v1502 = vshll.u32 %v1376, 16
  %v1504 = vsel %vm963, %v1500, %v1502
  %v1506 = vshrl.u32 %v694, 16
  %v1508 = vrot.slane %v1506, 7
  %v1509 = vrot.slane %v1508, 1
  %v1511 = vshll.u32 %v701, 16
  %v1513 = vsel %vm963, %v1509, %v1511
  %v1514 = vshrl.u32 %v701, 16
  %v1516 = vrot.slane %v1514, 7
  %v1517 = vrot.slane %v1516, 1
  %v1519 = vshll.u32 %v702, 16
  %v1521 = vsel %vm963, %v1517, %v1519
  %v1522 = vshrl.u32 %v702, 16
  %v1524 = vrot.slane %v1522, 7
  %v1525 = vrot.slane %v1524, 1
  %v1527 = vshll.u32 %v1377, 16
  %v1529 = vsel %vm963, %v1525, %v1527
  %v1531 = vshrl.u32 %v717, 16
  %v1533 = vrot.slane %v1531, 7
  %v1534 = vrot.slane %v1533, 1
  %v1536 = vshll.u32 %v724, 16
  %v1538 = vsel %vm963, %v1534, %v1536
  %v1539 = vshrl.u32 %v724, 16
  %v1541 = vrot.slane %v1539, 7
  %v1542 = vrot.slane %v1541, 1
  %v1544 = vshll.u32 %v725, 16
  %v1546 = vsel %vm963, %v1542, %v1544
  %v1547 = vshrl.u32 %v725, 16
  %v1549 = vrot.slane %v1547, 7
  %v1550 = vrot.slane %v1549, 1
  %v1552 = vshll.u32 %v1378, 16
  %v1554 = vsel %vm963, %v1550, %v1552
  %v1556 = vshrl.u32 %v740, 16
  %v1558 = vrot.slane %v1556, 7
  %v1559 = vrot.slane %v1558, 1
  %v1561 = vshll.u32 %v747, 16
  %v1563 = vsel %vm963, %v1559, %v1561
  %v1564 = vshrl.u32 %v747, 16
  %v1566 = vrot.slane %v1564, 7
  %v1567 = vrot.slane %v1566, 1
  %v1569 = vshll.u32 %v748, 16
  %v1571 = vsel %vm963, %v1567, %v1569
  %v1572 = vshrl.u32 %v748, 16
  %v1574 = vrot.slane %v1572, 7
  %v1575 = vrot.slane %v1574, 1
  %v1577 = vshll.u32 %v1379, 16
  %v1579 = vsel %vm963, %v1575, %v1577
  %v1580 = vcombine.high %v778, %v778
  %v1581 = vcombine.high %v801, %v801
  %v1582 = vcombine.high %v824, %v824
  %v1583 = vcombine.high %v847, %v847
  %v1584 = vcombine.high %v870, %v870
  %v1585 = vcombine.high %v893, %v893
  %v1586 = vcombine.high %v916, %v916
  %v1587 = vcombine.high %v939, %v939
  %v1589 = vshrl.u32 %v771, 16
  %v1591 = vrot.slane %v1589, 7
  %v1592 = vrot.slane %v1591, 1
  %v1594 = vshll.u32 %v778, 16
  %v1596 = vsel %vm963, %v1592, %v1594
  %v1597 = vshrl.u32 %v778, 16
  %v1599 = vrot.slane %v1597, 7
  %v1600 = vrot.slane %v1599, 1
  %v1602 = vshll.u32 %v779, 16
  %v1604 = vsel %vm963, %v1600, %v1602
  %v1605 = vshrl.u32 %v779, 16
  %v1607 = vrot.slane %v1605, 7
  %v1608 = vrot.slane %v1607, 1
  %v1610 = vshll.u32 %v1580, 16
  %v1612 = vsel %vm963, %v1608, %v1610
  %v1614 = vshrl.u32 %v794, 16
  %v1616 = vrot.slane %v1614, 7
  %v1617 = vrot.slane %v1616, 1
  %v1619 = vshll.u32 %v801, 16
  %v1621 = vsel %vm963, %v1617, %v1619
  %v1622 = vshrl.u32 %v801, 16
  %v1624 = vrot.slane %v1622, 7
  %v1625 = vrot.slane %v1624, 1
  %v1627 = vshll.u32 %v802, 16
  %v1629 = vsel %vm963, %v1625, %v1627
  %v1630 = vshrl.u32 %v802, 16
  %v1632 = vrot.slane %v1630, 7
  %v1633 = vrot.slane %v1632, 1
  %v1635 = vshll.u32 %v1581, 16
  %v1637 = vsel %vm963, %v1633, %v1635
  %v1639 = vshrl.u32 %v817, 16
  %v1641 = vrot.slane %v1639, 7
  %v1642 = vrot.slane %v1641, 1
  %v1644 = vshll.u32 %v824, 16
  %v1646 = vsel %vm963, %v1642, %v1644
  %v1647 = vshrl.u32 %v824, 16
  %v1649 = vrot.slane %v1647, 7
  %v1650 = vrot.slane %v1649, 1
  %v1652 = vshll.u32 %v825, 16
  %v1654 = vsel %vm963, %v1650, %v1652
  %v1655 = vshrl.u32 %v825, 16
  %v1657 = vrot.slane %v1655, 7
  %v1658 = vrot.slane %v1657, 1
  %v1660 = vshll.u32 %v1582, 16
  %v1662 = vsel %vm963, %v1658, %v1660
  %v1664 = vshrl.u32 %v840, 16
  %v1666 = vrot.slane %v1664, 7
  %v1667 = vrot.slane %v1666, 1
  %v1669 = vshll.u32 %v847, 16
  %v1671 = vsel %vm963, %v1667, %v1669
  %v1672 = vshrl.u32 %v847, 16
  %v1674 = vrot.slane %v1672, 7
  %v1675 = vrot.slane %v1674, 1
  %v1677 = vshll.u32 %v848, 16
  %v1679 = vsel %vm963, %v1675, %v1677
  %v1680 = vshrl.u32 %v848, 16
  %v1682 = vrot.slane %v1680, 7
  %v1683 = vrot.slane %v1682, 1
  %v1685 = vshll.u32 %v1583, 16
  %v1687 = vsel %vm963, %v1683, %v1685
  %v1689 = vshrl.u32 %v863, 16
  %v1691 = vrot.slane %v1689, 7
  %v1692 = vrot.slane %v1691, 1
  %v1694 = vshll.u32 %v870, 16
  %v1696 = vsel %vm963, %v1692, %v1694
  %v1697 = vshrl.u32 %v870, 16
  %v1699 = vrot.slane %v1697, 7
  %v1700 = vrot.slane %v1699, 1
  %v1702 = vshll.u32 %v871, 16
  %v1704 = vsel %vm963, %v1700, %v1702
  %v1705 = vshrl.u32 %v871, 16
  %v1707 = vrot.slane %v1705, 7
  %v1708 = vrot.slane %v1707, 1
  %v1710 = vshll.u32 %v1584, 16
  %v1712 = vsel %vm963, %v1708, %v1710
  %v1714 = vshrl.u32 %v886, 16
  %v1716 = vrot.slane %v1714, 7
  %v1717 = vrot.slane %v1716, 1
  %v1719 = vshll.u32 %v893, 16
  %v1721 = vsel %vm963, %v1717, %v1719
  %v1722 = vshrl.u32 %v893, 16
  %v1724 = vrot.slane %v1722, 7
  %v1725 = vrot.slane %v1724, 1
  %v1727 = vshll.u32 %v894, 16
  %v1729 = vsel %vm963, %v1725, %v1727
  %v1730 = vshrl.u32 %v894, 16
  %v1732 = vrot.slane %v1730, 7
  %v1733 = vrot.slane %v1732, 1
  %v1735 = vshll.u32 %v1585, 16
  %v1737 = vsel %vm963, %v1733, %v1735
  %v1739 = vshrl.u32 %v909, 16
  %v1741 = vrot.slane %v1739, 7
  %v1742 = vrot.slane %v1741, 1
  %v1744 = vshll.u32 %v916, 16
  %v1746 = vsel %vm963, %v1742, %v1744
  %v1747 = vshrl.u32 %v916, 16
  %v1749 = vrot.slane %v1747, 7
  %v1750 = vrot.slane %v1749, 1
  %v1752 = vshll.u32 %v917, 16
  %v1754 = vsel %vm963, %v1750, %v1752
  %v1755 = vshrl.u32 %v917, 16
  %v1757 = vrot.slane %v1755, 7
  %v1758 = vrot.slane %v1757, 1
  %v1760 = vshll.u32 %v1586, 16
  %v1762 = vsel %vm963, %v1758, %v1760
  %v1764 = vshrl.u32 %v932, 16
  %v1766 = vrot.slane %v1764, 7
  %v1767 = vrot.slane %v1766, 1
  %v1769 = vshll.u32 %v939, 16
  %v1771 = vsel %vm963, %v1767, %v1769
  %v1772 = vshrl.u32 %v939, 16
  %v1774 = vrot.slane %v1772, 7
  %v1775 = vrot.slane %v1774, 1
  %v1777 = vshll.u32 %v940, 16
  %v1779 = vsel %vm963, %v1775, %v1777
  %v1780 = vshrl.u32 %v940, 16
  %v1782 = vrot.slane %v1780, 7
  %v1783 = vrot.slane %v1782, 1
  %v1785 = vshll.u32 %v1587, 16
  %v1787 = vsel %vm963, %v1783, %v1785
  %v1788 = vcombine.low %v387, %v394
  %v1789 = vcombine.low %v395, %v410
  %v1790 = vcombine.low %v417, %v418
  %v1791 = vcombine.low %v433, %v440
  %v1793 = vunpack.c.l.s4 1966171168
  %v1794 = vunpack.c.0.s8 %v1793
  %v1795 = vlaneseq
  %v1796 = vshrl.u32 %v1795, 7
  %v1797 = vsub.s32 %v1794, %v1796
  %v1798 = vrot.slane %v1788, %v1797
  %v1800 = vunpack.c.l.s4 1966171168
  %v1801 = vunpack.c.0.s8 %v1800
  %v1802 = vlaneseq
  %v1803 = vshrl.u32 %v1802, 7
  %v1804 = vsub.s32 %v1801, %v1803
  %v1805 = vrot.slane %v1789, %v1804
  %v1807 = vunpack.c.l.s4 1966171168
  %v1808 = vunpack.c.0.s8 %v1807
  %v1809 = vlaneseq
  %v1810 = vshrl.u32 %v1809, 7
  %v1811 = vsub.s32 %v1808, %v1810
  %v1812 = vrot.slane %v1790, %v1811
  %v1814 = vunpack.c.l.s4 1966171168
  %v1815 = vunpack.c.0.s8 %v1814
  %v1816 = vlaneseq
  %v1817 = vshrl.u32 %v1816, 7
  %v1818 = vsub.s32 %v1815, %v1817
  %v1819 = vrot.slane %v1791, %v1818
  %v1820 = vcombine.low %v1798, %v1805
  %v1821 = vcombine.low %v1812, %v1819
  %v1823 = vunpack.c.l.s4 1966171168
  %v1824 = vunpack.c.0.s8 %v1823
  %v1825 = vlaneseq
  %v1826 = vshrl.u32 %v1825, 7
  %v1827 = vsub.s32 %v1824, %v1826
  %v1828 = vrot.slane %v1820, %v1827
  %v1830 = vunpack.c.l.s4 1966171168
  %v1831 = vunpack.c.0.s8 %v1830
  %v1832 = vlaneseq
  %v1833 = vshrl.u32 %v1832, 7
  %v1834 = vsub.s32 %v1831, %v1833
  %v1835 = vrot.slane %v1821, %v1834
  %v1836 = vcombine.low %v1828, %v1835
  %v1837 = vcombine.low %v441, %v456
  %v1838 = vcombine.low %v463, %v464
  %v1839 = vcombine.low %v479, %v486
  %v1840 = vcombine.low %v487, %v502
  %v1842 = vunpack.c.l.s4 1966171168
  %v1843 = vunpack.c.0.s8 %v1842
  %v1844 = vlaneseq
  %v1845 = vshrl.u32 %v1844, 7
  %v1846 = vsub.s32 %v1843, %v1845
  %v1847 = vrot.slane %v1837, %v1846
  %v1849 = vunpack.c.l.s4 1966171168
  %v1850 = vunpack.c.0.s8 %v1849
  %v1851 = vlaneseq
  %v1852 = vshrl.u32 %v1851, 7
  %v1853 = vsub.s32 %v1850, %v1852
  %v1854 = vrot.slane %v1838, %v1853
  %v1856 = vunpack.c.l.s4 1966171168
  %v1857 = vunpack.c.0.s8 %v1856
  %v1858 = vlaneseq
  %v1859 = vshrl.u32 %v1858, 7
  %v1860 = vsub.s32 %v1857, %v1859
  %v1861 = vrot.slane %v1839, %v1860
  %v1863 = vunpack.c.l.s4 1966171168
  %v1864 = vunpack.c.0.s8 %v1863
  %v1865 = vlaneseq
  %v1866 = vshrl.u32 %v1865, 7
  %v1867 = vsub.s32 %v1864, %v1866
  %v1868 = vrot.slane %v1840, %v1867
  %v1869 = vcombine.low %v1847, %v1854
  %v1870 = vcombine.low %v1861, %v1868
  %v1872 = vunpack.c.l.s4 1966171168
  %v1873 = vunpack.c.0.s8 %v1872
  %v1874 = vlaneseq
  %v1875 = vshrl.u32 %v1874, 7
  %v1876 = vsub.s32 %v1873, %v1875
  %v1877 = vrot.slane %v1869, %v1876
  %v1879 = vunpack.c.l.s4 1966171168
  %v1880 = vunpack.c.0.s8 %v1879
  %v1881 = vlaneseq
  %v1882 = vshrl.u32 %v1881, 7
  %v1883 = vsub.s32 %v1880, %v1882
  %v1884 = vrot.slane %v1870, %v1883
  %v1885 = vcombine.low %v1877, %v1884
  %v1886 = vcombine.low %v509, %v510
  %v1887 = vcombine.low %v525, %v532
  %v1888 = vcombine.low %v533, %v548
  %v1889 = vcombine.low %v555, %v556
  %v1891 = vunpack.c.l.s4 1966171168
  %v1892 = vunpack.c.0.s8 %v1891
  %v1893 = vlaneseq
  %v1894 = vshrl.u32 %v1893, 7
  %v1895 = vsub.s32 %v1892, %v1894
  %v1896 = vrot.slane %v1886, %v1895
  %v1898 = vunpack.c.l.s4 1966171168
  %v1899 = vunpack.c.0.s8 %v1898
  %v1900 = vlaneseq
  %v1901 = vshrl.u32 %v1900, 7
  %v1902 = vsub.s32 %v1899, %v1901
  %v1903 = vrot.slane %v1887, %v1902
  %v1905 = vunpack.c.l.s4 1966171168
  %v1906 = vunpack.c.0.s8 %v1905
  %v1907 = vlaneseq
  %v1908 = vshrl.u32 %v1907, 7
  %v1909 = vsub.s32 %v1906, %v1908
  %v1910 = vrot.slane %v1888, %v1909
  %v1912 = vunpack.c.l.s4 1966171168
  %v1913 = vunpack.c.0.s8 %v1912
  %v1914 = vlaneseq
  %v1915 = vshrl.u32 %v1914, 7
  %v1916 = vsub.s32 %v1913, %v1915
  %v1917 = vrot.slane %v1889, %v1916
  %v1918 = vcombine.low %v1896, %v1903
  %v1919 = vcombine.low %v1910, %v1917
  %v1921 = vunpack.c.l.s4 1966171168
  %v1922 = vunpack.c.0.s8 %v1921
  %v1923 = vlaneseq
  %v1924 = vshrl.u32 %v1923, 7
  %v1925 = vsub.s32 %v1922, %v1924
  %v1926 = vrot.slane %v1918, %v1925
  %v1928 = vunpack.c.l.s4 1966171168
  %v1929 = vunpack.c.0.s8 %v1928
  %v1930 = vlaneseq
  %v1931 = vshrl.u32 %v1930, 7
  %v1932 = vsub.s32 %v1929, %v1931
  %v1933 = vrot.slane %v1919, %v1932
  %v1934 = vcombine.low %v1926, %v1933
  %v1939 = vunpack.c.l.b16 %v70
  %v1940 = vunpack.c.h.b16 %v70
  %v1941 = vunpack.c.l.b16 %v71
  %v1942 = vunpack.c.h.b16 %v71
  %v1943 = vunpack.c.l.b16 %v72
  %v1944 = vunpack.c.h.b16 %v72
  %v1945 = vunpack.c.l.b16 %v73
  %v1946 = vunpack.c.h.b16 %v73
  %v1947 = vpack.c.b16 %v1941, %v1939
  %v1948 = vpack.c.b16 %v1942, %v1940
  %v1949 = vpack.c.b16 %v1945, %v1943
  %v1950 = vpack.c.b16 %v1946, %v1944
  %vm1955 = vcmask 261120
  %v1957 = vsel %vm1955, %v1836, 0
  %v1960 = vsel %vm1955, %v1885, 0
  %v1963 = vsel %vm1955, %v1934, 0
  %1965 = vmatprep.subr.bf16.mxu0 %v1948
  %1966 = vmatpush1.bf16.msra.mxu0 %v1947
  %1967 = vmatprep.subr.bf16.mxu0 %v1950
  %1968 = vmatpush1.bf16.msra.mxu0 %v1949
  %1969 = vmatprep.subr.bf16.mxu0 0
  %1970 = vmatpush1.bf16.msra.mxu0 0
  %1971 = vmatprep.subr.bf16.mxu0 0
  %1972 = vmatpush1.bf16.msra.mxu0 0
  %1973 = vmatprep.subr.bf16.mxu0 0
  %1974 = vmatpush1.bf16.msra.mxu0 0
  %1975 = vmatprep.subr.bf16.mxu0 0
  %1976 = vmatpush1.bf16.msra.mxu0 0
  %1977 = vmatprep.subr.bf16.mxu0 0
  %1978 = vmatpush1.bf16.msra.mxu0 0
  %1979 = vmatprep.subr.bf16.mxu0 0
  %1980 = vmatpush1.bf16.msra.mxu0 0
  %1981 = vmatprep.subr.bf16.mxu0 0
  %1982 = vmatpush1.bf16.msra.mxu0 0
  %1983 = vmatprep.subr.bf16.mxu0 0
  %1984 = vmatpush1.bf16.msra.mxu0 0
  %1985 = vmatprep.subr.bf16.mxu0 0
  %1986 = vmatpush1.bf16.msra.mxu0 0
  %1987 = vmatprep.subr.bf16.mxu0 0
  %1988 = vmatpush1.bf16.msra.mxu0 0
  %1989 = vmatprep.subr.bf16.mxu0 0
  %1990 = vmatpush1.bf16.msra.mxu0 0
  %1991 = vmatprep.subr.bf16.mxu0 0
  %1992 = vmatpush1.bf16.msra.mxu0 0
  %1993 = vmatprep.subr.bf16.mxu0 0
  %1994 = vmatpush1.bf16.msra.mxu0 0
  %1995 = vmatprep.subr.bf16.mxu0 0
  %1996 = vmatpush1.bf16.msra.mxu0 0
  %1997 = vmatprep.mubr.bf16.mxu0 0
  %1998 = vmatmul.mubr.bf16.gmra.mrb[0].mxu0 %v1957
  %v1999 = vpop.f32.mrb[0].mxu0
  %v2000 = vadd.f32 0.0, %v1999
  %v2001 = vpop.f32.mrb[0].mxu0
  %v2002 = vadd.f32 0.0, %v2001
  %v2003 = vpop.f32.mrb[0].mxu0
  %v2004 = vadd.f32 0.0, %v2003
  %v2005 = vpop.f32.mrb[0].mxu0
  %v2006 = vadd.f32 0.0, %v2005
  %2007 = vmatprep.mubr.bf16.mxu0 0
  %2008 = vmatmul.mubr.bf16.gmra.mrb[0].mxu0 %v1960
  %v2009 = vpop.f32.mrb[0].mxu0
  %v2010 = vadd.f32 0.0, %v2009
  %v2011 = vpop.f32.mrb[0].mxu0
  %v2012 = vadd.f32 0.0, %v2011
  %v2013 = vpop.f32.mrb[0].mxu0
  %v2014 = vadd.f32 0.0, %v2013
  %v2015 = vpop.f32.mrb[0].mxu0
  %v2016 = vadd.f32 0.0, %v2015
  %2017 = vmatprep.mubr.bf16.mxu0 0
  %2018 = vmatmul.mubr.bf16.gmra.mrb[0].mxu0 %v1963
  %v2019 = vpop.f32.mrb[0].mxu0
  %v2020 = vadd.f32 0.0, %v2019
  %v2021 = vpop.f32.mrb[0].mxu0
  %v2022 = vadd.f32 0.0, %v2021
  %v2023 = vpop.f32.mrb[0].mxu0
  %v2024 = vadd.f32 0.0, %v2023
  %v2025 = vpop.f32.mrb[0].mxu0
  %v2026 = vadd.f32 0.0, %v2025
  %2027 = vdwg.mxu0
  %v2028 = vcombine.low %v195, %v202
  %v2029 = vcombine.low %v203, %v218
  %v2030 = vcombine.low %v225, %v226
  %v2031 = vcombine.low %v241, %v248
  %v2033 = vunpack.c.l.s4 1966171168
  %v2034 = vunpack.c.0.s8 %v2033
  %v2035 = vlaneseq
  %v2036 = vshrl.u32 %v2035, 7
  %v2037 = vsub.s32 %v2034, %v2036
  %v2038 = vrot.slane %v2028, %v2037
  %v2040 = vunpack.c.l.s4 1966171168
  %v2041 = vunpack.c.0.s8 %v2040
  %v2042 = vlaneseq
  %v2043 = vshrl.u32 %v2042, 7
  %v2044 = vsub.s32 %v2041, %v2043
  %v2045 = vrot.slane %v2029, %v2044
  %v2047 = vunpack.c.l.s4 1966171168
  %v2048 = vunpack.c.0.s8 %v2047
  %v2049 = vlaneseq
  %v2050 = vshrl.u32 %v2049, 7
  %v2051 = vsub.s32 %v2048, %v2050
  %v2052 = vrot.slane %v2030, %v2051
  %v2054 = vunpack.c.l.s4 1966171168
  %v2055 = vunpack.c.0.s8 %v2054
  %v2056 = vlaneseq
  %v2057 = vshrl.u32 %v2056, 7
  %v2058 = vsub.s32 %v2055, %v2057
  %v2059 = vrot.slane %v2031, %v2058
  %v2060 = vcombine.low %v2038, %v2045
  %v2061 = vcombine.low %v2052, %v2059
  %v2063 = vunpack.c.l.s4 1966171168
  %v2064 = vunpack.c.0.s8 %v2063
  %v2065 = vlaneseq
  %v2066 = vshrl.u32 %v2065, 7
  %v2067 = vsub.s32 %v2064, %v2066
  %v2068 = vrot.slane %v2060, %v2067
  %v2070 = vunpack.c.l.s4 1966171168
  %v2071 = vunpack.c.0.s8 %v2070
  %v2072 = vlaneseq
  %v2073 = vshrl.u32 %v2072, 7
  %v2074 = vsub.s32 %v2071, %v2073
  %v2075 = vrot.slane %v2061, %v2074
  %v2076 = vcombine.low %v2068, %v2075
  %v2077 = vcombine.low %v249, %v264
  %v2078 = vcombine.low %v271, %v272
  %v2079 = vcombine.low %v287, %v294
  %v2080 = vcombine.low %v295, %v310
  %v2082 = vunpack.c.l.s4 1966171168
  %v2083 = vunpack.c.0.s8 %v2082
  %v2084 = vlaneseq
  %v2085 = vshrl.u32 %v2084, 7
  %v2086 = vsub.s32 %v2083, %v2085
  %v2087 = vrot.slane %v2077, %v2086
  %v2089 = vunpack.c.l.s4 1966171168
  %v2090 = vunpack.c.0.s8 %v2089
  %v2091 = vlaneseq
  %v2092 = vshrl.u32 %v2091, 7
  %v2093 = vsub.s32 %v2090, %v2092
  %v2094 = vrot.slane %v2078, %v2093
  %v2096 = vunpack.c.l.s4 1966171168
  %v2097 = vunpack.c.0.s8 %v2096
  %v2098 = vlaneseq
  %v2099 = vshrl.u32 %v2098, 7
  %v2100 = vsub.s32 %v2097, %v2099
  %v2101 = vrot.slane %v2079, %v2100
  %v2103 = vunpack.c.l.s4 1966171168
  %v2104 = vunpack.c.0.s8 %v2103
  %v2105 = vlaneseq
  %v2106 = vshrl.u32 %v2105, 7
  %v2107 = vsub.s32 %v2104, %v2106
  %v2108 = vrot.slane %v2080, %v2107
  %v2109 = vcombine.low %v2087, %v2094
  %v2110 = vcombine.low %v2101, %v2108
  %v2112 = vunpack.c.l.s4 1966171168
  %v2113 = vunpack.c.0.s8 %v2112
  %v2114 = vlaneseq
  %v2115 = vshrl.u32 %v2114, 7
  %v2116 = vsub.s32 %v2113, %v2115
  %v2117 = vrot.slane %v2109, %v2116
  %v2119 = vunpack.c.l.s4 1966171168
  %v2120 = vunpack.c.0.s8 %v2119
  %v2121 = vlaneseq
  %v2122 = vshrl.u32 %v2121, 7
  %v2123 = vsub.s32 %v2120, %v2122
  %v2124 = vrot.slane %v2110, %v2123
  %v2125 = vcombine.low %v2117, %v2124
  %v2126 = vcombine.low %v317, %v318
  %v2127 = vcombine.low %v333, %v340
  %v2128 = vcombine.low %v341, %v356
  %v2129 = vcombine.low %v363, %v364
  %v2131 = vunpack.c.l.s4 1966171168
  %v2132 = vunpack.c.0.s8 %v2131
  %v2133 = vlaneseq
  %v2134 = vshrl.u32 %v2133, 7
  %v2135 = vsub.s32 %v2132, %v2134
  %v2136 = vrot.slane %v2126, %v2135
  %v2138 = vunpack.c.l.s4 1966171168
  %v2139 = vunpack.c.0.s8 %v2138
  %v2140 = vlaneseq
  %v2141 = vshrl.u32 %v2140, 7
  %v2142 = vsub.s32 %v2139, %v2141
  %v2143 = vrot.slane %v2127, %v2142
  %v2145 = vunpack.c.l.s4 1966171168
  %v2146 = vunpack.c.0.s8 %v2145
  %v2147 = vlaneseq
  %v2148 = vshrl.u32 %v2147, 7
  %v2149 = vsub.s32 %v2146, %v2148
  %v2150 = vrot.slane %v2128, %v2149
  %v2152 = vunpack.c.l.s4 1966171168
  %v2153 = vunpack.c.0.s8 %v2152
  %v2154 = vlaneseq
  %v2155 = vshrl.u32 %v2154, 7
  %v2156 = vsub.s32 %v2153, %v2155
  %v2157 = vrot.slane %v2129, %v2156
  %v2158 = vcombine.low %v2136, %v2143
  %v2159 = vcombine.low %v2150, %v2157
  %v2161 = vunpack.c.l.s4 1966171168
  %v2162 = vunpack.c.0.s8 %v2161
  %v2163 = vlaneseq
  %v2164 = vshrl.u32 %v2163, 7
  %v2165 = vsub.s32 %v2162, %v2164
  %v2166 = vrot.slane %v2158, %v2165
  %v2168 = vunpack.c.l.s4 1966171168
  %v2169 = vunpack.c.0.s8 %v2168
  %v2170 = vlaneseq
  %v2171 = vshrl.u32 %v2170, 7
  %v2172 = vsub.s32 %v2169, %v2171
  %v2173 = vrot.slane %v2159, %v2172
  %v2174 = vcombine.low %v2166, %v2173
  %v2179 = vunpack.c.l.b16 %v65
  %v2180 = vunpack.c.h.b16 %v65
  %v2181 = vunpack.c.l.b16 %v66
  %v2182 = vunpack.c.h.b16 %v66
  %v2183 = vunpack.c.l.b16 %v67
  %v2184 = vunpack.c.h.b16 %v67
  %v2185 = vunpack.c.l.b16 %v68
  %v2186 = vunpack.c.h.b16 %v68
  %v2187 = vpack.c.b16 %v2181, %v2179
  %v2188 = vpack.c.b16 %v2182, %v2180
  %v2189 = vpack.c.b16 %v2185, %v2183
  %v2190 = vpack.c.b16 %v2186, %v2184
  %v2196 = vsel %vm1955, %v2076, 0
  %v2199 = vsel %vm1955, %v2125, 0
  %v2202 = vsel %vm1955, %v2174, 0
  %2204 = vmatprep.subr.bf16.mxu0 %v2188
  %2205 = vmatpush1.bf16.msra.mxu0 %v2187
  %2206 = vmatprep.subr.bf16.mxu0 %v2190
  %2207 = vmatpush1.bf16.msra.mxu0 %v2189
  %2208 = vmatprep.subr.bf16.mxu0 0
  %2209 = vmatpush1.bf16.msra.mxu0 0
  %2210 = vmatprep.subr.bf16.mxu0 0
  %2211 = vmatpush1.bf16.msra.mxu0 0
  %2212 = vmatprep.subr.bf16.mxu0 0
  %2213 = vmatpush1.bf16.msra.mxu0 0
  %2214 = vmatprep.subr.bf16.mxu0 0
  %2215 = vmatpush1.bf16.msra.mxu0 0
  %2216 = vmatprep.subr.bf16.mxu0 0
  %2217 = vmatpush1.bf16.msra.mxu0 0
  %2218 = vmatprep.subr.bf16.mxu0 0
  %2219 = vmatpush1.bf16.msra.mxu0 0
  %2220 = vmatprep.subr.bf16.mxu0 0
  %2221 = vmatpush1.bf16.msra.mxu0 0
  %2222 = vmatprep.subr.bf16.mxu0 0
  %2223 = vmatpush1.bf16.msra.mxu0 0
  %2224 = vmatprep.subr.bf16.mxu0 0
  %2225 = vmatpush1.bf16.msra.mxu0 0
  %2226 = vmatprep.subr.bf16.mxu0 0
  %2227 = vmatpush1.bf16.msra.mxu0 0
  %2228 = vmatprep.subr.bf16.mxu0 0
  %2229 = vmatpush1.bf16.msra.mxu0 0
  %2230 = vmatprep.subr.bf16.mxu0 0
  %2231 = vmatpush1.bf16.msra.mxu0 0
  %2232 = vmatprep.subr.bf16.mxu0 0
  %2233 = vmatpush1.bf16.msra.mxu0 0
  %2234 = vmatprep.subr.bf16.mxu0 0
  %2235 = vmatpush1.bf16.msra.mxu0 0
  %2236 = vmatprep.mubr.bf16.mxu0 0
  %2237 = vmatmul.mubr.bf16.gmra.mrb[0].mxu0 %v2196
  %v2238 = vpop.f32.mrb[0].mxu0
  %v2239 = vadd.f32 %v2000, %v2238
  %v2240 = vpop.f32.mrb[0].mxu0
  %v2241 = vadd.f32 %v2002, %v2240
  %v2242 = vpop.f32.mrb[0].mxu0
  %v2243 = vadd.f32 %v2004, %v2242
  %v2244 = vpop.f32.mrb[0].mxu0
  %v2245 = vadd.f32 %v2006, %v2244
  %2246 = vmatprep.mubr.bf16.mxu0 0
  %2247 = vmatmul.mubr.bf16.gmra.mrb[0].mxu0 %v2199
  %v2248 = vpop.f32.mrb[0].mxu0
  %v2249 = vadd.f32 %v2010, %v2248
  %v2250 = vpop.f32.mrb[0].mxu0
  %v2251 = vadd.f32 %v2012, %v2250
  %v2252 = vpop.f32.mrb[0].mxu0
  %v2253 = vadd.f32 %v2014, %v2252
  %v2254 = vpop.f32.mrb[0].mxu0
  %v2255 = vadd.f32 %v2016, %v2254
  %2256 = vmatprep.mubr.bf16.mxu0 0
  %2257 = vmatmul.mubr.bf16.gmra.mrb[0].mxu0 %v2202
  %v2258 = vpop.f32.mrb[0].mxu0
  %v2259 = vadd.f32 %v2020, %v2258
  %v2260 = vpop.f32.mrb[0].mxu0
  %v2261 = vadd.f32 %v2022, %v2260
  %v2262 = vpop.f32.mrb[0].mxu0
  %v2263 = vadd.f32 %v2024, %v2262
  %v2264 = vpop.f32.mrb[0].mxu0
  %v2265 = vadd.f32 %v2026, %v2264
  %2266 = vdwg.mxu0
  %v2267 = vcombine.low %v579, %v586
  %v2268 = vcombine.low %v587, %v602
  %v2269 = vcombine.low %v609, %v610
  %v2270 = vcombine.low %v625, %v632
  %v2272 = vunpack.c.l.s4 1966171168
  %v2273 = vunpack.c.0.s8 %v2272
  %v2274 = vlaneseq
  %v2275 = vshrl.u32 %v2274, 7
  %v2276 = vsub.s32 %v2273, %v2275
  %v2277 = vrot.slane %v2267, %v2276
  %v2279 = vunpack.c.l.s4 1966171168
  %v2280 = vunpack.c.0.s8 %v2279
  %v2281 = vlaneseq
  %v2282 = vshrl.u32 %v2281, 7
  %v2283 = vsub.s32 %v2280, %v2282
  %v2284 = vrot.slane %v2268, %v2283
  %v2286 = vunpack.c.l.s4 1966171168
  %v2287 = vunpack.c.0.s8 %v2286
  %v2288 = vlaneseq
  %v2289 = vshrl.u32 %v2288, 7
  %v2290 = vsub.s32 %v2287, %v2289
  %v2291 = vrot.slane %v2269, %v2290
  %v2293 = vunpack.c.l.s4 1966171168
  %v2294 = vunpack.c.0.s8 %v2293
  %v2295 = vlaneseq
  %v2296 = vshrl.u32 %v2295, 7
  %v2297 = vsub.s32 %v2294, %v2296
  %v2298 = vrot.slane %v2270, %v2297
  %v2299 = vcombine.low %v2277, %v2284
  %v2300 = vcombine.low %v2291, %v2298
  %v2302 = vunpack.c.l.s4 1966171168
  %v2303 = vunpack.c.0.s8 %v2302
  %v2304 = vlaneseq
  %v2305 = vshrl.u32 %v2304, 7
  %v2306 = vsub.s32 %v2303, %v2305
  %v2307 = vrot.slane %v2299, %v2306
  %v2309 = vunpack.c.l.s4 1966171168
  %v2310 = vunpack.c.0.s8 %v2309
  %v2311 = vlaneseq
  %v2312 = vshrl.u32 %v2311, 7
  %v2313 = vsub.s32 %v2310, %v2312
  %v2314 = vrot.slane %v2300, %v2313
  %v2315 = vcombine.low %v2307, %v2314
  %v2316 = vcombine.low %v633, %v648
  %v2317 = vcombine.low %v655, %v656
  %v2318 = vcombine.low %v671, %v678
  %v2319 = vcombine.low %v679, %v694
  %v2321 = vunpack.c.l.s4 1966171168
  %v2322 = vunpack.c.0.s8 %v2321
  %v2323 = vlaneseq
  %v2324 = vshrl.u32 %v2323, 7
  %v2325 = vsub.s32 %v2322, %v2324
  %v2326 = vrot.slane %v2316, %v2325
  %v2328 = vunpack.c.l.s4 1966171168
  %v2329 = vunpack.c.0.s8 %v2328
  %v2330 = vlaneseq
  %v2331 = vshrl.u32 %v2330, 7
  %v2332 = vsub.s32 %v2329, %v2331
  %v2333 = vrot.slane %v2317, %v2332
  %v2335 = vunpack.c.l.s4 1966171168
  %v2336 = vunpack.c.0.s8 %v2335
  %v2337 = vlaneseq
  %v2338 = vshrl.u32 %v2337, 7
  %v2339 = vsub.s32 %v2336, %v2338
  %v2340 = vrot.slane %v2318, %v2339
  %v2342 = vunpack.c.l.s4 1966171168
  %v2343 = vunpack.c.0.s8 %v2342
  %v2344 = vlaneseq
  %v2345 = vshrl.u32 %v2344, 7
  %v2346 = vsub.s32 %v2343, %v2345
  %v2347 = vrot.slane %v2319, %v2346
  %v2348 = vcombine.low %v2326, %v2333
  %v2349 = vcombine.low %v2340, %v2347
  %v2351 = vunpack.c.l.s4 1966171168
  %v2352 = vunpack.c.0.s8 %v2351
  %v2353 = vlaneseq
  %v2354 = vshrl.u32 %v2353, 7
  %v2355 = vsub.s32 %v2352, %v2354
  %v2356 = vrot.slane %v2348, %v2355
  %v2358 = vunpack.c.l.s4 1966171168
  %v2359 = vunpack.c.0.s8 %v2358
  %v2360 = vlaneseq
  %v2361 = vshrl.u32 %v2360, 7
  %v2362 = vsub.s32 %v2359, %v2361
  %v2363 = vrot.slane %v2349, %v2362
  %v2364 = vcombine.low %v2356, %v2363
  %v2365 = vcombine.low %v701, %v702
  %v2366 = vcombine.low %v717, %v724
  %v2367 = vcombine.low %v725, %v740
  %v2368 = vcombine.low %v747, %v748
  %v2370 = vunpack.c.l.s4 1966171168
  %v2371 = vunpack.c.0.s8 %v2370
  %v2372 = vlaneseq
  %v2373 = vshrl.u32 %v2372, 7
  %v2374 = vsub.s32 %v2371, %v2373
  %v2375 = vrot.slane %v2365, %v2374
  %v2377 = vunpack.c.l.s4 1966171168
  %v2378 = vunpack.c.0.s8 %v2377
  %v2379 = vlaneseq
  %v2380 = vshrl.u32 %v2379, 7
  %v2381 = vsub.s32 %v2378, %v2380
  %v2382 = vrot.slane %v2366, %v2381
  %v2384 = vunpack.c.l.s4 1966171168
  %v2385 = vunpack.c.0.s8 %v2384
  %v2386 = vlaneseq
  %v2387 = vshrl.u32 %v2386, 7
  %v2388 = vsub.s32 %v2385, %v2387
  %v2389 = vrot.slane %v2367, %v2388
  %v2391 = vunpack.c.l.s4 1966171168
  %v2392 = vunpack.c.0.s8 %v2391
  %v2393 = vlaneseq
  %v2394 = vshrl.u32 %v2393, 7
  %v2395 = vsub.s32 %v2392, %v2394
  %v2396 = vrot.slane %v2368, %v2395
  %v2397 = vcombine.low %v2375, %v2382
  %v2398 = vcombine.low %v2389, %v2396
  %v2400 = vunpack.c.l.s4 1966171168
  %v2401 = vunpack.c.0.s8 %v2400
  %v2402 = vlaneseq
  %v2403 = vshrl.u32 %v2402, 7
  %v2404 = vsub.s32 %v2401, %v2403
  %v2405 = vrot.slane %v2397, %v2404
  %v2407 = vunpack.c.l.s4 1966171168
  %v2408 = vunpack.c.0.s8 %v2407
  %v2409 = vlaneseq
  %v2410 = vshrl.u32 %v2409, 7
  %v2411 = vsub.s32 %v2408, %v2410
  %v2412 = vrot.slane %v2398, %v2411
  %v2413 = vcombine.low %v2405, %v2412
  %v2418 = vunpack.c.l.b16 %v75
  %v2419 = vunpack.c.h.b16 %v75
  %v2420 = vunpack.c.l.b16 %v76
  %v2421 = vunpack.c.h.b16 %v76
  %v2422 = vunpack.c.l.b16 %v77
  %v2423 = vunpack.c.h.b16 %v77
  %v2424 = vunpack.c.l.b16 %v78
  %v2425 = vunpack.c.h.b16 %v78
  %v2426 = vpack.c.b16 %v2420, %v2418
  %v2427 = vpack.c.b16 %v2421, %v2419
  %v2428 = vpack.c.b16 %v2424, %v2422
  %v2429 = vpack.c.b16 %v2425, %v2423
  %v2435 = vsel %vm1955, %v2315, 0
  %v2438 = vsel %vm1955, %v2364, 0
  %v2441 = vsel %vm1955, %v2413, 0
  %2443 = vmatprep.subr.bf16.mxu0 %v2427
  %2444 = vmatpush1.bf16.msra.mxu0 %v2426
  %2445 = vmatprep.subr.bf16.mxu0 %v2429
  %2446 = vmatpush1.bf16.msra.mxu0 %v2428
  %2447 = vmatprep.subr.bf16.mxu0 0
  %2448 = vmatpush1.bf16.msra.mxu0 0
  %2449 = vmatprep.subr.bf16.mxu0 0
  %2450 = vmatpush1.bf16.msra.mxu0 0
  %2451 = vmatprep.subr.bf16.mxu0 0
  %2452 = vmatpush1.bf16.msra.mxu0 0
  %2453 = vmatprep.subr.bf16.mxu0 0
  %2454 = vmatpush1.bf16.msra.mxu0 0
  %2455 = vmatprep.subr.bf16.mxu0 0
  %2456 = vmatpush1.bf16.msra.mxu0 0
  %2457 = vmatprep.subr.bf16.mxu0 0
  %2458 = vmatpush1.bf16.msra.mxu0 0
  %2459 = vmatprep.subr.bf16.mxu0 0
  %2460 = vmatpush1.bf16.msra.mxu0 0
  %2461 = vmatprep.subr.bf16.mxu0 0
  %2462 = vmatpush1.bf16.msra.mxu0 0
  %2463 = vmatprep.subr.bf16.mxu0 0
  %2464 = vmatpush1.bf16.msra.mxu0 0
  %2465 = vmatprep.subr.bf16.mxu0 0
  %2466 = vmatpush1.bf16.msra.mxu0 0
  %2467 = vmatprep.subr.bf16.mxu0 0
  %2468 = vmatpush1.bf16.msra.mxu0 0
  %2469 = vmatprep.subr.bf16.mxu0 0
  %2470 = vmatpush1.bf16.msra.mxu0 0
  %2471 = vmatprep.subr.bf16.mxu0 0
  %2472 = vmatpush1.bf16.msra.mxu0 0
  %2473 = vmatprep.subr.bf16.mxu0 0
  %2474 = vmatpush1.bf16.msra.mxu0 0
  %2475 = vmatprep.mubr.bf16.mxu0 0
  %2476 = vmatmul.mubr.bf16.gmra.mrb[0].mxu0 %v2435
  %v2477 = vpop.f32.mrb[0].mxu0
  %v2478 = vadd.f32 0.0, %v2477
  %v2479 = vpop.f32.mrb[0].mxu0
  %v2480 = vadd.f32 0.0, %v2479
  %v2481 = vpop.f32.mrb[0].mxu0
  %v2482 = vadd.f32 0.0, %v2481
  %v2483 = vpop.f32.mrb[0].mxu0
  %v2484 = vadd.f32 0.0, %v2483
  %2485 = vmatprep.mubr.bf16.mxu0 0
  %2486 = vmatmul.mubr.bf16.gmra.mrb[0].mxu0 %v2438
  %v2487 = vpop.f32.mrb[0].mxu0
  %v2488 = vadd.f32 0.0, %v2487
  %v2489 = vpop.f32.mrb[0].mxu0
  %v2490 = vadd.f32 0.0, %v2489
  %v2491 = vpop.f32.mrb[0].mxu0
  %v2492 = vadd.f32 0.0, %v2491
  %v2493 = vpop.f32.mrb[0].mxu0
  %v2494 = vadd.f32 0.0, %v2493
  %2495 = vmatprep.mubr.bf16.mxu0 0
  %2496 = vmatmul.mubr.bf16.gmra.mrb[0].mxu0 %v2441
  %v2497 = vpop.f32.mrb[0].mxu0
  %v2498 = vadd.f32 0.0, %v2497
  %v2499 = vpop.f32.mrb[0].mxu0
  %v2500 = vadd.f32 0.0, %v2499
  %v2501 = vpop.f32.mrb[0].mxu0
  %v2502 = vadd.f32 0.0, %v2501
  %v2503 = vpop.f32.mrb[0].mxu0
  %v2504 = vadd.f32 0.0, %v2503
  %2505 = vdwg.mxu0
  %v2506 = vadd.f32 %v2239, %v2478
  %v2507 = vadd.f32 %v2241, %v2480
  %v2508 = vadd.f32 %v2243, %v2482
  %v2509 = vadd.f32 %v2245, %v2484
  %v2510 = vadd.f32 %v2249, %v2488
  %v2511 = vadd.f32 %v2251, %v2490
  %v2512 = vadd.f32 %v2253, %v2492
  %v2513 = vadd.f32 %v2255, %v2494
  %v2514 = vadd.f32 %v2259, %v2498
  %v2515 = vadd.f32 %v2261, %v2500
  %v2516 = vadd.f32 %v2263, %v2502
  %v2517 = vadd.f32 %v2265, %v2504
  %v2518 = vcombine.low %v771, %v778
  %v2519 = vcombine.low %v779, %v794
  %v2520 = vcombine.low %v801, %v802
  %v2521 = vcombine.low %v817, %v824
  %v2523 = vunpack.c.l.s4 1966171168
  %v2524 = vunpack.c.0.s8 %v2523
  %v2525 = vlaneseq
  %v2526 = vshrl.u32 %v2525, 7
  %v2527 = vsub.s32 %v2524, %v2526
  %v2528 = vrot.slane %v2518, %v2527
  %v2530 = vunpack.c.l.s4 1966171168
  %v2531 = vunpack.c.0.s8 %v2530
  %v2532 = vlaneseq
  %v2533 = vshrl.u32 %v2532, 7
  %v2534 = vsub.s32 %v2531, %v2533
  %v2535 = vrot.slane %v2519, %v2534
  %v2537 = vunpack.c.l.s4 1966171168
  %v2538 = vunpack.c.0.s8 %v2537
  %v2539 = vlaneseq
  %v2540 = vshrl.u32 %v2539, 7
  %v2541 = vsub.s32 %v2538, %v2540
  %v2542 = vrot.slane %v2520, %v2541
  %v2544 = vunpack.c.l.s4 1966171168
  %v2545 = vunpack.c.0.s8 %v2544
  %v2546 = vlaneseq
  %v2547 = vshrl.u32 %v2546, 7
  %v2548 = vsub.s32 %v2545, %v2547
  %v2549 = vrot.slane %v2521, %v2548
  %v2550 = vcombine.low %v2528, %v2535
  %v2551 = vcombine.low %v2542, %v2549
  %v2553 = vunpack.c.l.s4 1966171168
  %v2554 = vunpack.c.0.s8 %v2553
  %v2555 = vlaneseq
  %v2556 = vshrl.u32 %v2555, 7
  %v2557 = vsub.s32 %v2554, %v2556
  %v2558 = vrot.slane %v2550, %v2557
  %v2560 = vunpack.c.l.s4 1966171168
  %v2561 = vunpack.c.0.s8 %v2560
  %v2562 = vlaneseq
  %v2563 = vshrl.u32 %v2562, 7
  %v2564 = vsub.s32 %v2561, %v2563
  %v2565 = vrot.slane %v2551, %v2564
  %v2566 = vcombine.low %v2558, %v2565
  %v2567 = vcombine.low %v825, %v840
  %v2568 = vcombine.low %v847, %v848
  %v2569 = vcombine.low %v863, %v870
  %v2570 = vcombine.low %v871, %v886
  %v2572 = vunpack.c.l.s4 1966171168
  %v2573 = vunpack.c.0.s8 %v2572
  %v2574 = vlaneseq
  %v2575 = vshrl.u32 %v2574, 7
  %v2576 = vsub.s32 %v2573, %v2575
  %v2577 = vrot.slane %v2567, %v2576
  %v2579 = vunpack.c.l.s4 1966171168
  %v2580 = vunpack.c.0.s8 %v2579
  %v2581 = vlaneseq
  %v2582 = vshrl.u32 %v2581, 7
  %v2583 = vsub.s32 %v2580, %v2582
  %v2584 = vrot.slane %v2568, %v2583
  %v2586 = vunpack.c.l.s4 1966171168
  %v2587 = vunpack.c.0.s8 %v2586
  %v2588 = vlaneseq
  %v2589 = vshrl.u32 %v2588, 7
  %v2590 = vsub.s32 %v2587, %v2589
  %v2591 = vrot.slane %v2569, %v2590
  %v2593 = vunpack.c.l.s4 1966171168
  %v2594 = vunpack.c.0.s8 %v2593
  %v2595 = vlaneseq
  %v2596 = vshrl.u32 %v2595, 7
  %v2597 = vsub.s32 %v2594, %v2596
  %v2598 = vrot.slane %v2570, %v2597
  %v2599 = vcombine.low %v2577, %v2584
  %v2600 = vcombine.low %v2591, %v2598
  %v2602 = vunpack.c.l.s4 1966171168
  %v2603 = vunpack.c.0.s8 %v2602
  %v2604 = vlaneseq
  %v2605 = vshrl.u32 %v2604, 7
  %v2606 = vsub.s32 %v2603, %v2605
  %v2607 = vrot.slane %v2599, %v2606
  %v2609 = vunpack.c.l.s4 1966171168
  %v2610 = vunpack.c.0.s8 %v2609
  %v2611 = vlaneseq
  %v2612 = vshrl.u32 %v2611, 7
  %v2613 = vsub.s32 %v2610, %v2612
  %v2614 = vrot.slane %v2600, %v2613
  %v2615 = vcombine.low %v2607, %v2614
  %v2616 = vcombine.low %v893, %v894
  %v2617 = vcombine.low %v909, %v916
  %v2618 = vcombine.low %v917, %v932
  %v2619 = vcombine.low %v939, %v940
  %v2621 = vunpack.c.l.s4 1966171168
  %v2622 = vunpack.c.0.s8 %v2621
  %v2623 = vlaneseq
  %v2624 = vshrl.u32 %v2623, 7
  %v2625 = vsub.s32 %v2622, %v2624
  %v2626 = vrot.slane %v2616, %v2625
  %v2628 = vunpack.c.l.s4 1966171168
  %v2629 = vunpack.c.0.s8 %v2628
  %v2630 = vlaneseq
  %v2631 = vshrl.u32 %v2630, 7
  %v2632 = vsub.s32 %v2629, %v2631
  %v2633 = vrot.slane %v2617, %v2632
  %v2635 = vunpack.c.l.s4 1966171168
  %v2636 = vunpack.c.0.s8 %v2635
  %v2637 = vlaneseq
  %v2638 = vshrl.u32 %v2637, 7
  %v2639 = vsub.s32 %v2636, %v2638
  %v2640 = vrot.slane %v2618, %v2639
  %v2642 = vunpack.c.l.s4 1966171168
  %v2643 = vunpack.c.0.s8 %v2642
  %v2644 = vlaneseq
  %v2645 = vshrl.u32 %v2644, 7
  %v2646 = vsub.s32 %v2643, %v2645
  %v2647 = vrot.slane %v2619, %v2646
  %v2648 = vcombine.low %v2626, %v2633
  %v2649 = vcombine.low %v2640, %v2647
  %v2651 = vunpack.c.l.s4 1966171168
  %v2652 = vunpack.c.0.s8 %v2651
  %v2653 = vlaneseq
  %v2654 = vshrl.u32 %v2653, 7
  %v2655 = vsub.s32 %v2652, %v2654
  %v2656 = vrot.slane %v2648, %v2655
  %v2658 = vunpack.c.l.s4 1966171168
  %v2659 = vunpack.c.0.s8 %v2658
  %v2660 = vlaneseq
  %v2661 = vshrl.u32 %v2660, 7
  %v2662 = vsub.s32 %v2659, %v2661
  %v2663 = vrot.slane %v2649, %v2662
  %v2664 = vcombine.low %v2656, %v2663
  %v2669 = vunpack.c.l.b16 %v80
  %v2670 = vunpack.c.h.b16 %v80
  %v2671 = vunpack.c.l.b16 %v81
  %v2672 = vunpack.c.h.b16 %v81
  %v2673 = vunpack.c.l.b16 %v82
  %v2674 = vunpack.c.h.b16 %v82
  %v2675 = vunpack.c.l.b16 %v83
  %v2676 = vunpack.c.h.b16 %v83
  %v2677 = vpack.c.b16 %v2671, %v2669
  %v2678 = vpack.c.b16 %v2672, %v2670
  %v2679 = vpack.c.b16 %v2675, %v2673
  %v2680 = vpack.c.b16 %v2676, %v2674
  %v2686 = vsel %vm1955, %v2566, 0
  %v2689 = vsel %vm1955, %v2615, 0
  %v2692 = vsel %vm1955, %v2664, 0
  %2694 = vmatprep.subr.bf16.mxu0 %v2678
  %2695 = vmatpush1.bf16.msra.mxu0 %v2677
  %2696 = vmatprep.subr.bf16.mxu0 %v2680
  %2697 = vmatpush1.bf16.msra.mxu0 %v2679
  %2698 = vmatprep.subr.bf16.mxu0 0
  %2699 = vmatpush1.bf16.msra.mxu0 0
  %2700 = vmatprep.subr.bf16.mxu0 0
  %2701 = vmatpush1.bf16.msra.mxu0 0
  %2702 = vmatprep.subr.bf16.mxu0 0
  %2703 = vmatpush1.bf16.msra.mxu0 0
  %2704 = vmatprep.subr.bf16.mxu0 0
  %2705 = vmatpush1.bf16.msra.mxu0 0
  %2706 = vmatprep.subr.bf16.mxu0 0
  %2707 = vmatpush1.bf16.msra.mxu0 0
  %2708 = vmatprep.subr.bf16.mxu0 0
  %2709 = vmatpush1.bf16.msra.mxu0 0
  %2710 = vmatprep.subr.bf16.mxu0 0
  %2711 = vmatpush1.bf16.msra.mxu0 0
  %2712 = vmatprep.subr.bf16.mxu0 0
  %2713 = vmatpush1.bf16.msra.mxu0 0
  %2714 = vmatprep.subr.bf16.mxu0 0
  %2715 = vmatpush1.bf16.msra.mxu0 0
  %2716 = vmatprep.subr.bf16.mxu0 0
  %2717 = vmatpush1.bf16.msra.mxu0 0
  %2718 = vmatprep.subr.bf16.mxu0 0
  %2719 = vmatpush1.bf16.msra.mxu0 0
  %2720 = vmatprep.subr.bf16.mxu0 0
  %2721 = vmatpush1.bf16.msra.mxu0 0
  %2722 = vmatprep.subr.bf16.mxu0 0
  %2723 = vmatpush1.bf16.msra.mxu0 0
  %2724 = vmatprep.subr.bf16.mxu0 0
  %2725 = vmatpush1.bf16.msra.mxu0 0
  %2726 = vmatprep.mubr.bf16.mxu0 0
  %2727 = vmatmul.mubr.bf16.gmra.mrb[0].mxu0 %v2686
  %v2728 = vpop.f32.mrb[0].mxu0
  %v2729 = vadd.f32 0.0, %v2728
  %v2730 = vpop.f32.mrb[0].mxu0
  %v2731 = vadd.f32 0.0, %v2730
  %v2732 = vpop.f32.mrb[0].mxu0
  %v2733 = vadd.f32 0.0, %v2732
  %v2734 = vpop.f32.mrb[0].mxu0
  %v2735 = vadd.f32 0.0, %v2734
  %2736 = vmatprep.mubr.bf16.mxu0 0
  %2737 = vmatmul.mubr.bf16.gmra.mrb[0].mxu0 %v2689
  %v2738 = vpop.f32.mrb[0].mxu0
  %v2739 = vadd.f32 0.0, %v2738
  %v2740 = vpop.f32.mrb[0].mxu0
  %v2741 = vadd.f32 0.0, %v2740
  %v2742 = vpop.f32.mrb[0].mxu0
  %v2743 = vadd.f32 0.0, %v2742
  %v2744 = vpop.f32.mrb[0].mxu0
  %v2745 = vadd.f32 0.0, %v2744
  %2746 = vmatprep.mubr.bf16.mxu0 0
  %2747 = vmatmul.mubr.bf16.gmra.mrb[0].mxu0 %v2692
  %v2748 = vpop.f32.mrb[0].mxu0
  %v2749 = vadd.f32 0.0, %v2748
  %v2750 = vpop.f32.mrb[0].mxu0
  %v2751 = vadd.f32 0.0, %v2750
  %v2752 = vpop.f32.mrb[0].mxu0
  %v2753 = vadd.f32 0.0, %v2752
  %v2754 = vpop.f32.mrb[0].mxu0
  %v2755 = vadd.f32 0.0, %v2754
  %2756 = vdwg.mxu0
  %v2757 = vadd.f32 %v2506, %v2729
  %v2758 = vadd.f32 %v2507, %v2731
  %v2759 = vadd.f32 %v2508, %v2733
  %v2760 = vadd.f32 %v2509, %v2735
  %v2761 = vadd.f32 %v2510, %v2739
  %v2762 = vadd.f32 %v2511, %v2741
  %v2763 = vadd.f32 %v2512, %v2743
  %v2764 = vadd.f32 %v2513, %v2745
  %v2765 = vadd.f32 %v2514, %v2749
  %v2766 = vadd.f32 %v2515, %v2751
  %v2767 = vadd.f32 %v2516, %v2753
  %v2768 = vadd.f32 %v2517, %v2755
  %v2769 = vcombine.low %v972, %v980
  %v2770 = vcombine.low %v988, %v997
  %v2771 = vcombine.low %v1005, %v1013
  %v2772 = vcombine.low %v1022, %v1030
  %v2774 = vunpack.c.l.s4 1966171168
  %v2775 = vunpack.c.0.s8 %v2774
  %v2776 = vlaneseq
  %v2777 = vshrl.u32 %v2776, 7
  %v2778 = vsub.s32 %v2775, %v2777
  %v2779 = vrot.slane %v2769, %v2778
  %v2781 = vunpack.c.l.s4 1966171168
  %v2782 = vunpack.c.0.s8 %v2781
  %v2783 = vlaneseq
  %v2784 = vshrl.u32 %v2783, 7
  %v2785 = vsub.s32 %v2782, %v2784
  %v2786 = vrot.slane %v2770, %v2785
  %v2788 = vunpack.c.l.s4 1966171168
  %v2789 = vunpack.c.0.s8 %v2788
  %v2790 = vlaneseq
  %v2791 = vshrl.u32 %v2790, 7
  %v2792 = vsub.s32 %v2789, %v2791
  %v2793 = vrot.slane %v2771, %v2792
  %v2795 = vunpack.c.l.s4 1966171168
  %v2796 = vunpack.c.0.s8 %v2795
  %v2797 = vlaneseq
  %v2798 = vshrl.u32 %v2797, 7
  %v2799 = vsub.s32 %v2796, %v2798
  %v2800 = vrot.slane %v2772, %v2799
  %v2801 = vcombine.low %v2779, %v2786
  %v2802 = vcombine.low %v2793, %v2800
  %v2804 = vunpack.c.l.s4 1966171168
  %v2805 = vunpack.c.0.s8 %v2804
  %v2806 = vlaneseq
  %v2807 = vshrl.u32 %v2806, 7
  %v2808 = vsub.s32 %v2805, %v2807
  %v2809 = vrot.slane %v2801, %v2808
  %v2811 = vunpack.c.l.s4 1966171168
  %v2812 = vunpack.c.0.s8 %v2811
  %v2813 = vlaneseq
  %v2814 = vshrl.u32 %v2813, 7
  %v2815 = vsub.s32 %v2812, %v2814
  %v2816 = vrot.slane %v2802, %v2815
  %v2817 = vcombine.low %v2809, %v2816
  %v2818 = vcombine.low %v1038, %v1047
  %v2819 = vcombine.low %v1055, %v1063
  %v2820 = vcombine.low %v1072, %v1080
  %v2821 = vcombine.low %v1088, %v1097
  %v2823 = vunpack.c.l.s4 1966171168
  %v2824 = vunpack.c.0.s8 %v2823
  %v2825 = vlaneseq
  %v2826 = vshrl.u32 %v2825, 7
  %v2827 = vsub.s32 %v2824, %v2826
  %v2828 = vrot.slane %v2818, %v2827
  %v2830 = vunpack.c.l.s4 1966171168
  %v2831 = vunpack.c.0.s8 %v2830
  %v2832 = vlaneseq
  %v2833 = vshrl.u32 %v2832, 7
  %v2834 = vsub.s32 %v2831, %v2833
  %v2835 = vrot.slane %v2819, %v2834
  %v2837 = vunpack.c.l.s4 1966171168
  %v2838 = vunpack.c.0.s8 %v2837
  %v2839 = vlaneseq
  %v2840 = vshrl.u32 %v2839, 7
  %v2841 = vsub.s32 %v2838, %v2840
  %v2842 = vrot.slane %v2820, %v2841
  %v2844 = vunpack.c.l.s4 1966171168
  %v2845 = vunpack.c.0.s8 %v2844
  %v2846 = vlaneseq
  %v2847 = vshrl.u32 %v2846, 7
  %v2848 = vsub.s32 %v2845, %v2847
  %v2849 = vrot.slane %v2821, %v2848
  %v2850 = vcombine.low %v2828, %v2835
  %v2851 = vcombine.low %v2842, %v2849
  %v2853 = vunpack.c.l.s4 1966171168
  %v2854 = vunpack.c.0.s8 %v2853
  %v2855 = vlaneseq
  %v2856 = vshrl.u32 %v2855, 7
  %v2857 = vsub.s32 %v2854, %v2856
  %v2858 = vrot.slane %v2850, %v2857
  %v2860 = vunpack.c.l.s4 1966171168
  %v2861 = vunpack.c.0.s8 %v2860
  %v2862 = vlaneseq
  %v2863 = vshrl.u32 %v2862, 7
  %v2864 = vsub.s32 %v2861, %v2863
  %v2865 = vrot.slane %v2851, %v2864
  %v2866 = vcombine.low %v2858, %v2865
  %v2867 = vcombine.low %v1105, %v1113
  %v2868 = vcombine.low %v1122, %v1130
  %v2869 = vcombine.low %v1138, %v1147
  %v2870 = vcombine.low %v1155, %v1163
  %v2872 = vunpack.c.l.s4 1966171168
  %v2873 = vunpack.c.0.s8 %v2872
  %v2874 = vlaneseq
  %v2875 = vshrl.u32 %v2874, 7
  %v2876 = vsub.s32 %v2873, %v2875
  %v2877 = vrot.slane %v2867, %v2876
  %v2879 = vunpack.c.l.s4 1966171168
  %v2880 = vunpack.c.0.s8 %v2879
  %v2881 = vlaneseq
  %v2882 = vshrl.u32 %v2881, 7
  %v2883 = vsub.s32 %v2880, %v2882
  %v2884 = vrot.slane %v2868, %v2883
  %v2886 = vunpack.c.l.s4 1966171168
  %v2887 = vunpack.c.0.s8 %v2886
  %v2888 = vlaneseq
  %v2889 = vshrl.u32 %v2888, 7
  %v2890 = vsub.s32 %v2887, %v2889
  %v2891 = vrot.slane %v2869, %v2890
  %v2893 = vunpack.c.l.s4 1966171168
  %v2894 = vunpack.c.0.s8 %v2893
  %v2895 = vlaneseq
  %v2896 = vshrl.u32 %v2895, 7
  %v2897 = vsub.s32 %v2894, %v2896
  %v2898 = vrot.slane %v2870, %v2897
  %v2899 = vcombine.low %v2877, %v2884
  %v2900 = vcombine.low %v2891, %v2898
  %v2902 = vunpack.c.l.s4 1966171168
  %v2903 = vunpack.c.0.s8 %v2902
  %v2904 = vlaneseq
  %v2905 = vshrl.u32 %v2904, 7
  %v2906 = vsub.s32 %v2903, %v2905
  %v2907 = vrot.slane %v2899, %v2906
  %v2909 = vunpack.c.l.s4 1966171168
  %v2910 = vunpack.c.0.s8 %v2909
  %v2911 = vlaneseq
  %v2912 = vshrl.u32 %v2911, 7
  %v2913 = vsub.s32 %v2910, %v2912
  %v2914 = vrot.slane %v2900, %v2913
  %v2915 = vcombine.low %v2907, %v2914
  %v2920 = vunpack.c.l.b16 %v85
  %v2921 = vunpack.c.h.b16 %v85
  %v2922 = vunpack.c.l.b16 %v86
  %v2923 = vunpack.c.h.b16 %v86
  %v2924 = vunpack.c.l.b16 %v87
  %v2925 = vunpack.c.h.b16 %v87
  %v2926 = vunpack.c.l.b16 %v88
  %v2927 = vunpack.c.h.b16 %v88
  %v2928 = vpack.c.b16 %v2922, %v2920
  %v2929 = vpack.c.b16 %v2923, %v2921
  %v2930 = vpack.c.b16 %v2926, %v2924
  %v2931 = vpack.c.b16 %v2927, %v2925
  %v2937 = vsel %vm1955, %v2817, 0
  %v2940 = vsel %vm1955, %v2866, 0
  %v2943 = vsel %vm1955, %v2915, 0
  %2945 = vmatprep.subr.bf16.mxu0 %v2929
  %2946 = vmatpush1.bf16.msra.mxu0 %v2928
  %2947 = vmatprep.subr.bf16.mxu0 %v2931
  %2948 = vmatpush1.bf16.msra.mxu0 %v2930
  %2949 = vmatprep.subr.bf16.mxu0 0
  %2950 = vmatpush1.bf16.msra.mxu0 0
  %2951 = vmatprep.subr.bf16.mxu0 0
  %2952 = vmatpush1.bf16.msra.mxu0 0
  %2953 = vmatprep.subr.bf16.mxu0 0
  %2954 = vmatpush1.bf16.msra.mxu0 0
  %2955 = vmatprep.subr.bf16.mxu0 0
  %2956 = vmatpush1.bf16.msra.mxu0 0
  %2957 = vmatprep.subr.bf16.mxu0 0
  %2958 = vmatpush1.bf16.msra.mxu0 0
  %2959 = vmatprep.subr.bf16.mxu0 0
  %2960 = vmatpush1.bf16.msra.mxu0 0
  %2961 = vmatprep.subr.bf16.mxu0 0
  %2962 = vmatpush1.bf16.msra.mxu0 0
  %2963 = vmatprep.subr.bf16.mxu0 0
  %2964 = vmatpush1.bf16.msra.mxu0 0
  %2965 = vmatprep.subr.bf16.mxu0 0
  %2966 = vmatpush1.bf16.msra.mxu0 0
  %2967 = vmatprep.subr.bf16.mxu0 0
  %2968 = vmatpush1.bf16.msra.mxu0 0
  %2969 = vmatprep.subr.bf16.mxu0 0
  %2970 = vmatpush1.bf16.msra.mxu0 0
  %2971 = vmatprep.subr.bf16.mxu0 0
  %2972 = vmatpush1.bf16.msra.mxu0 0
  %2973 = vmatprep.subr.bf16.mxu0 0
  %2974 = vmatpush1.bf16.msra.mxu0 0
  %2975 = vmatprep.subr.bf16.mxu0 0
  %2976 = vmatpush1.bf16.msra.mxu0 0
  %2977 = vmatprep.mubr.bf16.mxu0 0
  %2978 = vmatmul.mubr.bf16.gmra.mrb[0].mxu0 %v2937
  %v2979 = vpop.f32.mrb[0].mxu0
  %v2980 = vadd.f32 0.0, %v2979
  %v2981 = vpop.f32.mrb[0].mxu0
  %v2982 = vadd.f32 0.0, %v2981
  %v2983 = vpop.f32.mrb[0].mxu0
  %v2984 = vadd.f32 0.0, %v2983
  %v2985 = vpop.f32.mrb[0].mxu0
  %v2986 = vadd.f32 0.0, %v2985
  %2987 = vmatprep.mubr.bf16.mxu0 0
  %2988 = vmatmul.mubr.bf16.gmra.mrb[0].mxu0 %v2940
  %v2989 = vpop.f32.mrb[0].mxu0
  %v2990 = vadd.f32 0.0, %v2989
  %v2991 = vpop.f32.mrb[0].mxu0
  %v2992 = vadd.f32 0.0, %v2991
  %v2993 = vpop.f32.mrb[0].mxu0
  %v2994 = vadd.f32 0.0, %v2993
  %v2995 = vpop.f32.mrb[0].mxu0
  %v2996 = vadd.f32 0.0, %v2995
  %2997 = vmatprep.mubr.bf16.mxu0 0
  %2998 = vmatmul.mubr.bf16.gmra.mrb[0].mxu0 %v2943
  %v2999 = vpop.f32.mrb[0].mxu0
  %v3000 = vadd.f32 0.0, %v2999
  %v3001 = vpop.f32.mrb[0].mxu0
  %v3002 = vadd.f32 0.0, %v3001
  %v3003 = vpop.f32.mrb[0].mxu0
  %v3004 = vadd.f32 0.0, %v3003
  %v3005 = vpop.f32.mrb[0].mxu0
  %v3006 = vadd.f32 0.0, %v3005
  %3007 = vdwg.mxu0
  %v3008 = vadd.f32 %v2757, %v2980
  %v3009 = vadd.f32 %v2758, %v2982
  %v3010 = vadd.f32 %v2759, %v2984
  %v3011 = vadd.f32 %v2760, %v2986
  %v3012 = vadd.f32 %v2761, %v2990
  %v3013 = vadd.f32 %v2762, %v2992
  %v3014 = vadd.f32 %v2763, %v2994
  %v3015 = vadd.f32 %v2764, %v2996
  %v3016 = vadd.f32 %v2765, %v3000
  %v3017 = vadd.f32 %v2766, %v3002
  %v3018 = vadd.f32 %v2767, %v3004
  %v3019 = vadd.f32 %v2768, %v3006
  %3020 = vmatprep.subr.bf16.mxu0 %v1948
  %3021 = vmatpush1.bf16.msra.mxu0 %v1947
  %3022 = vmatprep.subr.bf16.mxu0 %v1950
  %3023 = vmatpush1.bf16.msra.mxu0 %v1949
  %3024 = vmatprep.subr.bf16.mxu0 0
  %3025 = vmatpush1.bf16.msra.mxu0 0
  %3026 = vmatprep.subr.bf16.mxu0 0
  %3027 = vmatpush1.bf16.msra.mxu0 0
  %3028 = vmatprep.subr.bf16.mxu0 0
  %3029 = vmatpush1.bf16.msra.mxu0 0
  %3030 = vmatprep.subr.bf16.mxu0 0
  %3031 = vmatpush1.bf16.msra.mxu0 0
  %3032 = vmatprep.subr.bf16.mxu0 0
  %3033 = vmatpush1.bf16.msra.mxu0 0
  %3034 = vmatprep.subr.bf16.mxu0 0
  %3035 = vmatpush1.bf16.msra.mxu0 0
  %3036 = vmatprep.subr.bf16.mxu0 0
  %3037 = vmatpush1.bf16.msra.mxu0 0
  %3038 = vmatprep.subr.bf16.mxu0 0
  %3039 = vmatpush1.bf16.msra.mxu0 0
  %3040 = vmatprep.subr.bf16.mxu0 0
  %3041 = vmatpush1.bf16.msra.mxu0 0
  %3042 = vmatprep.subr.bf16.mxu0 0
  %3043 = vmatpush1.bf16.msra.mxu0 0
  %3044 = vmatprep.subr.bf16.mxu0 0
  %3045 = vmatpush1.bf16.msra.mxu0 0
  %3046 = vmatprep.subr.bf16.mxu0 0
  %3047 = vmatpush1.bf16.msra.mxu0 0
  %3048 = vmatprep.subr.bf16.mxu0 0
  %3049 = vmatpush1.bf16.msra.mxu0 0
  %3050 = vmatprep.subr.bf16.mxu0 0
  %3051 = vmatpush1.bf16.msra.mxu0 0
  %3052 = vmatprep.mubr.bf16.mxu0 0
  %3053 = vmatmul.mubr.bf16.gmra.mrb[0].mxu0 %v2435
  %v3054 = vpop.f32.mrb[0].mxu0
  %v3055 = vadd.f32 0.0, %v3054
  %v3056 = vpop.f32.mrb[0].mxu0
  %v3057 = vadd.f32 0.0, %v3056
  %v3058 = vpop.f32.mrb[0].mxu0
  %v3059 = vadd.f32 0.0, %v3058
  %v3060 = vpop.f32.mrb[0].mxu0
  %v3061 = vadd.f32 0.0, %v3060
  %3062 = vmatprep.mubr.bf16.mxu0 0
  %3063 = vmatmul.mubr.bf16.gmra.mrb[0].mxu0 %v2438
  %v3064 = vpop.f32.mrb[0].mxu0
  %v3065 = vadd.f32 0.0, %v3064
  %v3066 = vpop.f32.mrb[0].mxu0
  %v3067 = vadd.f32 0.0, %v3066
  %v3068 = vpop.f32.mrb[0].mxu0
  %v3069 = vadd.f32 0.0, %v3068
  %v3070 = vpop.f32.mrb[0].mxu0
  %v3071 = vadd.f32 0.0, %v3070
  %3072 = vmatprep.mubr.bf16.mxu0 0
  %3073 = vmatmul.mubr.bf16.gmra.mrb[0].mxu0 %v2441
  %v3074 = vpop.f32.mrb[0].mxu0
  %v3075 = vadd.f32 0.0, %v3074
  %v3076 = vpop.f32.mrb[0].mxu0
  %v3077 = vadd.f32 0.0, %v3076
  %v3078 = vpop.f32.mrb[0].mxu0
  %v3079 = vadd.f32 0.0, %v3078
  %v3080 = vpop.f32.mrb[0].mxu0
  %v3081 = vadd.f32 0.0, %v3080
  %3082 = vdwg.mxu0
  %3083 = vmatprep.subr.bf16.mxu0 %v2188
  %3084 = vmatpush1.bf16.msra.mxu0 %v2187
  %3085 = vmatprep.subr.bf16.mxu0 %v2190
  %3086 = vmatpush1.bf16.msra.mxu0 %v2189
  %3087 = vmatprep.subr.bf16.mxu0 0
  %3088 = vmatpush1.bf16.msra.mxu0 0
  %3089 = vmatprep.subr.bf16.mxu0 0
  %3090 = vmatpush1.bf16.msra.mxu0 0
  %3091 = vmatprep.subr.bf16.mxu0 0
  %3092 = vmatpush1.bf16.msra.mxu0 0
  %3093 = vmatprep.subr.bf16.mxu0 0
  %3094 = vmatpush1.bf16.msra.mxu0 0
  %3095 = vmatprep.subr.bf16.mxu0 0
  %3096 = vmatpush1.bf16.msra.mxu0 0
  %3097 = vmatprep.subr.bf16.mxu0 0
  %3098 = vmatpush1.bf16.msra.mxu0 0
  %3099 = vmatprep.subr.bf16.mxu0 0
  %3100 = vmatpush1.bf16.msra.mxu0 0
  %3101 = vmatprep.subr.bf16.mxu0 0
  %3102 = vmatpush1.bf16.msra.mxu0 0
  %3103 = vmatprep.subr.bf16.mxu0 0
  %3104 = vmatpush1.bf16.msra.mxu0 0
  %3105 = vmatprep.subr.bf16.mxu0 0
  %3106 = vmatpush1.bf16.msra.mxu0 0
  %3107 = vmatprep.subr.bf16.mxu0 0
  %3108 = vmatpush1.bf16.msra.mxu0 0
  %3109 = vmatprep.subr.bf16.mxu0 0
  %3110 = vmatpush1.bf16.msra.mxu0 0
  %3111 = vmatprep.subr.bf16.mxu0 0
  %3112 = vmatpush1.bf16.msra.mxu0 0
  %3113 = vmatprep.subr.bf16.mxu0 0
  %3114 = vmatpush1.bf16.msra.mxu0 0
  %3115 = vmatprep.mubr.bf16.mxu0 0
  %3116 = vmatmul.mubr.bf16.gmra.mrb[0].mxu0 %v1957
  %v3117 = vpop.f32.mrb[0].mxu0
  %v3118 = vadd.f32 %v3055, %v3117
  %v3119 = vpop.f32.mrb[0].mxu0
  %v3120 = vadd.f32 %v3057, %v3119
  %v3121 = vpop.f32.mrb[0].mxu0
  %v3122 = vadd.f32 %v3059, %v3121
  %v3123 = vpop.f32.mrb[0].mxu0
  %v3124 = vadd.f32 %v3061, %v3123
  %3125 = vmatprep.mubr.bf16.mxu0 0
  %3126 = vmatmul.mubr.bf16.gmra.mrb[0].mxu0 %v1960
  %v3127 = vpop.f32.mrb[0].mxu0
  %v3128 = vadd.f32 %v3065, %v3127
  %v3129 = vpop.f32.mrb[0].mxu0
  %v3130 = vadd.f32 %v3067, %v3129
  %v3131 = vpop.f32.mrb[0].mxu0
  %v3132 = vadd.f32 %v3069, %v3131
  %v3133 = vpop.f32.mrb[0].mxu0
  %v3134 = vadd.f32 %v3071, %v3133
  %3135 = vmatprep.mubr.bf16.mxu0 0
  %3136 = vmatmul.mubr.bf16.gmra.mrb[0].mxu0 %v1963
  %v3137 = vpop.f32.mrb[0].mxu0
  %v3138 = vadd.f32 %v3075, %v3137
  %v3139 = vpop.f32.mrb[0].mxu0
  %v3140 = vadd.f32 %v3077, %v3139
  %v3141 = vpop.f32.mrb[0].mxu0
  %v3142 = vadd.f32 %v3079, %v3141
  %v3143 = vpop.f32.mrb[0].mxu0
  %v3144 = vadd.f32 %v3081, %v3143
  %3145 = vdwg.mxu0
  %3146 = vmatprep.subr.bf16.mxu0 %v2427
  %3147 = vmatpush1.bf16.msra.mxu0 %v2426
  %3148 = vmatprep.subr.bf16.mxu0 %v2429
  %3149 = vmatpush1.bf16.msra.mxu0 %v2428
  %3150 = vmatprep.subr.bf16.mxu0 0
  %3151 = vmatpush1.bf16.msra.mxu0 0
  %3152 = vmatprep.subr.bf16.mxu0 0
  %3153 = vmatpush1.bf16.msra.mxu0 0
  %3154 = vmatprep.subr.bf16.mxu0 0
  %3155 = vmatpush1.bf16.msra.mxu0 0
  %3156 = vmatprep.subr.bf16.mxu0 0
  %3157 = vmatpush1.bf16.msra.mxu0 0
  %3158 = vmatprep.subr.bf16.mxu0 0
  %3159 = vmatpush1.bf16.msra.mxu0 0
  %3160 = vmatprep.subr.bf16.mxu0 0
  %3161 = vmatpush1.bf16.msra.mxu0 0
  %3162 = vmatprep.subr.bf16.mxu0 0
  %3163 = vmatpush1.bf16.msra.mxu0 0
  %3164 = vmatprep.subr.bf16.mxu0 0
  %3165 = vmatpush1.bf16.msra.mxu0 0
  %3166 = vmatprep.subr.bf16.mxu0 0
  %3167 = vmatpush1.bf16.msra.mxu0 0
  %3168 = vmatprep.subr.bf16.mxu0 0
  %3169 = vmatpush1.bf16.msra.mxu0 0
  %3170 = vmatprep.subr.bf16.mxu0 0
  %3171 = vmatpush1.bf16.msra.mxu0 0
  %3172 = vmatprep.subr.bf16.mxu0 0
  %3173 = vmatpush1.bf16.msra.mxu0 0
  %3174 = vmatprep.subr.bf16.mxu0 0
  %3175 = vmatpush1.bf16.msra.mxu0 0
  %3176 = vmatprep.subr.bf16.mxu0 0
  %3177 = vmatpush1.bf16.msra.mxu0 0
  %3178 = vmatprep.mubr.bf16.mxu0 0
  %3179 = vmatmul.mubr.bf16.gmra.mrb[0].mxu0 %v2686
  %v3180 = vpop.f32.mrb[0].mxu0
  %v3181 = vadd.f32 0.0, %v3180
  %v3182 = vpop.f32.mrb[0].mxu0
  %v3183 = vadd.f32 0.0, %v3182
  %v3184 = vpop.f32.mrb[0].mxu0
  %v3185 = vadd.f32 0.0, %v3184
  %v3186 = vpop.f32.mrb[0].mxu0
  %v3187 = vadd.f32 0.0, %v3186
  %3188 = vmatprep.mubr.bf16.mxu0 0
  %3189 = vmatmul.mubr.bf16.gmra.mrb[0].mxu0 %v2689
  %v3190 = vpop.f32.mrb[0].mxu0
  %v3191 = vadd.f32 0.0, %v3190
  %v3192 = vpop.f32.mrb[0].mxu0
  %v3193 = vadd.f32 0.0, %v3192
  %v3194 = vpop.f32.mrb[0].mxu0
  %v3195 = vadd.f32 0.0, %v3194
  %v3196 = vpop.f32.mrb[0].mxu0
  %v3197 = vadd.f32 0.0, %v3196
  %3198 = vmatprep.mubr.bf16.mxu0 0
  %3199 = vmatmul.mubr.bf16.gmra.mrb[0].mxu0 %v2692
  %v3200 = vpop.f32.mrb[0].mxu0
  %v3201 = vadd.f32 0.0, %v3200
  %v3202 = vpop.f32.mrb[0].mxu0
  %v3203 = vadd.f32 0.0, %v3202
  %v3204 = vpop.f32.mrb[0].mxu0
  %v3205 = vadd.f32 0.0, %v3204
  %v3206 = vpop.f32.mrb[0].mxu0
  %v3207 = vadd.f32 0.0, %v3206
  %3208 = vdwg.mxu0
  %v3209 = vadd.f32 %v3118, %v3181
  %v3210 = vadd.f32 %v3120, %v3183
  %v3211 = vadd.f32 %v3122, %v3185
  %v3212 = vadd.f32 %v3124, %v3187
  %v3213 = vadd.f32 %v3128, %v3191
  %v3214 = vadd.f32 %v3130, %v3193
  %v3215 = vadd.f32 %v3132, %v3195
  %v3216 = vadd.f32 %v3134, %v3197
  %v3217 = vadd.f32 %v3138, %v3201
  %v3218 = vadd.f32 %v3140, %v3203
  %v3219 = vadd.f32 %v3142, %v3205
  %v3220 = vadd.f32 %v3144, %v3207
  %3221 = vmatprep.subr.bf16.mxu0 %v2678
  %3222 = vmatpush1.bf16.msra.mxu0 %v2677
  %3223 = vmatprep.subr.bf16.mxu0 %v2680
  %3224 = vmatpush1.bf16.msra.mxu0 %v2679
  %3225 = vmatprep.subr.bf16.mxu0 0
  %3226 = vmatpush1.bf16.msra.mxu0 0
  %3227 = vmatprep.subr.bf16.mxu0 0
  %3228 = vmatpush1.bf16.msra.mxu0 0
  %3229 = vmatprep.subr.bf16.mxu0 0
  %3230 = vmatpush1.bf16.msra.mxu0 0
  %3231 = vmatprep.subr.bf16.mxu0 0
  %3232 = vmatpush1.bf16.msra.mxu0 0
  %3233 = vmatprep.subr.bf16.mxu0 0
  %3234 = vmatpush1.bf16.msra.mxu0 0
  %3235 = vmatprep.subr.bf16.mxu0 0
  %3236 = vmatpush1.bf16.msra.mxu0 0
  %3237 = vmatprep.subr.bf16.mxu0 0
  %3238 = vmatpush1.bf16.msra.mxu0 0
  %3239 = vmatprep.subr.bf16.mxu0 0
  %3240 = vmatpush1.bf16.msra.mxu0 0
  %3241 = vmatprep.subr.bf16.mxu0 0
  %3242 = vmatpush1.bf16.msra.mxu0 0
  %3243 = vmatprep.subr.bf16.mxu0 0
  %3244 = vmatpush1.bf16.msra.mxu0 0
  %3245 = vmatprep.subr.bf16.mxu0 0
  %3246 = vmatpush1.bf16.msra.mxu0 0
  %3247 = vmatprep.subr.bf16.mxu0 0
  %3248 = vmatpush1.bf16.msra.mxu0 0
  %3249 = vmatprep.subr.bf16.mxu0 0
  %3250 = vmatpush1.bf16.msra.mxu0 0
  %3251 = vmatprep.subr.bf16.mxu0 0
  %3252 = vmatpush1.bf16.msra.mxu0 0
  %3253 = vmatprep.mubr.bf16.mxu0 0
  %3254 = vmatmul.mubr.bf16.gmra.mrb[0].mxu0 %v2937
  %v3255 = vpop.f32.mrb[0].mxu0
  %v3256 = vadd.f32 0.0, %v3255
  %v3257 = vpop.f32.mrb[0].mxu0
  %v3258 = vadd.f32 0.0, %v3257
  %v3259 = vpop.f32.mrb[0].mxu0
  %v3260 = vadd.f32 0.0, %v3259
  %v3261 = vpop.f32.mrb[0].mxu0
  %v3262 = vadd.f32 0.0, %v3261
  %3263 = vmatprep.mubr.bf16.mxu0 0
  %3264 = vmatmul.mubr.bf16.gmra.mrb[0].mxu0 %v2940
  %v3265 = vpop.f32.mrb[0].mxu0
  %v3266 = vadd.f32 0.0, %v3265
  %v3267 = vpop.f32.mrb[0].mxu0
  %v3268 = vadd.f32 0.0, %v3267
  %v3269 = vpop.f32.mrb[0].mxu0
  %v3270 = vadd.f32 0.0, %v3269
  %v3271 = vpop.f32.mrb[0].mxu0
  %v3272 = vadd.f32 0.0, %v3271
  %3273 = vmatprep.mubr.bf16.mxu0 0
  %3274 = vmatmul.mubr.bf16.gmra.mrb[0].mxu0 %v2943
  %v3275 = vpop.f32.mrb[0].mxu0
  %v3276 = vadd.f32 0.0, %v3275
  %v3277 = vpop.f32.mrb[0].mxu0
  %v3278 = vadd.f32 0.0, %v3277
  %v3279 = vpop.f32.mrb[0].mxu0
  %v3280 = vadd.f32 0.0, %v3279
  %v3281 = vpop.f32.mrb[0].mxu0
  %v3282 = vadd.f32 0.0, %v3281
  %3283 = vdwg.mxu0
  %v3284 = vadd.f32 %v3209, %v3256
  %v3285 = vadd.f32 %v3210, %v3258
  %v3286 = vadd.f32 %v3211, %v3260
  %v3287 = vadd.f32 %v3212, %v3262
  %v3288 = vadd.f32 %v3213, %v3266
  %v3289 = vadd.f32 %v3214, %v3268
  %v3290 = vadd.f32 %v3215, %v3270
  %v3291 = vadd.f32 %v3216, %v3272
  %v3292 = vadd.f32 %v3217, %v3276
  %v3293 = vadd.f32 %v3218, %v3278
  %v3294 = vadd.f32 %v3219, %v3280
  %v3295 = vadd.f32 %v3220, %v3282
  %v3296 = vcombine.low %v1180, %v1188
  %v3297 = vcombine.low %v1196, %v1205
  %v3298 = vcombine.low %v1213, %v1221
  %v3299 = vcombine.low %v1230, %v1238
  %v3301 = vunpack.c.l.s4 1966171168
  %v3302 = vunpack.c.0.s8 %v3301
  %v3303 = vlaneseq
  %v3304 = vshrl.u32 %v3303, 7
  %v3305 = vsub.s32 %v3302, %v3304
  %v3306 = vrot.slane %v3296, %v3305
  %v3308 = vunpack.c.l.s4 1966171168
  %v3309 = vunpack.c.0.s8 %v3308
  %v3310 = vlaneseq
  %v3311 = vshrl.u32 %v3310, 7
  %v3312 = vsub.s32 %v3309, %v3311
  %v3313 = vrot.slane %v3297, %v3312
  %v3315 = vunpack.c.l.s4 1966171168
  %v3316 = vunpack.c.0.s8 %v3315
  %v3317 = vlaneseq
  %v3318 = vshrl.u32 %v3317, 7
  %v3319 = vsub.s32 %v3316, %v3318
  %v3320 = vrot.slane %v3298, %v3319
  %v3322 = vunpack.c.l.s4 1966171168
  %v3323 = vunpack.c.0.s8 %v3322
  %v3324 = vlaneseq
  %v3325 = vshrl.u32 %v3324, 7
  %v3326 = vsub.s32 %v3323, %v3325
  %v3327 = vrot.slane %v3299, %v3326
  %v3328 = vcombine.low %v3306, %v3313
  %v3329 = vcombine.low %v3320, %v3327
  %v3331 = vunpack.c.l.s4 1966171168
  %v3332 = vunpack.c.0.s8 %v3331
  %v3333 = vlaneseq
  %v3334 = vshrl.u32 %v3333, 7
  %v3335 = vsub.s32 %v3332, %v3334
  %v3336 = vrot.slane %v3328, %v3335
  %v3338 = vunpack.c.l.s4 1966171168
  %v3339 = vunpack.c.0.s8 %v3338
  %v3340 = vlaneseq
  %v3341 = vshrl.u32 %v3340, 7
  %v3342 = vsub.s32 %v3339, %v3341
  %v3343 = vrot.slane %v3329, %v3342
  %v3344 = vcombine.low %v3336, %v3343
  %v3345 = vcombine.low %v1246, %v1255
  %v3346 = vcombine.low %v1263, %v1271
  %v3347 = vcombine.low %v1280, %v1288
  %v3348 = vcombine.low %v1296, %v1305
  %v3350 = vunpack.c.l.s4 1966171168
  %v3351 = vunpack.c.0.s8 %v3350
  %v3352 = vlaneseq
  %v3353 = vshrl.u32 %v3352, 7
  %v3354 = vsub.s32 %v3351, %v3353
  %v3355 = vrot.slane %v3345, %v3354
  %v3357 = vunpack.c.l.s4 1966171168
  %v3358 = vunpack.c.0.s8 %v3357
  %v3359 = vlaneseq
  %v3360 = vshrl.u32 %v3359, 7
  %v3361 = vsub.s32 %v3358, %v3360
  %v3362 = vrot.slane %v3346, %v3361
  %v3364 = vunpack.c.l.s4 1966171168
  %v3365 = vunpack.c.0.s8 %v3364
  %v3366 = vlaneseq
  %v3367 = vshrl.u32 %v3366, 7
  %v3368 = vsub.s32 %v3365, %v3367
  %v3369 = vrot.slane %v3347, %v3368
  %v3371 = vunpack.c.l.s4 1966171168
  %v3372 = vunpack.c.0.s8 %v3371
  %v3373 = vlaneseq
  %v3374 = vshrl.u32 %v3373, 7
  %v3375 = vsub.s32 %v3372, %v3374
  %v3376 = vrot.slane %v3348, %v3375
  %v3377 = vcombine.low %v3355, %v3362
  %v3378 = vcombine.low %v3369, %v3376
  %v3380 = vunpack.c.l.s4 1966171168
  %v3381 = vunpack.c.0.s8 %v3380
  %v3382 = vlaneseq
  %v3383 = vshrl.u32 %v3382, 7
  %v3384 = vsub.s32 %v3381, %v3383
  %v3385 = vrot.slane %v3377, %v3384
  %v3387 = vunpack.c.l.s4 1966171168
  %v3388 = vunpack.c.0.s8 %v3387
  %v3389 = vlaneseq
  %v3390 = vshrl.u32 %v3389, 7
  %v3391 = vsub.s32 %v3388, %v3390
  %v3392 = vrot.slane %v3378, %v3391
  %v3393 = vcombine.low %v3385, %v3392
  %v3394 = vcombine.low %v1313, %v1321
  %v3395 = vcombine.low %v1330, %v1338
  %v3396 = vcombine.low %v1346, %v1355
  %v3397 = vcombine.low %v1363, %v1371
  %v3399 = vunpack.c.l.s4 1966171168
  %v3400 = vunpack.c.0.s8 %v3399
  %v3401 = vlaneseq
  %v3402 = vshrl.u32 %v3401, 7
  %v3403 = vsub.s32 %v3400, %v3402
  %v3404 = vrot.slane %v3394, %v3403
  %v3406 = vunpack.c.l.s4 1966171168
  %v3407 = vunpack.c.0.s8 %v3406
  %v3408 = vlaneseq
  %v3409 = vshrl.u32 %v3408, 7
  %v3410 = vsub.s32 %v3407, %v3409
  %v3411 = vrot.slane %v3395, %v3410
  %v3413 = vunpack.c.l.s4 1966171168
  %v3414 = vunpack.c.0.s8 %v3413
  %v3415 = vlaneseq
  %v3416 = vshrl.u32 %v3415, 7
  %v3417 = vsub.s32 %v3414, %v3416
  %v3418 = vrot.slane %v3396, %v3417
  %v3420 = vunpack.c.l.s4 1966171168
  %v3421 = vunpack.c.0.s8 %v3420
  %v3422 = vlaneseq
  %v3423 = vshrl.u32 %v3422, 7
  %v3424 = vsub.s32 %v3421, %v3423
  %v3425 = vrot.slane %v3397, %v3424
  %v3426 = vcombine.low %v3404, %v3411
  %v3427 = vcombine.low %v3418, %v3425
  %v3429 = vunpack.c.l.s4 1966171168
  %v3430 = vunpack.c.0.s8 %v3429
  %v3431 = vlaneseq
  %v3432 = vshrl.u32 %v3431, 7
  %v3433 = vsub.s32 %v3430, %v3432
  %v3434 = vrot.slane %v3426, %v3433
  %v3436 = vunpack.c.l.s4 1966171168
  %v3437 = vunpack.c.0.s8 %v3436
  %v3438 = vlaneseq
  %v3439 = vshrl.u32 %v3438, 7
  %v3440 = vsub.s32 %v3437, %v3439
  %v3441 = vrot.slane %v3427, %v3440
  %v3442 = vcombine.low %v3434, %v3441
  %v3444 = vsel %vm1955, %v3344, 0
  %v3447 = vsel %vm1955, %v3393, 0
  %v3450 = vsel %vm1955, %v3442, 0
  %3452 = vmatprep.subr.bf16.mxu0 %v2929
  %3453 = vmatpush1.bf16.msra.mxu0 %v2928
  %3454 = vmatprep.subr.bf16.mxu0 %v2931
  %3455 = vmatpush1.bf16.msra.mxu0 %v2930
  %3456 = vmatprep.subr.bf16.mxu0 0
  %3457 = vmatpush1.bf16.msra.mxu0 0
  %3458 = vmatprep.subr.bf16.mxu0 0
  %3459 = vmatpush1.bf16.msra.mxu0 0
  %3460 = vmatprep.subr.bf16.mxu0 0
  %3461 = vmatpush1.bf16.msra.mxu0 0
  %3462 = vmatprep.subr.bf16.mxu0 0
  %3463 = vmatpush1.bf16.msra.mxu0 0
  %3464 = vmatprep.subr.bf16.mxu0 0
  %3465 = vmatpush1.bf16.msra.mxu0 0
  %3466 = vmatprep.subr.bf16.mxu0 0
  %3467 = vmatpush1.bf16.msra.mxu0 0
  %3468 = vmatprep.subr.bf16.mxu0 0
  %3469 = vmatpush1.bf16.msra.mxu0 0
  %3470 = vmatprep.subr.bf16.mxu0 0
  %3471 = vmatpush1.bf16.msra.mxu0 0
  %3472 = vmatprep.subr.bf16.mxu0 0
  %3473 = vmatpush1.bf16.msra.mxu0 0
  %3474 = vmatprep.subr.bf16.mxu0 0
  %3475 = vmatpush1.bf16.msra.mxu0 0
  %3476 = vmatprep.subr.bf16.mxu0 0
  %3477 = vmatpush1.bf16.msra.mxu0 0
  %3478 = vmatprep.subr.bf16.mxu0 0
  %3479 = vmatpush1.bf16.msra.mxu0 0
  %3480 = vmatprep.subr.bf16.mxu0 0
  %3481 = vmatpush1.bf16.msra.mxu0 0
  %3482 = vmatprep.subr.bf16.mxu0 0
  %3483 = vmatpush1.bf16.msra.mxu0 0
  %3484 = vmatprep.mubr.bf16.mxu0 0
  %3485 = vmatmul.mubr.bf16.gmra.mrb[0].mxu0 %v3444
  %v3486 = vpop.f32.mrb[0].mxu0
  %v3487 = vadd.f32 0.0, %v3486
  %v3488 = vpop.f32.mrb[0].mxu0
  %v3489 = vadd.f32 0.0, %v3488
  %v3490 = vpop.f32.mrb[0].mxu0
  %v3491 = vadd.f32 0.0, %v3490
  %v3492 = vpop.f32.mrb[0].mxu0
  %v3493 = vadd.f32 0.0, %v3492
  %3494 = vmatprep.mubr.bf16.mxu0 0
  %3495 = vmatmul.mubr.bf16.gmra.mrb[0].mxu0 %v3447
  %v3496 = vpop.f32.mrb[0].mxu0
  %v3497 = vadd.f32 0.0, %v3496
  %v3498 = vpop.f32.mrb[0].mxu0
  %v3499 = vadd.f32 0.0, %v3498
  %v3500 = vpop.f32.mrb[0].mxu0
  %v3501 = vadd.f32 0.0, %v3500
  %v3502 = vpop.f32.mrb[0].mxu0
  %v3503 = vadd.f32 0.0, %v3502
  %3504 = vmatprep.mubr.bf16.mxu0 0
  %3505 = vmatmul.mubr.bf16.gmra.mrb[0].mxu0 %v3450
  %v3506 = vpop.f32.mrb[0].mxu0
  %v3507 = vadd.f32 0.0, %v3506
  %v3508 = vpop.f32.mrb[0].mxu0
  %v3509 = vadd.f32 0.0, %v3508
  %v3510 = vpop.f32.mrb[0].mxu0
  %v3511 = vadd.f32 0.0, %v3510
  %v3512 = vpop.f32.mrb[0].mxu0
  %v3513 = vadd.f32 0.0, %v3512
  %3514 = vdwg.mxu0
  %v3515 = vadd.f32 %v3284, %v3487
  %v3516 = vadd.f32 %v3285, %v3489
  %v3517 = vadd.f32 %v3286, %v3491
  %v3518 = vadd.f32 %v3287, %v3493
  %v3519 = vadd.f32 %v3288, %v3497
  %v3520 = vadd.f32 %v3289, %v3499
  %v3521 = vadd.f32 %v3290, %v3501
  %v3522 = vadd.f32 %v3291, %v3503
  %v3523 = vadd.f32 %v3292, %v3507
  %v3524 = vadd.f32 %v3293, %v3509
  %v3525 = vadd.f32 %v3294, %v3511
  %v3526 = vadd.f32 %v3295, %v3513
  %v3527 = vmax.f32 %v3008, %v3515
  %v3528 = vmax.f32 %v3009, %v3516
  %v3529 = vmax.f32 %v3010, %v3517
  %v3530 = vmax.f32 %v3011, %v3518
  %v3531 = vmax.f32 %v3012, %v3519
  %v3532 = vmax.f32 %v3013, %v3520
  %v3533 = vmax.f32 %v3014, %v3521
  %v3534 = vmax.f32 %v3015, %v3522
  %v3535 = vmax.f32 %v3016, %v3523
  %v3536 = vmax.f32 %v3017, %v3524
  %v3537 = vmax.f32 %v3018, %v3525
  %v3538 = vmax.f32 %v3019, %v3526
  %v3539 = vmax.f32 %v3527, %v3528
  %v3540 = vmax.f32 %v3529, %v3530
  %v3541 = vmax.f32 %v3531, %v3532
  %v3542 = vmax.f32 %v3533, %v3534
  %v3543 = vmax.f32 %v3535, %v3536
  %v3544 = vmax.f32 %v3537, %v3538
  %v3545 = vld [vmem:[%s2] sm:$0x1]
  %v3547 = vlaneseq
  %v3548 = vshrl.u32 %v3547, 7
  %v3549 = vsub.s32 0, %v3548
  %v3550 = vrot.slane %v3545, %v3549
  %v3552 = vadd.f32 %v3539, %v3550
  %v3553 = vadd.f32 %v3540, %v3550
  %v3554 = vadd.f32 %v3541, %v3550
  %v3555 = vadd.f32 %v3542, %v3550
  %v3556 = vadd.f32 %v3543, %v3550
  %v3557 = vadd.f32 %v3544, %v3550
  %v3558 = vmax.f32 %v3552, 0.0
  %v3559 = vmax.f32 %v3553, 0.0
  %v3560 = vmax.f32 %v3554, 0.0
  %v3561 = vmax.f32 %v3555, 0.0
  %v3562 = vmax.f32 %v3556, 0.0
  %v3563 = vmax.f32 %v3557, 0.0
  %v3564 = vpack.c.bf16 %v3559, %v3558
  %v3565 = vpack.c.bf16 %v3561, %v3560
  %v3566 = vpack.c.bf16 %v3563, %v3562
  %v3570 = vcombine.high %v3564, %v3564
  %v3572 = vunpack.c.l.s4 1966171168
  %v3573 = vunpack.c.0.s8 %v3572
  %v3574 = vlaneseq
  %v3575 = vshrl.u32 %v3574, 7
  %v3576 = vsub.s32 %v3573, %v3575
  %v3577 = vrot.slane %v3564, %v3576
  %v3579 = vunpack.c.l.s4 1966171168
  %v3580 = vunpack.c.0.s8 %v3579
  %v3581 = vlaneseq
  %v3582 = vshrl.u32 %v3581, 7
  %v3583 = vsub.s32 %v3580, %v3582
  %v3584 = vrot.slane %v3570, %v3583
  %v3585 = vcombine.high %v3577, %v3577
  %v3586 = vcombine.high %v3584, %v3584
  %v3588 = vunpack.c.l.s4 1966171168
  %v3589 = vunpack.c.0.s8 %v3588
  %v3590 = vlaneseq
  %v3591 = vshrl.u32 %v3590, 7
  %v3592 = vsub.s32 %v3589, %v3591
  %v3593 = vrot.slane %v3577, %v3592
  %v3595 = vunpack.c.l.s4 1966171168
  %v3596 = vunpack.c.0.s8 %v3595
  %v3597 = vlaneseq
  %v3598 = vshrl.u32 %v3597, 7
  %v3599 = vsub.s32 %v3596, %v3598
  %v3600 = vrot.slane %v3584, %v3599
  %v3602 = vunpack.c.l.s4 1966171168
  %v3603 = vunpack.c.0.s8 %v3602
  %v3604 = vlaneseq
  %v3605 = vshrl.u32 %v3604, 7
  %v3606 = vsub.s32 %v3603, %v3605
  %v3607 = vrot.slane %v3585, %v3606
  %v3609 = vunpack.c.l.s4 1966171168
  %v3610 = vunpack.c.0.s8 %v3609
  %v3611 = vlaneseq
  %v3612 = vshrl.u32 %v3611, 7
  %v3613 = vsub.s32 %v3610, %v3612
  %v3614 = vrot.slane %v3586, %v3613
  %v3615 = vcombine.high %v3593, %v3593
  %v3616 = vcombine.high %v3600, %v3600
  %v3617 = vcombine.high %v3607, %v3607
  %v3618 = vcombine.high %v3614, %v3614
  %v3619 = vcombine.high %v3565, %v3565
  %v3621 = vunpack.c.l.s4 1966171168
  %v3622 = vunpack.c.0.s8 %v3621
  %v3623 = vlaneseq
  %v3624 = vshrl.u32 %v3623, 7
  %v3625 = vsub.s32 %v3622, %v3624
  %v3626 = vrot.slane %v3565, %v3625
  %v3628 = vunpack.c.l.s4 1966171168
  %v3629 = vunpack.c.0.s8 %v3628
  %v3630 = vlaneseq
  %v3631 = vshrl.u32 %v3630, 7
  %v3632 = vsub.s32 %v3629, %v3631
  %v3633 = vrot.slane %v3619, %v3632
  %v3634 = vcombine.high %v3626, %v3626
  %v3635 = vcombine.high %v3633, %v3633
  %v3637 = vunpack.c.l.s4 1966171168
  %v3638 = vunpack.c.0.s8 %v3637
  %v3639 = vlaneseq
  %v3640 = vshrl.u32 %v3639, 7
  %v3641 = vsub.s32 %v3638, %v3640
  %v3642 = vrot.slane %v3626, %v3641
  %v3644 = vunpack.c.l.s4 1966171168
  %v3645 = vunpack.c.0.s8 %v3644
  %v3646 = vlaneseq
  %v3647 = vshrl.u32 %v3646, 7
  %v3648 = vsub.s32 %v3645, %v3647
  %v3649 = vrot.slane %v3633, %v3648
  %v3651 = vunpack.c.l.s4 1966171168
  %v3652 = vunpack.c.0.s8 %v3651
  %v3653 = vlaneseq
  %v3654 = vshrl.u32 %v3653, 7
  %v3655 = vsub.s32 %v3652, %v3654
  %v3656 = vrot.slane %v3634, %v3655
  %v3658 = vunpack.c.l.s4 1966171168
  %v3659 = vunpack.c.0.s8 %v3658
  %v3660 = vlaneseq
  %v3661 = vshrl.u32 %v3660, 7
  %v3662 = vsub.s32 %v3659, %v3661
  %v3663 = vrot.slane %v3635, %v3662
  %v3664 = vcombine.high %v3642, %v3642
  %v3665 = vcombine.high %v3649, %v3649
  %v3666 = vcombine.high %v3656, %v3656
  %v3667 = vcombine.high %v3663, %v3663
  %v3668 = vcombine.high %v3566, %v3566
  %v3670 = vunpack.c.l.s4 1966171168
  %v3671 = vunpack.c.0.s8 %v3670
  %v3672 = vlaneseq
  %v3673 = vshrl.u32 %v3672, 7
  %v3674 = vsub.s32 %v3671, %v3673
  %v3675 = vrot.slane %v3566, %v3674
  %v3677 = vunpack.c.l.s4 1966171168
  %v3678 = vunpack.c.0.s8 %v3677
  %v3679 = vlaneseq
  %v3680 = vshrl.u32 %v3679, 7
  %v3681 = vsub.s32 %v3678, %v3680
  %v3682 = vrot.slane %v3668, %v3681
  %v3683 = vcombine.high %v3675, %v3675
  %v3684 = vcombine.high %v3682, %v3682
  %v3686 = vunpack.c.l.s4 1966171168
  %v3687 = vunpack.c.0.s8 %v3686
  %v3688 = vlaneseq
  %v3689 = vshrl.u32 %v3688, 7
  %v3690 = vsub.s32 %v3687, %v3689
  %v3691 = vrot.slane %v3675, %v3690
  %v3693 = vunpack.c.l.s4 1966171168
  %v3694 = vunpack.c.0.s8 %v3693
  %v3695 = vlaneseq
  %v3696 = vshrl.u32 %v3695, 7
  %v3697 = vsub.s32 %v3694, %v3696
  %v3698 = vrot.slane %v3682, %v3697
  %v3700 = vunpack.c.l.s4 1966171168
  %v3701 = vunpack.c.0.s8 %v3700
  %v3702 = vlaneseq
  %v3703 = vshrl.u32 %v3702, 7
  %v3704 = vsub.s32 %v3701, %v3703
  %v3705 = vrot.slane %v3683, %v3704
  %v3707 = vunpack.c.l.s4 1966171168
  %v3708 = vunpack.c.0.s8 %v3707
  %v3709 = vlaneseq
  %v3710 = vshrl.u32 %v3709, 7
  %v3711 = vsub.s32 %v3708, %v3710
  %v3712 = vrot.slane %v3684, %v3711
  %v3713 = vcombine.high %v3691, %v3691
  %v3714 = vcombine.high %v3698, %v3698
  %v3715 = vcombine.high %v3705, %v3705
  %v3716 = vcombine.high %v3712, %v3712
  %3717 = vmatprep.subr.bf16.mxu0 %v1948
  %3718 = vmatpush1.bf16.msra.mxu0 %v1947
  %3719 = vmatprep.subr.bf16.mxu0 %v1950
  %3720 = vmatpush1.bf16.msra.mxu0 %v1949
  %3721 = vmatprep.subr.bf16.mxu0 0
  %3722 = vmatpush1.bf16.msra.mxu0 0
  %3723 = vmatprep.subr.bf16.mxu0 0
  %3724 = vmatpush1.bf16.msra.mxu0 0
  %3725 = vmatprep.subr.bf16.mxu0 0
  %3726 = vmatpush1.bf16.msra.mxu0 0
  %3727 = vmatprep.subr.bf16.mxu0 0
  %3728 = vmatpush1.bf16.msra.mxu0 0
  %3729 = vmatprep.subr.bf16.mxu0 0
  %3730 = vmatpush1.bf16.msra.mxu0 0
  %3731 = vmatprep.subr.bf16.mxu0 0
  %3732 = vmatpush1.bf16.msra.mxu0 0
  %3733 = vmatprep.subr.bf16.mxu0 0
  %3734 = vmatpush1.bf16.msra.mxu0 0
  %3735 = vmatprep.subr.bf16.mxu0 0
  %3736 = vmatpush1.bf16.msra.mxu0 0
  %3737 = vmatprep.subr.bf16.mxu0 0
  %3738 = vmatpush1.bf16.msra.mxu0 0
  %3739 = vmatprep.subr.bf16.mxu0 0
  %3740 = vmatpush1.bf16.msra.mxu0 0
  %3741 = vmatprep.subr.bf16.mxu0 0
  %3742 = vmatpush1.bf16.msra.mxu0 0
  %3743 = vmatprep.subr.bf16.mxu0 0
  %3744 = vmatpush1.bf16.msra.mxu0 0
  %3745 = vmatprep.subr.bf16.mxu0 0
  %3746 = vmatpush1.bf16.msra.mxu0 0
  %3747 = vmatprep.subr.bf16.mxu0 0
  %3748 = vmatpush1.bf16.msra.mxu0 0
  %3749 = vmatprep.mubr.bf16.mxu0 0
  %3750 = vmatmul.mubr.bf16.gmra.mrb[0].mxu0 %v2686
  %v3751 = vpop.f32.mrb[0].mxu0
  %v3752 = vadd.f32 0.0, %v3751
  %v3753 = vpop.f32.mrb[0].mxu0
  %v3754 = vadd.f32 0.0, %v3753
  %v3755 = vpop.f32.mrb[0].mxu0
  %v3756 = vadd.f32 0.0, %v3755
  %v3757 = vpop.f32.mrb[0].mxu0
  %v3758 = vadd.f32 0.0, %v3757
  %3759 = vmatprep.mubr.bf16.mxu0 0
  %3760 = vmatmul.mubr.bf16.gmra.mrb[0].mxu0 %v2689
  %v3761 = vpop.f32.mrb[0].mxu0
  %v3762 = vadd.f32 0.0, %v3761
  %v3763 = vpop.f32.mrb[0].mxu0
  %v3764 = vadd.f32 0.0, %v3763
  %v3765 = vpop.f32.mrb[0].mxu0
  %v3766 = vadd.f32 0.0, %v3765
  %v3767 = vpop.f32.mrb[0].mxu0
  %v3768 = vadd.f32 0.0, %v3767
  %3769 = vmatprep.mubr.bf16.mxu0 0
  %3770 = vmatmul.mubr.bf16.gmra.mrb[0].mxu0 %v2692
  %v3771 = vpop.f32.mrb[0].mxu0
  %v3772 = vadd.f32 0.0, %v3771
  %v3773 = vpop.f32.mrb[0].mxu0
  %v3774 = vadd.f32 0.0, %v3773
  %v3775 = vpop.f32.mrb[0].mxu0
  %v3776 = vadd.f32 0.0, %v3775
  %v3777 = vpop.f32.mrb[0].mxu0
  %v3778 = vadd.f32 0.0, %v3777
  %3779 = vdwg.mxu0
  %3780 = vmatprep.subr.bf16.mxu0 %v2188
  %3781 = vmatpush1.bf16.msra.mxu0 %v2187
  %3782 = vmatprep.subr.bf16.mxu0 %v2190
  %3783 = vmatpush1.bf16.msra.mxu0 %v2189
  %3784 = vmatprep.subr.bf16.mxu0 0
  %3785 = vmatpush1.bf16.msra.mxu0 0
  %3786 = vmatprep.subr.bf16.mxu0 0
  %3787 = vmatpush1.bf16.msra.mxu0 0
  %3788 = vmatprep.subr.bf16.mxu0 0
  %3789 = vmatpush1.bf16.msra.mxu0 0
  %3790 = vmatprep.subr.bf16.mxu0 0
  %3791 = vmatpush1.bf16.msra.mxu0 0
  %3792 = vmatprep.subr.bf16.mxu0 0
  %3793 = vmatpush1.bf16.msra.mxu0 0
  %3794 = vmatprep.subr.bf16.mxu0 0
  %3795 = vmatpush1.bf16.msra.mxu0 0
  %3796 = vmatprep.subr.bf16.mxu0 0
  %3797 = vmatpush1.bf16.msra.mxu0 0
  %3798 = vmatprep.subr.bf16.mxu0 0
  %3799 = vmatpush1.bf16.msra.mxu0 0
  %3800 = vmatprep.subr.bf16.mxu0 0
  %3801 = vmatpush1.bf16.msra.mxu0 0
  %3802 = vmatprep.subr.bf16.mxu0 0
  %3803 = vmatpush1.bf16.msra.mxu0 0
  %3804 = vmatprep.subr.bf16.mxu0 0
  %3805 = vmatpush1.bf16.msra.mxu0 0
  %3806 = vmatprep.subr.bf16.mxu0 0
  %3807 = vmatpush1.bf16.msra.mxu0 0
  %3808 = vmatprep.subr.bf16.mxu0 0
  %3809 = vmatpush1.bf16.msra.mxu0 0
  %3810 = vmatprep.subr.bf16.mxu0 0
  %3811 = vmatpush1.bf16.msra.mxu0 0
  %3812 = vmatprep.mubr.bf16.mxu0 0
  %3813 = vmatmul.mubr.bf16.gmra.mrb[0].mxu0 %v2435
  %v3814 = vpop.f32.mrb[0].mxu0
  %v3815 = vadd.f32 %v3752, %v3814
  %v3816 = vpop.f32.mrb[0].mxu0
  %v3817 = vadd.f32 %v3754, %v3816
  %v3818 = vpop.f32.mrb[0].mxu0
  %v3819 = vadd.f32 %v3756, %v3818
  %v3820 = vpop.f32.mrb[0].mxu0
  %v3821 = vadd.f32 %v3758, %v3820
  %3822 = vmatprep.mubr.bf16.mxu0 0
  %3823 = vmatmul.mubr.bf16.gmra.mrb[0].mxu0 %v2438
  %v3824 = vpop.f32.mrb[0].mxu0
  %v3825 = vadd.f32 %v3762, %v3824
  %v3826 = vpop.f32.mrb[0].mxu0
  %v3827 = vadd.f32 %v3764, %v3826
  %v3828 = vpop.f32.mrb[0].mxu0
  %v3829 = vadd.f32 %v3766, %v3828
  %v3830 = vpop.f32.mrb[0].mxu0
  %v3831 = vadd.f32 %v3768, %v3830
  %3832 = vmatprep.mubr.bf16.mxu0 0
  %3833 = vmatmul.mubr.bf16.gmra.mrb[0].mxu0 %v2441
  %v3834 = vpop.f32.mrb[0].mxu0
  %v3835 = vadd.f32 %v3772, %v3834
  %v3836 = vpop.f32.mrb[0].mxu0
  %v3837 = vadd.f32 %v3774, %v3836
  %v3838 = vpop.f32.mrb[0].mxu0
  %v3839 = vadd.f32 %v3776, %v3838
  %v3840 = vpop.f32.mrb[0].mxu0
  %v3841 = vadd.f32 %v3778, %v3840
  %3842 = vdwg.mxu0
  %3843 = vmatprep.subr.bf16.mxu0 %v2427
  %3844 = vmatpush1.bf16.msra.mxu0 %v2426
  %3845 = vmatprep.subr.bf16.mxu0 %v2429
  %3846 = vmatpush1.bf16.msra.mxu0 %v2428
  %3847 = vmatprep.subr.bf16.mxu0 0
  %3848 = vmatpush1.bf16.msra.mxu0 0
  %3849 = vmatprep.subr.bf16.mxu0 0
  %3850 = vmatpush1.bf16.msra.mxu0 0
  %3851 = vmatprep.subr.bf16.mxu0 0
  %3852 = vmatpush1.bf16.msra.mxu0 0
  %3853 = vmatprep.subr.bf16.mxu0 0
  %3854 = vmatpush1.bf16.msra.mxu0 0
  %3855 = vmatprep.subr.bf16.mxu0 0
  %3856 = vmatpush1.bf16.msra.mxu0 0
  %3857 = vmatprep.subr.bf16.mxu0 0
  %3858 = vmatpush1.bf16.msra.mxu0 0
  %3859 = vmatprep.subr.bf16.mxu0 0
  %3860 = vmatpush1.bf16.msra.mxu0 0
  %3861 = vmatprep.subr.bf16.mxu0 0
  %3862 = vmatpush1.bf16.msra.mxu0 0
  %3863 = vmatprep.subr.bf16.mxu0 0
  %3864 = vmatpush1.bf16.msra.mxu0 0
  %3865 = vmatprep.subr.bf16.mxu0 0
  %3866 = vmatpush1.bf16.msra.mxu0 0
  %3867 = vmatprep.subr.bf16.mxu0 0
  %3868 = vmatpush1.bf16.msra.mxu0 0
  %3869 = vmatprep.subr.bf16.mxu0 0
  %3870 = vmatpush1.bf16.msra.mxu0 0
  %3871 = vmatprep.subr.bf16.mxu0 0
  %3872 = vmatpush1.bf16.msra.mxu0 0
  %3873 = vmatprep.subr.bf16.mxu0 0
  %3874 = vmatpush1.bf16.msra.mxu0 0
  %3875 = vmatprep.mubr.bf16.mxu0 0
  %3876 = vmatmul.mubr.bf16.gmra.mrb[0].mxu0 %v2937
  %v3877 = vpop.f32.mrb[0].mxu0
  %v3878 = vadd.f32 0.0, %v3877
  %v3879 = vpop.f32.mrb[0].mxu0
  %v3880 = vadd.f32 0.0, %v3879
  %v3881 = vpop.f32.mrb[0].mxu0
  %v3882 = vadd.f32 0.0, %v3881
  %v3883 = vpop.f32.mrb[0].mxu0
  %v3884 = vadd.f32 0.0, %v3883
  %3885 = vmatprep.mubr.bf16.mxu0 0
  %3886 = vmatmul.mubr.bf16.gmra.mrb[0].mxu0 %v2940
  %v3887 = vpop.f32.mrb[0].mxu0
  %v3888 = vadd.f32 0.0, %v3887
  %v3889 = vpop.f32.mrb[0].mxu0
  %v3890 = vadd.f32 0.0, %v3889
  %v3891 = vpop.f32.mrb[0].mxu0
  %v3892 = vadd.f32 0.0, %v3891
  %v3893 = vpop.f32.mrb[0].mxu0
  %v3894 = vadd.f32 0.0, %v3893
  %3895 = vmatprep.mubr.bf16.mxu0 0
  %3896 = vmatmul.mubr.bf16.gmra.mrb[0].mxu0 %v2943
  %v3897 = vpop.f32.mrb[0].mxu0
  %v3898 = vadd.f32 0.0, %v3897
  %v3899 = vpop.f32.mrb[0].mxu0
  %v3900 = vadd.f32 0.0, %v3899
  %v3901 = vpop.f32.mrb[0].mxu0
  %v3902 = vadd.f32 0.0, %v3901
  %v3903 = vpop.f32.mrb[0].mxu0
  %v3904 = vadd.f32 0.0, %v3903
  %3905 = vdwg.mxu0
  %v3906 = vadd.f32 %v3815, %v3878
  %v3907 = vadd.f32 %v3817, %v3880
  %v3908 = vadd.f32 %v3819, %v3882
  %v3909 = vadd.f32 %v3821, %v3884
  %v3910 = vadd.f32 %v3825, %v3888
  %v3911 = vadd.f32 %v3827, %v3890
  %v3912 = vadd.f32 %v3829, %v3892
  %v3913 = vadd.f32 %v3831, %v3894
  %v3914 = vadd.f32 %v3835, %v3898
  %v3915 = vadd.f32 %v3837, %v3900
  %v3916 = vadd.f32 %v3839, %v3902
  %v3917 = vadd.f32 %v3841, %v3904
  %3918 = vmatprep.subr.bf16.mxu0 %v2678
  %3919 = vmatpush1.bf16.msra.mxu0 %v2677
  %3920 = vmatprep.subr.bf16.mxu0 %v2680
  %3921 = vmatpush1.bf16.msra.mxu0 %v2679
  %3922 = vmatprep.subr.bf16.mxu0 0
  %3923 = vmatpush1.bf16.msra.mxu0 0
  %3924 = vmatprep.subr.bf16.mxu0 0
  %3925 = vmatpush1.bf16.msra.mxu0 0
  %3926 = vmatprep.subr.bf16.mxu0 0
  %3927 = vmatpush1.bf16.msra.mxu0 0
  %3928 = vmatprep.subr.bf16.mxu0 0
  %3929 = vmatpush1.bf16.msra.mxu0 0
  %3930 = vmatprep.subr.bf16.mxu0 0
  %3931 = vmatpush1.bf16.msra.mxu0 0
  %3932 = vmatprep.subr.bf16.mxu0 0
  %3933 = vmatpush1.bf16.msra.mxu0 0
  %3934 = vmatprep.subr.bf16.mxu0 0
  %3935 = vmatpush1.bf16.msra.mxu0 0
  %3936 = vmatprep.subr.bf16.mxu0 0
  %3937 = vmatpush1.bf16.msra.mxu0 0
  %3938 = vmatprep.subr.bf16.mxu0 0
  %3939 = vmatpush1.bf16.msra.mxu0 0
  %3940 = vmatprep.subr.bf16.mxu0 0
  %3941 = vmatpush1.bf16.msra.mxu0 0
  %3942 = vmatprep.subr.bf16.mxu0 0
  %3943 = vmatpush1.bf16.msra.mxu0 0
  %3944 = vmatprep.subr.bf16.mxu0 0
  %3945 = vmatpush1.bf16.msra.mxu0 0
  %3946 = vmatprep.subr.bf16.mxu0 0
  %3947 = vmatpush1.bf16.msra.mxu0 0
  %3948 = vmatprep.subr.bf16.mxu0 0
  %3949 = vmatpush1.bf16.msra.mxu0 0
  %3950 = vmatprep.mubr.bf16.mxu0 0
  %3951 = vmatmul.mubr.bf16.gmra.mrb[0].mxu0 %v3444
  %v3952 = vpop.f32.mrb[0].mxu0
  %v3953 = vadd.f32 0.0, %v3952
  %v3954 = vpop.f32.mrb[0].mxu0
  %v3955 = vadd.f32 0.0, %v3954
  %v3956 = vpop.f32.mrb[0].mxu0
  %v3957 = vadd.f32 0.0, %v3956
  %v3958 = vpop.f32.mrb[0].mxu0
  %v3959 = vadd.f32 0.0, %v3958
  %3960 = vmatprep.mubr.bf16.mxu0 0
  %3961 = vmatmul.mubr.bf16.gmra.mrb[0].mxu0 %v3447
  %v3962 = vpop.f32.mrb[0].mxu0
  %v3963 = vadd.f32 0.0, %v3962
  %v3964 = vpop.f32.mrb[0].mxu0
  %v3965 = vadd.f32 0.0, %v3964
  %v3966 = vpop.f32.mrb[0].mxu0
  %v3967 = vadd.f32 0.0, %v3966
  %v3968 = vpop.f32.mrb[0].mxu0
  %v3969 = vadd.f32 0.0, %v3968
  %3970 = vmatprep.mubr.bf16.mxu0 0
  %3971 = vmatmul.mubr.bf16.gmra.mrb[0].mxu0 %v3450
  %v3972 = vpop.f32.mrb[0].mxu0
  %v3973 = vadd.f32 0.0, %v3972
  %v3974 = vpop.f32.mrb[0].mxu0
  %v3975 = vadd.f32 0.0, %v3974
  %v3976 = vpop.f32.mrb[0].mxu0
  %v3977 = vadd.f32 0.0, %v3976
  %v3978 = vpop.f32.mrb[0].mxu0
  %v3979 = vadd.f32 0.0, %v3978
  %3980 = vdwg.mxu0
  %v3981 = vadd.f32 %v3906, %v3953
  %v3982 = vadd.f32 %v3907, %v3955
  %v3983 = vadd.f32 %v3908, %v3957
  %v3984 = vadd.f32 %v3909, %v3959
  %v3985 = vadd.f32 %v3910, %v3963
  %v3986 = vadd.f32 %v3911, %v3965
  %v3987 = vadd.f32 %v3912, %v3967
  %v3988 = vadd.f32 %v3913, %v3969
  %v3989 = vadd.f32 %v3914, %v3973
  %v3990 = vadd.f32 %v3915, %v3975
  %v3991 = vadd.f32 %v3916, %v3977
  %v3992 = vadd.f32 %v3917, %v3979
  %v3993 = vcombine.low %v1388, %v1396
  %v3994 = vcombine.low %v1404, %v1413
  %v3995 = vcombine.low %v1421, %v1429
  %v3996 = vcombine.low %v1438, %v1446
  %v3998 = vunpack.c.l.s4 1966171168
  %v3999 = vunpack.c.0.s8 %v3998
  %v4000 = vlaneseq
  %v4001 = vshrl.u32 %v4000, 7
  %v4002 = vsub.s32 %v3999, %v4001
  %v4003 = vrot.slane %v3993, %v4002
  %v4005 = vunpack.c.l.s4 1966171168
  %v4006 = vunpack.c.0.s8 %v4005
  %v4007 = vlaneseq
  %v4008 = vshrl.u32 %v4007, 7
  %v4009 = vsub.s32 %v4006, %v4008
  %v4010 = vrot.slane %v3994, %v4009
  %v4012 = vunpack.c.l.s4 1966171168
  %v4013 = vunpack.c.0.s8 %v4012
  %v4014 = vlaneseq
  %v4015 = vshrl.u32 %v4014, 7
  %v4016 = vsub.s32 %v4013, %v4015
  %v4017 = vrot.slane %v3995, %v4016
  %v4019 = vunpack.c.l.s4 1966171168
  %v4020 = vunpack.c.0.s8 %v4019
  %v4021 = vlaneseq
  %v4022 = vshrl.u32 %v4021, 7
  %v4023 = vsub.s32 %v4020, %v4022
  %v4024 = vrot.slane %v3996, %v4023
  %v4025 = vcombine.low %v4003, %v4010
  %v4026 = vcombine.low %v4017, %v4024
  %v4028 = vunpack.c.l.s4 1966171168
  %v4029 = vunpack.c.0.s8 %v4028
  %v4030 = vlaneseq
  %v4031 = vshrl.u32 %v4030, 7
  %v4032 = vsub.s32 %v4029, %v4031
  %v4033 = vrot.slane %v4025, %v4032
  %v4035 = vunpack.c.l.s4 1966171168
  %v4036 = vunpack.c.0.s8 %v4035
  %v4037 = vlaneseq
  %v4038 = vshrl.u32 %v4037, 7
  %v4039 = vsub.s32 %v4036, %v4038
  %v4040 = vrot.slane %v4026, %v4039
  %v4041 = vcombine.low %v4033, %v4040
  %v4042 = vcombine.low %v1454, %v1463
  %v4043 = vcombine.low %v1471, %v1479
  %v4044 = vcombine.low %v1488, %v1496
  %v4045 = vcombine.low %v1504, %v1513
  %v4047 = vunpack.c.l.s4 1966171168
  %v4048 = vunpack.c.0.s8 %v4047
  %v4049 = vlaneseq
  %v4050 = vshrl.u32 %v4049, 7
  %v4051 = vsub.s32 %v4048, %v4050
  %v4052 = vrot.slane %v4042, %v4051
  %v4054 = vunpack.c.l.s4 1966171168
  %v4055 = vunpack.c.0.s8 %v4054
  %v4056 = vlaneseq
  %v4057 = vshrl.u32 %v4056, 7
  %v4058 = vsub.s32 %v4055, %v4057
  %v4059 = vrot.slane %v4043, %v4058
  %v4061 = vunpack.c.l.s4 1966171168
  %v4062 = vunpack.c.0.s8 %v4061
  %v4063 = vlaneseq
  %v4064 = vshrl.u32 %v4063, 7
  %v4065 = vsub.s32 %v4062, %v4064
  %v4066 = vrot.slane %v4044, %v4065
  %v4068 = vunpack.c.l.s4 1966171168
  %v4069 = vunpack.c.0.s8 %v4068
  %v4070 = vlaneseq
  %v4071 = vshrl.u32 %v4070, 7
  %v4072 = vsub.s32 %v4069, %v4071
  %v4073 = vrot.slane %v4045, %v4072
  %v4074 = vcombine.low %v4052, %v4059
  %v4075 = vcombine.low %v4066, %v4073
  %v4077 = vunpack.c.l.s4 1966171168
  %v4078 = vunpack.c.0.s8 %v4077
  %v4079 = vlaneseq
  %v4080 = vshrl.u32 %v4079, 7
  %v4081 = vsub.s32 %v4078, %v4080
  %v4082 = vrot.slane %v4074, %v4081
  %v4084 = vunpack.c.l.s4 1966171168
  %v4085 = vunpack.c.0.s8 %v4084
  %v4086 = vlaneseq
  %v4087 = vshrl.u32 %v4086, 7
  %v4088 = vsub.s32 %v4085, %v4087
  %v4089 = vrot.slane %v4075, %v4088
  %v4090 = vcombine.low %v4082, %v4089
  %v4091 = vcombine.low %v1521, %v1529
  %v4092 = vcombine.low %v1538, %v1546
  %v4093 = vcombine.low %v1554, %v1563
  %v4094 = vcombine.low %v1571, %v1579
  %v4096 = vunpack.c.l.s4 1966171168
  %v4097 = vunpack.c.0.s8 %v4096
  %v4098 = vlaneseq
  %v4099 = vshrl.u32 %v4098, 7
  %v4100 = vsub.s32 %v4097, %v4099
  %v4101 = vrot.slane %v4091, %v4100
  %v4103 = vunpack.c.l.s4 1966171168
  %v4104 = vunpack.c.0.s8 %v4103
  %v4105 = vlaneseq
  %v4106 = vshrl.u32 %v4105, 7
  %v4107 = vsub.s32 %v4104, %v4106
  %v4108 = vrot.slane %v4092, %v4107
  %v4110 = vunpack.c.l.s4 1966171168
  %v4111 = vunpack.c.0.s8 %v4110
  %v4112 = vlaneseq
  %v4113 = vshrl.u32 %v4112, 7
  %v4114 = vsub.s32 %v4111, %v4113
  %v4115 = vrot.slane %v4093, %v4114
  %v4117 = vunpack.c.l.s4 1966171168
  %v4118 = vunpack.c.0.s8 %v4117
  %v4119 = vlaneseq
  %v4120 = vshrl.u32 %v4119, 7
  %v4121 = vsub.s32 %v4118, %v4120
  %v4122 = vrot.slane %v4094, %v4121
  %v4123 = vcombine.low %v4101, %v4108
  %v4124 = vcombine.low %v4115, %v4122
  %v4126 = vunpack.c.l.s4 1966171168
  %v4127 = vunpack.c.0.s8 %v4126
  %v4128 = vlaneseq
  %v4129 = vshrl.u32 %v4128, 7
  %v4130 = vsub.s32 %v4127, %v4129
  %v4131 = vrot.slane %v4123, %v4130
  %v4133 = vunpack.c.l.s4 1966171168
  %v4134 = vunpack.c.0.s8 %v4133
  %v4135 = vlaneseq
  %v4136 = vshrl.u32 %v4135, 7
  %v4137 = vsub.s32 %v4134, %v4136
  %v4138 = vrot.slane %v4124, %v4137
  %v4139 = vcombine.low %v4131, %v4138
  %v4141 = vsel %vm1955, %v4041, 0
  %v4144 = vsel %vm1955, %v4090, 0
  %v4147 = vsel %vm1955, %v4139, 0
  %4149 = vmatprep.subr.bf16.mxu0 %v2929
  %4150 = vmatpush1.bf16.msra.mxu0 %v2928
  %4151 = vmatprep.subr.bf16.mxu0 %v2931
  %4152 = vmatpush1.bf16.msra.mxu0 %v2930
  %4153 = vmatprep.subr.bf16.mxu0 0
  %4154 = vmatpush1.bf16.msra.mxu0 0
  %4155 = vmatprep.subr.bf16.mxu0 0
  %4156 = vmatpush1.bf16.msra.mxu0 0
  %4157 = vmatprep.subr.bf16.mxu0 0
  %4158 = vmatpush1.bf16.msra.mxu0 0
  %4159 = vmatprep.subr.bf16.mxu0 0
  %4160 = vmatpush1.bf16.msra.mxu0 0
  %4161 = vmatprep.subr.bf16.mxu0 0
  %4162 = vmatpush1.bf16.msra.mxu0 0
  %4163 = vmatprep.subr.bf16.mxu0 0
  %4164 = vmatpush1.bf16.msra.mxu0 0
  %4165 = vmatprep.subr.bf16.mxu0 0
  %4166 = vmatpush1.bf16.msra.mxu0 0
  %4167 = vmatprep.subr.bf16.mxu0 0
  %4168 = vmatpush1.bf16.msra.mxu0 0
  %4169 = vmatprep.subr.bf16.mxu0 0
  %4170 = vmatpush1.bf16.msra.mxu0 0
  %4171 = vmatprep.subr.bf16.mxu0 0
  %4172 = vmatpush1.bf16.msra.mxu0 0
  %4173 = vmatprep.subr.bf16.mxu0 0
  %4174 = vmatpush1.bf16.msra.mxu0 0
  %4175 = vmatprep.subr.bf16.mxu0 0
  %4176 = vmatpush1.bf16.msra.mxu0 0
  %4177 = vmatprep.subr.bf16.mxu0 0
  %4178 = vmatpush1.bf16.msra.mxu0 0
  %4179 = vmatprep.subr.bf16.mxu0 0
  %4180 = vmatpush1.bf16.msra.mxu0 0
  %4181 = vmatprep.mubr.bf16.mxu0 0
  %4182 = vmatmul.mubr.bf16.gmra.mrb[0].mxu0 %v4141
  %v4183 = vpop.f32.mrb[0].mxu0
  %v4184 = vadd.f32 0.0, %v4183
  %v4185 = vpop.f32.mrb[0].mxu0
  %v4186 = vadd.f32 0.0, %v4185
  %v4187 = vpop.f32.mrb[0].mxu0
  %v4188 = vadd.f32 0.0, %v4187
  %v4189 = vpop.f32.mrb[0].mxu0
  %v4190 = vadd.f32 0.0, %v4189
  %4191 = vmatprep.mubr.bf16.mxu0 0
  %4192 = vmatmul.mubr.bf16.gmra.mrb[0].mxu0 %v4144
  %v4193 = vpop.f32.mrb[0].mxu0
  %v4194 = vadd.f32 0.0, %v4193
  %v4195 = vpop.f32.mrb[0].mxu0
  %v4196 = vadd.f32 0.0, %v4195
  %v4197 = vpop.f32.mrb[0].mxu0
  %v4198 = vadd.f32 0.0, %v4197
  %v4199 = vpop.f32.mrb[0].mxu0
  %v4200 = vadd.f32 0.0, %v4199
  %4201 = vmatprep.mubr.bf16.mxu0 0
  %4202 = vmatmul.mubr.bf16.gmra.mrb[0].mxu0 %v4147
  %v4203 = vpop.f32.mrb[0].mxu0
  %v4204 = vadd.f32 0.0, %v4203
  %v4205 = vpop.f32.mrb[0].mxu0
  %v4206 = vadd.f32 0.0, %v4205
  %v4207 = vpop.f32.mrb[0].mxu0
  %v4208 = vadd.f32 0.0, %v4207
  %v4209 = vpop.f32.mrb[0].mxu0
  %v4210 = vadd.f32 0.0, %v4209
  %4211 = vdwg.mxu0
  %v4212 = vadd.f32 %v3981, %v4184
  %v4213 = vadd.f32 %v3982, %v4186
  %v4214 = vadd.f32 %v3983, %v4188
  %v4215 = vadd.f32 %v3984, %v4190
  %v4216 = vadd.f32 %v3985, %v4194
  %v4217 = vadd.f32 %v3986, %v4196
  %v4218 = vadd.f32 %v3987, %v4198
  %v4219 = vadd.f32 %v3988, %v4200
  %v4220 = vadd.f32 %v3989, %v4204
  %v4221 = vadd.f32 %v3990, %v4206
  %v4222 = vadd.f32 %v3991, %v4208
  %v4223 = vadd.f32 %v3992, %v4210
  %4224 = vmatprep.subr.bf16.mxu0 %v1948
  %4225 = vmatpush1.bf16.msra.mxu0 %v1947
  %4226 = vmatprep.subr.bf16.mxu0 %v1950
  %4227 = vmatpush1.bf16.msra.mxu0 %v1949
  %4228 = vmatprep.subr.bf16.mxu0 0
  %4229 = vmatpush1.bf16.msra.mxu0 0
  %4230 = vmatprep.subr.bf16.mxu0 0
  %4231 = vmatpush1.bf16.msra.mxu0 0
  %4232 = vmatprep.subr.bf16.mxu0 0
  %4233 = vmatpush1.bf16.msra.mxu0 0
  %4234 = vmatprep.subr.bf16.mxu0 0
  %4235 = vmatpush1.bf16.msra.mxu0 0
  %4236 = vmatprep.subr.bf16.mxu0 0
  %4237 = vmatpush1.bf16.msra.mxu0 0
  %4238 = vmatprep.subr.bf16.mxu0 0
  %4239 = vmatpush1.bf16.msra.mxu0 0
  %4240 = vmatprep.subr.bf16.mxu0 0
  %4241 = vmatpush1.bf16.msra.mxu0 0
  %4242 = vmatprep.subr.bf16.mxu0 0
  %4243 = vmatpush1.bf16.msra.mxu0 0
  %4244 = vmatprep.subr.bf16.mxu0 0
  %4245 = vmatpush1.bf16.msra.mxu0 0
  %4246 = vmatprep.subr.bf16.mxu0 0
  %4247 = vmatpush1.bf16.msra.mxu0 0
  %4248 = vmatprep.subr.bf16.mxu0 0
  %4249 = vmatpush1.bf16.msra.mxu0 0
  %4250 = vmatprep.subr.bf16.mxu0 0
  %4251 = vmatpush1.bf16.msra.mxu0 0
  %4252 = vmatprep.subr.bf16.mxu0 0
  %4253 = vmatpush1.bf16.msra.mxu0 0
  %4254 = vmatprep.subr.bf16.mxu0 0
  %4255 = vmatpush1.bf16.msra.mxu0 0
  %4256 = vmatprep.mubr.bf16.mxu0 0
  %4257 = vmatmul.mubr.bf16.gmra.mrb[0].mxu0 %v2937
  %v4258 = vpop.f32.mrb[0].mxu0
  %v4259 = vadd.f32 0.0, %v4258
  %v4260 = vpop.f32.mrb[0].mxu0
  %v4261 = vadd.f32 0.0, %v4260
  %v4262 = vpop.f32.mrb[0].mxu0
  %v4263 = vadd.f32 0.0, %v4262
  %v4264 = vpop.f32.mrb[0].mxu0
  %v4265 = vadd.f32 0.0, %v4264
  %4266 = vmatprep.mubr.bf16.mxu0 0
  %4267 = vmatmul.mubr.bf16.gmra.mrb[0].mxu0 %v2940
  %v4268 = vpop.f32.mrb[0].mxu0
  %v4269 = vadd.f32 0.0, %v4268
  %v4270 = vpop.f32.mrb[0].mxu0
  %v4271 = vadd.f32 0.0, %v4270
  %v4272 = vpop.f32.mrb[0].mxu0
  %v4273 = vadd.f32 0.0, %v4272
  %v4274 = vpop.f32.mrb[0].mxu0
  %v4275 = vadd.f32 0.0, %v4274
  %4276 = vmatprep.mubr.bf16.mxu0 0
  %4277 = vmatmul.mubr.bf16.gmra.mrb[0].mxu0 %v2943
  %v4278 = vpop.f32.mrb[0].mxu0
  %v4279 = vadd.f32 0.0, %v4278
  %v4280 = vpop.f32.mrb[0].mxu0
  %v4281 = vadd.f32 0.0, %v4280
  %v4282 = vpop.f32.mrb[0].mxu0
  %v4283 = vadd.f32 0.0, %v4282
  %v4284 = vpop.f32.mrb[0].mxu0
  %v4285 = vadd.f32 0.0, %v4284
  %4286 = vdwg.mxu0
  %4287 = vmatprep.subr.bf16.mxu0 %v2188
  %4288 = vmatpush1.bf16.msra.mxu0 %v2187
  %4289 = vmatprep.subr.bf16.mxu0 %v2190
  %4290 = vmatpush1.bf16.msra.mxu0 %v2189
  %4291 = vmatprep.subr.bf16.mxu0 0
  %4292 = vmatpush1.bf16.msra.mxu0 0
  %4293 = vmatprep.subr.bf16.mxu0 0
  %4294 = vmatpush1.bf16.msra.mxu0 0
  %4295 = vmatprep.subr.bf16.mxu0 0
  %4296 = vmatpush1.bf16.msra.mxu0 0
  %4297 = vmatprep.subr.bf16.mxu0 0
  %4298 = vmatpush1.bf16.msra.mxu0 0
  %4299 = vmatprep.subr.bf16.mxu0 0
  %4300 = vmatpush1.bf16.msra.mxu0 0
  %4301 = vmatprep.subr.bf16.mxu0 0
  %4302 = vmatpush1.bf16.msra.mxu0 0
  %4303 = vmatprep.subr.bf16.mxu0 0
  %4304 = vmatpush1.bf16.msra.mxu0 0
  %4305 = vmatprep.subr.bf16.mxu0 0
  %4306 = vmatpush1.bf16.msra.mxu0 0
  %4307 = vmatprep.subr.bf16.mxu0 0
  %4308 = vmatpush1.bf16.msra.mxu0 0
  %4309 = vmatprep.subr.bf16.mxu0 0
  %4310 = vmatpush1.bf16.msra.mxu0 0
  %4311 = vmatprep.subr.bf16.mxu0 0
  %4312 = vmatpush1.bf16.msra.mxu0 0
  %4313 = vmatprep.subr.bf16.mxu0 0
  %4314 = vmatpush1.bf16.msra.mxu0 0
  %4315 = vmatprep.subr.bf16.mxu0 0
  %4316 = vmatpush1.bf16.msra.mxu0 0
  %4317 = vmatprep.subr.bf16.mxu0 0
  %4318 = vmatpush1.bf16.msra.mxu0 0
  %4319 = vmatprep.mubr.bf16.mxu0 0
  %4320 = vmatmul.mubr.bf16.gmra.mrb[0].mxu0 %v2686
  %v4321 = vpop.f32.mrb[0].mxu0
  %v4322 = vadd.f32 %v4259, %v4321
  %v4323 = vpop.f32.mrb[0].mxu0
  %v4324 = vadd.f32 %v4261, %v4323
  %v4325 = vpop.f32.mrb[0].mxu0
  %v4326 = vadd.f32 %v4263, %v4325
  %v4327 = vpop.f32.mrb[0].mxu0
  %v4328 = vadd.f32 %v4265, %v4327
  %4329 = vmatprep.mubr.bf16.mxu0 0
  %4330 = vmatmul.mubr.bf16.gmra.mrb[0].mxu0 %v2689
  %v4331 = vpop.f32.mrb[0].mxu0
  %v4332 = vadd.f32 %v4269, %v4331
  %v4333 = vpop.f32.mrb[0].mxu0
  %v4334 = vadd.f32 %v4271, %v4333
  %v4335 = vpop.f32.mrb[0].mxu0
  %v4336 = vadd.f32 %v4273, %v4335
  %v4337 = vpop.f32.mrb[0].mxu0
  %v4338 = vadd.f32 %v4275, %v4337
  %4339 = vmatprep.mubr.bf16.mxu0 0
  %4340 = vmatmul.mubr.bf16.gmra.mrb[0].mxu0 %v2692
  %v4341 = vpop.f32.mrb[0].mxu0
  %v4342 = vadd.f32 %v4279, %v4341
  %v4343 = vpop.f32.mrb[0].mxu0
  %v4344 = vadd.f32 %v4281, %v4343
  %v4345 = vpop.f32.mrb[0].mxu0
  %v4346 = vadd.f32 %v4283, %v4345
  %v4347 = vpop.f32.mrb[0].mxu0
  %v4348 = vadd.f32 %v4285, %v4347
  %4349 = vdwg.mxu0
  %4350 = vmatprep.subr.bf16.mxu0 %v2427
  %4351 = vmatpush1.bf16.msra.mxu0 %v2426
  %4352 = vmatprep.subr.bf16.mxu0 %v2429
  %4353 = vmatpush1.bf16.msra.mxu0 %v2428
  %4354 = vmatprep.subr.bf16.mxu0 0
  %4355 = vmatpush1.bf16.msra.mxu0 0
  %4356 = vmatprep.subr.bf16.mxu0 0
  %4357 = vmatpush1.bf16.msra.mxu0 0
  %4358 = vmatprep.subr.bf16.mxu0 0
  %4359 = vmatpush1.bf16.msra.mxu0 0
  %4360 = vmatprep.subr.bf16.mxu0 0
  %4361 = vmatpush1.bf16.msra.mxu0 0
  %4362 = vmatprep.subr.bf16.mxu0 0
  %4363 = vmatpush1.bf16.msra.mxu0 0
  %4364 = vmatprep.subr.bf16.mxu0 0
  %4365 = vmatpush1.bf16.msra.mxu0 0
  %4366 = vmatprep.subr.bf16.mxu0 0
  %4367 = vmatpush1.bf16.msra.mxu0 0
  %4368 = vmatprep.subr.bf16.mxu0 0
  %4369 = vmatpush1.bf16.msra.mxu0 0
  %4370 = vmatprep.subr.bf16.mxu0 0
  %4371 = vmatpush1.bf16.msra.mxu0 0
  %4372 = vmatprep.subr.bf16.mxu0 0
  %4373 = vmatpush1.bf16.msra.mxu0 0
  %4374 = vmatprep.subr.bf16.mxu0 0
  %4375 = vmatpush1.bf16.msra.mxu0 0
  %4376 = vmatprep.subr.bf16.mxu0 0
  %4377 = vmatpush1.bf16.msra.mxu0 0
  %4378 = vmatprep.subr.bf16.mxu0 0
  %4379 = vmatpush1.bf16.msra.mxu0 0
  %4380 = vmatprep.subr.bf16.mxu0 0
  %4381 = vmatpush1.bf16.msra.mxu0 0
  %4382 = vmatprep.mubr.bf16.mxu0 0
  %4383 = vmatmul.mubr.bf16.gmra.mrb[0].mxu0 %v3444
  %v4384 = vpop.f32.mrb[0].mxu0
  %v4385 = vadd.f32 0.0, %v4384
  %v4386 = vpop.f32.mrb[0].mxu0
  %v4387 = vadd.f32 0.0, %v4386
  %v4388 = vpop.f32.mrb[0].mxu0
  %v4389 = vadd.f32 0.0, %v4388
  %v4390 = vpop.f32.mrb[0].mxu0
  %v4391 = vadd.f32 0.0, %v4390
  %4392 = vmatprep.mubr.bf16.mxu0 0
  %4393 = vmatmul.mubr.bf16.gmra.mrb[0].mxu0 %v3447
  %v4394 = vpop.f32.mrb[0].mxu0
  %v4395 = vadd.f32 0.0, %v4394
  %v4396 = vpop.f32.mrb[0].mxu0
  %v4397 = vadd.f32 0.0, %v4396
  %v4398 = vpop.f32.mrb[0].mxu0
  %v4399 = vadd.f32 0.0, %v4398
  %v4400 = vpop.f32.mrb[0].mxu0
  %v4401 = vadd.f32 0.0, %v4400
  %4402 = vmatprep.mubr.bf16.mxu0 0
  %4403 = vmatmul.mubr.bf16.gmra.mrb[0].mxu0 %v3450
  %v4404 = vpop.f32.mrb[0].mxu0
  %v4405 = vadd.f32 0.0, %v4404
  %v4406 = vpop.f32.mrb[0].mxu0
  %v4407 = vadd.f32 0.0, %v4406
  %v4408 = vpop.f32.mrb[0].mxu0
  %v4409 = vadd.f32 0.0, %v4408
  %v4410 = vpop.f32.mrb[0].mxu0
  %v4411 = vadd.f32 0.0, %v4410
  %4412 = vdwg.mxu0
  %v4413 = vadd.f32 %v4322, %v4385
  %v4414 = vadd.f32 %v4324, %v4387
  %v4415 = vadd.f32 %v4326, %v4389
  %v4416 = vadd.f32 %v4328, %v4391
  %v4417 = vadd.f32 %v4332, %v4395
  %v4418 = vadd.f32 %v4334, %v4397
  %v4419 = vadd.f32 %v4336, %v4399
  %v4420 = vadd.f32 %v4338, %v4401
  %v4421 = vadd.f32 %v4342, %v4405
  %v4422 = vadd.f32 %v4344, %v4407
  %v4423 = vadd.f32 %v4346, %v4409
  %v4424 = vadd.f32 %v4348, %v4411
  %4425 = vmatprep.subr.bf16.mxu0 %v2678
  %4426 = vmatpush1.bf16.msra.mxu0 %v2677
  %4427 = vmatprep.subr.bf16.mxu0 %v2680
  %4428 = vmatpush1.bf16.msra.mxu0 %v2679
  %4429 = vmatprep.subr.bf16.mxu0 0
  %4430 = vmatpush1.bf16.msra.mxu0 0
  %4431 = vmatprep.subr.bf16.mxu0 0
  %4432 = vmatpush1.bf16.msra.mxu0 0
  %4433 = vmatprep.subr.bf16.mxu0 0
  %4434 = vmatpush1.bf16.msra.mxu0 0
  %4435 = vmatprep.subr.bf16.mxu0 0
  %4436 = vmatpush1.bf16.msra.mxu0 0
  %4437 = vmatprep.subr.bf16.mxu0 0
  %4438 = vmatpush1.bf16.msra.mxu0 0
  %4439 = vmatprep.subr.bf16.mxu0 0
  %4440 = vmatpush1.bf16.msra.mxu0 0
  %4441 = vmatprep.subr.bf16.mxu0 0
  %4442 = vmatpush1.bf16.msra.mxu0 0
  %4443 = vmatprep.subr.bf16.mxu0 0
  %4444 = vmatpush1.bf16.msra.mxu0 0
  %4445 = vmatprep.subr.bf16.mxu0 0
  %4446 = vmatpush1.bf16.msra.mxu0 0
  %4447 = vmatprep.subr.bf16.mxu0 0
  %4448 = vmatpush1.bf16.msra.mxu0 0
  %4449 = vmatprep.subr.bf16.mxu0 0
  %4450 = vmatpush1.bf16.msra.mxu0 0
  %4451 = vmatprep.subr.bf16.mxu0 0
  %4452 = vmatpush1.bf16.msra.mxu0 0
  %4453 = vmatprep.subr.bf16.mxu0 0
  %4454 = vmatpush1.bf16.msra.mxu0 0
  %4455 = vmatprep.subr.bf16.mxu0 0
  %4456 = vmatpush1.bf16.msra.mxu0 0
  %4457 = vmatprep.mubr.bf16.mxu0 0
  %4458 = vmatmul.mubr.bf16.gmra.mrb[0].mxu0 %v4141
  %v4459 = vpop.f32.mrb[0].mxu0
  %v4460 = vadd.f32 0.0, %v4459
  %v4461 = vpop.f32.mrb[0].mxu0
  %v4462 = vadd.f32 0.0, %v4461
  %v4463 = vpop.f32.mrb[0].mxu0
  %v4464 = vadd.f32 0.0, %v4463
  %v4465 = vpop.f32.mrb[0].mxu0
  %v4466 = vadd.f32 0.0, %v4465
  %4467 = vmatprep.mubr.bf16.mxu0 0
  %4468 = vmatmul.mubr.bf16.gmra.mrb[0].mxu0 %v4144
  %v4469 = vpop.f32.mrb[0].mxu0
  %v4470 = vadd.f32 0.0, %v4469
  %v4471 = vpop.f32.mrb[0].mxu0
  %v4472 = vadd.f32 0.0, %v4471
  %v4473 = vpop.f32.mrb[0].mxu0
  %v4474 = vadd.f32 0.0, %v4473
  %v4475 = vpop.f32.mrb[0].mxu0
  %v4476 = vadd.f32 0.0, %v4475
  %4477 = vmatprep.mubr.bf16.mxu0 0
  %4478 = vmatmul.mubr.bf16.gmra.mrb[0].mxu0 %v4147
  %v4479 = vpop.f32.mrb[0].mxu0
  %v4480 = vadd.f32 0.0, %v4479
  %v4481 = vpop.f32.mrb[0].mxu0
  %v4482 = vadd.f32 0.0, %v4481
  %v4483 = vpop.f32.mrb[0].mxu0
  %v4484 = vadd.f32 0.0, %v4483
  %v4485 = vpop.f32.mrb[0].mxu0
  %v4486 = vadd.f32 0.0, %v4485
  %4487 = vdwg.mxu0
  %v4488 = vadd.f32 %v4413, %v4460
  %v4489 = vadd.f32 %v4414, %v4462
  %v4490 = vadd.f32 %v4415, %v4464
  %v4491 = vadd.f32 %v4416, %v4466
  %v4492 = vadd.f32 %v4417, %v4470
  %v4493 = vadd.f32 %v4418, %v4472
  %v4494 = vadd.f32 %v4419, %v4474
  %v4495 = vadd.f32 %v4420, %v4476
  %v4496 = vadd.f32 %v4421, %v4480
  %v4497 = vadd.f32 %v4422, %v4482
  %v4498 = vadd.f32 %v4423, %v4484
  %v4499 = vadd.f32 %v4424, %v4486
  %v4500 = vcombine.low %v1596, %v1604
  %v4501 = vcombine.low %v1612, %v1621
  %v4502 = vcombine.low %v1629, %v1637
  %v4503 = vcombine.low %v1646, %v1654
  %v4505 = vunpack.c.l.s4 1966171168
  %v4506 = vunpack.c.0.s8 %v4505
  %v4507 = vlaneseq
  %v4508 = vshrl.u32 %v4507, 7
  %v4509 = vsub.s32 %v4506, %v4508
  %v4510 = vrot.slane %v4500, %v4509
  %v4512 = vunpack.c.l.s4 1966171168
  %v4513 = vunpack.c.0.s8 %v4512
  %v4514 = vlaneseq
  %v4515 = vshrl.u32 %v4514, 7
  %v4516 = vsub.s32 %v4513, %v4515
  %v4517 = vrot.slane %v4501, %v4516
  %v4519 = vunpack.c.l.s4 1966171168
  %v4520 = vunpack.c.0.s8 %v4519
  %v4521 = vlaneseq
  %v4522 = vshrl.u32 %v4521, 7
  %v4523 = vsub.s32 %v4520, %v4522
  %v4524 = vrot.slane %v4502, %v4523
  %v4526 = vunpack.c.l.s4 1966171168
  %v4527 = vunpack.c.0.s8 %v4526
  %v4528 = vlaneseq
  %v4529 = vshrl.u32 %v4528, 7
  %v4530 = vsub.s32 %v4527, %v4529
  %v4531 = vrot.slane %v4503, %v4530
  %v4532 = vcombine.low %v4510, %v4517
  %v4533 = vcombine.low %v4524, %v4531
  %v4535 = vunpack.c.l.s4 1966171168
  %v4536 = vunpack.c.0.s8 %v4535
  %v4537 = vlaneseq
  %v4538 = vshrl.u32 %v4537, 7
  %v4539 = vsub.s32 %v4536, %v4538
  %v4540 = vrot.slane %v4532, %v4539
  %v4542 = vunpack.c.l.s4 1966171168
  %v4543 = vunpack.c.0.s8 %v4542
  %v4544 = vlaneseq
  %v4545 = vshrl.u32 %v4544, 7
  %v4546 = vsub.s32 %v4543, %v4545
  %v4547 = vrot.slane %v4533, %v4546
  %v4548 = vcombine.low %v4540, %v4547
  %v4549 = vcombine.low %v1662, %v1671
  %v4550 = vcombine.low %v1679, %v1687
  %v4551 = vcombine.low %v1696, %v1704
  %v4552 = vcombine.low %v1712, %v1721
  %v4554 = vunpack.c.l.s4 1966171168
  %v4555 = vunpack.c.0.s8 %v4554
  %v4556 = vlaneseq
  %v4557 = vshrl.u32 %v4556, 7
  %v4558 = vsub.s32 %v4555, %v4557
  %v4559 = vrot.slane %v4549, %v4558
  %v4561 = vunpack.c.l.s4 1966171168
  %v4562 = vunpack.c.0.s8 %v4561
  %v4563 = vlaneseq
  %v4564 = vshrl.u32 %v4563, 7
  %v4565 = vsub.s32 %v4562, %v4564
  %v4566 = vrot.slane %v4550, %v4565
  %v4568 = vunpack.c.l.s4 1966171168
  %v4569 = vunpack.c.0.s8 %v4568
  %v4570 = vlaneseq
  %v4571 = vshrl.u32 %v4570, 7
  %v4572 = vsub.s32 %v4569, %v4571
  %v4573 = vrot.slane %v4551, %v4572
  %v4575 = vunpack.c.l.s4 1966171168
  %v4576 = vunpack.c.0.s8 %v4575
  %v4577 = vlaneseq
  %v4578 = vshrl.u32 %v4577, 7
  %v4579 = vsub.s32 %v4576, %v4578
  %v4580 = vrot.slane %v4552, %v4579
  %v4581 = vcombine.low %v4559, %v4566
  %v4582 = vcombine.low %v4573, %v4580
  %v4584 = vunpack.c.l.s4 1966171168
  %v4585 = vunpack.c.0.s8 %v4584
  %v4586 = vlaneseq
  %v4587 = vshrl.u32 %v4586, 7
  %v4588 = vsub.s32 %v4585, %v4587
  %v4589 = vrot.slane %v4581, %v4588
  %v4591 = vunpack.c.l.s4 1966171168
  %v4592 = vunpack.c.0.s8 %v4591
  %v4593 = vlaneseq
  %v4594 = vshrl.u32 %v4593, 7
  %v4595 = vsub.s32 %v4592, %v4594
  %v4596 = vrot.slane %v4582, %v4595
  %v4597 = vcombine.low %v4589, %v4596
  %v4598 = vcombine.low %v1729, %v1737
  %v4599 = vcombine.low %v1746, %v1754
  %v4600 = vcombine.low %v1762, %v1771
  %v4601 = vcombine.low %v1779, %v1787
  %v4603 = vunpack.c.l.s4 1966171168
  %v4604 = vunpack.c.0.s8 %v4603
  %v4605 = vlaneseq
  %v4606 = vshrl.u32 %v4605, 7
  %v4607 = vsub.s32 %v4604, %v4606
  %v4608 = vrot.slane %v4598, %v4607
  %v4610 = vunpack.c.l.s4 1966171168
  %v4611 = vunpack.c.0.s8 %v4610
  %v4612 = vlaneseq
  %v4613 = vshrl.u32 %v4612, 7
  %v4614 = vsub.s32 %v4611, %v4613
  %v4615 = vrot.slane %v4599, %v4614
  %v4617 = vunpack.c.l.s4 1966171168
  %v4618 = vunpack.c.0.s8 %v4617
  %v4619 = vlaneseq
  %v4620 = vshrl.u32 %v4619, 7
  %v4621 = vsub.s32 %v4618, %v4620
  %v4622 = vrot.slane %v4600, %v4621
  %v4624 = vunpack.c.l.s4 1966171168
  %v4625 = vunpack.c.0.s8 %v4624
  %v4626 = vlaneseq
  %v4627 = vshrl.u32 %v4626, 7
  %v4628 = vsub.s32 %v4625, %v4627
  %v4629 = vrot.slane %v4601, %v4628
  %v4630 = vcombine.low %v4608, %v4615
  %v4631 = vcombine.low %v4622, %v4629
  %v4633 = vunpack.c.l.s4 1966171168
  %v4634 = vunpack.c.0.s8 %v4633
  %v4635 = vlaneseq
  %v4636 = vshrl.u32 %v4635, 7
  %v4637 = vsub.s32 %v4634, %v4636
  %v4638 = vrot.slane %v4630, %v4637
  %v4640 = vunpack.c.l.s4 1966171168
  %v4641 = vunpack.c.0.s8 %v4640
  %v4642 = vlaneseq
  %v4643 = vshrl.u32 %v4642, 7
  %v4644 = vsub.s32 %v4641, %v4643
  %v4645 = vrot.slane %v4631, %v4644
  %v4646 = vcombine.low %v4638, %v4645
  %v4648 = vsel %vm1955, %v4548, 0
  %v4651 = vsel %vm1955, %v4597, 0
  %v4654 = vsel %vm1955, %v4646, 0
  %4656 = vmatprep.subr.bf16.mxu0 %v2929
  %4657 = vmatpush1.bf16.msra.mxu0 %v2928
  %4658 = vmatprep.subr.bf16.mxu0 %v2931
  %4659 = vmatpush1.bf16.msra.mxu0 %v2930
  %4660 = vmatprep.subr.bf16.mxu0 0
  %4661 = vmatpush1.bf16.msra.mxu0 0
  %4662 = vmatprep.subr.bf16.mxu0 0
  %4663 = vmatpush1.bf16.msra.mxu0 0
  %4664 = vmatprep.subr.bf16.mxu0 0
  %4665 = vmatpush1.bf16.msra.mxu0 0
  %4666 = vmatprep.subr.bf16.mxu0 0
  %4667 = vmatpush1.bf16.msra.mxu0 0
  %4668 = vmatprep.subr.bf16.mxu0 0
  %4669 = vmatpush1.bf16.msra.mxu0 0
  %4670 = vmatprep.subr.bf16.mxu0 0
  %4671 = vmatpush1.bf16.msra.mxu0 0
  %4672 = vmatprep.subr.bf16.mxu0 0
  %4673 = vmatpush1.bf16.msra.mxu0 0
  %4674 = vmatprep.subr.bf16.mxu0 0
  %4675 = vmatpush1.bf16.msra.mxu0 0
  %4676 = vmatprep.subr.bf16.mxu0 0
  %4677 = vmatpush1.bf16.msra.mxu0 0
  %4678 = vmatprep.subr.bf16.mxu0 0
  %4679 = vmatpush1.bf16.msra.mxu0 0
  %4680 = vmatprep.subr.bf16.mxu0 0
  %4681 = vmatpush1.bf16.msra.mxu0 0
  %4682 = vmatprep.subr.bf16.mxu0 0
  %4683 = vmatpush1.bf16.msra.mxu0 0
  %4684 = vmatprep.subr.bf16.mxu0 0
  %4685 = vmatpush1.bf16.msra.mxu0 0
  %4686 = vmatprep.subr.bf16.mxu0 0
  %4687 = vmatpush1.bf16.msra.mxu0 0
  %4688 = vmatprep.mubr.bf16.mxu0 0
  %4689 = vmatmul.mubr.bf16.gmra.mrb[0].mxu0 %v4648
  %v4690 = vpop.f32.mrb[0].mxu0
  %v4691 = vadd.f32 0.0, %v4690
  %v4692 = vpop.f32.mrb[0].mxu0
  %v4693 = vadd.f32 0.0, %v4692
  %v4694 = vpop.f32.mrb[0].mxu0
  %v4695 = vadd.f32 0.0, %v4694
  %v4696 = vpop.f32.mrb[0].mxu0
  %v4697 = vadd.f32 0.0, %v4696
  %4698 = vmatprep.mubr.bf16.mxu0 0
  %4699 = vmatmul.mubr.bf16.gmra.mrb[0].mxu0 %v4651
  %v4700 = vpop.f32.mrb[0].mxu0
  %v4701 = vadd.f32 0.0, %v4700
  %v4702 = vpop.f32.mrb[0].mxu0
  %v4703 = vadd.f32 0.0, %v4702
  %v4704 = vpop.f32.mrb[0].mxu0
  %v4705 = vadd.f32 0.0, %v4704
  %v4706 = vpop.f32.mrb[0].mxu0
  %v4707 = vadd.f32 0.0, %v4706
  %4708 = vmatprep.mubr.bf16.mxu0 0
  %4709 = vmatmul.mubr.bf16.gmra.mrb[0].mxu0 %v4654
  %v4710 = vpop.f32.mrb[0].mxu0
  %v4711 = vadd.f32 0.0, %v4710
  %v4712 = vpop.f32.mrb[0].mxu0
  %v4713 = vadd.f32 0.0, %v4712
  %v4714 = vpop.f32.mrb[0].mxu0
  %v4715 = vadd.f32 0.0, %v4714
  %v4716 = vpop.f32.mrb[0].mxu0
  %v4717 = vadd.f32 0.0, %v4716
  %4718 = vdwg.mxu0
  %v4719 = vadd.f32 %v4488, %v4691
  %v4720 = vadd.f32 %v4489, %v4693
  %v4721 = vadd.f32 %v4490, %v4695
  %v4722 = vadd.f32 %v4491, %v4697
  %v4723 = vadd.f32 %v4492, %v4701
  %v4724 = vadd.f32 %v4493, %v4703
  %v4725 = vadd.f32 %v4494, %v4705
  %v4726 = vadd.f32 %v4495, %v4707
  %v4727 = vadd.f32 %v4496, %v4711
  %v4728 = vadd.f32 %v4497, %v4713
  %v4729 = vadd.f32 %v4498, %v4715
  %v4730 = vadd.f32 %v4499, %v4717
  %v4731 = vmax.f32 %v4212, %v4719
  %v4732 = vmax.f32 %v4213, %v4720
  %v4733 = vmax.f32 %v4214, %v4721
  %v4734 = vmax.f32 %v4215, %v4722
  %v4735 = vmax.f32 %v4216, %v4723
  %v4736 = vmax.f32 %v4217, %v4724
  %v4737 = vmax.f32 %v4218, %v4725
  %v4738 = vmax.f32 %v4219, %v4726
  %v4739 = vmax.f32 %v4220, %v4727
  %v4740 = vmax.f32 %v4221, %v4728
  %v4741 = vmax.f32 %v4222, %v4729
  %v4742 = vmax.f32 %v4223, %v4730
  %v4743 = vmax.f32 %v4731, %v4732
  %v4744 = vmax.f32 %v4733, %v4734
  %v4745 = vmax.f32 %v4735, %v4736
  %v4746 = vmax.f32 %v4737, %v4738
  %v4747 = vmax.f32 %v4739, %v4740
  %v4748 = vmax.f32 %v4741, %v4742
  %v4749 = vadd.f32 %v4743, %v3550
  %v4750 = vadd.f32 %v4744, %v3550
  %v4751 = vadd.f32 %v4745, %v3550
  %v4752 = vadd.f32 %v4746, %v3550
  %v4753 = vadd.f32 %v4747, %v3550
  %v4754 = vadd.f32 %v4748, %v3550
  %v4755 = vmax.f32 %v4749, 0.0
  %v4756 = vmax.f32 %v4750, 0.0
  %v4757 = vmax.f32 %v4751, 0.0
  %v4758 = vmax.f32 %v4752, 0.0
  %v4759 = vmax.f32 %v4753, 0.0
  %v4760 = vmax.f32 %v4754, 0.0
  %v4761 = vpack.c.bf16 %v4756, %v4755
  %v4762 = vpack.c.bf16 %v4758, %v4757
  %v4763 = vpack.c.bf16 %v4760, %v4759
  %v4767 = vcombine.high %v4761, %v4761
  %v4769 = vunpack.c.l.s4 1966171168
  %v4770 = vunpack.c.0.s8 %v4769
  %v4771 = vlaneseq
  %v4772 = vshrl.u32 %v4771, 7
  %v4773 = vsub.s32 %v4770, %v4772
  %v4774 = vrot.slane %v4761, %v4773
  %v4776 = vunpack.c.l.s4 1966171168
  %v4777 = vunpack.c.0.s8 %v4776
  %v4778 = vlaneseq
  %v4779 = vshrl.u32 %v4778, 7
  %v4780 = vsub.s32 %v4777, %v4779
  %v4781 = vrot.slane %v4767, %v4780
  %v4782 = vcombine.high %v4774, %v4774
  %v4783 = vcombine.high %v4781, %v4781
  %v4785 = vunpack.c.l.s4 1966171168
  %v4786 = vunpack.c.0.s8 %v4785
  %v4787 = vlaneseq
  %v4788 = vshrl.u32 %v4787, 7
  %v4789 = vsub.s32 %v4786, %v4788
  %v4790 = vrot.slane %v4774, %v4789
  %v4792 = vunpack.c.l.s4 1966171168
  %v4793 = vunpack.c.0.s8 %v4792
  %v4794 = vlaneseq
  %v4795 = vshrl.u32 %v4794, 7
  %v4796 = vsub.s32 %v4793, %v4795
  %v4797 = vrot.slane %v4781, %v4796
  %v4799 = vunpack.c.l.s4 1966171168
  %v4800 = vunpack.c.0.s8 %v4799
  %v4801 = vlaneseq
  %v4802 = vshrl.u32 %v4801, 7
  %v4803 = vsub.s32 %v4800, %v4802
  %v4804 = vrot.slane %v4782, %v4803
  %v4806 = vunpack.c.l.s4 1966171168
  %v4807 = vunpack.c.0.s8 %v4806
  %v4808 = vlaneseq
  %v4809 = vshrl.u32 %v4808, 7
  %v4810 = vsub.s32 %v4807, %v4809
  %v4811 = vrot.slane %v4783, %v4810
  %v4812 = vcombine.high %v4790, %v4790
  %v4813 = vcombine.high %v4797, %v4797
  %v4814 = vcombine.high %v4804, %v4804
  %v4815 = vcombine.high %v4811, %v4811
  %v4816 = vcombine.high %v4762, %v4762
  %v4818 = vunpack.c.l.s4 1966171168
  %v4819 = vunpack.c.0.s8 %v4818
  %v4820 = vlaneseq
  %v4821 = vshrl.u32 %v4820, 7
  %v4822 = vsub.s32 %v4819, %v4821
  %v4823 = vrot.slane %v4762, %v4822
  %v4825 = vunpack.c.l.s4 1966171168
  %v4826 = vunpack.c.0.s8 %v4825
  %v4827 = vlaneseq
  %v4828 = vshrl.u32 %v4827, 7
  %v4829 = vsub.s32 %v4826, %v4828
  %v4830 = vrot.slane %v4816, %v4829
  %v4831 = vcombine.high %v4823, %v4823
  %v4832 = vcombine.high %v4830, %v4830
  %v4834 = vunpack.c.l.s4 1966171168
  %v4835 = vunpack.c.0.s8 %v4834
  %v4836 = vlaneseq
  %v4837 = vshrl.u32 %v4836, 7
  %v4838 = vsub.s32 %v4835, %v4837
  %v4839 = vrot.slane %v4823, %v4838
  %v4841 = vunpack.c.l.s4 1966171168
  %v4842 = vunpack.c.0.s8 %v4841
  %v4843 = vlaneseq
  %v4844 = vshrl.u32 %v4843, 7
  %v4845 = vsub.s32 %v4842, %v4844
  %v4846 = vrot.slane %v4830, %v4845
  %v4848 = vunpack.c.l.s4 1966171168
  %v4849 = vunpack.c.0.s8 %v4848
  %v4850 = vlaneseq
  %v4851 = vshrl.u32 %v4850, 7
  %v4852 = vsub.s32 %v4849, %v4851
  %v4853 = vrot.slane %v4831, %v4852
  %v4855 = vunpack.c.l.s4 1966171168
  %v4856 = vunpack.c.0.s8 %v4855
  %v4857 = vlaneseq
  %v4858 = vshrl.u32 %v4857, 7
  %v4859 = vsub.s32 %v4856, %v4858
  %v4860 = vrot.slane %v4832, %v4859
  %v4861 = vcombine.high %v4839, %v4839
  %v4862 = vcombine.high %v4846, %v4846
  %v4863 = vcombine.high %v4853, %v4853
  %v4864 = vcombine.high %v4860, %v4860
  %v4865 = vcombine.high %v4763, %v4763
  %v4867 = vunpack.c.l.s4 1966171168
  %v4868 = vunpack.c.0.s8 %v4867
  %v4869 = vlaneseq
  %v4870 = vshrl.u32 %v4869, 7
  %v4871 = vsub.s32 %v4868, %v4870
  %v4872 = vrot.slane %v4763, %v4871
  %v4874 = vunpack.c.l.s4 1966171168
  %v4875 = vunpack.c.0.s8 %v4874
  %v4876 = vlaneseq
  %v4877 = vshrl.u32 %v4876, 7
  %v4878 = vsub.s32 %v4875, %v4877
  %v4879 = vrot.slane %v4865, %v4878
  %v4880 = vcombine.high %v4872, %v4872
  %v4881 = vcombine.high %v4879, %v4879
  %v4883 = vunpack.c.l.s4 1966171168
  %v4884 = vunpack.c.0.s8 %v4883
  %v4885 = vlaneseq
  %v4886 = vshrl.u32 %v4885, 7
  %v4887 = vsub.s32 %v4884, %v4886
  %v4888 = vrot.slane %v4872, %v4887
  %v4890 = vunpack.c.l.s4 1966171168
  %v4891 = vunpack.c.0.s8 %v4890
  %v4892 = vlaneseq
  %v4893 = vshrl.u32 %v4892, 7
  %v4894 = vsub.s32 %v4891, %v4893
  %v4895 = vrot.slane %v4879, %v4894
  %v4897 = vunpack.c.l.s4 1966171168
  %v4898 = vunpack.c.0.s8 %v4897
  %v4899 = vlaneseq
  %v4900 = vshrl.u32 %v4899, 7
  %v4901 = vsub.s32 %v4898, %v4900
  %v4902 = vrot.slane %v4880, %v4901
  %v4904 = vunpack.c.l.s4 1966171168
  %v4905 = vunpack.c.0.s8 %v4904
  %v4906 = vlaneseq
  %v4907 = vshrl.u32 %v4906, 7
  %v4908 = vsub.s32 %v4905, %v4907
  %v4909 = vrot.slane %v4881, %v4908
  %v4910 = vcombine.high %v4888, %v4888
  %v4911 = vcombine.high %v4895, %v4895
  %v4912 = vcombine.high %v4902, %v4902
  %v4913 = vcombine.high %v4909, %v4909
  %v4915 = vshrl.u32 %v3593, 16
  %v4917 = vrot.slane %v4915, 7
  %v4918 = vrot.slane %v4917, 1
  %v4920 = vshll.u32 %v3607, 16
  %v4922 = vsel %vm963, %v4918, %v4920
  %v4923 = vshrl.u32 %v3607, 16
  %v4925 = vrot.slane %v4923, 7
  %v4926 = vrot.slane %v4925, 1
  %v4928 = vshll.u32 %v3615, 16
  %v4930 = vsel %vm963, %v4926, %v4928
  %v4932 = vshrl.u32 %v3617, 16
  %v4934 = vrot.slane %v4932, 7
  %v4935 = vrot.slane %v4934, 1
  %v4937 = vshll.u32 %v3600, 16
  %v4939 = vsel %vm963, %v4935, %v4937
  %v4940 = vshrl.u32 %v3600, 16
  %v4942 = vrot.slane %v4940, 7
  %v4943 = vrot.slane %v4942, 1
  %v4945 = vshll.u32 %v3614, 16
  %v4947 = vsel %vm963, %v4943, %v4945
  %v4949 = vshrl.u32 %v3616, 16
  %v4951 = vrot.slane %v4949, 7
  %v4952 = vrot.slane %v4951, 1
  %v4954 = vshll.u32 %v3618, 16
  %v4956 = vsel %vm963, %v4952, %v4954
  %v4957 = vshrl.u32 %v3618, 16
  %v4959 = vrot.slane %v4957, 7
  %v4960 = vrot.slane %v4959, 1
  %v4962 = vshll.u32 %v3642, 16
  %v4964 = vsel %vm963, %v4960, %v4962
  %v4966 = vshrl.u32 %v3656, 16
  %v4968 = vrot.slane %v4966, 7
  %v4969 = vrot.slane %v4968, 1
  %v4971 = vshll.u32 %v3664, 16
  %v4973 = vsel %vm963, %v4969, %v4971
  %v4974 = vshrl.u32 %v3664, 16
  %v4976 = vrot.slane %v4974, 7
  %v4977 = vrot.slane %v4976, 1
  %v4979 = vshll.u32 %v3666, 16
  %v4981 = vsel %vm963, %v4977, %v4979
  %v4983 = vshrl.u32 %v3649, 16
  %v4985 = vrot.slane %v4983, 7
  %v4986 = vrot.slane %v4985, 1
  %v4988 = vshll.u32 %v3663, 16
  %v4990 = vsel %vm963, %v4986, %v4988
  %v4991 = vshrl.u32 %v3663, 16
  %v4993 = vrot.slane %v4991, 7
  %v4994 = vrot.slane %v4993, 1
  %v4996 = vshll.u32 %v3665, 16
  %v4998 = vsel %vm963, %v4994, %v4996
  %v5000 = vshrl.u32 %v3667, 16
  %v5002 = vrot.slane %v5000, 7
  %v5003 = vrot.slane %v5002, 1
  %v5005 = vshll.u32 %v3691, 16
  %v5007 = vsel %vm963, %v5003, %v5005
  %v5008 = vshrl.u32 %v3691, 16
  %v5010 = vrot.slane %v5008, 7
  %v5011 = vrot.slane %v5010, 1
  %v5013 = vshll.u32 %v3705, 16
  %v5015 = vsel %vm963, %v5011, %v5013
  %v5017 = vshrl.u32 %v3713, 16
  %v5019 = vrot.slane %v5017, 7
  %v5020 = vrot.slane %v5019, 1
  %v5022 = vshll.u32 %v3715, 16
  %v5024 = vsel %vm963, %v5020, %v5022
  %v5025 = vshrl.u32 %v3715, 16
  %v5027 = vrot.slane %v5025, 7
  %v5028 = vrot.slane %v5027, 1
  %v5030 = vshll.u32 %v3698, 16
  %v5032 = vsel %vm963, %v5028, %v5030
  %v5034 = vshrl.u32 %v3712, 16
  %v5036 = vrot.slane %v5034, 7
  %v5037 = vrot.slane %v5036, 1
  %v5039 = vshll.u32 %v3714, 16
  %v5041 = vsel %vm963, %v5037, %v5039
  %v5042 = vshrl.u32 %v3714, 16
  %v5044 = vrot.slane %v5042, 7
  %v5045 = vrot.slane %v5044, 1
  %v5047 = vshll.u32 %v3716, 16
  %v5049 = vsel %vm963, %v5045, %v5047
  %v5051 = vshrl.u32 %v4790, 16
  %v5053 = vrot.slane %v5051, 7
  %v5054 = vrot.slane %v5053, 1
  %v5056 = vshll.u32 %v4804, 16
  %v5058 = vsel %vm963, %v5054, %v5056
  %v5059 = vshrl.u32 %v4804, 16
  %v5061 = vrot.slane %v5059, 7
  %v5062 = vrot.slane %v5061, 1
  %v5064 = vshll.u32 %v4812, 16
  %v5066 = vsel %vm963, %v5062, %v5064
  %v5068 = vshrl.u32 %v4814, 16
  %v5070 = vrot.slane %v5068, 7
  %v5071 = vrot.slane %v5070, 1
  %v5073 = vshll.u32 %v4797, 16
  %v5075 = vsel %vm963, %v5071, %v5073
  %v5076 = vshrl.u32 %v4797, 16
  %v5078 = vrot.slane %v5076, 7
  %v5079 = vrot.slane %v5078, 1
  %v5081 = vshll.u32 %v4811, 16
  %v5083 = vsel %vm963, %v5079, %v5081
  %v5085 = vshrl.u32 %v4813, 16
  %v5087 = vrot.slane %v5085, 7
  %v5088 = vrot.slane %v5087, 1
  %v5090 = vshll.u32 %v4815, 16
  %v5092 = vsel %vm963, %v5088, %v5090
  %v5093 = vshrl.u32 %v4815, 16
  %v5095 = vrot.slane %v5093, 7
  %v5096 = vrot.slane %v5095, 1
  %v5098 = vshll.u32 %v4839, 16
  %v5100 = vsel %vm963, %v5096, %v5098
  %v5102 = vshrl.u32 %v4853, 16
  %v5104 = vrot.slane %v5102, 7
  %v5105 = vrot.slane %v5104, 1
  %v5107 = vshll.u32 %v4861, 16
  %v5109 = vsel %vm963, %v5105, %v5107
  %v5110 = vshrl.u32 %v4861, 16
  %v5112 = vrot.slane %v5110, 7
  %v5113 = vrot.slane %v5112, 1
  %v5115 = vshll.u32 %v4863, 16
  %v5117 = vsel %vm963, %v5113, %v5115
  %v5119 = vshrl.u32 %v4846, 16
  %v5121 = vrot.slane %v5119, 7
  %v5122 = vrot.slane %v5121, 1
  %v5124 = vshll.u32 %v4860, 16
  %v5126 = vsel %vm963, %v5122, %v5124
  %v5127 = vshrl.u32 %v4860, 16
  %v5129 = vrot.slane %v5127, 7
  %v5130 = vrot.slane %v5129, 1
  %v5132 = vshll.u32 %v4862, 16
  %v5134 = vsel %vm963, %v5130, %v5132
  %v5136 = vshrl.u32 %v4864, 16
  %v5138 = vrot.slane %v5136, 7
  %v5139 = vrot.slane %v5138, 1
  %v5141 = vshll.u32 %v4888, 16
  %v5143 = vsel %vm963, %v5139, %v5141
  %v5144 = vshrl.u32 %v4888, 16
  %v5146 = vrot.slane %v5144, 7
  %v5147 = vrot.slane %v5146, 1
  %v5149 = vshll.u32 %v4902, 16
  %v5151 = vsel %vm963, %v5147, %v5149
  %v5153 = vshrl.u32 %v4910, 16
  %v5155 = vrot.slane %v5153, 7
  %v5156 = vrot.slane %v5155, 1
  %v5158 = vshll.u32 %v4912, 16
  %v5160 = vsel %vm963, %v5156, %v5158
  %v5161 = vshrl.u32 %v4912, 16
  %v5163 = vrot.slane %v5161, 7
  %v5164 = vrot.slane %v5163, 1
  %v5166 = vshll.u32 %v4895, 16
  %v5168 = vsel %vm963, %v5164, %v5166
  %v5170 = vshrl.u32 %v4909, 16
  %v5172 = vrot.slane %v5170, 7
  %v5173 = vrot.slane %v5172, 1
  %v5175 = vshll.u32 %v4911, 16
  %v5177 = vsel %vm963, %v5173, %v5175
  %v5178 = vshrl.u32 %v4911, 16
  %v5180 = vrot.slane %v5178, 7
  %v5181 = vrot.slane %v5180, 1
  %v5183 = vshll.u32 %v4913, 16
  %v5185 = vsel %vm963, %v5181, %v5183
  %v5186 = vcombine.low %v4790, %v4804
  %v5187 = vcombine.low %v4814, %v4797
  %v5188 = vcombine.low %v4813, %v4815
  %v5189 = vcombine.low %v4853, %v4861
  %v5191 = vunpack.c.l.s4 1966171168
  %v5192 = vunpack.c.0.s8 %v5191
  %v5193 = vlaneseq
  %v5194 = vshrl.u32 %v5193, 7
  %v5195 = vsub.s32 %v5192, %v5194
  %v5196 = vrot.slane %v5186, %v5195
  %v5198 = vunpack.c.l.s4 1966171168
  %v5199 = vunpack.c.0.s8 %v5198
  %v5200 = vlaneseq
  %v5201 = vshrl.u32 %v5200, 7
  %v5202 = vsub.s32 %v5199, %v5201
  %v5203 = vrot.slane %v5187, %v5202
  %v5205 = vunpack.c.l.s4 1966171168
  %v5206 = vunpack.c.0.s8 %v5205
  %v5207 = vlaneseq
  %v5208 = vshrl.u32 %v5207, 7
  %v5209 = vsub.s32 %v5206, %v5208
  %v5210 = vrot.slane %v5188, %v5209
  %v5212 = vunpack.c.l.s4 1966171168
  %v5213 = vunpack.c.0.s8 %v5212
  %v5214 = vlaneseq
  %v5215 = vshrl.u32 %v5214, 7
  %v5216 = vsub.s32 %v5213, %v5215
  %v5217 = vrot.slane %v5189, %v5216
  %v5218 = vcombine.low %v5196, %v5203
  %v5219 = vcombine.low %v5210, %v5217
  %v5221 = vunpack.c.l.s4 1966171168
  %v5222 = vunpack.c.0.s8 %v5221
  %v5223 = vlaneseq
  %v5224 = vshrl.u32 %v5223, 7
  %v5225 = vsub.s32 %v5222, %v5224
  %v5226 = vrot.slane %v5218, %v5225
  %v5228 = vunpack.c.l.s4 1966171168
  %v5229 = vunpack.c.0.s8 %v5228
  %v5230 = vlaneseq
  %v5231 = vshrl.u32 %v5230, 7
  %v5232 = vsub.s32 %v5229, %v5231
  %v5233 = vrot.slane %v5219, %v5232
  %v5234 = vcombine.low %v5226, %v5233
  %v5235 = vcombine.low %v4846, %v4860
  %v5236 = vcombine.low %v4864, %v4888
  %v5237 = vcombine.low %v4910, %v4912
  %v5238 = vcombine.low %v4909, %v4911
  %v5240 = vunpack.c.l.s4 1966171168
  %v5241 = vunpack.c.0.s8 %v5240
  %v5242 = vlaneseq
  %v5243 = vshrl.u32 %v5242, 7
  %v5244 = vsub.s32 %v5241, %v5243
  %v5245 = vrot.slane %v5235, %v5244
  %v5247 = vunpack.c.l.s4 1966171168
  %v5248 = vunpack.c.0.s8 %v5247
  %v5249 = vlaneseq
  %v5250 = vshrl.u32 %v5249, 7
  %v5251 = vsub.s32 %v5248, %v5250
  %v5252 = vrot.slane %v5236, %v5251
  %v5254 = vunpack.c.l.s4 1966171168
  %v5255 = vunpack.c.0.s8 %v5254
  %v5256 = vlaneseq
  %v5257 = vshrl.u32 %v5256, 7
  %v5258 = vsub.s32 %v5255, %v5257
  %v5259 = vrot.slane %v5237, %v5258
  %v5261 = vunpack.c.l.s4 1966171168
  %v5262 = vunpack.c.0.s8 %v5261
  %v5263 = vlaneseq
  %v5264 = vshrl.u32 %v5263, 7
  %v5265 = vsub.s32 %v5262, %v5264
  %v5266 = vrot.slane %v5238, %v5265
  %v5267 = vcombine.low %v5245, %v5252
  %v5268 = vcombine.low %v5259, %v5266
  %v5270 = vunpack.c.l.s4 1966171168
  %v5271 = vunpack.c.0.s8 %v5270
  %v5272 = vlaneseq
  %v5273 = vshrl.u32 %v5272, 7
  %v5274 = vsub.s32 %v5271, %v5273
  %v5275 = vrot.slane %v5267, %v5274
  %v5277 = vunpack.c.l.s4 1966171168
  %v5278 = vunpack.c.0.s8 %v5277
  %v5279 = vlaneseq
  %v5280 = vshrl.u32 %v5279, 7
  %v5281 = vsub.s32 %v5278, %v5280
  %v5282 = vrot.slane %v5268, %v5281
  %v5283 = vcombine.low %v5275, %v5282
  %v5302 = vunpack.c.l.b16 %v106
  %v5303 = vunpack.c.h.b16 %v106
  %v5304 = vunpack.c.l.b16 %v107
  %v5305 = vunpack.c.h.b16 %v107
  %v5306 = vunpack.c.l.b16 %v108
  %v5307 = vunpack.c.h.b16 %v108
  %v5308 = vunpack.c.l.b16 %v109
  %v5309 = vunpack.c.h.b16 %v109
  %v5310 = vunpack.c.l.b16 %v110
  %v5311 = vunpack.c.h.b16 %v110
  %v5312 = vunpack.c.l.b16 %v111
  %v5313 = vunpack.c.h.b16 %v111
  %v5314 = vunpack.c.l.b16 %v112
  %v5315 = vunpack.c.h.b16 %v112
  %v5316 = vunpack.c.l.b16 %v113
  %v5317 = vunpack.c.h.b16 %v113
  %v5318 = vunpack.c.l.b16 %v114
  %v5319 = vunpack.c.h.b16 %v114
  %v5320 = vunpack.c.l.b16 %v115
  %v5321 = vunpack.c.h.b16 %v115
  %v5322 = vunpack.c.l.b16 %v116
  %v5323 = vunpack.c.h.b16 %v116
  %v5324 = vunpack.c.l.b16 %v117
  %v5325 = vunpack.c.h.b16 %v117
  %v5326 = vunpack.c.l.b16 %v118
  %v5327 = vunpack.c.h.b16 %v118
  %v5328 = vunpack.c.l.b16 %v119
  %v5329 = vunpack.c.h.b16 %v119
  %v5330 = vunpack.c.l.b16 %v120
  %v5331 = vunpack.c.h.b16 %v120
  %v5332 = vunpack.c.l.b16 %v121
  %v5333 = vunpack.c.h.b16 %v121
  %v5334 = vpack.c.b16 %v5304, %v5302
  %v5335 = vpack.c.b16 %v5305, %v5303
  %v5336 = vpack.c.b16 %v5308, %v5306
  %v5337 = vpack.c.b16 %v5309, %v5307
  %v5338 = vpack.c.b16 %v5312, %v5310
  %v5339 = vpack.c.b16 %v5313, %v5311
  %v5340 = vpack.c.b16 %v5316, %v5314
  %v5341 = vpack.c.b16 %v5317, %v5315
  %v5342 = vpack.c.b16 %v5320, %v5318
  %v5343 = vpack.c.b16 %v5321, %v5319
  %v5344 = vpack.c.b16 %v5324, %v5322
  %v5345 = vpack.c.b16 %v5325, %v5323
  %v5346 = vpack.c.b16 %v5328, %v5326
  %v5347 = vpack.c.b16 %v5329, %v5327
  %v5348 = vpack.c.b16 %v5332, %v5330
  %v5349 = vpack.c.b16 %v5333, %v5331
  %5366 = vmatprep.subr.bf16.mxu0 %v5335
  %5367 = vmatpush1.bf16.msra.mxu0 %v5334
  %5368 = vmatprep.subr.bf16.mxu0 %v5337
  %5369 = vmatpush1.bf16.msra.mxu0 %v5336
  %5370 = vmatprep.subr.bf16.mxu0 %v5339
  %5371 = vmatpush1.bf16.msra.mxu0 %v5338
  %5372 = vmatprep.subr.bf16.mxu0 %v5341
  %5373 = vmatpush1.bf16.msra.mxu0 %v5340
  %5374 = vmatprep.subr.bf16.mxu0 %v5343
  %5375 = vmatpush1.bf16.msra.mxu0 %v5342
  %5376 = vmatprep.subr.bf16.mxu0 %v5345
  %5377 = vmatpush1.bf16.msra.mxu0 %v5344
  %5378 = vmatprep.subr.bf16.mxu0 %v5347
  %5379 = vmatpush1.bf16.msra.mxu0 %v5346
  %5380 = vmatprep.subr.bf16.mxu0 %v5349
  %5381 = vmatpush1.bf16.msra.mxu0 %v5348
  %5382 = vmatprep.subr.bf16.mxu0 0
  %5383 = vmatpush1.bf16.msra.mxu0 0
  %5384 = vmatprep.subr.bf16.mxu0 0
  %5385 = vmatpush1.bf16.msra.mxu0 0
  %5386 = vmatprep.subr.bf16.mxu0 0
  %5387 = vmatpush1.bf16.msra.mxu0 0
  %5388 = vmatprep.subr.bf16.mxu0 0
  %5389 = vmatpush1.bf16.msra.mxu0 0
  %5390 = vmatprep.subr.bf16.mxu0 0
  %5391 = vmatpush1.bf16.msra.mxu0 0
  %5392 = vmatprep.subr.bf16.mxu0 0
  %5393 = vmatpush1.bf16.msra.mxu0 0
  %5394 = vmatprep.subr.bf16.mxu0 0
  %5395 = vmatpush1.bf16.msra.mxu0 0
  %5396 = vmatprep.subr.bf16.mxu0 0
  %5397 = vmatpush1.bf16.msra.mxu0 0
  %5398 = vmatprep.mubr.bf16.mxu0 0
  %5399 = vmatmul.mubr.bf16.gmra.mrb[0].mxu0 %v5234
  %v5400 = vpop.f32.mrb[0].mxu0
  %v5401 = vadd.f32 0.0, %v5400
  %v5402 = vpop.f32.mrb[0].mxu0
  %v5403 = vadd.f32 0.0, %v5402
  %v5404 = vpop.f32.mrb[0].mxu0
  %v5405 = vadd.f32 0.0, %v5404
  %v5406 = vpop.f32.mrb[0].mxu0
  %v5407 = vadd.f32 0.0, %v5406
  %5408 = vmatprep.mubr.bf16.mxu0 0
  %5409 = vmatmul.mubr.bf16.gmra.mrb[0].mxu0 %v5283
  %v5410 = vpop.f32.mrb[0].mxu0
  %v5411 = vadd.f32 0.0, %v5410
  %v5412 = vpop.f32.mrb[0].mxu0
  %v5413 = vadd.f32 0.0, %v5412
  %v5414 = vpop.f32.mrb[0].mxu0
  %v5415 = vadd.f32 0.0, %v5414
  %v5416 = vpop.f32.mrb[0].mxu0
  %v5417 = vadd.f32 0.0, %v5416
  %5418 = vdwg.mxu0
  %v5419 = vcombine.low %v3593, %v3607
  %v5420 = vcombine.low %v3617, %v3600
  %v5421 = vcombine.low %v3616, %v3618
  %v5422 = vcombine.low %v3656, %v3664
  %v5424 = vunpack.c.l.s4 1966171168
  %v5425 = vunpack.c.0.s8 %v5424
  %v5426 = vlaneseq
  %v5427 = vshrl.u32 %v5426, 7
  %v5428 = vsub.s32 %v5425, %v5427
  %v5429 = vrot.slane %v5419, %v5428
  %v5431 = vunpack.c.l.s4 1966171168
  %v5432 = vunpack.c.0.s8 %v5431
  %v5433 = vlaneseq
  %v5434 = vshrl.u32 %v5433, 7
  %v5435 = vsub.s32 %v5432, %v5434
  %v5436 = vrot.slane %v5420, %v5435
  %v5438 = vunpack.c.l.s4 1966171168
  %v5439 = vunpack.c.0.s8 %v5438
  %v5440 = vlaneseq
  %v5441 = vshrl.u32 %v5440, 7
  %v5442 = vsub.s32 %v5439, %v5441
  %v5443 = vrot.slane %v5421, %v5442
  %v5445 = vunpack.c.l.s4 1966171168
  %v5446 = vunpack.c.0.s8 %v5445
  %v5447 = vlaneseq
  %v5448 = vshrl.u32 %v5447, 7
  %v5449 = vsub.s32 %v5446, %v5448
  %v5450 = vrot.slane %v5422, %v5449
  %v5451 = vcombine.low %v5429, %v5436
  %v5452 = vcombine.low %v5443, %v5450
  %v5454 = vunpack.c.l.s4 1966171168
  %v5455 = vunpack.c.0.s8 %v5454
  %v5456 = vlaneseq
  %v5457 = vshrl.u32 %v5456, 7
  %v5458 = vsub.s32 %v5455, %v5457
  %v5459 = vrot.slane %v5451, %v5458
  %v5461 = vunpack.c.l.s4 1966171168
  %v5462 = vunpack.c.0.s8 %v5461
  %v5463 = vlaneseq
  %v5464 = vshrl.u32 %v5463, 7
  %v5465 = vsub.s32 %v5462, %v5464
  %v5466 = vrot.slane %v5452, %v5465
  %v5467 = vcombine.low %v5459, %v5466
  %v5468 = vcombine.low %v3649, %v3663
  %v5469 = vcombine.low %v3667, %v3691
  %v5470 = vcombine.low %v3713, %v3715
  %v5471 = vcombine.low %v3712, %v3714
  %v5473 = vunpack.c.l.s4 1966171168
  %v5474 = vunpack.c.0.s8 %v5473
  %v5475 = vlaneseq
  %v5476 = vshrl.u32 %v5475, 7
  %v5477 = vsub.s32 %v5474, %v5476
  %v5478 = vrot.slane %v5468, %v5477
  %v5480 = vunpack.c.l.s4 1966171168
  %v5481 = vunpack.c.0.s8 %v5480
  %v5482 = vlaneseq
  %v5483 = vshrl.u32 %v5482, 7
  %v5484 = vsub.s32 %v5481, %v5483
  %v5485 = vrot.slane %v5469, %v5484
  %v5487 = vunpack.c.l.s4 1966171168
  %v5488 = vunpack.c.0.s8 %v5487
  %v5489 = vlaneseq
  %v5490 = vshrl.u32 %v5489, 7
  %v5491 = vsub.s32 %v5488, %v5490
  %v5492 = vrot.slane %v5470, %v5491
  %v5494 = vunpack.c.l.s4 1966171168
  %v5495 = vunpack.c.0.s8 %v5494
  %v5496 = vlaneseq
  %v5497 = vshrl.u32 %v5496, 7
  %v5498 = vsub.s32 %v5495, %v5497
  %v5499 = vrot.slane %v5471, %v5498
  %v5500 = vcombine.low %v5478, %v5485
  %v5501 = vcombine.low %v5492, %v5499
  %v5503 = vunpack.c.l.s4 1966171168
  %v5504 = vunpack.c.0.s8 %v5503
  %v5505 = vlaneseq
  %v5506 = vshrl.u32 %v5505, 7
  %v5507 = vsub.s32 %v5504, %v5506
  %v5508 = vrot.slane %v5500, %v5507
  %v5510 = vunpack.c.l.s4 1966171168
  %v5511 = vunpack.c.0.s8 %v5510
  %v5512 = vlaneseq
  %v5513 = vshrl.u32 %v5512, 7
  %v5514 = vsub.s32 %v5511, %v5513
  %v5515 = vrot.slane %v5501, %v5514
  %v5516 = vcombine.low %v5508, %v5515
  %v5535 = vunpack.c.l.b16 %v89
  %v5536 = vunpack.c.h.b16 %v89
  %v5537 = vunpack.c.l.b16 %v90
  %v5538 = vunpack.c.h.b16 %v90
  %v5539 = vunpack.c.l.b16 %v91
  %v5540 = vunpack.c.h.b16 %v91
  %v5541 = vunpack.c.l.b16 %v92
  %v5542 = vunpack.c.h.b16 %v92
  %v5543 = vunpack.c.l.b16 %v93
  %v5544 = vunpack.c.h.b16 %v93
  %v5545 = vunpack.c.l.b16 %v94
  %v5546 = vunpack.c.h.b16 %v94
  %v5547 = vunpack.c.l.b16 %v95
  %v5548 = vunpack.c.h.b16 %v95
  %v5549 = vunpack.c.l.b16 %v96
  %v5550 = vunpack.c.h.b16 %v96
  %v5551 = vunpack.c.l.b16 %v97
  %v5552 = vunpack.c.h.b16 %v97
  %v5553 = vunpack.c.l.b16 %v98
  %v5554 = vunpack.c.h.b16 %v98
  %v5555 = vunpack.c.l.b16 %v99
  %v5556 = vunpack.c.h.b16 %v99
  %v5557 = vunpack.c.l.b16 %v100
  %v5558 = vunpack.c.h.b16 %v100
  %v5559 = vunpack.c.l.b16 %v101
  %v5560 = vunpack.c.h.b16 %v101
  %v5561 = vunpack.c.l.b16 %v102
  %v5562 = vunpack.c.h.b16 %v102
  %v5563 = vunpack.c.l.b16 %v103
  %v5564 = vunpack.c.h.b16 %v103
  %v5565 = vunpack.c.l.b16 %v104
  %v5566 = vunpack.c.h.b16 %v104
  %v5567 = vpack.c.b16 %v5537, %v5535
  %v5568 = vpack.c.b16 %v5538, %v5536
  %v5569 = vpack.c.b16 %v5541, %v5539
  %v5570 = vpack.c.b16 %v5542, %v5540
  %v5571 = vpack.c.b16 %v5545, %v5543
  %v5572 = vpack.c.b16 %v5546, %v5544
  %v5573 = vpack.c.b16 %v5549, %v5547
  %v5574 = vpack.c.b16 %v5550, %v5548
  %v5575 = vpack.c.b16 %v5553, %v5551
  %v5576 = vpack.c.b16 %v5554, %v5552
  %v5577 = vpack.c.b16 %v5557, %v5555
  %v5578 = vpack.c.b16 %v5558, %v5556
  %v5579 = vpack.c.b16 %v5561, %v5559
  %v5580 = vpack.c.b16 %v5562, %v5560
  %v5581 = vpack.c.b16 %v5565, %v5563
  %v5582 = vpack.c.b16 %v5566, %v5564
  %5599 = vmatprep.subr.bf16.mxu0 %v5568
  %5600 = vmatpush1.bf16.msra.mxu0 %v5567
  %5601 = vmatprep.subr.bf16.mxu0 %v5570
  %5602 = vmatpush1.bf16.msra.mxu0 %v5569
  %5603 = vmatprep.subr.bf16.mxu0 %v5572
  %5604 = vmatpush1.bf16.msra.mxu0 %v5571
  %5605 = vmatprep.subr.bf16.mxu0 %v5574
  %5606 = vmatpush1.bf16.msra.mxu0 %v5573
  %5607 = vmatprep.subr.bf16.mxu0 %v5576
  %5608 = vmatpush1.bf16.msra.mxu0 %v5575
  %5609 = vmatprep.subr.bf16.mxu0 %v5578
  %5610 = vmatpush1.bf16.msra.mxu0 %v5577
  %5611 = vmatprep.subr.bf16.mxu0 %v5580
  %5612 = vmatpush1.bf16.msra.mxu0 %v5579
  %5613 = vmatprep.subr.bf16.mxu0 %v5582
  %5614 = vmatpush1.bf16.msra.mxu0 %v5581
  %5615 = vmatprep.subr.bf16.mxu0 0
  %5616 = vmatpush1.bf16.msra.mxu0 0
  %5617 = vmatprep.subr.bf16.mxu0 0
  %5618 = vmatpush1.bf16.msra.mxu0 0
  %5619 = vmatprep.subr.bf16.mxu0 0
  %5620 = vmatpush1.bf16.msra.mxu0 0
  %5621 = vmatprep.subr.bf16.mxu0 0
  %5622 = vmatpush1.bf16.msra.mxu0 0
  %5623 = vmatprep.subr.bf16.mxu0 0
  %5624 = vmatpush1.bf16.msra.mxu0 0
  %5625 = vmatprep.subr.bf16.mxu0 0
  %5626 = vmatpush1.bf16.msra.mxu0 0
  %5627 = vmatprep.subr.bf16.mxu0 0
  %5628 = vmatpush1.bf16.msra.mxu0 0
  %5629 = vmatprep.subr.bf16.mxu0 0
  %5630 = vmatpush1.bf16.msra.mxu0 0
  %5631 = vmatprep.mubr.bf16.mxu0 0
  %5632 = vmatmul.mubr.bf16.gmra.mrb[0].mxu0 %v5467
  %v5633 = vpop.f32.mrb[0].mxu0
  %v5634 = vadd.f32 %v5401, %v5633
  %v5635 = vpop.f32.mrb[0].mxu0
  %v5636 = vadd.f32 %v5403, %v5635
  %v5637 = vpop.f32.mrb[0].mxu0
  %v5638 = vadd.f32 %v5405, %v5637
  %v5639 = vpop.f32.mrb[0].mxu0
  %v5640 = vadd.f32 %v5407, %v5639
  %5641 = vmatprep.mubr.bf16.mxu0 0
  %5642 = vmatmul.mubr.bf16.gmra.mrb[0].mxu0 %v5516
  %v5643 = vpop.f32.mrb[0].mxu0
  %v5644 = vadd.f32 %v5411, %v5643
  %v5645 = vpop.f32.mrb[0].mxu0
  %v5646 = vadd.f32 %v5413, %v5645
  %v5647 = vpop.f32.mrb[0].mxu0
  %v5648 = vadd.f32 %v5415, %v5647
  %v5649 = vpop.f32.mrb[0].mxu0
  %v5650 = vadd.f32 %v5417, %v5649
  %5651 = vdwg.mxu0
  %v5652 = vcombine.low %v4922, %v4930
  %v5653 = vcombine.low %v4939, %v4947
  %v5654 = vcombine.low %v4956, %v4964
  %v5655 = vcombine.low %v4973, %v4981
  %v5657 = vunpack.c.l.s4 1966171168
  %v5658 = vunpack.c.0.s8 %v5657
  %v5659 = vlaneseq
  %v5660 = vshrl.u32 %v5659, 7
  %v5661 = vsub.s32 %v5658, %v5660
  %v5662 = vrot.slane %v5652, %v5661
  %v5664 = vunpack.c.l.s4 1966171168
  %v5665 = vunpack.c.0.s8 %v5664
  %v5666 = vlaneseq
  %v5667 = vshrl.u32 %v5666, 7
  %v5668 = vsub.s32 %v5665, %v5667
  %v5669 = vrot.slane %v5653, %v5668
  %v5671 = vunpack.c.l.s4 1966171168
  %v5672 = vunpack.c.0.s8 %v5671
  %v5673 = vlaneseq
  %v5674 = vshrl.u32 %v5673, 7
  %v5675 = vsub.s32 %v5672, %v5674
  %v5676 = vrot.slane %v5654, %v5675
  %v5678 = vunpack.c.l.s4 1966171168
  %v5679 = vunpack.c.0.s8 %v5678
  %v5680 = vlaneseq
  %v5681 = vshrl.u32 %v5680, 7
  %v5682 = vsub.s32 %v5679, %v5681
  %v5683 = vrot.slane %v5655, %v5682
  %v5684 = vcombine.low %v5662, %v5669
  %v5685 = vcombine.low %v5676, %v5683
  %v5687 = vunpack.c.l.s4 1966171168
  %v5688 = vunpack.c.0.s8 %v5687
  %v5689 = vlaneseq
  %v5690 = vshrl.u32 %v5689, 7
  %v5691 = vsub.s32 %v5688, %v5690
  %v5692 = vrot.slane %v5684, %v5691
  %v5694 = vunpack.c.l.s4 1966171168
  %v5695 = vunpack.c.0.s8 %v5694
  %v5696 = vlaneseq
  %v5697 = vshrl.u32 %v5696, 7
  %v5698 = vsub.s32 %v5695, %v5697
  %v5699 = vrot.slane %v5685, %v5698
  %v5700 = vcombine.low %v5692, %v5699
  %v5701 = vcombine.low %v4990, %v4998
  %v5702 = vcombine.low %v5007, %v5015
  %v5703 = vcombine.low %v5024, %v5032
  %v5704 = vcombine.low %v5041, %v5049
  %v5706 = vunpack.c.l.s4 1966171168
  %v5707 = vunpack.c.0.s8 %v5706
  %v5708 = vlaneseq
  %v5709 = vshrl.u32 %v5708, 7
  %v5710 = vsub.s32 %v5707, %v5709
  %v5711 = vrot.slane %v5701, %v5710
  %v5713 = vunpack.c.l.s4 1966171168
  %v5714 = vunpack.c.0.s8 %v5713
  %v5715 = vlaneseq
  %v5716 = vshrl.u32 %v5715, 7
  %v5717 = vsub.s32 %v5714, %v5716
  %v5718 = vrot.slane %v5702, %v5717
  %v5720 = vunpack.c.l.s4 1966171168
  %v5721 = vunpack.c.0.s8 %v5720
  %v5722 = vlaneseq
  %v5723 = vshrl.u32 %v5722, 7
  %v5724 = vsub.s32 %v5721, %v5723
  %v5725 = vrot.slane %v5703, %v5724
  %v5727 = vunpack.c.l.s4 1966171168
  %v5728 = vunpack.c.0.s8 %v5727
  %v5729 = vlaneseq
  %v5730 = vshrl.u32 %v5729, 7
  %v5731 = vsub.s32 %v5728, %v5730
  %v5732 = vrot.slane %v5704, %v5731
  %v5733 = vcombine.low %v5711, %v5718
  %v5734 = vcombine.low %v5725, %v5732
  %v5736 = vunpack.c.l.s4 1966171168
  %v5737 = vunpack.c.0.s8 %v5736
  %v5738 = vlaneseq
  %v5739 = vshrl.u32 %v5738, 7
  %v5740 = vsub.s32 %v5737, %v5739
  %v5741 = vrot.slane %v5733, %v5740
  %v5743 = vunpack.c.l.s4 1966171168
  %v5744 = vunpack.c.0.s8 %v5743
  %v5745 = vlaneseq
  %v5746 = vshrl.u32 %v5745, 7
  %v5747 = vsub.s32 %v5744, %v5746
  %v5748 = vrot.slane %v5734, %v5747
  %v5749 = vcombine.low %v5741, %v5748
  %v5768 = vunpack.c.l.b16 %v123
  %v5769 = vunpack.c.h.b16 %v123
  %v5770 = vunpack.c.l.b16 %v124
  %v5771 = vunpack.c.h.b16 %v124
  %v5772 = vunpack.c.l.b16 %v125
  %v5773 = vunpack.c.h.b16 %v125
  %v5774 = vunpack.c.l.b16 %v126
  %v5775 = vunpack.c.h.b16 %v126
  %v5776 = vunpack.c.l.b16 %v127
  %v5777 = vunpack.c.h.b16 %v127
  %v5778 = vunpack.c.l.b16 %v128
  %v5779 = vunpack.c.h.b16 %v128
  %v5780 = vunpack.c.l.b16 %v129
  %v5781 = vunpack.c.h.b16 %v129
  %v5782 = vunpack.c.l.b16 %v130
  %v5783 = vunpack.c.h.b16 %v130
  %v5784 = vunpack.c.l.b16 %v131
  %v5785 = vunpack.c.h.b16 %v131
  %v5786 = vunpack.c.l.b16 %v132
  %v5787 = vunpack.c.h.b16 %v132
  %v5788 = vunpack.c.l.b16 %v133
  %v5789 = vunpack.c.h.b16 %v133
  %v5790 = vunpack.c.l.b16 %v134
  %v5791 = vunpack.c.h.b16 %v134
  %v5792 = vunpack.c.l.b16 %v135
  %v5793 = vunpack.c.h.b16 %v135
  %v5794 = vunpack.c.l.b16 %v136
  %v5795 = vunpack.c.h.b16 %v136
  %v5796 = vunpack.c.l.b16 %v137
  %v5797 = vunpack.c.h.b16 %v137
  %v5798 = vunpack.c.l.b16 %v138
  %v5799 = vunpack.c.h.b16 %v138
  %v5800 = vpack.c.b16 %v5770, %v5768
  %v5801 = vpack.c.b16 %v5771, %v5769
  %v5802 = vpack.c.b16 %v5774, %v5772
  %v5803 = vpack.c.b16 %v5775, %v5773
  %v5804 = vpack.c.b16 %v5778, %v5776
  %v5805 = vpack.c.b16 %v5779, %v5777
  %v5806 = vpack.c.b16 %v5782, %v5780
  %v5807 = vpack.c.b16 %v5783, %v5781
  %v5808 = vpack.c.b16 %v5786, %v5784
  %v5809 = vpack.c.b16 %v5787, %v5785
  %v5810 = vpack.c.b16 %v5790, %v5788
  %v5811 = vpack.c.b16 %v5791, %v5789
  %v5812 = vpack.c.b16 %v5794, %v5792
  %v5813 = vpack.c.b16 %v5795, %v5793
  %v5814 = vpack.c.b16 %v5798, %v5796
  %v5815 = vpack.c.b16 %v5799, %v5797
  %5832 = vmatprep.subr.bf16.mxu0 %v5801
  %5833 = vmatpush1.bf16.msra.mxu0 %v5800
  %5834 = vmatprep.subr.bf16.mxu0 %v5803
  %5835 = vmatpush1.bf16.msra.mxu0 %v5802
  %5836 = vmatprep.subr.bf16.mxu0 %v5805
  %5837 = vmatpush1.bf16.msra.mxu0 %v5804
  %5838 = vmatprep.subr.bf16.mxu0 %v5807
  %5839 = vmatpush1.bf16.msra.mxu0 %v5806
  %5840 = vmatprep.subr.bf16.mxu0 %v5809
  %5841 = vmatpush1.bf16.msra.mxu0 %v5808
  %5842 = vmatprep.subr.bf16.mxu0 %v5811
  %5843 = vmatpush1.bf16.msra.mxu0 %v5810
  %5844 = vmatprep.subr.bf16.mxu0 %v5813
  %5845 = vmatpush1.bf16.msra.mxu0 %v5812
  %5846 = vmatprep.subr.bf16.mxu0 %v5815
  %5847 = vmatpush1.bf16.msra.mxu0 %v5814
  %5848 = vmatprep.subr.bf16.mxu0 0
  %5849 = vmatpush1.bf16.msra.mxu0 0
  %5850 = vmatprep.subr.bf16.mxu0 0
  %5851 = vmatpush1.bf16.msra.mxu0 0
  %5852 = vmatprep.subr.bf16.mxu0 0
  %5853 = vmatpush1.bf16.msra.mxu0 0
  %5854 = vmatprep.subr.bf16.mxu0 0
  %5855 = vmatpush1.bf16.msra.mxu0 0
  %5856 = vmatprep.subr.bf16.mxu0 0
  %5857 = vmatpush1.bf16.msra.mxu0 0
  %5858 = vmatprep.subr.bf16.mxu0 0
  %5859 = vmatpush1.bf16.msra.mxu0 0
  %5860 = vmatprep.subr.bf16.mxu0 0
  %5861 = vmatpush1.bf16.msra.mxu0 0
  %5862 = vmatprep.subr.bf16.mxu0 0
  %5863 = vmatpush1.bf16.msra.mxu0 0
  %5864 = vmatprep.mubr.bf16.mxu0 0
  %5865 = vmatmul.mubr.bf16.gmra.mrb[0].mxu0 %v5700
  %v5866 = vpop.f32.mrb[0].mxu0
  %v5867 = vadd.f32 0.0, %v5866
  %v5868 = vpop.f32.mrb[0].mxu0
  %v5869 = vadd.f32 0.0, %v5868
  %v5870 = vpop.f32.mrb[0].mxu0
  %v5871 = vadd.f32 0.0, %v5870
  %v5872 = vpop.f32.mrb[0].mxu0
  %v5873 = vadd.f32 0.0, %v5872
  %5874 = vmatprep.mubr.bf16.mxu0 0
  %5875 = vmatmul.mubr.bf16.gmra.mrb[0].mxu0 %v5749
  %v5876 = vpop.f32.mrb[0].mxu0
  %v5877 = vadd.f32 0.0, %v5876
  %v5878 = vpop.f32.mrb[0].mxu0
  %v5879 = vadd.f32 0.0, %v5878
  %v5880 = vpop.f32.mrb[0].mxu0
  %v5881 = vadd.f32 0.0, %v5880
  %v5882 = vpop.f32.mrb[0].mxu0
  %v5883 = vadd.f32 0.0, %v5882
  %5884 = vdwg.mxu0
  %v5885 = vadd.f32 %v5634, %v5867
  %v5886 = vadd.f32 %v5636, %v5869
  %v5887 = vadd.f32 %v5638, %v5871
  %v5888 = vadd.f32 %v5640, %v5873
  %v5889 = vadd.f32 %v5644, %v5877
  %v5890 = vadd.f32 %v5646, %v5879
  %v5891 = vadd.f32 %v5648, %v5881
  %v5892 = vadd.f32 %v5650, %v5883
  %v5893 = vcombine.low %v5058, %v5066
  %v5894 = vcombine.low %v5075, %v5083
  %v5895 = vcombine.low %v5092, %v5100
  %v5896 = vcombine.low %v5109, %v5117
  %v5898 = vunpack.c.l.s4 1966171168
  %v5899 = vunpack.c.0.s8 %v5898
  %v5900 = vlaneseq
  %v5901 = vshrl.u32 %v5900, 7
  %v5902 = vsub.s32 %v5899, %v5901
  %v5903 = vrot.slane %v5893, %v5902
  %v5905 = vunpack.c.l.s4 1966171168
  %v5906 = vunpack.c.0.s8 %v5905
  %v5907 = vlaneseq
  %v5908 = vshrl.u32 %v5907, 7
  %v5909 = vsub.s32 %v5906, %v5908
  %v5910 = vrot.slane %v5894, %v5909
  %v5912 = vunpack.c.l.s4 1966171168
  %v5913 = vunpack.c.0.s8 %v5912
  %v5914 = vlaneseq
  %v5915 = vshrl.u32 %v5914, 7
  %v5916 = vsub.s32 %v5913, %v5915
  %v5917 = vrot.slane %v5895, %v5916
  %v5919 = vunpack.c.l.s4 1966171168
  %v5920 = vunpack.c.0.s8 %v5919
  %v5921 = vlaneseq
  %v5922 = vshrl.u32 %v5921, 7
  %v5923 = vsub.s32 %v5920, %v5922
  %v5924 = vrot.slane %v5896, %v5923
  %v5925 = vcombine.low %v5903, %v5910
  %v5926 = vcombine.low %v5917, %v5924
  %v5928 = vunpack.c.l.s4 1966171168
  %v5929 = vunpack.c.0.s8 %v5928
  %v5930 = vlaneseq
  %v5931 = vshrl.u32 %v5930, 7
  %v5932 = vsub.s32 %v5929, %v5931
  %v5933 = vrot.slane %v5925, %v5932
  %v5935 = vunpack.c.l.s4 1966171168
  %v5936 = vunpack.c.0.s8 %v5935
  %v5937 = vlaneseq
  %v5938 = vshrl.u32 %v5937, 7
  %v5939 = vsub.s32 %v5936, %v5938
  %v5940 = vrot.slane %v5926, %v5939
  %v5941 = vcombine.low %v5933, %v5940
  %v5942 = vcombine.low %v5126, %v5134
  %v5943 = vcombine.low %v5143, %v5151
  %v5944 = vcombine.low %v5160, %v5168
  %v5945 = vcombine.low %v5177, %v5185
  %v5947 = vunpack.c.l.s4 1966171168
  %v5948 = vunpack.c.0.s8 %v5947
  %v5949 = vlaneseq
  %v5950 = vshrl.u32 %v5949, 7
  %v5951 = vsub.s32 %v5948, %v5950
  %v5952 = vrot.slane %v5942, %v5951
  %v5954 = vunpack.c.l.s4 1966171168
  %v5955 = vunpack.c.0.s8 %v5954
  %v5956 = vlaneseq
  %v5957 = vshrl.u32 %v5956, 7
  %v5958 = vsub.s32 %v5955, %v5957
  %v5959 = vrot.slane %v5943, %v5958
  %v5961 = vunpack.c.l.s4 1966171168
  %v5962 = vunpack.c.0.s8 %v5961
  %v5963 = vlaneseq
  %v5964 = vshrl.u32 %v5963, 7
  %v5965 = vsub.s32 %v5962, %v5964
  %v5966 = vrot.slane %v5944, %v5965
  %v5968 = vunpack.c.l.s4 1966171168
  %v5969 = vunpack.c.0.s8 %v5968
  %v5970 = vlaneseq
  %v5971 = vshrl.u32 %v5970, 7
  %v5972 = vsub.s32 %v5969, %v5971
  %v5973 = vrot.slane %v5945, %v5972
  %v5974 = vcombine.low %v5952, %v5959
  %v5975 = vcombine.low %v5966, %v5973
  %v5977 = vunpack.c.l.s4 1966171168
  %v5978 = vunpack.c.0.s8 %v5977
  %v5979 = vlaneseq
  %v5980 = vshrl.u32 %v5979, 7
  %v5981 = vsub.s32 %v5978, %v5980
  %v5982 = vrot.slane %v5974, %v5981
  %v5984 = vunpack.c.l.s4 1966171168
  %v5985 = vunpack.c.0.s8 %v5984
  %v5986 = vlaneseq
  %v5987 = vshrl.u32 %v5986, 7
  %v5988 = vsub.s32 %v5985, %v5987
  %v5989 = vrot.slane %v5975, %v5988
  %v5990 = vcombine.low %v5982, %v5989
  %v6009 = vunpack.c.l.b16 %v140
  %v6010 = vunpack.c.h.b16 %v140
  %v6011 = vunpack.c.l.b16 %v141
  %v6012 = vunpack.c.h.b16 %v141
  %v6013 = vunpack.c.l.b16 %v142
  %v6014 = vunpack.c.h.b16 %v142
  %v6015 = vunpack.c.l.b16 %v143
  %v6016 = vunpack.c.h.b16 %v143
  %v6017 = vunpack.c.l.b16 %v144
  %v6018 = vunpack.c.h.b16 %v144
  %v6019 = vunpack.c.l.b16 %v145
  %v6020 = vunpack.c.h.b16 %v145
  %v6021 = vunpack.c.l.b16 %v146
  %v6022 = vunpack.c.h.b16 %v146
  %v6023 = vunpack.c.l.b16 %v147
  %v6024 = vunpack.c.h.b16 %v147
  %v6025 = vunpack.c.l.b16 %v148
  %v6026 = vunpack.c.h.b16 %v148
  %v6027 = vunpack.c.l.b16 %v149
  %v6028 = vunpack.c.h.b16 %v149
  %v6029 = vunpack.c.l.b16 %v150
  %v6030 = vunpack.c.h.b16 %v150
  %v6031 = vunpack.c.l.b16 %v151
  %v6032 = vunpack.c.h.b16 %v151
  %v6033 = vunpack.c.l.b16 %v152
  %v6034 = vunpack.c.h.b16 %v152
  %v6035 = vunpack.c.l.b16 %v153
  %v6036 = vunpack.c.h.b16 %v153
  %v6037 = vunpack.c.l.b16 %v154
  %v6038 = vunpack.c.h.b16 %v154
  %v6039 = vunpack.c.l.b16 %v155
  %v6040 = vunpack.c.h.b16 %v155
  %v6041 = vpack.c.b16 %v6011, %v6009
  %v6042 = vpack.c.b16 %v6012, %v6010
  %v6043 = vpack.c.b16 %v6015, %v6013
  %v6044 = vpack.c.b16 %v6016, %v6014
  %v6045 = vpack.c.b16 %v6019, %v6017
  %v6046 = vpack.c.b16 %v6020, %v6018
  %v6047 = vpack.c.b16 %v6023, %v6021
  %v6048 = vpack.c.b16 %v6024, %v6022
  %v6049 = vpack.c.b16 %v6027, %v6025
  %v6050 = vpack.c.b16 %v6028, %v6026
  %v6051 = vpack.c.b16 %v6031, %v6029
  %v6052 = vpack.c.b16 %v6032, %v6030
  %v6053 = vpack.c.b16 %v6035, %v6033
  %v6054 = vpack.c.b16 %v6036, %v6034
  %v6055 = vpack.c.b16 %v6039, %v6037
  %v6056 = vpack.c.b16 %v6040, %v6038
  %6073 = vmatprep.subr.bf16.mxu0 %v6042
  %6074 = vmatpush1.bf16.msra.mxu0 %v6041
  %6075 = vmatprep.subr.bf16.mxu0 %v6044
  %6076 = vmatpush1.bf16.msra.mxu0 %v6043
  %6077 = vmatprep.subr.bf16.mxu0 %v6046
  %6078 = vmatpush1.bf16.msra.mxu0 %v6045
  %6079 = vmatprep.subr.bf16.mxu0 %v6048
  %6080 = vmatpush1.bf16.msra.mxu0 %v6047
  %6081 = vmatprep.subr.bf16.mxu0 %v6050
  %6082 = vmatpush1.bf16.msra.mxu0 %v6049
  %6083 = vmatprep.subr.bf16.mxu0 %v6052
  %6084 = vmatpush1.bf16.msra.mxu0 %v6051
  %6085 = vmatprep.subr.bf16.mxu0 %v6054
  %6086 = vmatpush1.bf16.msra.mxu0 %v6053
  %6087 = vmatprep.subr.bf16.mxu0 %v6056
  %6088 = vmatpush1.bf16.msra.mxu0 %v6055
  %6089 = vmatprep.subr.bf16.mxu0 0
  %6090 = vmatpush1.bf16.msra.mxu0 0
  %6091 = vmatprep.subr.bf16.mxu0 0
  %6092 = vmatpush1.bf16.msra.mxu0 0
  %6093 = vmatprep.subr.bf16.mxu0 0
  %6094 = vmatpush1.bf16.msra.mxu0 0
  %6095 = vmatprep.subr.bf16.mxu0 0
  %6096 = vmatpush1.bf16.msra.mxu0 0
  %6097 = vmatprep.subr.bf16.mxu0 0
  %6098 = vmatpush1.bf16.msra.mxu0 0
  %6099 = vmatprep.subr.bf16.mxu0 0
  %6100 = vmatpush1.bf16.msra.mxu0 0
  %6101 = vmatprep.subr.bf16.mxu0 0
  %6102 = vmatpush1.bf16.msra.mxu0 0
  %6103 = vmatprep.subr.bf16.mxu0 0
  %6104 = vmatpush1.bf16.msra.mxu0 0
  %6105 = vmatprep.mubr.bf16.mxu0 0
  %6106 = vmatmul.mubr.bf16.gmra.mrb[0].mxu0 %v5941
  %v6107 = vpop.f32.mrb[0].mxu0
  %v6108 = vadd.f32 0.0, %v6107
  %v6109 = vpop.f32.mrb[0].mxu0
  %v6110 = vadd.f32 0.0, %v6109
  %v6111 = vpop.f32.mrb[0].mxu0
  %v6112 = vadd.f32 0.0, %v6111
  %v6113 = vpop.f32.mrb[0].mxu0
  %v6114 = vadd.f32 0.0, %v6113
  %6115 = vmatprep.mubr.bf16.mxu0 0
  %6116 = vmatmul.mubr.bf16.gmra.mrb[0].mxu0 %v5990
  %v6117 = vpop.f32.mrb[0].mxu0
  %v6118 = vadd.f32 0.0, %v6117
  %v6119 = vpop.f32.mrb[0].mxu0
  %v6120 = vadd.f32 0.0, %v6119
  %v6121 = vpop.f32.mrb[0].mxu0
  %v6122 = vadd.f32 0.0, %v6121
  %v6123 = vpop.f32.mrb[0].mxu0
  %v6124 = vadd.f32 0.0, %v6123
  %6125 = vdwg.mxu0
  %v6126 = vadd.f32 %v5885, %v6108
  %v6127 = vadd.f32 %v5886, %v6110
  %v6128 = vadd.f32 %v5887, %v6112
  %v6129 = vadd.f32 %v5888, %v6114
  %v6130 = vadd.f32 %v5889, %v6118
  %v6131 = vadd.f32 %v5890, %v6120
  %v6132 = vadd.f32 %v5891, %v6122
  %v6133 = vadd.f32 %v5892, %v6124
  %v6134 = vcombine.low %v3607, %v3615
  %v6135 = vcombine.low %v3600, %v3614
  %v6136 = vcombine.low %v3618, %v3642
  %v6137 = vcombine.low %v3664, %v3666
  %v6139 = vunpack.c.l.s4 1966171168
  %v6140 = vunpack.c.0.s8 %v6139
  %v6141 = vlaneseq
  %v6142 = vshrl.u32 %v6141, 7
  %v6143 = vsub.s32 %v6140, %v6142
  %v6144 = vrot.slane %v6134, %v6143
  %v6146 = vunpack.c.l.s4 1966171168
  %v6147 = vunpack.c.0.s8 %v6146
  %v6148 = vlaneseq
  %v6149 = vshrl.u32 %v6148, 7
  %v6150 = vsub.s32 %v6147, %v6149
  %v6151 = vrot.slane %v6135, %v6150
  %v6153 = vunpack.c.l.s4 1966171168
  %v6154 = vunpack.c.0.s8 %v6153
  %v6155 = vlaneseq
  %v6156 = vshrl.u32 %v6155, 7
  %v6157 = vsub.s32 %v6154, %v6156
  %v6158 = vrot.slane %v6136, %v6157
  %v6160 = vunpack.c.l.s4 1966171168
  %v6161 = vunpack.c.0.s8 %v6160
  %v6162 = vlaneseq
  %v6163 = vshrl.u32 %v6162, 7
  %v6164 = vsub.s32 %v6161, %v6163
  %v6165 = vrot.slane %v6137, %v6164
  %v6166 = vcombine.low %v6144, %v6151
  %v6167 = vcombine.low %v6158, %v6165
  %v6169 = vunpack.c.l.s4 1966171168
  %v6170 = vunpack.c.0.s8 %v6169
  %v6171 = vlaneseq
  %v6172 = vshrl.u32 %v6171, 7
  %v6173 = vsub.s32 %v6170, %v6172
  %v6174 = vrot.slane %v6166, %v6173
  %v6176 = vunpack.c.l.s4 1966171168
  %v6177 = vunpack.c.0.s8 %v6176
  %v6178 = vlaneseq
  %v6179 = vshrl.u32 %v6178, 7
  %v6180 = vsub.s32 %v6177, %v6179
  %v6181 = vrot.slane %v6167, %v6180
  %v6182 = vcombine.low %v6174, %v6181
  %v6183 = vcombine.low %v3663, %v3665
  %v6184 = vcombine.low %v3691, %v3705
  %v6185 = vcombine.low %v3715, %v3698
  %v6186 = vcombine.low %v3714, %v3716
  %v6188 = vunpack.c.l.s4 1966171168
  %v6189 = vunpack.c.0.s8 %v6188
  %v6190 = vlaneseq
  %v6191 = vshrl.u32 %v6190, 7
  %v6192 = vsub.s32 %v6189, %v6191
  %v6193 = vrot.slane %v6183, %v6192
  %v6195 = vunpack.c.l.s4 1966171168
  %v6196 = vunpack.c.0.s8 %v6195
  %v6197 = vlaneseq
  %v6198 = vshrl.u32 %v6197, 7
  %v6199 = vsub.s32 %v6196, %v6198
  %v6200 = vrot.slane %v6184, %v6199
  %v6202 = vunpack.c.l.s4 1966171168
  %v6203 = vunpack.c.0.s8 %v6202
  %v6204 = vlaneseq
  %v6205 = vshrl.u32 %v6204, 7
  %v6206 = vsub.s32 %v6203, %v6205
  %v6207 = vrot.slane %v6185, %v6206
  %v6209 = vunpack.c.l.s4 1966171168
  %v6210 = vunpack.c.0.s8 %v6209
  %v6211 = vlaneseq
  %v6212 = vshrl.u32 %v6211, 7
  %v6213 = vsub.s32 %v6210, %v6212
  %v6214 = vrot.slane %v6186, %v6213
  %v6215 = vcombine.low %v6193, %v6200
  %v6216 = vcombine.low %v6207, %v6214
  %v6218 = vunpack.c.l.s4 1966171168
  %v6219 = vunpack.c.0.s8 %v6218
  %v6220 = vlaneseq
  %v6221 = vshrl.u32 %v6220, 7
  %v6222 = vsub.s32 %v6219, %v6221
  %v6223 = vrot.slane %v6215, %v6222
  %v6225 = vunpack.c.l.s4 1966171168
  %v6226 = vunpack.c.0.s8 %v6225
  %v6227 = vlaneseq
  %v6228 = vshrl.u32 %v6227, 7
  %v6229 = vsub.s32 %v6226, %v6228
  %v6230 = vrot.slane %v6216, %v6229
  %v6231 = vcombine.low %v6223, %v6230
  %v6250 = vunpack.c.l.b16 %v157
  %v6251 = vunpack.c.h.b16 %v157
  %v6252 = vunpack.c.l.b16 %v158
  %v6253 = vunpack.c.h.b16 %v158
  %v6254 = vunpack.c.l.b16 %v159
  %v6255 = vunpack.c.h.b16 %v159
  %v6256 = vunpack.c.l.b16 %v160
  %v6257 = vunpack.c.h.b16 %v160
  %v6258 = vunpack.c.l.b16 %v161
  %v6259 = vunpack.c.h.b16 %v161
  %v6260 = vunpack.c.l.b16 %v162
  %v6261 = vunpack.c.h.b16 %v162
  %v6262 = vunpack.c.l.b16 %v163
  %v6263 = vunpack.c.h.b16 %v163
  %v6264 = vunpack.c.l.b16 %v164
  %v6265 = vunpack.c.h.b16 %v164
  %v6266 = vunpack.c.l.b16 %v165
  %v6267 = vunpack.c.h.b16 %v165
  %v6268 = vunpack.c.l.b16 %v166
  %v6269 = vunpack.c.h.b16 %v166
  %v6270 = vunpack.c.l.b16 %v167
  %v6271 = vunpack.c.h.b16 %v167
  %v6272 = vunpack.c.l.b16 %v168
  %v6273 = vunpack.c.h.b16 %v168
  %v6274 = vunpack.c.l.b16 %v169
  %v6275 = vunpack.c.h.b16 %v169
  %v6276 = vunpack.c.l.b16 %v170
  %v6277 = vunpack.c.h.b16 %v170
  %v6278 = vunpack.c.l.b16 %v171
  %v6279 = vunpack.c.h.b16 %v171
  %v6280 = vunpack.c.l.b16 %v172
  %v6281 = vunpack.c.h.b16 %v172
  %v6282 = vpack.c.b16 %v6252, %v6250
  %v6283 = vpack.c.b16 %v6253, %v6251
  %v6284 = vpack.c.b16 %v6256, %v6254
  %v6285 = vpack.c.b16 %v6257, %v6255
  %v6286 = vpack.c.b16 %v6260, %v6258
  %v6287 = vpack.c.b16 %v6261, %v6259
  %v6288 = vpack.c.b16 %v6264, %v6262
  %v6289 = vpack.c.b16 %v6265, %v6263
  %v6290 = vpack.c.b16 %v6268, %v6266
  %v6291 = vpack.c.b16 %v6269, %v6267
  %v6292 = vpack.c.b16 %v6272, %v6270
  %v6293 = vpack.c.b16 %v6273, %v6271
  %v6294 = vpack.c.b16 %v6276, %v6274
  %v6295 = vpack.c.b16 %v6277, %v6275
  %v6296 = vpack.c.b16 %v6280, %v6278
  %v6297 = vpack.c.b16 %v6281, %v6279
  %6314 = vmatprep.subr.bf16.mxu0 %v6283
  %6315 = vmatpush1.bf16.msra.mxu0 %v6282
  %6316 = vmatprep.subr.bf16.mxu0 %v6285
  %6317 = vmatpush1.bf16.msra.mxu0 %v6284
  %6318 = vmatprep.subr.bf16.mxu0 %v6287
  %6319 = vmatpush1.bf16.msra.mxu0 %v6286
  %6320 = vmatprep.subr.bf16.mxu0 %v6289
  %6321 = vmatpush1.bf16.msra.mxu0 %v6288
  %6322 = vmatprep.subr.bf16.mxu0 %v6291
  %6323 = vmatpush1.bf16.msra.mxu0 %v6290
  %6324 = vmatprep.subr.bf16.mxu0 %v6293
  %6325 = vmatpush1.bf16.msra.mxu0 %v6292
  %6326 = vmatprep.subr.bf16.mxu0 %v6295
  %6327 = vmatpush1.bf16.msra.mxu0 %v6294
  %6328 = vmatprep.subr.bf16.mxu0 %v6297
  %6329 = vmatpush1.bf16.msra.mxu0 %v6296
  %6330 = vmatprep.subr.bf16.mxu0 0
  %6331 = vmatpush1.bf16.msra.mxu0 0
  %6332 = vmatprep.subr.bf16.mxu0 0
  %6333 = vmatpush1.bf16.msra.mxu0 0
  %6334 = vmatprep.subr.bf16.mxu0 0
  %6335 = vmatpush1.bf16.msra.mxu0 0
  %6336 = vmatprep.subr.bf16.mxu0 0
  %6337 = vmatpush1.bf16.msra.mxu0 0
  %6338 = vmatprep.subr.bf16.mxu0 0
  %6339 = vmatpush1.bf16.msra.mxu0 0
  %6340 = vmatprep.subr.bf16.mxu0 0
  %6341 = vmatpush1.bf16.msra.mxu0 0
  %6342 = vmatprep.subr.bf16.mxu0 0
  %6343 = vmatpush1.bf16.msra.mxu0 0
  %6344 = vmatprep.subr.bf16.mxu0 0
  %6345 = vmatpush1.bf16.msra.mxu0 0
  %6346 = vmatprep.mubr.bf16.mxu0 0
  %6347 = vmatmul.mubr.bf16.gmra.mrb[0].mxu0 %v6182
  %v6348 = vpop.f32.mrb[0].mxu0
  %v6349 = vadd.f32 0.0, %v6348
  %v6350 = vpop.f32.mrb[0].mxu0
  %v6351 = vadd.f32 0.0, %v6350
  %v6352 = vpop.f32.mrb[0].mxu0
  %v6353 = vadd.f32 0.0, %v6352
  %v6354 = vpop.f32.mrb[0].mxu0
  %v6355 = vadd.f32 0.0, %v6354
  %6356 = vmatprep.mubr.bf16.mxu0 0
  %6357 = vmatmul.mubr.bf16.gmra.mrb[0].mxu0 %v6231
  %v6358 = vpop.f32.mrb[0].mxu0
  %v6359 = vadd.f32 0.0, %v6358
  %v6360 = vpop.f32.mrb[0].mxu0
  %v6361 = vadd.f32 0.0, %v6360
  %v6362 = vpop.f32.mrb[0].mxu0
  %v6363 = vadd.f32 0.0, %v6362
  %v6364 = vpop.f32.mrb[0].mxu0
  %v6365 = vadd.f32 0.0, %v6364
  %6366 = vdwg.mxu0
  %v6367 = vadd.f32 %v6126, %v6349
  %v6368 = vadd.f32 %v6127, %v6351
  %v6369 = vadd.f32 %v6128, %v6353
  %v6370 = vadd.f32 %v6129, %v6355
  %v6371 = vadd.f32 %v6130, %v6359
  %v6372 = vadd.f32 %v6131, %v6361
  %v6373 = vadd.f32 %v6132, %v6363
  %v6374 = vadd.f32 %v6133, %v6365
  %6375 = vmatprep.subr.bf16.mxu0 %v5335
  %6376 = vmatpush1.bf16.msra.mxu0 %v5334
  %6377 = vmatprep.subr.bf16.mxu0 %v5337
  %6378 = vmatpush1.bf16.msra.mxu0 %v5336
  %6379 = vmatprep.subr.bf16.mxu0 %v5339
  %6380 = vmatpush1.bf16.msra.mxu0 %v5338
  %6381 = vmatprep.subr.bf16.mxu0 %v5341
  %6382 = vmatpush1.bf16.msra.mxu0 %v5340
  %6383 = vmatprep.subr.bf16.mxu0 %v5343
  %6384 = vmatpush1.bf16.msra.mxu0 %v5342
  %6385 = vmatprep.subr.bf16.mxu0 %v5345
  %6386 = vmatpush1.bf16.msra.mxu0 %v5344
  %6387 = vmatprep.subr.bf16.mxu0 %v5347
  %6388 = vmatpush1.bf16.msra.mxu0 %v5346
  %6389 = vmatprep.subr.bf16.mxu0 %v5349
  %6390 = vmatpush1.bf16.msra.mxu0 %v5348
  %6391 = vmatprep.subr.bf16.mxu0 0
  %6392 = vmatpush1.bf16.msra.mxu0 0
  %6393 = vmatprep.subr.bf16.mxu0 0
  %6394 = vmatpush1.bf16.msra.mxu0 0
  %6395 = vmatprep.subr.bf16.mxu0 0
  %6396 = vmatpush1.bf16.msra.mxu0 0
  %6397 = vmatprep.subr.bf16.mxu0 0
  %6398 = vmatpush1.bf16.msra.mxu0 0
  %6399 = vmatprep.subr.bf16.mxu0 0
  %6400 = vmatpush1.bf16.msra.mxu0 0
  %6401 = vmatprep.subr.bf16.mxu0 0
  %6402 = vmatpush1.bf16.msra.mxu0 0
  %6403 = vmatprep.subr.bf16.mxu0 0
  %6404 = vmatpush1.bf16.msra.mxu0 0
  %6405 = vmatprep.subr.bf16.mxu0 0
  %6406 = vmatpush1.bf16.msra.mxu0 0
  %6407 = vmatprep.mubr.bf16.mxu0 0
  %6408 = vmatmul.mubr.bf16.gmra.mrb[0].mxu0 %v5700
  %v6409 = vpop.f32.mrb[0].mxu0
  %v6410 = vadd.f32 0.0, %v6409
  %v6411 = vpop.f32.mrb[0].mxu0
  %v6412 = vadd.f32 0.0, %v6411
  %v6413 = vpop.f32.mrb[0].mxu0
  %v6414 = vadd.f32 0.0, %v6413
  %v6415 = vpop.f32.mrb[0].mxu0
  %v6416 = vadd.f32 0.0, %v6415
  %6417 = vmatprep.mubr.bf16.mxu0 0
  %6418 = vmatmul.mubr.bf16.gmra.mrb[0].mxu0 %v5749
  %v6419 = vpop.f32.mrb[0].mxu0
  %v6420 = vadd.f32 0.0, %v6419
  %v6421 = vpop.f32.mrb[0].mxu0
  %v6422 = vadd.f32 0.0, %v6421
  %v6423 = vpop.f32.mrb[0].mxu0
  %v6424 = vadd.f32 0.0, %v6423
  %v6425 = vpop.f32.mrb[0].mxu0
  %v6426 = vadd.f32 0.0, %v6425
  %6427 = vdwg.mxu0
  %6428 = vmatprep.subr.bf16.mxu0 %v5568
  %6429 = vmatpush1.bf16.msra.mxu0 %v5567
  %6430 = vmatprep.subr.bf16.mxu0 %v5570
  %6431 = vmatpush1.bf16.msra.mxu0 %v5569
  %6432 = vmatprep.subr.bf16.mxu0 %v5572
  %6433 = vmatpush1.bf16.msra.mxu0 %v5571
  %6434 = vmatprep.subr.bf16.mxu0 %v5574
  %6435 = vmatpush1.bf16.msra.mxu0 %v5573
  %6436 = vmatprep.subr.bf16.mxu0 %v5576
  %6437 = vmatpush1.bf16.msra.mxu0 %v5575
  %6438 = vmatprep.subr.bf16.mxu0 %v5578
  %6439 = vmatpush1.bf16.msra.mxu0 %v5577
  %6440 = vmatprep.subr.bf16.mxu0 %v5580
  %6441 = vmatpush1.bf16.msra.mxu0 %v5579
  %6442 = vmatprep.subr.bf16.mxu0 %v5582
  %6443 = vmatpush1.bf16.msra.mxu0 %v5581
  %6444 = vmatprep.subr.bf16.mxu0 0
  %6445 = vmatpush1.bf16.msra.mxu0 0
  %6446 = vmatprep.subr.bf16.mxu0 0
  %6447 = vmatpush1.bf16.msra.mxu0 0
  %6448 = vmatprep.subr.bf16.mxu0 0
  %6449 = vmatpush1.bf16.msra.mxu0 0
  %6450 = vmatprep.subr.bf16.mxu0 0
  %6451 = vmatpush1.bf16.msra.mxu0 0
  %6452 = vmatprep.subr.bf16.mxu0 0
  %6453 = vmatpush1.bf16.msra.mxu0 0
  %6454 = vmatprep.subr.bf16.mxu0 0
  %6455 = vmatpush1.bf16.msra.mxu0 0
  %6456 = vmatprep.subr.bf16.mxu0 0
  %6457 = vmatpush1.bf16.msra.mxu0 0
  %6458 = vmatprep.subr.bf16.mxu0 0
  %6459 = vmatpush1.bf16.msra.mxu0 0
  %6460 = vmatprep.mubr.bf16.mxu0 0
  %6461 = vmatmul.mubr.bf16.gmra.mrb[0].mxu0 %v5234
  %v6462 = vpop.f32.mrb[0].mxu0
  %v6463 = vadd.f32 %v6410, %v6462
  %v6464 = vpop.f32.mrb[0].mxu0
  %v6465 = vadd.f32 %v6412, %v6464
  %v6466 = vpop.f32.mrb[0].mxu0
  %v6467 = vadd.f32 %v6414, %v6466
  %v6468 = vpop.f32.mrb[0].mxu0
  %v6469 = vadd.f32 %v6416, %v6468
  %6470 = vmatprep.mubr.bf16.mxu0 0
  %6471 = vmatmul.mubr.bf16.gmra.mrb[0].mxu0 %v5283
  %v6472 = vpop.f32.mrb[0].mxu0
  %v6473 = vadd.f32 %v6420, %v6472
  %v6474 = vpop.f32.mrb[0].mxu0
  %v6475 = vadd.f32 %v6422, %v6474
  %v6476 = vpop.f32.mrb[0].mxu0
  %v6477 = vadd.f32 %v6424, %v6476
  %v6478 = vpop.f32.mrb[0].mxu0
  %v6479 = vadd.f32 %v6426, %v6478
  %6480 = vdwg.mxu0
  %6481 = vmatprep.subr.bf16.mxu0 %v5801
  %6482 = vmatpush1.bf16.msra.mxu0 %v5800
  %6483 = vmatprep.subr.bf16.mxu0 %v5803
  %6484 = vmatpush1.bf16.msra.mxu0 %v5802
  %6485 = vmatprep.subr.bf16.mxu0 %v5805
  %6486 = vmatpush1.bf16.msra.mxu0 %v5804
  %6487 = vmatprep.subr.bf16.mxu0 %v5807
  %6488 = vmatpush1.bf16.msra.mxu0 %v5806
  %6489 = vmatprep.subr.bf16.mxu0 %v5809
  %6490 = vmatpush1.bf16.msra.mxu0 %v5808
  %6491 = vmatprep.subr.bf16.mxu0 %v5811
  %6492 = vmatpush1.bf16.msra.mxu0 %v5810
  %6493 = vmatprep.subr.bf16.mxu0 %v5813
  %6494 = vmatpush1.bf16.msra.mxu0 %v5812
  %6495 = vmatprep.subr.bf16.mxu0 %v5815
  %6496 = vmatpush1.bf16.msra.mxu0 %v5814
  %6497 = vmatprep.subr.bf16.mxu0 0
  %6498 = vmatpush1.bf16.msra.mxu0 0
  %6499 = vmatprep.subr.bf16.mxu0 0
  %6500 = vmatpush1.bf16.msra.mxu0 0
  %6501 = vmatprep.subr.bf16.mxu0 0
  %6502 = vmatpush1.bf16.msra.mxu0 0
  %6503 = vmatprep.subr.bf16.mxu0 0
  %6504 = vmatpush1.bf16.msra.mxu0 0
  %6505 = vmatprep.subr.bf16.mxu0 0
  %6506 = vmatpush1.bf16.msra.mxu0 0
  %6507 = vmatprep.subr.bf16.mxu0 0
  %6508 = vmatpush1.bf16.msra.mxu0 0
  %6509 = vmatprep.subr.bf16.mxu0 0
  %6510 = vmatpush1.bf16.msra.mxu0 0
  %6511 = vmatprep.subr.bf16.mxu0 0
  %6512 = vmatpush1.bf16.msra.mxu0 0
  %6513 = vmatprep.mubr.bf16.mxu0 0
  %6514 = vmatmul.mubr.bf16.gmra.mrb[0].mxu0 %v5941
  %v6515 = vpop.f32.mrb[0].mxu0
  %v6516 = vadd.f32 0.0, %v6515
  %v6517 = vpop.f32.mrb[0].mxu0
  %v6518 = vadd.f32 0.0, %v6517
  %v6519 = vpop.f32.mrb[0].mxu0
  %v6520 = vadd.f32 0.0, %v6519
  %v6521 = vpop.f32.mrb[0].mxu0
  %v6522 = vadd.f32 0.0, %v6521
  %6523 = vmatprep.mubr.bf16.mxu0 0
  %6524 = vmatmul.mubr.bf16.gmra.mrb[0].mxu0 %v5990
  %v6525 = vpop.f32.mrb[0].mxu0
  %v6526 = vadd.f32 0.0, %v6525
  %v6527 = vpop.f32.mrb[0].mxu0
  %v6528 = vadd.f32 0.0, %v6527
  %v6529 = vpop.f32.mrb[0].mxu0
  %v6530 = vadd.f32 0.0, %v6529
  %v6531 = vpop.f32.mrb[0].mxu0
  %v6532 = vadd.f32 0.0, %v6531
  %6533 = vdwg.mxu0
  %v6534 = vadd.f32 %v6463, %v6516
  %v6535 = vadd.f32 %v6465, %v6518
  %v6536 = vadd.f32 %v6467, %v6520
  %v6537 = vadd.f32 %v6469, %v6522
  %v6538 = vadd.f32 %v6473, %v6526
  %v6539 = vadd.f32 %v6475, %v6528
  %v6540 = vadd.f32 %v6477, %v6530
  %v6541 = vadd.f32 %v6479, %v6532
  %6542 = vmatprep.subr.bf16.mxu0 %v6042
  %6543 = vmatpush1.bf16.msra.mxu0 %v6041
  %6544 = vmatprep.subr.bf16.mxu0 %v6044
  %6545 = vmatpush1.bf16.msra.mxu0 %v6043
  %6546 = vmatprep.subr.bf16.mxu0 %v6046
  %6547 = vmatpush1.bf16.msra.mxu0 %v6045
  %6548 = vmatprep.subr.bf16.mxu0 %v6048
  %6549 = vmatpush1.bf16.msra.mxu0 %v6047
  %6550 = vmatprep.subr.bf16.mxu0 %v6050
  %6551 = vmatpush1.bf16.msra.mxu0 %v6049
  %6552 = vmatprep.subr.bf16.mxu0 %v6052
  %6553 = vmatpush1.bf16.msra.mxu0 %v6051
  %6554 = vmatprep.subr.bf16.mxu0 %v6054
  %6555 = vmatpush1.bf16.msra.mxu0 %v6053
  %6556 = vmatprep.subr.bf16.mxu0 %v6056
  %6557 = vmatpush1.bf16.msra.mxu0 %v6055
  %6558 = vmatprep.subr.bf16.mxu0 0
  %6559 = vmatpush1.bf16.msra.mxu0 0
  %6560 = vmatprep.subr.bf16.mxu0 0
  %6561 = vmatpush1.bf16.msra.mxu0 0
  %6562 = vmatprep.subr.bf16.mxu0 0
  %6563 = vmatpush1.bf16.msra.mxu0 0
  %6564 = vmatprep.subr.bf16.mxu0 0
  %6565 = vmatpush1.bf16.msra.mxu0 0
  %6566 = vmatprep.subr.bf16.mxu0 0
  %6567 = vmatpush1.bf16.msra.mxu0 0
  %6568 = vmatprep.subr.bf16.mxu0 0
  %6569 = vmatpush1.bf16.msra.mxu0 0
  %6570 = vmatprep.subr.bf16.mxu0 0
  %6571 = vmatpush1.bf16.msra.mxu0 0
  %6572 = vmatprep.subr.bf16.mxu0 0
  %6573 = vmatpush1.bf16.msra.mxu0 0
  %6574 = vmatprep.mubr.bf16.mxu0 0
  %6575 = vmatmul.mubr.bf16.gmra.mrb[0].mxu0 %v6182
  %v6576 = vpop.f32.mrb[0].mxu0
  %v6577 = vadd.f32 0.0, %v6576
  %v6578 = vpop.f32.mrb[0].mxu0
  %v6579 = vadd.f32 0.0, %v6578
  %v6580 = vpop.f32.mrb[0].mxu0
  %v6581 = vadd.f32 0.0, %v6580
  %v6582 = vpop.f32.mrb[0].mxu0
  %v6583 = vadd.f32 0.0, %v6582
  %6584 = vmatprep.mubr.bf16.mxu0 0
  %6585 = vmatmul.mubr.bf16.gmra.mrb[0].mxu0 %v6231
  %v6586 = vpop.f32.mrb[0].mxu0
  %v6587 = vadd.f32 0.0, %v6586
  %v6588 = vpop.f32.mrb[0].mxu0
  %v6589 = vadd.f32 0.0, %v6588
  %v6590 = vpop.f32.mrb[0].mxu0
  %v6591 = vadd.f32 0.0, %v6590
  %v6592 = vpop.f32.mrb[0].mxu0
  %v6593 = vadd.f32 0.0, %v6592
  %6594 = vdwg.mxu0
  %v6595 = vadd.f32 %v6534, %v6577
  %v6596 = vadd.f32 %v6535, %v6579
  %v6597 = vadd.f32 %v6536, %v6581
  %v6598 = vadd.f32 %v6537, %v6583
  %v6599 = vadd.f32 %v6538, %v6587
  %v6600 = vadd.f32 %v6539, %v6589
  %v6601 = vadd.f32 %v6540, %v6591
  %v6602 = vadd.f32 %v6541, %v6593
  %v6603 = vcombine.low %v4804, %v4812
  %v6604 = vcombine.low %v4797, %v4811
  %v6605 = vcombine.low %v4815, %v4839
  %v6606 = vcombine.low %v4861, %v4863
  %v6608 = vunpack.c.l.s4 1966171168
  %v6609 = vunpack.c.0.s8 %v6608
  %v6610 = vlaneseq
  %v6611 = vshrl.u32 %v6610, 7
  %v6612 = vsub.s32 %v6609, %v6611
  %v6613 = vrot.slane %v6603, %v6612
  %v6615 = vunpack.c.l.s4 1966171168
  %v6616 = vunpack.c.0.s8 %v6615
  %v6617 = vlaneseq
  %v6618 = vshrl.u32 %v6617, 7
  %v6619 = vsub.s32 %v6616, %v6618
  %v6620 = vrot.slane %v6604, %v6619
  %v6622 = vunpack.c.l.s4 1966171168
  %v6623 = vunpack.c.0.s8 %v6622
  %v6624 = vlaneseq
  %v6625 = vshrl.u32 %v6624, 7
  %v6626 = vsub.s32 %v6623, %v6625
  %v6627 = vrot.slane %v6605, %v6626
  %v6629 = vunpack.c.l.s4 1966171168
  %v6630 = vunpack.c.0.s8 %v6629
  %v6631 = vlaneseq
  %v6632 = vshrl.u32 %v6631, 7
  %v6633 = vsub.s32 %v6630, %v6632
  %v6634 = vrot.slane %v6606, %v6633
  %v6635 = vcombine.low %v6613, %v6620
  %v6636 = vcombine.low %v6627, %v6634
  %v6638 = vunpack.c.l.s4 1966171168
  %v6639 = vunpack.c.0.s8 %v6638
  %v6640 = vlaneseq
  %v6641 = vshrl.u32 %v6640, 7
  %v6642 = vsub.s32 %v6639, %v6641
  %v6643 = vrot.slane %v6635, %v6642
  %v6645 = vunpack.c.l.s4 1966171168
  %v6646 = vunpack.c.0.s8 %v6645
  %v6647 = vlaneseq
  %v6648 = vshrl.u32 %v6647, 7
  %v6649 = vsub.s32 %v6646, %v6648
  %v6650 = vrot.slane %v6636, %v6649
  %v6651 = vcombine.low %v6643, %v6650
  %v6652 = vcombine.low %v4860, %v4862
  %v6653 = vcombine.low %v4888, %v4902
  %v6654 = vcombine.low %v4912, %v4895
  %v6655 = vcombine.low %v4911, %v4913
  %v6657 = vunpack.c.l.s4 1966171168
  %v6658 = vunpack.c.0.s8 %v6657
  %v6659 = vlaneseq
  %v6660 = vshrl.u32 %v6659, 7
  %v6661 = vsub.s32 %v6658, %v6660
  %v6662 = vrot.slane %v6652, %v6661
  %v6664 = vunpack.c.l.s4 1966171168
  %v6665 = vunpack.c.0.s8 %v6664
  %v6666 = vlaneseq
  %v6667 = vshrl.u32 %v6666, 7
  %v6668 = vsub.s32 %v6665, %v6667
  %v6669 = vrot.slane %v6653, %v6668
  %v6671 = vunpack.c.l.s4 1966171168
  %v6672 = vunpack.c.0.s8 %v6671
  %v6673 = vlaneseq
  %v6674 = vshrl.u32 %v6673, 7
  %v6675 = vsub.s32 %v6672, %v6674
  %v6676 = vrot.slane %v6654, %v6675
  %v6678 = vunpack.c.l.s4 1966171168
  %v6679 = vunpack.c.0.s8 %v6678
  %v6680 = vlaneseq
  %v6681 = vshrl.u32 %v6680, 7
  %v6682 = vsub.s32 %v6679, %v6681
  %v6683 = vrot.slane %v6655, %v6682
  %v6684 = vcombine.low %v6662, %v6669
  %v6685 = vcombine.low %v6676, %v6683
  %v6687 = vunpack.c.l.s4 1966171168
  %v6688 = vunpack.c.0.s8 %v6687
  %v6689 = vlaneseq
  %v6690 = vshrl.u32 %v6689, 7
  %v6691 = vsub.s32 %v6688, %v6690
  %v6692 = vrot.slane %v6684, %v6691
  %v6694 = vunpack.c.l.s4 1966171168
  %v6695 = vunpack.c.0.s8 %v6694
  %v6696 = vlaneseq
  %v6697 = vshrl.u32 %v6696, 7
  %v6698 = vsub.s32 %v6695, %v6697
  %v6699 = vrot.slane %v6685, %v6698
  %v6700 = vcombine.low %v6692, %v6699
  %6703 = vmatprep.subr.bf16.mxu0 %v6283
  %6704 = vmatpush1.bf16.msra.mxu0 %v6282
  %6705 = vmatprep.subr.bf16.mxu0 %v6285
  %6706 = vmatpush1.bf16.msra.mxu0 %v6284
  %6707 = vmatprep.subr.bf16.mxu0 %v6287
  %6708 = vmatpush1.bf16.msra.mxu0 %v6286
  %6709 = vmatprep.subr.bf16.mxu0 %v6289
  %6710 = vmatpush1.bf16.msra.mxu0 %v6288
  %6711 = vmatprep.subr.bf16.mxu0 %v6291
  %6712 = vmatpush1.bf16.msra.mxu0 %v6290
  %6713 = vmatprep.subr.bf16.mxu0 %v6293
  %6714 = vmatpush1.bf16.msra.mxu0 %v6292
  %6715 = vmatprep.subr.bf16.mxu0 %v6295
  %6716 = vmatpush1.bf16.msra.mxu0 %v6294
  %6717 = vmatprep.subr.bf16.mxu0 %v6297
  %6718 = vmatpush1.bf16.msra.mxu0 %v6296
  %6719 = vmatprep.subr.bf16.mxu0 0
  %6720 = vmatpush1.bf16.msra.mxu0 0
  %6721 = vmatprep.subr.bf16.mxu0 0
  %6722 = vmatpush1.bf16.msra.mxu0 0
  %6723 = vmatprep.subr.bf16.mxu0 0
  %6724 = vmatpush1.bf16.msra.mxu0 0
  %6725 = vmatprep.subr.bf16.mxu0 0
  %6726 = vmatpush1.bf16.msra.mxu0 0
  %6727 = vmatprep.subr.bf16.mxu0 0
  %6728 = vmatpush1.bf16.msra.mxu0 0
  %6729 = vmatprep.subr.bf16.mxu0 0
  %6730 = vmatpush1.bf16.msra.mxu0 0
  %6731 = vmatprep.subr.bf16.mxu0 0
  %6732 = vmatpush1.bf16.msra.mxu0 0
  %6733 = vmatprep.subr.bf16.mxu0 0
  %6734 = vmatpush1.bf16.msra.mxu0 0
  %6735 = vmatprep.mubr.bf16.mxu0 0
  %6736 = vmatmul.mubr.bf16.gmra.mrb[0].mxu0 %v6651
  %v6737 = vpop.f32.mrb[0].mxu0
  %v6738 = vadd.f32 0.0, %v6737
  %v6739 = vpop.f32.mrb[0].mxu0
  %v6740 = vadd.f32 0.0, %v6739
  %v6741 = vpop.f32.mrb[0].mxu0
  %v6742 = vadd.f32 0.0, %v6741
  %v6743 = vpop.f32.mrb[0].mxu0
  %v6744 = vadd.f32 0.0, %v6743
  %6745 = vmatprep.mubr.bf16.mxu0 0
  %6746 = vmatmul.mubr.bf16.gmra.mrb[0].mxu0 %v6700
  %v6747 = vpop.f32.mrb[0].mxu0
  %v6748 = vadd.f32 0.0, %v6747
  %v6749 = vpop.f32.mrb[0].mxu0
  %v6750 = vadd.f32 0.0, %v6749
  %v6751 = vpop.f32.mrb[0].mxu0
  %v6752 = vadd.f32 0.0, %v6751
  %v6753 = vpop.f32.mrb[0].mxu0
  %v6754 = vadd.f32 0.0, %v6753
  %6755 = vdwg.mxu0
  %v6756 = vadd.f32 %v6595, %v6738
  %v6757 = vadd.f32 %v6596, %v6740
  %v6758 = vadd.f32 %v6597, %v6742
  %v6759 = vadd.f32 %v6598, %v6744
  %v6760 = vadd.f32 %v6599, %v6748
  %v6761 = vadd.f32 %v6600, %v6750
  %v6762 = vadd.f32 %v6601, %v6752
  %v6763 = vadd.f32 %v6602, %v6754
  %v6764 = vmax.f32 %v6367, %v6756
  %v6765 = vmax.f32 %v6368, %v6757
  %v6766 = vmax.f32 %v6369, %v6758
  %v6767 = vmax.f32 %v6370, %v6759
  %v6768 = vmax.f32 %v6371, %v6760
  %v6769 = vmax.f32 %v6372, %v6761
  %v6770 = vmax.f32 %v6373, %v6762
  %v6771 = vmax.f32 %v6374, %v6763
  %v6772 = vmax.f32 %v6764, %v6765
  %v6773 = vmax.f32 %v6766, %v6767
  %v6774 = vmax.f32 %v6768, %v6769
  %v6775 = vmax.f32 %v6770, %v6771
  %v6776 = vld [vmem:[%s4] sm:$0x1]
  %v6778 = vlaneseq
  %v6779 = vshrl.u32 %v6778, 7
  %v6780 = vsub.s32 0, %v6779
  %v6781 = vrot.slane %v6776, %v6780
  %v6783 = vadd.f32 %v6772, %v6781
  %v6784 = vadd.f32 %v6773, %v6781
  %v6785 = vadd.f32 %v6774, %v6781
  %v6786 = vadd.f32 %v6775, %v6781
  %v6787 = vmax.f32 %v6783, 0.0
  %v6788 = vmax.f32 %v6784, 0.0
  %v6789 = vmax.f32 %v6785, 0.0
  %v6790 = vmax.f32 %v6786, 0.0
  %v6791 = vpack.c.bf16 %v6788, %v6787
  %v6792 = vpack.c.bf16 %v6790, %v6789
  %v6794 = vunpack.i.l.s16 %v6791
  %v6795 = vunpack.i.h.s16 %v6791
  %v6796 = vpack.c.b16 %v6795, %v6794
  %v6797 = vunpack.i.l.s16 %v6796
  %v6798 = vunpack.i.h.s16 %v6796
  %v6799 = vpack.c.b16 %v6798, %v6797
  %v6801 = vunpack.i.l.s16 %v6792
  %v6802 = vunpack.i.h.s16 %v6792
  %v6803 = vpack.c.b16 %v6802, %v6801
  %v6804 = vunpack.i.l.s16 %v6803
  %v6805 = vunpack.i.h.s16 %v6803
  %v6806 = vpack.c.b16 %v6805, %v6804
  %v6807 = vld [vmem:[%s5] sm:$0xf]
  %v6808 = vld [vmem:[%s5 + $0x4] sm:$0xf]
  %v6809 = vld [vmem:[%s5 + $0x8] sm:$0xf]
  %v6810 = vld [vmem:[%s5 + $0xc] sm:$0xf]
  %v6811 = vld [vmem:[%s5 + $0x10] sm:$0xf]
  %v6812 = vld [vmem:[%s5 + $0x14] sm:$0xf]
  %v6813 = vld [vmem:[%s5 + $0x18] sm:$0xf]
  %v6814 = vld [vmem:[%s5 + $0x1c] sm:$0xf]
  %v6815 = vld [vmem:[%s5 + $0x20] sm:$0xf]
  %v6816 = vld [vmem:[%s5 + $0x24] sm:$0xf]
  %v6817 = vld [vmem:[%s5 + $0x28] sm:$0xf]
  %v6818 = vld [vmem:[%s5 + $0x2c] sm:$0xf]
  %v6819 = vld [vmem:[%s5 + $0x30] sm:$0xf]
  %v6820 = vld [vmem:[%s5 + $0x34] sm:$0xf]
  %v6821 = vld [vmem:[%s5 + $0x38] sm:$0xf]
  %v6822 = vld [vmem:[%s5 + $0x3c] sm:$0xf]
  %v6823 = vld [vmem:[%s5 + $0x40] sm:$0xf]
  %v6824 = vld [vmem:[%s5 + $0x44] sm:$0xf]
  %v6825 = vld [vmem:[%s5 + $0x48] sm:$0xf]
  %v6826 = vld [vmem:[%s5 + $0x4c] sm:$0xf]
  %v6827 = vld [vmem:[%s5 + $0x50] sm:$0xf]
  %v6828 = vld [vmem:[%s5 + $0x54] sm:$0xf]
  %v6829 = vld [vmem:[%s5 + $0x58] sm:$0xf]
  %v6830 = vld [vmem:[%s5 + $0x5c] sm:$0xf]
  %v6831 = vld [vmem:[%s5 + $0x60] sm:$0xf]
  %v6832 = vld [vmem:[%s5 + $0x64] sm:$0xf]
  %v6833 = vld [vmem:[%s5 + $0x68] sm:$0xf]
  %v6834 = vld [vmem:[%s5 + $0x6c] sm:$0xf]
  %v6835 = vld [vmem:[%s5 + $0x70] sm:$0xf]
  %v6836 = vld [vmem:[%s5 + $0x74] sm:$0xf]
  %v6837 = vld [vmem:[%s5 + $0x78] sm:$0xf]
  %v6838 = vld [vmem:[%s5 + $0x7c] sm:$0xf]
  %v6839 = vld [vmem:[%s5 + $0x80] sm:$0xf]
  %v6840 = vld [vmem:[%s5 + $0x84] sm:$0xf]
  %v6841 = vld [vmem:[%s5 + $0x88] sm:$0xf]
  %v6842 = vld [vmem:[%s5 + $0x8c] sm:$0xf]
  %v6843 = vld [vmem:[%s5 + $0x90] sm:$0xf]
  %v6844 = vld [vmem:[%s5 + $0x94] sm:$0xf]
  %v6845 = vld [vmem:[%s5 + $0x98] sm:$0xf]
  %v6846 = vld [vmem:[%s5 + $0x9c] sm:$0xf]
  %v6847 = vld [vmem:[%s5 + $0xa0] sm:$0xf]
  %v6848 = vld [vmem:[%s5 + $0xa4] sm:$0xf]
  %v6849 = vld [vmem:[%s5 + $0xa8] sm:$0xf]
  %v6850 = vld [vmem:[%s5 + $0xac] sm:$0xf]
  %v6851 = vld [vmem:[%s5 + $0xb0] sm:$0xf]
  %v6852 = vld [vmem:[%s5 + $0xb4] sm:$0xf]
  %v6853 = vld [vmem:[%s5 + $0xb8] sm:$0xf]
  %v6854 = vld [vmem:[%s5 + $0xbc] sm:$0xf]
  %v6855 = vld [vmem:[%s5 + $0xc0] sm:$0xf]
  %v6856 = vld [vmem:[%s5 + $0xc4] sm:$0xf]
  %v6857 = vld [vmem:[%s5 + $0xc8] sm:$0xf]
  %v6858 = vld [vmem:[%s5 + $0xcc] sm:$0xf]
  %v6859 = vld [vmem:[%s5 + $0xd0] sm:$0xf]
  %v6860 = vld [vmem:[%s5 + $0xd4] sm:$0xf]
  %v6861 = vld [vmem:[%s5 + $0xd8] sm:$0xf]
  %v6862 = vld [vmem:[%s5 + $0xdc] sm:$0xf]
  %v6863 = vld [vmem:[%s5 + $0xe0] sm:$0xf]
  %v6864 = vld [vmem:[%s5 + $0xe4] sm:$0xf]
  %v6865 = vld [vmem:[%s5 + $0xe8] sm:$0xf]
  %v6866 = vld [vmem:[%s5 + $0xec] sm:$0xf]
  %v6867 = vld [vmem:[%s5 + $0xf0] sm:$0xf]
  %v6868 = vld [vmem:[%s5 + $0xf4] sm:$0xf]
  %v6869 = vld [vmem:[%s5 + $0xf8] sm:$0xf]
  %v6870 = vld [vmem:[%s5 + $0xfc] sm:$0xf]
  %v6871 = vld [vmem:[%s6] sm:$0x1]
  %v6873 = vlaneseq
  %v6874 = vshrl.u32 %v6873, 7
  %v6875 = vsub.s32 0, %v6874
  %v6876 = vrot.slane %v6871, %v6875
  %v6878 = vcombine.low %v6799, %v6806
  %v6879 = vcombine.high %v6799, %v6806
  %v6881 = vunpack.c.l.s4 1983009808
  %v6882 = vunpack.c.0.s8 %v6881
  %v6883 = vlaneseq
  %v6884 = vshrl.u32 %v6883, 7
  %v6885 = vsub.s32 %v6882, %v6884
  %v6886 = vrot.slane %v6878, %v6885
  %v6888 = vunpack.c.l.s4 1983009808
  %v6889 = vunpack.c.0.s8 %v6888
  %v6890 = vlaneseq
  %v6891 = vshrl.u32 %v6890, 7
  %v6892 = vsub.s32 %v6889, %v6891
  %v6893 = vrot.slane %v6879, %v6892
  %v6894 = vcombine.high %v6886, %v6886
  %v6895 = vcombine.high %v6893, %v6893
  %v6964 = vunpack.c.l.b16 %v6807
  %v6965 = vunpack.c.l.b16 %v6808
  %v6966 = vunpack.c.l.b16 %v6809
  %v6967 = vunpack.c.l.b16 %v6810
  %v6968 = vunpack.c.l.b16 %v6811
  %v6969 = vunpack.c.l.b16 %v6812
  %v6970 = vunpack.c.l.b16 %v6813
  %v6971 = vunpack.c.l.b16 %v6814
  %v6972 = vunpack.c.l.b16 %v6815
  %v6973 = vunpack.c.l.b16 %v6816
  %v6974 = vunpack.c.l.b16 %v6817
  %v6975 = vunpack.c.l.b16 %v6818
  %v6976 = vunpack.c.l.b16 %v6819
  %v6977 = vunpack.c.l.b16 %v6820
  %v6978 = vunpack.c.l.b16 %v6821
  %v6979 = vunpack.c.l.b16 %v6822
  %v6980 = vunpack.c.l.b16 %v6823
  %v6981 = vunpack.c.l.b16 %v6824
  %v6982 = vunpack.c.l.b16 %v6825
  %v6983 = vunpack.c.l.b16 %v6826
  %v6984 = vunpack.c.l.b16 %v6827
  %v6985 = vunpack.c.l.b16 %v6828
  %v6986 = vunpack.c.l.b16 %v6829
  %v6987 = vunpack.c.l.b16 %v6830
  %v6988 = vunpack.c.l.b16 %v6831
  %v6989 = vunpack.c.l.b16 %v6832
  %v6990 = vunpack.c.l.b16 %v6833
  %v6991 = vunpack.c.l.b16 %v6834
  %v6992 = vunpack.c.l.b16 %v6835
  %v6993 = vunpack.c.l.b16 %v6836
  %v6994 = vunpack.c.l.b16 %v6837
  %v6995 = vunpack.c.l.b16 %v6838
  %v6996 = vunpack.c.l.b16 %v6839
  %v6997 = vunpack.c.l.b16 %v6840
  %v6998 = vunpack.c.l.b16 %v6841
  %v6999 = vunpack.c.l.b16 %v6842
  %v7000 = vunpack.c.l.b16 %v6843
  %v7001 = vunpack.c.l.b16 %v6844
  %v7002 = vunpack.c.l.b16 %v6845
  %v7003 = vunpack.c.l.b16 %v6846
  %v7004 = vunpack.c.l.b16 %v6847
  %v7005 = vunpack.c.l.b16 %v6848
  %v7006 = vunpack.c.l.b16 %v6849
  %v7007 = vunpack.c.l.b16 %v6850
  %v7008 = vunpack.c.l.b16 %v6851
  %v7009 = vunpack.c.l.b16 %v6852
  %v7010 = vunpack.c.l.b16 %v6853
  %v7011 = vunpack.c.l.b16 %v6854
  %v7012 = vunpack.c.l.b16 %v6855
  %v7013 = vunpack.c.l.b16 %v6856
  %v7014 = vunpack.c.l.b16 %v6857
  %v7015 = vunpack.c.l.b16 %v6858
  %v7016 = vunpack.c.l.b16 %v6859
  %v7017 = vunpack.c.l.b16 %v6860
  %v7018 = vunpack.c.l.b16 %v6861
  %v7019 = vunpack.c.l.b16 %v6862
  %v7020 = vunpack.c.l.b16 %v6863
  %v7021 = vunpack.c.l.b16 %v6864
  %v7022 = vunpack.c.l.b16 %v6865
  %v7023 = vunpack.c.l.b16 %v6866
  %v7024 = vunpack.c.l.b16 %v6867
  %v7025 = vunpack.c.l.b16 %v6868
  %v7026 = vunpack.c.l.b16 %v6869
  %v7027 = vunpack.c.l.b16 %v6870
  %v7028 = vpack.c.b16 %v6965, %v6964
  %v7029 = vpack.c.b16 %v6967, %v6966
  %v7030 = vpack.c.b16 %v6969, %v6968
  %v7031 = vpack.c.b16 %v6971, %v6970
  %v7032 = vpack.c.b16 %v6973, %v6972
  %v7033 = vpack.c.b16 %v6975, %v6974
  %v7034 = vpack.c.b16 %v6977, %v6976
  %v7035 = vpack.c.b16 %v6979, %v6978
  %v7036 = vpack.c.b16 %v6981, %v6980
  %v7037 = vpack.c.b16 %v6983, %v6982
  %v7038 = vpack.c.b16 %v6985, %v6984
  %v7039 = vpack.c.b16 %v6987, %v6986
  %v7040 = vpack.c.b16 %v6989, %v6988
  %v7041 = vpack.c.b16 %v6991, %v6990
  %v7042 = vpack.c.b16 %v6993, %v6992
  %v7043 = vpack.c.b16 %v6995, %v6994
  %v7044 = vpack.c.b16 %v6997, %v6996
  %v7045 = vpack.c.b16 %v6999, %v6998
  %v7046 = vpack.c.b16 %v7001, %v7000
  %v7047 = vpack.c.b16 %v7003, %v7002
  %v7048 = vpack.c.b16 %v7005, %v7004
  %v7049 = vpack.c.b16 %v7007, %v7006
  %v7050 = vpack.c.b16 %v7009, %v7008
  %v7051 = vpack.c.b16 %v7011, %v7010
  %v7052 = vpack.c.b16 %v7013, %v7012
  %v7053 = vpack.c.b16 %v7015, %v7014
  %v7054 = vpack.c.b16 %v7017, %v7016
  %v7055 = vpack.c.b16 %v7019, %v7018
  %v7056 = vpack.c.b16 %v7021, %v7020
  %v7057 = vpack.c.b16 %v7023, %v7022
  %v7058 = vpack.c.b16 %v7025, %v7024
  %v7059 = vpack.c.b16 %v7027, %v7026
  %7092 = vmatprep.subr.bf16.mxu0 0
  %7093 = vmatpush1.bf16.msra.mxu0 %v7028
  %7094 = vmatprep.subr.bf16.mxu0 0
  %7095 = vmatpush1.bf16.msra.mxu0 %v7029
  %7096 = vmatprep.subr.bf16.mxu0 0
  %7097 = vmatpush1.bf16.msra.mxu0 %v7030
  %7098 = vmatprep.subr.bf16.mxu0 0
  %7099 = vmatpush1.bf16.msra.mxu0 %v7031
  %7100 = vmatprep.subr.bf16.mxu0 0
  %7101 = vmatpush1.bf16.msra.mxu0 %v7032
  %7102 = vmatprep.subr.bf16.mxu0 0
  %7103 = vmatpush1.bf16.msra.mxu0 %v7033
  %7104 = vmatprep.subr.bf16.mxu0 0
  %7105 = vmatpush1.bf16.msra.mxu0 %v7034
  %7106 = vmatprep.subr.bf16.mxu0 0
  %7107 = vmatpush1.bf16.msra.mxu0 %v7035
  %7108 = vmatprep.subr.bf16.mxu0 0
  %7109 = vmatpush1.bf16.msra.mxu0 %v7036
  %7110 = vmatprep.subr.bf16.mxu0 0
  %7111 = vmatpush1.bf16.msra.mxu0 %v7037
  %7112 = vmatprep.subr.bf16.mxu0 0
  %7113 = vmatpush1.bf16.msra.mxu0 %v7038
  %7114 = vmatprep.subr.bf16.mxu0 0
  %7115 = vmatpush1.bf16.msra.mxu0 %v7039
  %7116 = vmatprep.subr.bf16.mxu0 0
  %7117 = vmatpush1.bf16.msra.mxu0 %v7040
  %7118 = vmatprep.subr.bf16.mxu0 0
  %7119 = vmatpush1.bf16.msra.mxu0 %v7041
  %7120 = vmatprep.subr.bf16.mxu0 0
  %7121 = vmatpush1.bf16.msra.mxu0 %v7042
  %7122 = vmatprep.subr.bf16.mxu0 0
  %7123 = vmatpush1.bf16.msra.mxu0 %v7043
  %7124 = vmatprep.mubr.bf16.mxu0 %v6894
  %7125 = vmatmul.mubr.bf16.gmra.mrb[0].mxu0 %v6886
  %v7126 = vpop.f32.mrb[0].mxu0
  %v7127 = vadd.f32 %v6876, %v7126
  %v7128 = vpop.f32.mrb[0].mxu0
  %v7129 = vpop.f32.mrb[0].mxu0
  %v7130 = vpop.f32.mrb[0].mxu0
  %7131 = vdwg.mxu0
  %7132 = vmatprep.subr.bf16.mxu0 0
  %7133 = vmatpush1.bf16.msra.mxu0 %v7044
  %7134 = vmatprep.subr.bf16.mxu0 0
  %7135 = vmatpush1.bf16.msra.mxu0 %v7045
  %7136 = vmatprep.subr.bf16.mxu0 0
  %7137 = vmatpush1.bf16.msra.mxu0 %v7046
  %7138 = vmatprep.subr.bf16.mxu0 0
  %7139 = vmatpush1.bf16.msra.mxu0 %v7047
  %7140 = vmatprep.subr.bf16.mxu0 0
  %7141 = vmatpush1.bf16.msra.mxu0 %v7048
  %7142 = vmatprep.subr.bf16.mxu0 0
  %7143 = vmatpush1.bf16.msra.mxu0 %v7049
  %7144 = vmatprep.subr.bf16.mxu0 0
  %7145 = vmatpush1.bf16.msra.mxu0 %v7050
  %7146 = vmatprep.subr.bf16.mxu0 0
  %7147 = vmatpush1.bf16.msra.mxu0 %v7051
  %7148 = vmatprep.subr.bf16.mxu0 0
  %7149 = vmatpush1.bf16.msra.mxu0 %v7052
  %7150 = vmatprep.subr.bf16.mxu0 0
  %7151 = vmatpush1.bf16.msra.mxu0 %v7053
  %7152 = vmatprep.subr.bf16.mxu0 0
  %7153 = vmatpush1.bf16.msra.mxu0 %v7054
  %7154 = vmatprep.subr.bf16.mxu0 0
  %7155 = vmatpush1.bf16.msra.mxu0 %v7055
  %7156 = vmatprep.subr.bf16.mxu0 0
  %7157 = vmatpush1.bf16.msra.mxu0 %v7056
  %7158 = vmatprep.subr.bf16.mxu0 0
  %7159 = vmatpush1.bf16.msra.mxu0 %v7057
  %7160 = vmatprep.subr.bf16.mxu0 0
  %7161 = vmatpush1.bf16.msra.mxu0 %v7058
  %7162 = vmatprep.subr.bf16.mxu0 0
  %7163 = vmatpush1.bf16.msra.mxu0 %v7059
  %7164 = vmatprep.mubr.bf16.mxu0 %v6895
  %7165 = vmatmul.mubr.bf16.gmra.mrb[0].mxu0 %v6893
  %v7166 = vpop.f32.mrb[0].mxu0
  %v7167 = vadd.f32 %v7127, %v7166
  %v7168 = vpop.f32.mrb[0].mxu0
  %v7169 = vpop.f32.mrb[0].mxu0
  %v7170 = vpop.f32.mrb[0].mxu0
  %7171 = vdwg.mxu0
  %v7172 = vmax.f32 %v7167, 0.0
  %v7173 = vpack.c.bf16 %v7172, %v7172
  %v7174 = vld [vmem:[%s7] sm:$0xf]
  %v7175 = vld [vmem:[%s7 + $0x4] sm:$0xf]
  %v7176 = vld [vmem:[%s7 + $0x8] sm:$0xf]
  %v7177 = vld [vmem:[%s7 + $0xc] sm:$0xf]
  %v7178 = vld [vmem:[%s7 + $0x10] sm:$0xf]
  %v7179 = vld [vmem:[%s7 + $0x14] sm:$0xf]
  %v7180 = vld [vmem:[%s7 + $0x18] sm:$0xf]
  %v7181 = vld [vmem:[%s7 + $0x1c] sm:$0xf]
  %v7182 = vld [vmem:[%s8] sm:$0x1]
  %v7184 = vlaneseq
  %v7185 = vshrl.u32 %v7184, 7
  %v7186 = vsub.s32 0, %v7185
  %v7187 = vrot.slane %v7182, %v7186
  %v7197 = vunpack.c.l.b16 %v7174
  %v7198 = vunpack.c.l.b16 %v7175
  %v7199 = vunpack.c.l.b16 %v7176
  %v7200 = vunpack.c.l.b16 %v7177
  %v7201 = vunpack.c.l.b16 %v7178
  %v7202 = vunpack.c.l.b16 %v7179
  %v7203 = vunpack.c.l.b16 %v7180
  %v7204 = vunpack.c.l.b16 %v7181
  %v7205 = vpack.c.b16 %v7198, %v7197
  %v7206 = vpack.c.b16 %v7200, %v7199
  %v7207 = vpack.c.b16 %v7202, %v7201
  %v7208 = vpack.c.b16 %v7204, %v7203
  %vm7213 = vcmask 523264
  %v7215 = vsel %vm7213, %v7173, 0
  %7217 = vmatprep.subr.bf16.mxu0 0
  %7218 = vmatpush1.bf16.msra.mxu0 %v7205
  %7219 = vmatprep.subr.bf16.mxu0 0
  %7220 = vmatpush1.bf16.msra.mxu0 %v7206
  %7221 = vmatprep.subr.bf16.mxu0 0
  %7222 = vmatpush1.bf16.msra.mxu0 %v7207
  %7223 = vmatprep.subr.bf16.mxu0 0
  %7224 = vmatpush1.bf16.msra.mxu0 %v7208
  %7225 = vmatprep.subr.bf16.mxu0 0
  %7226 = vmatpush1.bf16.msra.mxu0 0
  %7227 = vmatprep.subr.bf16.mxu0 0
  %7228 = vmatpush1.bf16.msra.mxu0 0
  %7229 = vmatprep.subr.bf16.mxu0 0
  %7230 = vmatpush1.bf16.msra.mxu0 0
  %7231 = vmatprep.subr.bf16.mxu0 0
  %7232 = vmatpush1.bf16.msra.mxu0 0
  %7233 = vmatprep.subr.bf16.mxu0 0
  %7234 = vmatpush1.bf16.msra.mxu0 0
  %7235 = vmatprep.subr.bf16.mxu0 0
  %7236 = vmatpush1.bf16.msra.mxu0 0
  %7237 = vmatprep.subr.bf16.mxu0 0
  %7238 = vmatpush1.bf16.msra.mxu0 0
  %7239 = vmatprep.subr.bf16.mxu0 0
  %7240 = vmatpush1.bf16.msra.mxu0 0
  %7241 = vmatprep.subr.bf16.mxu0 0
  %7242 = vmatpush1.bf16.msra.mxu0 0
  %7243 = vmatprep.subr.bf16.mxu0 0
  %7244 = vmatpush1.bf16.msra.mxu0 0
  %7245 = vmatprep.subr.bf16.mxu0 0
  %7246 = vmatpush1.bf16.msra.mxu0 0
  %7247 = vmatprep.subr.bf16.mxu0 0
  %7248 = vmatpush1.bf16.msra.mxu0 0
  %7249 = vmatprep.mubr.bf16.mxu0 0
  %7250 = vmatmul.mubr.bf16.gmra.mrb[0].mxu0 %v7215
  %v7251 = vpop.f32.mrb[0].mxu0
  %v7252 = vadd.f32 %v7187, %v7251
  %v7253 = vpop.f32.mrb[0].mxu0
  %v7254 = vpop.f32.mrb[0].mxu0
  %v7255 = vpop.f32.mrb[0].mxu0
  %7256 = vdwg.mxu0
  %7257 = vmax.xlane.f32.xlu0 %v7252
  %v7258 = vpop.xlane.xlu0 %7257
  %v7259 = vsub.f32 %v7252, %v7258
  %v7260 = vmul.f32 %v7259, 1.442695
  %v7261 = vpow.pop %v7260
  %7262 = vadd.xlane.f32.xlu0 %v7261
  %v7263 = vpop.xlane.xlu0 %7262
  %v7264 = vlog2.pop %v7263
  %v7265 = vmul.f32 %v7264, 0.6931472
  %v7266 = vadd.f32 %v7265, %v7258
  %v7267 = vsub.f32 %v7252, %v7266
  %7268 = vst [vmem:[%s9] sm:$0xff] %v7267
  // Predicated region
  $region38: #{net0_forward.1} parent=0 // pred_check
    _
  $region39: #{net0_forward.1} parent=0 // pred_check_branch
    %7270 = sbr.rel (0) target = $region41
  $region40: #{net0_forward.1} parent=0 // pred_region
    _
  $region41: #{net0_forward.1} parent=0 // pred_fallthru
    _
  // Predicated region
  $region42: #{net0_forward.1} parent=0 // pred_check
    _
  $region43: #{net0_forward.1} parent=0 // pred_check_branch
    %7272 = sbr.rel (0) target = $region45
  $region44: #{net0_forward.1} parent=0 // pred_region
    _
  $region45: #{net0_forward.1} parent=0 // pred_fallthru
    _

</llo_original>
